<compile_context>
chip_gen: v5e
topology: v5e:2x2
jax: 0.10.0
libtpu: 0.0.40
codegen_flags: <defaults>
</compile_context>

<pallas_src>
import numpy as np
import jax
import jax.numpy as jnp
from jax.experimental import pallas as pl
from jax.experimental.pallas import tpu as pltpu

# ---------------------------------------------------------------------------
# Model configuration (matches the module spec):
#   fc1: input_dim -> hidden_dims[0]
#   fc_k (k=2..99): hidden_dims[k-2] -> hidden_dims[k-1]
#   fc100: hidden_dims[99] -> output_dim
# ---------------------------------------------------------------------------
INPUT_DIM = 1
OUTPUT_DIM = 1
HIDDEN = 32
NUM_LAYERS = 100
HIDDEN_DIMS = [HIDDEN] * NUM_LAYERS

DF = 32        # padded feature width (>= every layer's in/out dim)
DH_PAD = 40    # homogeneous width (DF + 1 for the constant-1 coord), sublane-padded
LPAD = 128     # layer count padded to a power of two with identity layers
NPAD = 8       # batch rows (sublane multiple)
BATCH = 8


# ---------------------------------------------------------------------------
# Kernels
# ---------------------------------------------------------------------------
def compose_kernel(a_ref, o_ref, s_ref):
    """One-time log2-depth tree reduction of LPAD homogeneous affine matrices.

    a_ref : (LPAD, DH_PAD, DH_PAD)   per-layer homogeneous matrices (identity pad)
    o_ref : (DH_PAD, DH_PAD)         A_eff = A_1 @ A_2 @ ... @ A_LPAD
    s_ref : (LPAD//2, DH_PAD, DH_PAD) VMEM scratch

    Each level is a set of INDEPENDENT matmuls (no RAW chain inside a level),
    fully unrolled with static ref indices.
    """
    # Level 0: 128 -> 64, reading pairs straight from the input stack.
    for i in range(LPAD // 2):
        s_ref[i] = jnp.dot(a_ref[2 * i], a_ref[2 * i + 1],
                           preferred_element_type=jnp.float32)
    # Levels 1..6: halve in place (writes index i, reads 2i / 2i+1 with 2i >= i,
    # and loads precede the store, so in-place is safe).
    n = LPAD // 2
    while n > 1:
        n //= 2
        for i in range(n):
            s_ref[i] = jnp.dot(s_ref[2 * i], s_ref[2 * i + 1],
                               preferred_element_type=jnp.float32)
    o_ref[...] = s_ref[0]


def forward_kernel(x_ref, a_ref, o_ref):
    """Hot path: the entire 100-layer chain is ONE matmul in homogeneous coords."""
    o_ref[...] = jnp.dot(x_ref[...], a_ref[...],
                         preferred_element_type=jnp.float32)


@jax.jit
def compose_affine_pallas(a_stack):
    return pl.pallas_call(
        compose_kernel,
        out_shape=jax.ShapeDtypeStruct((DH_PAD, DH_PAD), jnp.float32),
        in_specs=[pl.BlockSpec(memory_space=pltpu.MemorySpace.VMEM)],
        out_specs=pl.BlockSpec(memory_space=pltpu.MemorySpace.VMEM),
        scratch_shapes=[pltpu.VMEM((LPAD // 2, DH_PAD, DH_PAD), jnp.float32)],
    )(a_stack)


@jax.jit
def mlp_forward_pallas(x_h, a_eff):
    return pl.pallas_call(
        forward_kernel,
        out_shape=jax.ShapeDtypeStruct((NPAD, DH_PAD), jnp.float32),
        in_specs=[pl.BlockSpec(memory_space=pltpu.MemorySpace.VMEM),
                  pl.BlockSpec(memory_space=pltpu.MemorySpace.VMEM)],
        out_specs=pl.BlockSpec(memory_space=pltpu.MemorySpace.VMEM),
    )(x_h, a_eff)


# ---------------------------------------------------------------------------
# Parameter construction (PyTorch-style init), homogeneous packing, reference
# ---------------------------------------------------------------------------
def layer_dims():
    """(in, out) per layer: [(1,32)] + [(32,32)]*98 + [(32,1)] — 100 layers."""
    dims = [(INPUT_DIM, HIDDEN_DIMS[0])]                        # fc1
    for k in range(1, NUM_LAYERS - 1):                          # fc2 .. fc99
        dims.append((HIDDEN_DIMS[k - 1], HIDDEN_DIMS[k]))
    dims.append((HIDDEN_DIMS[NUM_LAYERS - 1], OUTPUT_DIM))      # fc100
    return dims


def build_params(key):
    """U(-1/sqrt(in), 1/sqrt(in)) params packed into homogeneous (40,40) slabs.

    Layer l occupies  A[l, :fi, :fo] = W_l,  A[l, DF, :fo] = b_l,  A[l, DF, DF] = 1.
    Layers NUM_LAYERS..LPAD-1 are identity (tree padding).
    """
    dims = layer_dims()
    a_np = np.zeros((LPAD, DH_PAD, DH_PAD), np.float32)
    for l in range(NUM_LAYERS, LPAD):
        a_np[l] = np.eye(DH_PAD, dtype=np.float32)
    ws, bs = [], []
    keys = jax.random.split(key, NUM_LAYERS)
    for l, (fi, fo) in enumerate(dims):
        kw, kb = jax.random.split(keys[l])
        bound = 1.0 / np.sqrt(np.float32(fi))
        w = jax.random.uniform(kw, (fi, fo), jnp.float32, -bound, bound)
        b = jax.random.uniform(kb, (fo,), jnp.float32, -bound, bound)
        ws.append(w)
        bs.append(b)
        a_np[l, :fi, :fo] = np.asarray(w)     # weight block, (in, out) layout
        a_np[l, DF, :fo] = np.asarray(b)      # bias row
        a_np[l, DF, DF] = 1.0                 # propagate the homogeneous 1
    return jnp.asarray(a_np), ws, bs


def reference_forward(x, ws, bs):
    """Pure-JAX reference with exact PyTorch forward semantics (sequential)."""
    h = x
    for w, b in zip(ws, bs):
        h = h @ w + b
    return h


if __name__ == "__main__":
    key = jax.random.PRNGKey(0)
    k_params, k_x = jax.random.split(key)

    # Small batch consistent with `x = torch.randn(N, input_dim)`.
    x = jax.random.normal(k_x, (BATCH, INPUT_DIM), jnp.float32)
    a_stack, ws, bs = build_params(k_params)

    # One-time precompose of the whole 100-layer chain (log-depth tree kernel).
    a_eff = jax.block_until_ready(compose_affine_pallas(a_stack))

    # Homogeneous-coordinate input slab: [x | 0-pad | 1 | 0-pad].
    x_h = jnp.zeros((NPAD, DH_PAD), jnp.float32)
    x_h = x_h.at[:BATCH, :INPUT_DIM].set(x)
    x_h = x_h.at[:, DF].set(1.0)

    out_pad = jax.block_until_ready(mlp_forward_pallas(x_h, a_eff))
    y_kernel = out_pad[:BATCH, :OUTPUT_DIM]

    y_ref = reference_forward(x, ws, bs)

    assert y_kernel.shape == (BATCH, OUTPUT_DIM)
    assert jnp.allclose(y_kernel, y_ref, atol=1e-4, rtol=1e-4), (
        "Pallas output does not match JAX reference"
    )
    print("KERNEL_OK")
</pallas_src>

<mosaic_0001>
module attributes {stable_mosaic.version = 11 : i64} {
  func.func @compose_kernel(%arg0: memref<128x40x40xf32, #tpu.memory_space<vmem>>, %arg1: memref<40x40xf32, #tpu.memory_space<vmem>>, %arg2: memref<64x40x40xf32, #tpu.memory_space<vmem>>) attributes {dimension_semantics = [], scalar_prefetch = 0 : i64, scratch_operands = 1 : i64, tpu.core_type = #tpu.core_type<tc>} {
    %c0 = arith.constant 0 : index
    %c0_0 = arith.constant 0 : index
    %c0_1 = arith.constant 0 : index
    %0 = vector.load %arg0[%c0, %c0_0, %c0_1] : memref<128x40x40xf32, #tpu.memory_space<vmem>>, vector<1x40x40xf32>
    %1 = vector.shape_cast %0 : vector<1x40x40xf32> to vector<40x40xf32>
    %c1 = arith.constant 1 : index
    %c0_2 = arith.constant 0 : index
    %c0_3 = arith.constant 0 : index
    %2 = vector.load %arg0[%c1, %c0_2, %c0_3] : memref<128x40x40xf32, #tpu.memory_space<vmem>>, vector<1x40x40xf32>
    %3 = vector.shape_cast %2 : vector<1x40x40xf32> to vector<40x40xf32>
    %cst = arith.constant dense<0.000000e+00> : vector<40x40xf32>
    %4 = tpu.matmul %1, %3, %cst {dimension_numbers = #tpu.dot_dimension_numbers<[1], [0], [0], [1], [0, 0, 1, 1], [], []>} : vector<40x40xf32>, vector<40x40xf32>, vector<40x40xf32> -> vector<40x40xf32>
    %c0_4 = arith.constant 0 : index
    %c0_5 = arith.constant 0 : index
    %c0_6 = arith.constant 0 : index
    %5 = vector.load %arg2[%c0_4, %c0_5, %c0_6] : memref<64x40x40xf32, #tpu.memory_space<vmem>>, vector<1x40x40xf32>
    %6 = vector.shape_cast %5 : vector<1x40x40xf32> to vector<40x40xf32>
    %7 = vector.shape_cast %4 : vector<40x40xf32> to vector<1x40x40xf32>
    tpu.vector_store %arg2[%c0_4, %c0_5, %c0_6], %7 {strides = array<i32>} : memref<64x40x40xf32, #tpu.memory_space<vmem>>, vector<1x40x40xf32>,
    %c2 = arith.constant 2 : index
    %c0_7 = arith.constant 0 : index
    %c0_8 = arith.constant 0 : index
    %8 = vector.load %arg0[%c2, %c0_7, %c0_8] : memref<128x40x40xf32, #tpu.memory_space<vmem>>, vector<1x40x40xf32>
    %9 = vector.shape_cast %8 : vector<1x40x40xf32> to vector<40x40xf32>
    %c3 = arith.constant 3 : index
    %c0_9 = arith.constant 0 : index
    %c0_10 = arith.constant 0 : index
    %10 = vector.load %arg0[%c3, %c0_9, %c0_10] : memref<128x40x40xf32, #tpu.memory_space<vmem>>, vector<1x40x40xf32>
    %11 = vector.shape_cast %10 : vector<1x40x40xf32> to vector<40x40xf32>
    %cst_11 = arith.constant dense<0.000000e+00> : vector<40x40xf32>
    %12 = tpu.matmul %9, %11, %cst_11 {dimension_numbers = #tpu.dot_dimension_numbers<[1], [0], [0], [1], [0, 0, 1, 1], [], []>} : vector<40x40xf32>, vector<40x40xf32>, vector<40x40xf32> -> vector<40x40xf32>
    %c1_12 = arith.constant 1 : index
    %c0_13 = arith.constant 0 : index
    %c0_14 = arith.constant 0 : index
    %13 = vector.load %arg2[%c1_12, %c0_13, %c0_14] : memref<64x40x40xf32, #tpu.memory_space<vmem>>, vector<1x40x40xf32>
    %14 = vector.shape_cast %13 : vector<1x40x40xf32> to vector<40x40xf32>
    %15 = vector.shape_cast %12 : vector<40x40xf32> to vector<1x40x40xf32>
    tpu.vector_store %arg2[%c1_12, %c0_13, %c0_14], %15 {strides = array<i32>} : memref<64x40x40xf32, #tpu.memory_space<vmem>>, vector<1x40x40xf32>,
    %c4 = arith.constant 4 : index
    %c0_15 = arith.constant 0 : index
    %c0_16 = arith.constant 0 : index
    %16 = vector.load %arg0[%c4, %c0_15, %c0_16] : memref<128x40x40xf32, #tpu.memory_space<vmem>>, vector<1x40x40xf32>
    %17 = vector.shape_cast %16 : vector<1x40x40xf32> to vector<40x40xf32>
    %c5 = arith.constant 5 : index
    %c0_17 = arith.constant 0 : index
    %c0_18 = arith.constant 0 : index
    %18 = vector.load %arg0[%c5, %c0_17, %c0_18] : memref<128x40x40xf32, #tpu.memory_space<vmem>>, vector<1x40x40xf32>
    %19 = vector.shape_cast %18 : vector<1x40x40xf32> to vector<40x40xf32>
    %cst_19 = arith.constant dense<0.000000e+00> : vector<40x40xf32>
    %20 = tpu.matmul %17, %19, %cst_19 {dimension_numbers = #tpu.dot_dimension_numbers<[1], [0], [0], [1], [0, 0, 1, 1], [], []>} : vector<40x40xf32>, vector<40x40xf32>, vector<40x40xf32> -> vector<40x40xf32>
    %c2_20 = arith.constant 2 : index
    %c0_21 = arith.constant 0 : index
    %c0_22 = arith.constant 0 : index
    %21 = vector.load %arg2[%c2_20, %c0_21, %c0_22] : memref<64x40x40xf32, #tpu.memory_space<vmem>>, vector<1x40x40xf32>
    %22 = vector.shape_cast %21 : vector<1x40x40xf32> to vector<40x40xf32>
    %23 = vector.shape_cast %20 : vector<40x40xf32> to vector<1x40x40xf32>
    tpu.vector_store %arg2[%c2_20, %c0_21, %c0_22], %23 {strides = array<i32>} : memref<64x40x40xf32, #tpu.memory_space<vmem>>, vector<1x40x40xf32>,
    %c6 = arith.constant 6 : index
    %c0_23 = arith.constant 0 : index
    %c0_24 = arith.constant 0 : index
    %24 = vector.load %arg0[%c6, %c0_23, %c0_24] : memref<128x40x40xf32, #tpu.memory_space<vmem>>, vector<1x40x40xf32>
    %25 = vector.shape_cast %24 : vector<1x40x40xf32> to vector<40x40xf32>
    %c7 = arith.constant 7 : index
    %c0_25 = arith.constant 0 : index
    %c0_26 = arith.constant 0 : index
    %26 = vector.load %arg0[%c7, %c0_25, %c0_26] : memref<128x40x40xf32, #tpu.memory_space<vmem>>, vector<1x40x40xf32>
    %27 = vector.shape_cast %26 : vector<1x40x40xf32> to vector<40x40xf32>
    %cst_27 = arith.constant dense<0.000000e+00> : vector<40x40xf32>
    %28 = tpu.matmul %25, %27, %cst_27 {dimension_numbers = #tpu.dot_dimension_numbers<[1], [0], [0], [1], [0, 0, 1, 1], [], []>} : vector<40x40xf32>, vector<40x40xf32>, vector<40x40xf32> -> vector<40x40xf32>
    %c3_28 = arith.constant 3 : index
    %c0_29 = arith.constant 0 : index
    %c0_30 = arith.constant 0 : index
    %29 = vector.load %arg2[%c3_28, %c0_29, %c0_30] : memref<64x40x40xf32, #tpu.memory_space<vmem>>, vector<1x40x40xf32>
    %30 = vector.shape_cast %29 : vector<1x40x40xf32> to vector<40x40xf32>
    %31 = vector.shape_cast %28 : vector<40x40xf32> to vector<1x40x40xf32>
    tpu.vector_store %arg2[%c3_28, %c0_29, %c0_30], %31 {strides = array<i32>} : memref<64x40x40xf32, #tpu.memory_space<vmem>>, vector<1x40x40xf32>,
    %c8 = arith.constant 8 : index
    %c0_31 = arith.constant 0 : index
    %c0_32 = arith.constant 0 : index
    %32 = vector.load %arg0[%c8, %c0_31, %c0_32] : memref<128x40x40xf32, #tpu.memory_space<vmem>>, vector<1x40x40xf32>
    %33 = vector.shape_cast %32 : vector<1x40x40xf32> to vector<40x40xf32>
    %c9 = arith.constant 9 : index
    %c0_33 = arith.constant 0 : index
    %c0_34 = arith.constant 0 : index
    %34 = vector.load %arg0[%c9, %c0_33, %c0_34] : memref<128x40x40xf32, #tpu.memory_space<vmem>>, vector<1x40x40xf32>
    %35 = vector.shape_cast %34 : vector<1x40x40xf32> to vector<40x40xf32>
    %cst_35 = arith.constant dense<0.000000e+00> : vector<40x40xf32>
    %36 = tpu.matmul %33, %35, %cst_35 {dimension_numbers = #tpu.dot_dimension_numbers<[1], [0], [0], [1], [0, 0, 1, 1], [], []>} : vector<40x40xf32>, vector<40x40xf32>, vector<40x40xf32> -> vector<40x40xf32>
    %c4_36 = arith.constant 4 : index
    %c0_37 = arith.constant 0 : index
    %c0_38 = arith.constant 0 : index
    %37 = vector.load %arg2[%c4_36, %c0_37, %c0_38] : memref<64x40x40xf32, #tpu.memory_space<vmem>>, vector<1x40x40xf32>
    %38 = vector.shape_cast %37 : vector<1x40x40xf32> to vector<40x40xf32>
    %39 = vector.shape_cast %36 : vector<40x40xf32> to vector<1x40x40xf32>
    tpu.vector_store %arg2[%c4_36, %c0_37, %c0_38], %39 {strides = array<i32>} : memref<64x40x40xf32, #tpu.memory_space<vmem>>, vector<1x40x40xf32>,
    %c10 = arith.constant 10 : index
    %c0_39 = arith.constant 0 : index
    %c0_40 = arith.constant 0 : index
    %40 = vector.load %arg0[%c10, %c0_39, %c0_40] : memref<128x40x40xf32, #tpu.memory_space<vmem>>, vector<1x40x40xf32>
    %41 = vector.shape_cast %40 : vector<1x40x40xf32> to vector<40x40xf32>
    %c11 = arith.constant 11 : index
    %c0_41 = arith.constant 0 : index
    %c0_42 = arith.constant 0 : index
    %42 = vector.load %arg0[%c11, %c0_41, %c0_42] : memref<128x40x40xf32, #tpu.memory_space<vmem>>, vector<1x40x40xf32>
    %43 = vector.shape_cast %42 : vector<1x40x40xf32> to vector<40x40xf32>
    %cst_43 = arith.constant dense<0.000000e+00> : vector<40x40xf32>
    %44 = tpu.matmul %41, %43, %cst_43 {dimension_numbers = #tpu.dot_dimension_numbers<[1], [0], [0], [1], [0, 0, 1, 1], [], []>} : vector<40x40xf32>, vector<40x40xf32>, vector<40x40xf32> -> vector<40x40xf32>
    %c5_44 = arith.constant 5 : index
    %c0_45 = arith.constant 0 : index
    %c0_46 = arith.constant 0 : index
    %45 = vector.load %arg2[%c5_44, %c0_45, %c0_46] : memref<64x40x40xf32, #tpu.memory_space<vmem>>, vector<1x40x40xf32>
    %46 = vector.shape_cast %45 : vector<1x40x40xf32> to vector<40x40xf32>
    %47 = vector.shape_cast %44 : vector<40x40xf32> to vector<1x40x40xf32>
    tpu.vector_store %arg2[%c5_44, %c0_45, %c0_46], %47 {strides = array<i32>} : memref<64x40x40xf32, #tpu.memory_space<vmem>>, vector<1x40x40xf32>,
    %c12 = arith.constant 12 : index
    %c0_47 = arith.constant 0 : index
    %c0_48 = arith.constant 0 : index
    %48 = vector.load %arg0[%c12, %c0_47, %c0_48] : memref<128x40x40xf32, #tpu.memory_space<vmem>>, vector<1x40x40xf32>
    %49 = vector.shape_cast %48 : vector<1x40x40xf32> to vector<40x40xf32>
    %c13 = arith.constant 13 : index
    %c0_49 = arith.constant 0 : index
    %c0_50 = arith.constant 0 : index
    %50 = vector.load %arg0[%c13, %c0_49, %c0_50] : memref<128x40x40xf32, #tpu.memory_space<vmem>>, vector<1x40x40xf32>
    %51 = vector.shape_cast %50 : vector<1x40x40xf32> to vector<40x40xf32>
    %cst_51 = arith.constant dense<0.000000e+00> : vector<40x40xf32>
    %52 = tpu.matmul %49, %51, %cst_51 {dimension_numbers = #tpu.dot_dimension_numbers<[1], [0], [0], [1], [0, 0, 1, 1], [], []>} : vector<40x40xf32>, vector<40x40xf32>, vector<40x40xf32> -> vector<40x40xf32>
    %c6_52 = arith.constant 6 : index
    %c0_53 = arith.constant 0 : index
    %c0_54 = arith.constant 0 : index
    %53 = vector.load %arg2[%c6_52, %c0_53, %c0_54] : memref<64x40x40xf32, #tpu.memory_space<vmem>>, vector<1x40x40xf32>
    %54 = vector.shape_cast %53 : vector<1x40x40xf32> to vector<40x40xf32>
    %55 = vector.shape_cast %52 : vector<40x40xf32> to vector<1x40x40xf32>
    tpu.vector_store %arg2[%c6_52, %c0_53, %c0_54], %55 {strides = array<i32>} : memref<64x40x40xf32, #tpu.memory_space<vmem>>, vector<1x40x40xf32>,
    %c14 = arith.constant 14 : index
    %c0_55 = arith.constant 0 : index
    %c0_56 = arith.constant 0 : index
    %56 = vector.load %arg0[%c14, %c0_55, %c0_56] : memref<128x40x40xf32, #tpu.memory_space<vmem>>, vector<1x40x40xf32>
    %57 = vector.shape_cast %56 : vector<1x40x40xf32> to vector<40x40xf32>
    %c15 = arith.constant 15 : index
    %c0_57 = arith.constant 0 : index
    %c0_58 = arith.constant 0 : index
    %58 = vector.load %arg0[%c15, %c0_57, %c0_58] : memref<128x40x40xf32, #tpu.memory_space<vmem>>, vector<1x40x40xf32>
    %59 = vector.shape_cast %58 : vector<1x40x40xf32> to vector<40x40xf32>
    %cst_59 = arith.constant dense<0.000000e+00> : vector<40x40xf32>
    %60 = tpu.matmul %57, %59, %cst_59 {dimension_numbers = #tpu.dot_dimension_numbers<[1], [0], [0], [1], [0, 0, 1, 1], [], []>} : vector<40x40xf32>, vector<40x40xf32>, vector<40x40xf32> -> vector<40x40xf32>
    %c7_60 = arith.constant 7 : index
    %c0_61 = arith.constant 0 : index
    %c0_62 = arith.constant 0 : index
    %61 = vector.load %arg2[%c7_60, %c0_61, %c0_62] : memref<64x40x40xf32, #tpu.memory_space<vmem>>, vector<1x40x40xf32>
    %62 = vector.shape_cast %61 : vector<1x40x40xf32> to vector<40x40xf32>
    %63 = vector.shape_cast %60 : vector<40x40xf32> to vector<1x40x40xf32>
    tpu.vector_store %arg2[%c7_60, %c0_61, %c0_62], %63 {strides = array<i32>} : memref<64x40x40xf32, #tpu.memory_space<vmem>>, vector<1x40x40xf32>,
    %c16 = arith.constant 16 : index
    %c0_63 = arith.constant 0 : index
    %c0_64 = arith.constant 0 : index
    %64 = vector.load %arg0[%c16, %c0_63, %c0_64] : memref<128x40x40xf32, #tpu.memory_space<vmem>>, vector<1x40x40xf32>
    %65 = vector.shape_cast %64 : vector<1x40x40xf32> to vector<40x40xf32>
    %c17 = arith.constant 17 : index
    %c0_65 = arith.constant 0 : index
    %c0_66 = arith.constant 0 : index
    %66 = vector.load %arg0[%c17, %c0_65, %c0_66] : memref<128x40x40xf32, #tpu.memory_space<vmem>>, vector<1x40x40xf32>
    %67 = vector.shape_cast %66 : vector<1x40x40xf32> to vector<40x40xf32>
    %cst_67 = arith.constant dense<0.000000e+00> : vector<40x40xf32>
    %68 = tpu.matmul %65, %67, %cst_67 {dimension_numbers = #tpu.dot_dimension_numbers<[1], [0], [0], [1], [0, 0, 1, 1], [], []>} : vector<40x40xf32>, vector<40x40xf32>, vector<40x40xf32> -> vector<40x40xf32>
    %c8_68 = arith.constant 8 : index
    %c0_69 = arith.constant 0 : index
    %c0_70 = arith.constant 0 : index
    %69 = vector.load %arg2[%c8_68, %c0_69, %c0_70] : memref<64x40x40xf32, #tpu.memory_space<vmem>>, vector<1x40x40xf32>
    %70 = vector.shape_cast %69 : vector<1x40x40xf32> to vector<40x40xf32>
    %71 = vector.shape_cast %68 : vector<40x40xf32> to vector<1x40x40xf32>
    tpu.vector_store %arg2[%c8_68, %c0_69, %c0_70], %71 {strides = array<i32>} : memref<64x40x40xf32, #tpu.memory_space<vmem>>, vector<1x40x40xf32>,
    %c18 = arith.constant 18 : index
    %c0_71 = arith.constant 0 : index
    %c0_72 = arith.constant 0 : index
    %72 = vector.load %arg0[%c18, %c0_71, %c0_72] : memref<128x40x40xf32, #tpu.memory_space<vmem>>, vector<1x40x40xf32>
    %73 = vector.shape_cast %72 : vector<1x40x40xf32> to vector<40x40xf32>
    %c19 = arith.constant 19 : index
    %c0_73 = arith.constant 0 : index
    %c0_74 = arith.constant 0 : index
    %74 = vector.load %arg0[%c19, %c0_73, %c0_74] : memref<128x40x40xf32, #tpu.memory_space<vmem>>, vector<1x40x40xf32>
    %75 = vector.shape_cast %74 : vector<1x40x40xf32> to vector<40x40xf32>
    %cst_75 = arith.constant dense<0.000000e+00> : vector<40x40xf32>
    %76 = tpu.matmul %73, %75, %cst_75 {dimension_numbers = #tpu.dot_dimension_numbers<[1], [0], [0], [1], [0, 0, 1, 1], [], []>} : vector<40x40xf32>, vector<40x40xf32>, vector<40x40xf32> -> vector<40x40xf32>
    %c9_76 = arith.constant 9 : index
    %c0_77 = arith.constant 0 : index
    %c0_78 = arith.constant 0 : index
    %77 = vector.load %arg2[%c9_76, %c0_77, %c0_78] : memref<64x40x40xf32, #tpu.memory_space<vmem>>, vector<1x40x40xf32>
    %78 = vector.shape_cast %77 : vector<1x40x40xf32> to vector<40x40xf32>
    %79 = vector.shape_cast %76 : vector<40x40xf32> to vector<1x40x40xf32>
    tpu.vector_store %arg2[%c9_76, %c0_77, %c0_78], %79 {strides = array<i32>} : memref<64x40x40xf32, #tpu.memory_space<vmem>>, vector<1x40x40xf32>,
    %c20 = arith.constant 20 : index
    %c0_79 = arith.constant 0 : index
    %c0_80 = arith.constant 0 : index
    %80 = vector.load %arg0[%c20, %c0_79, %c0_80] : memref<128x40x40xf32, #tpu.memory_space<vmem>>, vector<1x40x40xf32>
    %81 = vector.shape_cast %80 : vector<1x40x40xf32> to vector<40x40xf32>
    %c21 = arith.constant 21 : index
    %c0_81 = arith.constant 0 : index
    %c0_82 = arith.constant 0 : index
    %82 = vector.load %arg0[%c21, %c0_81, %c0_82] : memref<128x40x40xf32, #tpu.memory_space<vmem>>, vector<1x40x40xf32>
    %83 = vector.shape_cast %82 : vector<1x40x40xf32> to vector<40x40xf32>
    %cst_83 = arith.constant dense<0.000000e+00> : vector<40x40xf32>
    %84 = tpu.matmul %81, %83, %cst_83 {dimension_numbers = #tpu.dot_dimension_numbers<[1], [0], [0], [1], [0, 0, 1, 1], [], []>} : vector<40x40xf32>, vector<40x40xf32>, vector<40x40xf32> -> vector<40x40xf32>
    %c10_84 = arith.constant 10 : index
    %c0_85 = arith.constant 0 : index
    %c0_86 = arith.constant 0 : index
    %85 = vector.load %arg2[%c10_84, %c0_85, %c0_86] : memref<64x40x40xf32, #tpu.memory_space<vmem>>, vector<1x40x40xf32>
    %86 = vector.shape_cast %85 : vector<1x40x40xf32> to vector<40x40xf32>
    %87 = vector.shape_cast %84 : vector<40x40xf32> to vector<1x40x40xf32>
    tpu.vector_store %arg2[%c10_84, %c0_85, %c0_86], %87 {strides = array<i32>} : memref<64x40x40xf32, #tpu.memory_space<vmem>>, vector<1x40x40xf32>,
    %c22 = arith.constant 22 : index
    %c0_87 = arith.constant 0 : index
    %c0_88 = arith.constant 0 : index
    %88 = vector.load %arg0[%c22, %c0_87, %c0_88] : memref<128x40x40xf32, #tpu.memory_space<vmem>>, vector<1x40x40xf32>
    %89 = vector.shape_cast %88 : vector<1x40x40xf32> to vector<40x40xf32>
    %c23 = arith.constant 23 : index
    %c0_89 = arith.constant 0 : index
    %c0_90 = arith.constant 0 : index
    %90 = vector.load %arg0[%c23, %c0_89, %c0_90] : memref<128x40x40xf32, #tpu.memory_space<vmem>>, vector<1x40x40xf32>
    %91 = vector.shape_cast %90 : vector<1x40x40xf32> to vector<40x40xf32>
    %cst_91 = arith.constant dense<0.000000e+00> : vector<40x40xf32>
    %92 = tpu.matmul %89, %91, %cst_91 {dimension_numbers = #tpu.dot_dimension_numbers<[1], [0], [0], [1], [0, 0, 1, 1], [], []>} : vector<40x40xf32>, vector<40x40xf32>, vector<40x40xf32> -> vector<40x40xf32>
    %c11_92 = arith.constant 11 : index
    %c0_93 = arith.constant 0 : index
    %c0_94 = arith.constant 0 : index
    %93 = vector.load %arg2[%c11_92, %c0_93, %c0_94] : memref<64x40x40xf32, #tpu.memory_space<vmem>>, vector<1x40x40xf32>
    %94 = vector.shape_cast %93 : vector<1x40x40xf32> to vector<40x40xf32>
    %95 = vector.shape_cast %92 : vector<40x40xf32> to vector<1x40x40xf32>
    tpu.vector_store %arg2[%c11_92, %c0_93, %c0_94], %95 {strides = array<i32>} : memref<64x40x40xf32, #tpu.memory_space<vmem>>, vector<1x40x40xf32>,
    %c24 = arith.constant 24 : index
    %c0_95 = arith.constant 0 : index
    %c0_96 = arith.constant 0 : index
    %96 = vector.load %arg0[%c24, %c0_95, %c0_96] : memref<128x40x40xf32, #tpu.memory_space<vmem>>, vector<1x40x40xf32>
    %97 = vector.shape_cast %96 : vector<1x40x40xf32> to vector<40x40xf32>
    %c25 = arith.constant 25 : index
    %c0_97 = arith.constant 0 : index
    %c0_98 = arith.constant 0 : index
    %98 = vector.load %arg0[%c25, %c0_97, %c0_98] : memref<128x40x40xf32, #tpu.memory_space<vmem>>, vector<1x40x40xf32>
    %99 = vector.shape_cast %98 : vector<1x40x40xf32> to vector<40x40xf32>
    %cst_99 = arith.constant dense<0.000000e+00> : vector<40x40xf32>
    %100 = tpu.matmul %97, %99, %cst_99 {dimension_numbers = #tpu.dot_dimension_numbers<[1], [0], [0], [1], [0, 0, 1, 1], [], []>} : vector<40x40xf32>, vector<40x40xf32>, vector<40x40xf32> -> vector<40x40xf32>
    %c12_100 = arith.constant 12 : index
    %c0_101 = arith.constant 0 : index
    %c0_102 = arith.constant 0 : index
    %101 = vector.load %arg2[%c12_100, %c0_101, %c0_102] : memref<64x40x40xf32, #tpu.memory_space<vmem>>, vector<1x40x40xf32>
    %102 = vector.shape_cast %101 : vector<1x40x40xf32> to vector<40x40xf32>
    %103 = vector.shape_cast %100 : vector<40x40xf32> to vector<1x40x40xf32>
    tpu.vector_store %arg2[%c12_100, %c0_101, %c0_102], %103 {strides = array<i32>} : memref<64x40x40xf32, #tpu.memory_space<vmem>>, vector<1x40x40xf32>,
    %c26 = arith.constant 26 : index
    %c0_103 = arith.constant 0 : index
    %c0_104 = arith.constant 0 : index
    %104 = vector.load %arg0[%c26, %c0_103, %c0_104] : memref<128x40x40xf32, #tpu.memory_space<vmem>>, vector<1x40x40xf32>
    %105 = vector.shape_cast %104 : vector<1x40x40xf32> to vector<40x40xf32>
    %c27 = arith.constant 27 : index
    %c0_105 = arith.constant 0 : index
    %c0_106 = arith.constant 0 : index
    %106 = vector.load %arg0[%c27, %c0_105, %c0_106] : memref<128x40x40xf32, #tpu.memory_space<vmem>>, vector<1x40x40xf32>
    %107 = vector.shape_cast %106 : vector<1x40x40xf32> to vector<40x40xf32>
    %cst_107 = arith.constant dense<0.000000e+00> : vector<40x40xf32>
    %108 = tpu.matmul %105, %107, %cst_107 {dimension_numbers = #tpu.dot_dimension_numbers<[1], [0], [0], [1], [0, 0, 1, 1], [], []>} : vector<40x40xf32>, vector<40x40xf32>, vector<40x40xf32> -> vector<40x40xf32>
    %c13_108 = arith.constant 13 : index
    %c0_109 = arith.constant 0 : index
    %c0_110 = arith.constant 0 : index
    %109 = vector.load %arg2[%c13_108, %c0_109, %c0_110] : memref<64x40x40xf32, #tpu.memory_space<vmem>>, vector<1x40x40xf32>
    %110 = vector.shape_cast %109 : vector<1x40x40xf32> to vector<40x40xf32>
    %111 = vector.shape_cast %108 : vector<40x40xf32> to vector<1x40x40xf32>
    tpu.vector_store %arg2[%c13_108, %c0_109, %c0_110], %111 {strides = array<i32>} : memref<64x40x40xf32, #tpu.memory_space<vmem>>, vector<1x40x40xf32>,
    %c28 = arith.constant 28 : index
    %c0_111 = arith.constant 0 : index
    %c0_112 = arith.constant 0 : index
    %112 = vector.load %arg0[%c28, %c0_111, %c0_112] : memref<128x40x40xf32, #tpu.memory_space<vmem>>, vector<1x40x40xf32>
    %113 = vector.shape_cast %112 : vector<1x40x40xf32> to vector<40x40xf32>
    %c29 = arith.constant 29 : index
    %c0_113 = arith.constant 0 : index
    %c0_114 = arith.constant 0 : index
    %114 = vector.load %arg0[%c29, %c0_113, %c0_114] : memref<128x40x40xf32, #tpu.memory_space<vmem>>, vector<1x40x40xf32>
    %115 = vector.shape_cast %114 : vector<1x40x40xf32> to vector<40x40xf32>
    %cst_115 = arith.constant dense<0.000000e+00> : vector<40x40xf32>
    %116 = tpu.matmul %113, %115, %cst_115 {dimension_numbers = #tpu.dot_dimension_numbers<[1], [0], [0], [1], [0, 0, 1, 1], [], []>} : vector<40x40xf32>, vector<40x40xf32>, vector<40x40xf32> -> vector<40x40xf32>
    %c14_116 = arith.constant 14 : index
    %c0_117 = arith.constant 0 : index
    %c0_118 = arith.constant 0 : index
    %117 = vector.load %arg2[%c14_116, %c0_117, %c0_118] : memref<64x40x40xf32, #tpu.memory_space<vmem>>, vector<1x40x40xf32>
    %118 = vector.shape_cast %117 : vector<1x40x40xf32> to vector<40x40xf32>
    %119 = vector.shape_cast %116 : vector<40x40xf32> to vector<1x40x40xf32>
    tpu.vector_store %arg2[%c14_116, %c0_117, %c0_118], %119 {strides = array<i32>} : memref<64x40x40xf32, #tpu.memory_space<vmem>>, vector<1x40x40xf32>,
    %c30 = arith.constant 30 : index
    %c0_119 = arith.constant 0 : index
    %c0_120 = arith.constant 0 : index
    %120 = vector.load %arg0[%c30, %c0_119, %c0_120] : memref<128x40x40xf32, #tpu.memory_space<vmem>>, vector<1x40x40xf32>
    %121 = vector.shape_cast %120 : vector<1x40x40xf32> to vector<40x40xf32>
    %c31 = arith.constant 31 : index
    %c0_121 = arith.constant 0 : index
    %c0_122 = arith.constant 0 : index
    %122 = vector.load %arg0[%c31, %c0_121, %c0_122] : memref<128x40x40xf32, #tpu.memory_space<vmem>>, vector<1x40x40xf32>
    %123 = vector.shape_cast %122 : vector<1x40x40xf32> to vector<40x40xf32>
    %cst_123 = arith.constant dense<0.000000e+00> : vector<40x40xf32>
    %124 = tpu.matmul %121, %123, %cst_123 {dimension_numbers = #tpu.dot_dimension_numbers<[1], [0], [0], [1], [0, 0, 1, 1], [], []>} : vector<40x40xf32>, vector<40x40xf32>, vector<40x40xf32> -> vector<40x40xf32>
    %c15_124 = arith.constant 15 : index
    %c0_125 = arith.constant 0 : index
    %c0_126 = arith.constant 0 : index
    %125 = vector.load %arg2[%c15_124, %c0_125, %c0_126] : memref<64x40x40xf32, #tpu.memory_space<vmem>>, vector<1x40x40xf32>
    %126 = vector.shape_cast %125 : vector<1x40x40xf32> to vector<40x40xf32>
    %127 = vector.shape_cast %124 : vector<40x40xf32> to vector<1x40x40xf32>
    tpu.vector_store %arg2[%c15_124, %c0_125, %c0_126], %127 {strides = array<i32>} : memref<64x40x40xf32, #tpu.memory_space<vmem>>, vector<1x40x40xf32>,
    %c32 = arith.constant 32 : index
    %c0_127 = arith.constant 0 : index
    %c0_128 = arith.constant 0 : index
    %128 = vector.load %arg0[%c32, %c0_127, %c0_128] : memref<128x40x40xf32, #tpu.memory_space<vmem>>, vector<1x40x40xf32>
    %129 = vector.shape_cast %128 : vector<1x40x40xf32> to vector<40x40xf32>
    %c33 = arith.constant 33 : index
    %c0_129 = arith.constant 0 : index
    %c0_130 = arith.constant 0 : index
    %130 = vector.load %arg0[%c33, %c0_129, %c0_130] : memref<128x40x40xf32, #tpu.memory_space<vmem>>, vector<1x40x40xf32>
    %131 = vector.shape_cast %130 : vector<1x40x40xf32> to vector<40x40xf32>
    %cst_131 = arith.constant dense<0.000000e+00> : vector<40x40xf32>
    %132 = tpu.matmul %129, %131, %cst_131 {dimension_numbers = #tpu.dot_dimension_numbers<[1], [0], [0], [1], [0, 0, 1, 1], [], []>} : vector<40x40xf32>, vector<40x40xf32>, vector<40x40xf32> -> vector<40x40xf32>
    %c16_132 = arith.constant 16 : index
    %c0_133 = arith.constant 0 : index
    %c0_134 = arith.constant 0 : index
    %133 = vector.load %arg2[%c16_132, %c0_133, %c0_134] : memref<64x40x40xf32, #tpu.memory_space<vmem>>, vector<1x40x40xf32>
    %134 = vector.shape_cast %133 : vector<1x40x40xf32> to vector<40x40xf32>
    %135 = vector.shape_cast %132 : vector<40x40xf32> to vector<1x40x40xf32>
    tpu.vector_store %arg2[%c16_132, %c0_133, %c0_134], %135 {strides = array<i32>} : memref<64x40x40xf32, #tpu.memory_space<vmem>>, vector<1x40x40xf32>,
    %c34 = arith.constant 34 : index
    %c0_135 = arith.constant 0 : index
    %c0_136 = arith.constant 0 : index
    %136 = vector.load %arg0[%c34, %c0_135, %c0_136] : memref<128x40x40xf32, #tpu.memory_space<vmem>>, vector<1x40x40xf32>
    %137 = vector.shape_cast %136 : vector<1x40x40xf32> to vector<40x40xf32>
    %c35 = arith.constant 35 : index
    %c0_137 = arith.constant 0 : index
    %c0_138 = arith.constant 0 : index
    %138 = vector.load %arg0[%c35, %c0_137, %c0_138] : memref<128x40x40xf32, #tpu.memory_space<vmem>>, vector<1x40x40xf32>
    %139 = vector.shape_cast %138 : vector<1x40x40xf32> to vector<40x40xf32>
    %cst_139 = arith.constant dense<0.000000e+00> : vector<40x40xf32>
    %140 = tpu.matmul %137, %139, %cst_139 {dimension_numbers = #tpu.dot_dimension_numbers<[1], [0], [0], [1], [0, 0, 1, 1], [], []>} : vector<40x40xf32>, vector<40x40xf32>, vector<40x40xf32> -> vector<40x40xf32>
    %c17_140 = arith.constant 17 : index
    %c0_141 = arith.constant 0 : index
    %c0_142 = arith.constant 0 : index
    %141 = vector.load %arg2[%c17_140, %c0_141, %c0_142] : memref<64x40x40xf32, #tpu.memory_space<vmem>>, vector<1x40x40xf32>
    %142 = vector.shape_cast %141 : vector<1x40x40xf32> to vector<40x40xf32>
    %143 = vector.shape_cast %140 : vector<40x40xf32> to vector<1x40x40xf32>
    tpu.vector_store %arg2[%c17_140, %c0_141, %c0_142], %143 {strides = array<i32>} : memref<64x40x40xf32, #tpu.memory_space<vmem>>, vector<1x40x40xf32>,
    %c36 = arith.constant 36 : index
    %c0_143 = arith.constant 0 : index
    %c0_144 = arith.constant 0 : index
    %144 = vector.load %arg0[%c36, %c0_143, %c0_144] : memref<128x40x40xf32, #tpu.memory_space<vmem>>, vector<1x40x40xf32>
    %145 = vector.shape_cast %144 : vector<1x40x40xf32> to vector<40x40xf32>
    %c37 = arith.constant 37 : index
    %c0_145 = arith.constant 0 : index
    %c0_146 = arith.constant 0 : index
    %146 = vector.load %arg0[%c37, %c0_145, %c0_146] : memref<128x40x40xf32, #tpu.memory_space<vmem>>, vector<1x40x40xf32>
    %147 = vector.shape_cast %146 : vector<1x40x40xf32> to vector<40x40xf32>
    %cst_147 = arith.constant dense<0.000000e+00> : vector<40x40xf32>
    %148 = tpu.matmul %145, %147, %cst_147 {dimension_numbers = #tpu.dot_dimension_numbers<[1], [0], [0], [1], [0, 0, 1, 1], [], []>} : vector<40x40xf32>, vector<40x40xf32>, vector<40x40xf32> -> vector<40x40xf32>
    %c18_148 = arith.constant 18 : index
    %c0_149 = arith.constant 0 : index
    %c0_150 = arith.constant 0 : index
    %149 = vector.load %arg2[%c18_148, %c0_149, %c0_150] : memref<64x40x40xf32, #tpu.memory_space<vmem>>, vector<1x40x40xf32>
    %150 = vector.shape_cast %149 : vector<1x40x40xf32> to vector<40x40xf32>
    %151 = vector.shape_cast %148 : vector<40x40xf32> to vector<1x40x40xf32>
    tpu.vector_store %arg2[%c18_148, %c0_149, %c0_150], %151 {strides = array<i32>} : memref<64x40x40xf32, #tpu.memory_space<vmem>>, vector<1x40x40xf32>,
    %c38 = arith.constant 38 : index
    %c0_151 = arith.constant 0 : index
    %c0_152 = arith.constant 0 : index
    %152 = vector.load %arg0[%c38, %c0_151, %c0_152] : memref<128x40x40xf32, #tpu.memory_space<vmem>>, vector<1x40x40xf32>
    %153 = vector.shape_cast %152 : vector<1x40x40xf32> to vector<40x40xf32>
    %c39 = arith.constant 39 : index
    %c0_153 = arith.constant 0 : index
    %c0_154 = arith.constant 0 : index
    %154 = vector.load %arg0[%c39, %c0_153, %c0_154] : memref<128x40x40xf32, #tpu.memory_space<vmem>>, vector<1x40x40xf32>
    %155 = vector.shape_cast %154 : vector<1x40x40xf32> to vector<40x40xf32>
    %cst_155 = arith.constant dense<0.000000e+00> : vector<40x40xf32>
    %156 = tpu.matmul %153, %155, %cst_155 {dimension_numbers = #tpu.dot_dimension_numbers<[1], [0], [0], [1], [0, 0, 1, 1], [], []>} : vector<40x40xf32>, vector<40x40xf32>, vector<40x40xf32> -> vector<40x40xf32>
    %c19_156 = arith.constant 19 : index
    %c0_157 = arith.constant 0 : index
    %c0_158 = arith.constant 0 : index
    %157 = vector.load %arg2[%c19_156, %c0_157, %c0_158] : memref<64x40x40xf32, #tpu.memory_space<vmem>>, vector<1x40x40xf32>
    %158 = vector.shape_cast %157 : vector<1x40x40xf32> to vector<40x40xf32>
    %159 = vector.shape_cast %156 : vector<40x40xf32> to vector<1x40x40xf32>
    tpu.vector_store %arg2[%c19_156, %c0_157, %c0_158], %159 {strides = array<i32>} : memref<64x40x40xf32, #tpu.memory_space<vmem>>, vector<1x40x40xf32>,
    %c40 = arith.constant 40 : index
    %c0_159 = arith.constant 0 : index
    %c0_160 = arith.constant 0 : index
    %160 = vector.load %arg0[%c40, %c0_159, %c0_160] : memref<128x40x40xf32, #tpu.memory_space<vmem>>, vector<1x40x40xf32>
    %161 = vector.shape_cast %160 : vector<1x40x40xf32> to vector<40x40xf32>
    %c41 = arith.constant 41 : index
    %c0_161 = arith.constant 0 : index
    %c0_162 = arith.constant 0 : index
    %162 = vector.load %arg0[%c41, %c0_161, %c0_162] : memref<128x40x40xf32, #tpu.memory_space<vmem>>, vector<1x40x40xf32>
    %163 = vector.shape_cast %162 : vector<1x40x40xf32> to vector<40x40xf32>
    %cst_163 = arith.constant dense<0.000000e+00> : vector<40x40xf32>
    %164 = tpu.matmul %161, %163, %cst_163 {dimension_numbers = #tpu.dot_dimension_numbers<[1], [0], [0], [1], [0, 0, 1, 1], [], []>} : vector<40x40xf32>, vector<40x40xf32>, vector<40x40xf32> -> vector<40x40xf32>
    %c20_164 = arith.constant 20 : index
    %c0_165 = arith.constant 0 : index
    %c0_166 = arith.constant 0 : index
    %165 = vector.load %arg2[%c20_164, %c0_165, %c0_166] : memref<64x40x40xf32, #tpu.memory_space<vmem>>, vector<1x40x40xf32>
    %166 = vector.shape_cast %165 : vector<1x40x40xf32> to vector<40x40xf32>
    %167 = vector.shape_cast %164 : vector<40x40xf32> to vector<1x40x40xf32>
    tpu.vector_store %arg2[%c20_164, %c0_165, %c0_166], %167 {strides = array<i32>} : memref<64x40x40xf32, #tpu.memory_space<vmem>>, vector<1x40x40xf32>,
    %c42 = arith.constant 42 : index
    %c0_167 = arith.constant 0 : index
    %c0_168 = arith.constant 0 : index
    %168 = vector.load %arg0[%c42, %c0_167, %c0_168] : memref<128x40x40xf32, #tpu.memory_space<vmem>>, vector<1x40x40xf32>
    %169 = vector.shape_cast %168 : vector<1x40x40xf32> to vector<40x40xf32>
    %c43 = arith.constant 43 : index
    %c0_169 = arith.constant 0 : index
    %c0_170 = arith.constant 0 : index
    %170 = vector.load %arg0[%c43, %c0_169, %c0_170] : memref<128x40x40xf32, #tpu.memory_space<vmem>>, vector<1x40x40xf32>
    %171 = vector.shape_cast %170 : vector<1x40x40xf32> to vector<40x40xf32>
    %cst_171 = arith.constant dense<0.000000e+00> : vector<40x40xf32>
    %172 = tpu.matmul %169, %171, %cst_171 {dimension_numbers = #tpu.dot_dimension_numbers<[1], [0], [0], [1], [0, 0, 1, 1], [], []>} : vector<40x40xf32>, vector<40x40xf32>, vector<40x40xf32> -> vector<40x40xf32>
    %c21_172 = arith.constant 21 : index
    %c0_173 = arith.constant 0 : index
    %c0_174 = arith.constant 0 : index
    %173 = vector.load %arg2[%c21_172, %c0_173, %c0_174] : memref<64x40x40xf32, #tpu.memory_space<vmem>>, vector<1x40x40xf32>
    %174 = vector.shape_cast %173 : vector<1x40x40xf32> to vector<40x40xf32>
    %175 = vector.shape_cast %172 : vector<40x40xf32> to vector<1x40x40xf32>
    tpu.vector_store %arg2[%c21_172, %c0_173, %c0_174], %175 {strides = array<i32>} : memref<64x40x40xf32, #tpu.memory_space<vmem>>, vector<1x40x40xf32>,
    %c44 = arith.constant 44 : index
    %c0_175 = arith.constant 0 : index
    %c0_176 = arith.constant 0 : index
    %176 = vector.load %arg0[%c44, %c0_175, %c0_176] : memref<128x40x40xf32, #tpu.memory_space<vmem>>, vector<1x40x40xf32>
    %177 = vector.shape_cast %176 : vector<1x40x40xf32> to vector<40x40xf32>
    %c45 = arith.constant 45 : index
    %c0_177 = arith.constant 0 : index
    %c0_178 = arith.constant 0 : index
    %178 = vector.load %arg0[%c45, %c0_177, %c0_178] : memref<128x40x40xf32, #tpu.memory_space<vmem>>, vector<1x40x40xf32>
    %179 = vector.shape_cast %178 : vector<1x40x40xf32> to vector<40x40xf32>
    %cst_179 = arith.constant dense<0.000000e+00> : vector<40x40xf32>
    %180 = tpu.matmul %177, %179, %cst_179 {dimension_numbers = #tpu.dot_dimension_numbers<[1], [0], [0], [1], [0, 0, 1, 1], [], []>} : vector<40x40xf32>, vector<40x40xf32>, vector<40x40xf32> -> vector<40x40xf32>
    %c22_180 = arith.constant 22 : index
    %c0_181 = arith.constant 0 : index
    %c0_182 = arith.constant 0 : index
    %181 = vector.load %arg2[%c22_180, %c0_181, %c0_182] : memref<64x40x40xf32, #tpu.memory_space<vmem>>, vector<1x40x40xf32>
    %182 = vector.shape_cast %181 : vector<1x40x40xf32> to vector<40x40xf32>
    %183 = vector.shape_cast %180 : vector<40x40xf32> to vector<1x40x40xf32>
    tpu.vector_store %arg2[%c22_180, %c0_181, %c0_182], %183 {strides = array<i32>} : memref<64x40x40xf32, #tpu.memory_space<vmem>>, vector<1x40x40xf32>,
    %c46 = arith.constant 46 : index
    %c0_183 = arith.constant 0 : index
    %c0_184 = arith.constant 0 : index
    %184 = vector.load %arg0[%c46, %c0_183, %c0_184] : memref<128x40x40xf32, #tpu.memory_space<vmem>>, vector<1x40x40xf32>
    %185 = vector.shape_cast %184 : vector<1x40x40xf32> to vector<40x40xf32>
    %c47 = arith.constant 47 : index
    %c0_185 = arith.constant 0 : index
    %c0_186 = arith.constant 0 : index
    %186 = vector.load %arg0[%c47, %c0_185, %c0_186] : memref<128x40x40xf32, #tpu.memory_space<vmem>>, vector<1x40x40xf32>
    %187 = vector.shape_cast %186 : vector<1x40x40xf32> to vector<40x40xf32>
    %cst_187 = arith.constant dense<0.000000e+00> : vector<40x40xf32>
    %188 = tpu.matmul %185, %187, %cst_187 {dimension_numbers = #tpu.dot_dimension_numbers<[1], [0], [0], [1], [0, 0, 1, 1], [], []>} : vector<40x40xf32>, vector<40x40xf32>, vector<40x40xf32> -> vector<40x40xf32>
    %c23_188 = arith.constant 23 : index
    %c0_189 = arith.constant 0 : index
    %c0_190 = arith.constant 0 : index
    %189 = vector.load %arg2[%c23_188, %c0_189, %c0_190] : memref<64x40x40xf32, #tpu.memory_space<vmem>>, vector<1x40x40xf32>
    %190 = vector.shape_cast %189 : vector<1x40x40xf32> to vector<40x40xf32>
    %191 = vector.shape_cast %188 : vector<40x40xf32> to vector<1x40x40xf32>
    tpu.vector_store %arg2[%c23_188, %c0_189, %c0_190], %191 {strides = array<i32>} : memref<64x40x40xf32, #tpu.memory_space<vmem>>, vector<1x40x40xf32>,
    %c48 = arith.constant 48 : index
    %c0_191 = arith.constant 0 : index
    %c0_192 = arith.constant 0 : index
    %192 = vector.load %arg0[%c48, %c0_191, %c0_192] : memref<128x40x40xf32, #tpu.memory_space<vmem>>, vector<1x40x40xf32>
    %193 = vector.shape_cast %192 : vector<1x40x40xf32> to vector<40x40xf32>
    %c49 = arith.constant 49 : index
    %c0_193 = arith.constant 0 : index
    %c0_194 = arith.constant 0 : index
    %194 = vector.load %arg0[%c49, %c0_193, %c0_194] : memref<128x40x40xf32, #tpu.memory_space<vmem>>, vector<1x40x40xf32>
    %195 = vector.shape_cast %194 : vector<1x40x40xf32> to vector<40x40xf32>
    %cst_195 = arith.constant dense<0.000000e+00> : vector<40x40xf32>
    %196 = tpu.matmul %193, %195, %cst_195 {dimension_numbers = #tpu.dot_dimension_numbers<[1], [0], [0], [1], [0, 0, 1, 1], [], []>} : vector<40x40xf32>, vector<40x40xf32>, vector<40x40xf32> -> vector<40x40xf32>
    %c24_196 = arith.constant 24 : index
    %c0_197 = arith.constant 0 : index
    %c0_198 = arith.constant 0 : index
    %197 = vector.load %arg2[%c24_196, %c0_197, %c0_198] : memref<64x40x40xf32, #tpu.memory_space<vmem>>, vector<1x40x40xf32>
    %198 = vector.shape_cast %197 : vector<1x40x40xf32> to vector<40x40xf32>
    %199 = vector.shape_cast %196 : vector<40x40xf32> to vector<1x40x40xf32>
    tpu.vector_store %arg2[%c24_196, %c0_197, %c0_198], %199 {strides = array<i32>} : memref<64x40x40xf32, #tpu.memory_space<vmem>>, vector<1x40x40xf32>,
    %c50 = arith.constant 50 : index
    %c0_199 = arith.constant 0 : index
    %c0_200 = arith.constant 0 : index
    %200 = vector.load %arg0[%c50, %c0_199, %c0_200] : memref<128x40x40xf32, #tpu.memory_space<vmem>>, vector<1x40x40xf32>
    %201 = vector.shape_cast %200 : vector<1x40x40xf32> to vector<40x40xf32>
    %c51 = arith.constant 51 : index
    %c0_201 = arith.constant 0 : index
    %c0_202 = arith.constant 0 : index
    %202 = vector.load %arg0[%c51, %c0_201, %c0_202] : memref<128x40x40xf32, #tpu.memory_space<vmem>>, vector<1x40x40xf32>
    %203 = vector.shape_cast %202 : vector<1x40x40xf32> to vector<40x40xf32>
    %cst_203 = arith.constant dense<0.000000e+00> : vector<40x40xf32>
    %204 = tpu.matmul %201, %203, %cst_203 {dimension_numbers = #tpu.dot_dimension_numbers<[1], [0], [0], [1], [0, 0, 1, 1], [], []>} : vector<40x40xf32>, vector<40x40xf32>, vector<40x40xf32> -> vector<40x40xf32>
    %c25_204 = arith.constant 25 : index
    %c0_205 = arith.constant 0 : index
    %c0_206 = arith.constant 0 : index
    %205 = vector.load %arg2[%c25_204, %c0_205, %c0_206] : memref<64x40x40xf32, #tpu.memory_space<vmem>>, vector<1x40x40xf32>
    %206 = vector.shape_cast %205 : vector<1x40x40xf32> to vector<40x40xf32>
    %207 = vector.shape_cast %204 : vector<40x40xf32> to vector<1x40x40xf32>
    tpu.vector_store %arg2[%c25_204, %c0_205, %c0_206], %207 {strides = array<i32>} : memref<64x40x40xf32, #tpu.memory_space<vmem>>, vector<1x40x40xf32>,
    %c52 = arith.constant 52 : index
    %c0_207 = arith.constant 0 : index
    %c0_208 = arith.constant 0 : index
    %208 = vector.load %arg0[%c52, %c0_207, %c0_208] : memref<128x40x40xf32, #tpu.memory_space<vmem>>, vector<1x40x40xf32>
    %209 = vector.shape_cast %208 : vector<1x40x40xf32> to vector<40x40xf32>
    %c53 = arith.constant 53 : index
    %c0_209 = arith.constant 0 : index
    %c0_210 = arith.constant 0 : index
    %210 = vector.load %arg0[%c53, %c0_209, %c0_210] : memref<128x40x40xf32, #tpu.memory_space<vmem>>, vector<1x40x40xf32>
    %211 = vector.shape_cast %210 : vector<1x40x40xf32> to vector<40x40xf32>
    %cst_211 = arith.constant dense<0.000000e+00> : vector<40x40xf32>
    %212 = tpu.matmul %209, %211, %cst_211 {dimension_numbers = #tpu.dot_dimension_numbers<[1], [0], [0], [1], [0, 0, 1, 1], [], []>} : vector<40x40xf32>, vector<40x40xf32>, vector<40x40xf32> -> vector<40x40xf32>
    %c26_212 = arith.constant 26 : index
    %c0_213 = arith.constant 0 : index
    %c0_214 = arith.constant 0 : index
    %213 = vector.load %arg2[%c26_212, %c0_213, %c0_214] : memref<64x40x40xf32, #tpu.memory_space<vmem>>, vector<1x40x40xf32>
    %214 = vector.shape_cast %213 : vector<1x40x40xf32> to vector<40x40xf32>
    %215 = vector.shape_cast %212 : vector<40x40xf32> to vector<1x40x40xf32>
    tpu.vector_store %arg2[%c26_212, %c0_213, %c0_214], %215 {strides = array<i32>} : memref<64x40x40xf32, #tpu.memory_space<vmem>>, vector<1x40x40xf32>,
    %c54 = arith.constant 54 : index
    %c0_215 = arith.constant 0 : index
    %c0_216 = arith.constant 0 : index
    %216 = vector.load %arg0[%c54, %c0_215, %c0_216] : memref<128x40x40xf32, #tpu.memory_space<vmem>>, vector<1x40x40xf32>
    %217 = vector.shape_cast %216 : vector<1x40x40xf32> to vector<40x40xf32>
    %c55 = arith.constant 55 : index
    %c0_217 = arith.constant 0 : index
    %c0_218 = arith.constant 0 : index
    %218 = vector.load %arg0[%c55, %c0_217, %c0_218] : memref<128x40x40xf32, #tpu.memory_space<vmem>>, vector<1x40x40xf32>
    %219 = vector.shape_cast %218 : vector<1x40x40xf32> to vector<40x40xf32>
    %cst_219 = arith.constant dense<0.000000e+00> : vector<40x40xf32>
    %220 = tpu.matmul %217, %219, %cst_219 {dimension_numbers = #tpu.dot_dimension_numbers<[1], [0], [0], [1], [0, 0, 1, 1], [], []>} : vector<40x40xf32>, vector<40x40xf32>, vector<40x40xf32> -> vector<40x40xf32>
    %c27_220 = arith.constant 27 : index
    %c0_221 = arith.constant 0 : index
    %c0_222 = arith.constant 0 : index
    %221 = vector.load %arg2[%c27_220, %c0_221, %c0_222] : memref<64x40x40xf32, #tpu.memory_space<vmem>>, vector<1x40x40xf32>
    %222 = vector.shape_cast %221 : vector<1x40x40xf32> to vector<40x40xf32>
    %223 = vector.shape_cast %220 : vector<40x40xf32> to vector<1x40x40xf32>
    tpu.vector_store %arg2[%c27_220, %c0_221, %c0_222], %223 {strides = array<i32>} : memref<64x40x40xf32, #tpu.memory_space<vmem>>, vector<1x40x40xf32>,
    %c56 = arith.constant 56 : index
    %c0_223 = arith.constant 0 : index
    %c0_224 = arith.constant 0 : index
    %224 = vector.load %arg0[%c56, %c0_223, %c0_224] : memref<128x40x40xf32, #tpu.memory_space<vmem>>, vector<1x40x40xf32>
    %225 = vector.shape_cast %224 : vector<1x40x40xf32> to vector<40x40xf32>
    %c57 = arith.constant 57 : index
    %c0_225 = arith.constant 0 : index
    %c0_226 = arith.constant 0 : index
    %226 = vector.load %arg0[%c57, %c0_225, %c0_226] : memref<128x40x40xf32, #tpu.memory_space<vmem>>, vector<1x40x40xf32>
    %227 = vector.shape_cast %226 : vector<1x40x40xf32> to vector<40x40xf32>
    %cst_227 = arith.constant dense<0.000000e+00> : vector<40x40xf32>
    %228 = tpu.matmul %225, %227, %cst_227 {dimension_numbers = #tpu.dot_dimension_numbers<[1], [0], [0], [1], [0, 0, 1, 1], [], []>} : vector<40x40xf32>, vector<40x40xf32>, vector<40x40xf32> -> vector<40x40xf32>
    %c28_228 = arith.constant 28 : index
    %c0_229 = arith.constant 0 : index
    %c0_230 = arith.constant 0 : index
    %229 = vector.load %arg2[%c28_228, %c0_229, %c0_230] : memref<64x40x40xf32, #tpu.memory_space<vmem>>, vector<1x40x40xf32>
    %230 = vector.shape_cast %229 : vector<1x40x40xf32> to vector<40x40xf32>
    %231 = vector.shape_cast %228 : vector<40x40xf32> to vector<1x40x40xf32>
    tpu.vector_store %arg2[%c28_228, %c0_229, %c0_230], %231 {strides = array<i32>} : memref<64x40x40xf32, #tpu.memory_space<vmem>>, vector<1x40x40xf32>,
    %c58 = arith.constant 58 : index
    %c0_231 = arith.constant 0 : index
    %c0_232 = arith.constant 0 : index
    %232 = vector.load %arg0[%c58, %c0_231, %c0_232] : memref<128x40x40xf32, #tpu.memory_space<vmem>>, vector<1x40x40xf32>
    %233 = vector.shape_cast %232 : vector<1x40x40xf32> to vector<40x40xf32>
    %c59 = arith.constant 59 : index
    %c0_233 = arith.constant 0 : index
    %c0_234 = arith.constant 0 : index
    %234 = vector.load %arg0[%c59, %c0_233, %c0_234] : memref<128x40x40xf32, #tpu.memory_space<vmem>>, vector<1x40x40xf32>
    %235 = vector.shape_cast %234 : vector<1x40x40xf32> to vector<40x40xf32>
    %cst_235 = arith.constant dense<0.000000e+00> : vector<40x40xf32>
    %236 = tpu.matmul %233, %235, %cst_235 {dimension_numbers = #tpu.dot_dimension_numbers<[1], [0], [0], [1], [0, 0, 1, 1], [], []>} : vector<40x40xf32>, vector<40x40xf32>, vector<40x40xf32> -> vector<40x40xf32>
    %c29_236 = arith.constant 29 : index
    %c0_237 = arith.constant 0 : index
    %c0_238 = arith.constant 0 : index
    %237 = vector.load %arg2[%c29_236, %c0_237, %c0_238] : memref<64x40x40xf32, #tpu.memory_space<vmem>>, vector<1x40x40xf32>
    %238 = vector.shape_cast %237 : vector<1x40x40xf32> to vector<40x40xf32>
    %239 = vector.shape_cast %236 : vector<40x40xf32> to vector<1x40x40xf32>
    tpu.vector_store %arg2[%c29_236, %c0_237, %c0_238], %239 {strides = array<i32>} : memref<64x40x40xf32, #tpu.memory_space<vmem>>, vector<1x40x40xf32>,
    %c60 = arith.constant 60 : index
    %c0_239 = arith.constant 0 : index
    %c0_240 = arith.constant 0 : index
    %240 = vector.load %arg0[%c60, %c0_239, %c0_240] : memref<128x40x40xf32, #tpu.memory_space<vmem>>, vector<1x40x40xf32>
    %241 = vector.shape_cast %240 : vector<1x40x40xf32> to vector<40x40xf32>
    %c61 = arith.constant 61 : index
    %c0_241 = arith.constant 0 : index
    %c0_242 = arith.constant 0 : index
    %242 = vector.load %arg0[%c61, %c0_241, %c0_242] : memref<128x40x40xf32, #tpu.memory_space<vmem>>, vector<1x40x40xf32>
    %243 = vector.shape_cast %242 : vector<1x40x40xf32> to vector<40x40xf32>
    %cst_243 = arith.constant dense<0.000000e+00> : vector<40x40xf32>
    %244 = tpu.matmul %241, %243, %cst_243 {dimension_numbers = #tpu.dot_dimension_numbers<[1], [0], [0], [1], [0, 0, 1, 1], [], []>} : vector<40x40xf32>, vector<40x40xf32>, vector<40x40xf32> -> vector<40x40xf32>
    %c30_244 = arith.constant 30 : index
    %c0_245 = arith.constant 0 : index
    %c0_246 = arith.constant 0 : index
    %245 = vector.load %arg2[%c30_244, %c0_245, %c0_246] : memref<64x40x40xf32, #tpu.memory_space<vmem>>, vector<1x40x40xf32>
    %246 = vector.shape_cast %245 : vector<1x40x40xf32> to vector<40x40xf32>
    %247 = vector.shape_cast %244 : vector<40x40xf32> to vector<1x40x40xf32>
    tpu.vector_store %arg2[%c30_244, %c0_245, %c0_246], %247 {strides = array<i32>} : memref<64x40x40xf32, #tpu.memory_space<vmem>>, vector<1x40x40xf32>,
    %c62 = arith.constant 62 : index
    %c0_247 = arith.constant 0 : index
    %c0_248 = arith.constant 0 : index
    %248 = vector.load %arg0[%c62, %c0_247, %c0_248] : memref<128x40x40xf32, #tpu.memory_space<vmem>>, vector<1x40x40xf32>
    %249 = vector.shape_cast %248 : vector<1x40x40xf32> to vector<40x40xf32>
    %c63 = arith.constant 63 : index
    %c0_249 = arith.constant 0 : index
    %c0_250 = arith.constant 0 : index
    %250 = vector.load %arg0[%c63, %c0_249, %c0_250] : memref<128x40x40xf32, #tpu.memory_space<vmem>>, vector<1x40x40xf32>
    %251 = vector.shape_cast %250 : vector<1x40x40xf32> to vector<40x40xf32>
    %cst_251 = arith.constant dense<0.000000e+00> : vector<40x40xf32>
    %252 = tpu.matmul %249, %251, %cst_251 {dimension_numbers = #tpu.dot_dimension_numbers<[1], [0], [0], [1], [0, 0, 1, 1], [], []>} : vector<40x40xf32>, vector<40x40xf32>, vector<40x40xf32> -> vector<40x40xf32>
    %c31_252 = arith.constant 31 : index
    %c0_253 = arith.constant 0 : index
    %c0_254 = arith.constant 0 : index
    %253 = vector.load %arg2[%c31_252, %c0_253, %c0_254] : memref<64x40x40xf32, #tpu.memory_space<vmem>>, vector<1x40x40xf32>
    %254 = vector.shape_cast %253 : vector<1x40x40xf32> to vector<40x40xf32>
    %255 = vector.shape_cast %252 : vector<40x40xf32> to vector<1x40x40xf32>
    tpu.vector_store %arg2[%c31_252, %c0_253, %c0_254], %255 {strides = array<i32>} : memref<64x40x40xf32, #tpu.memory_space<vmem>>, vector<1x40x40xf32>,
    %c64 = arith.constant 64 : index
    %c0_255 = arith.constant 0 : index
    %c0_256 = arith.constant 0 : index
    %256 = vector.load %arg0[%c64, %c0_255, %c0_256] : memref<128x40x40xf32, #tpu.memory_space<vmem>>, vector<1x40x40xf32>
    %257 = vector.shape_cast %256 : vector<1x40x40xf32> to vector<40x40xf32>
    %c65 = arith.constant 65 : index
    %c0_257 = arith.constant 0 : index
    %c0_258 = arith.constant 0 : index
    %258 = vector.load %arg0[%c65, %c0_257, %c0_258] : memref<128x40x40xf32, #tpu.memory_space<vmem>>, vector<1x40x40xf32>
    %259 = vector.shape_cast %258 : vector<1x40x40xf32> to vector<40x40xf32>
    %cst_259 = arith.constant dense<0.000000e+00> : vector<40x40xf32>
    %260 = tpu.matmul %257, %259, %cst_259 {dimension_numbers = #tpu.dot_dimension_numbers<[1], [0], [0], [1], [0, 0, 1, 1], [], []>} : vector<40x40xf32>, vector<40x40xf32>, vector<40x40xf32> -> vector<40x40xf32>
    %c32_260 = arith.constant 32 : index
    %c0_261 = arith.constant 0 : index
    %c0_262 = arith.constant 0 : index
    %261 = vector.load %arg2[%c32_260, %c0_261, %c0_262] : memref<64x40x40xf32, #tpu.memory_space<vmem>>, vector<1x40x40xf32>
    %262 = vector.shape_cast %261 : vector<1x40x40xf32> to vector<40x40xf32>
    %263 = vector.shape_cast %260 : vector<40x40xf32> to vector<1x40x40xf32>
    tpu.vector_store %arg2[%c32_260, %c0_261, %c0_262], %263 {strides = array<i32>} : memref<64x40x40xf32, #tpu.memory_space<vmem>>, vector<1x40x40xf32>,
    %c66 = arith.constant 66 : index
    %c0_263 = arith.constant 0 : index
    %c0_264 = arith.constant 0 : index
    %264 = vector.load %arg0[%c66, %c0_263, %c0_264] : memref<128x40x40xf32, #tpu.memory_space<vmem>>, vector<1x40x40xf32>
    %265 = vector.shape_cast %264 : vector<1x40x40xf32> to vector<40x40xf32>
    %c67 = arith.constant 67 : index
    %c0_265 = arith.constant 0 : index
    %c0_266 = arith.constant 0 : index
    %266 = vector.load %arg0[%c67, %c0_265, %c0_266] : memref<128x40x40xf32, #tpu.memory_space<vmem>>, vector<1x40x40xf32>
    %267 = vector.shape_cast %266 : vector<1x40x40xf32> to vector<40x40xf32>
    %cst_267 = arith.constant dense<0.000000e+00> : vector<40x40xf32>
    %268 = tpu.matmul %265, %267, %cst_267 {dimension_numbers = #tpu.dot_dimension_numbers<[1], [0], [0], [1], [0, 0, 1, 1], [], []>} : vector<40x40xf32>, vector<40x40xf32>, vector<40x40xf32> -> vector<40x40xf32>
    %c33_268 = arith.constant 33 : index
    %c0_269 = arith.constant 0 : index
    %c0_270 = arith.constant 0 : index
    %269 = vector.load %arg2[%c33_268, %c0_269, %c0_270] : memref<64x40x40xf32, #tpu.memory_space<vmem>>, vector<1x40x40xf32>
    %270 = vector.shape_cast %269 : vector<1x40x40xf32> to vector<40x40xf32>
    %271 = vector.shape_cast %268 : vector<40x40xf32> to vector<1x40x40xf32>
    tpu.vector_store %arg2[%c33_268, %c0_269, %c0_270], %271 {strides = array<i32>} : memref<64x40x40xf32, #tpu.memory_space<vmem>>, vector<1x40x40xf32>,
    %c68 = arith.constant 68 : index
    %c0_271 = arith.constant 0 : index
    %c0_272 = arith.constant 0 : index
    %272 = vector.load %arg0[%c68, %c0_271, %c0_272] : memref<128x40x40xf32, #tpu.memory_space<vmem>>, vector<1x40x40xf32>
    %273 = vector.shape_cast %272 : vector<1x40x40xf32> to vector<40x40xf32>
    %c69 = arith.constant 69 : index
    %c0_273 = arith.constant 0 : index
    %c0_274 = arith.constant 0 : index
    %274 = vector.load %arg0[%c69, %c0_273, %c0_274] : memref<128x40x40xf32, #tpu.memory_space<vmem>>, vector<1x40x40xf32>
    %275 = vector.shape_cast %274 : vector<1x40x40xf32> to vector<40x40xf32>
    %cst_275 = arith.constant dense<0.000000e+00> : vector<40x40xf32>
    %276 = tpu.matmul %273, %275, %cst_275 {dimension_numbers = #tpu.dot_dimension_numbers<[1], [0], [0], [1], [0, 0, 1, 1], [], []>} : vector<40x40xf32>, vector<40x40xf32>, vector<40x40xf32> -> vector<40x40xf32>
    %c34_276 = arith.constant 34 : index
    %c0_277 = arith.constant 0 : index
    %c0_278 = arith.constant 0 : index
    %277 = vector.load %arg2[%c34_276, %c0_277, %c0_278] : memref<64x40x40xf32, #tpu.memory_space<vmem>>, vector<1x40x40xf32>
    %278 = vector.shape_cast %277 : vector<1x40x40xf32> to vector<40x40xf32>
    %279 = vector.shape_cast %276 : vector<40x40xf32> to vector<1x40x40xf32>
    tpu.vector_store %arg2[%c34_276, %c0_277, %c0_278], %279 {strides = array<i32>} : memref<64x40x40xf32, #tpu.memory_space<vmem>>, vector<1x40x40xf32>,
    %c70 = arith.constant 70 : index
    %c0_279 = arith.constant 0 : index
    %c0_280 = arith.constant 0 : index
    %280 = vector.load %arg0[%c70, %c0_279, %c0_280] : memref<128x40x40xf32, #tpu.memory_space<vmem>>, vector<1x40x40xf32>
    %281 = vector.shape_cast %280 : vector<1x40x40xf32> to vector<40x40xf32>
    %c71 = arith.constant 71 : index
    %c0_281 = arith.constant 0 : index
    %c0_282 = arith.constant 0 : index
    %282 = vector.load %arg0[%c71, %c0_281, %c0_282] : memref<128x40x40xf32, #tpu.memory_space<vmem>>, vector<1x40x40xf32>
    %283 = vector.shape_cast %282 : vector<1x40x40xf32> to vector<40x40xf32>
    %cst_283 = arith.constant dense<0.000000e+00> : vector<40x40xf32>
    %284 = tpu.matmul %281, %283, %cst_283 {dimension_numbers = #tpu.dot_dimension_numbers<[1], [0], [0], [1], [0, 0, 1, 1], [], []>} : vector<40x40xf32>, vector<40x40xf32>, vector<40x40xf32> -> vector<40x40xf32>
    %c35_284 = arith.constant 35 : index
    %c0_285 = arith.constant 0 : index
    %c0_286 = arith.constant 0 : index
    %285 = vector.load %arg2[%c35_284, %c0_285, %c0_286] : memref<64x40x40xf32, #tpu.memory_space<vmem>>, vector<1x40x40xf32>
    %286 = vector.shape_cast %285 : vector<1x40x40xf32> to vector<40x40xf32>
    %287 = vector.shape_cast %284 : vector<40x40xf32> to vector<1x40x40xf32>
    tpu.vector_store %arg2[%c35_284, %c0_285, %c0_286], %287 {strides = array<i32>} : memref<64x40x40xf32, #tpu.memory_space<vmem>>, vector<1x40x40xf32>,
    %c72 = arith.constant 72 : index
    %c0_287 = arith.constant 0 : index
    %c0_288 = arith.constant 0 : index
    %288 = vector.load %arg0[%c72, %c0_287, %c0_288] : memref<128x40x40xf32, #tpu.memory_space<vmem>>, vector<1x40x40xf32>
    %289 = vector.shape_cast %288 : vector<1x40x40xf32> to vector<40x40xf32>
    %c73 = arith.constant 73 : index
    %c0_289 = arith.constant 0 : index
    %c0_290 = arith.constant 0 : index
    %290 = vector.load %arg0[%c73, %c0_289, %c0_290] : memref<128x40x40xf32, #tpu.memory_space<vmem>>, vector<1x40x40xf32>
    %291 = vector.shape_cast %290 : vector<1x40x40xf32> to vector<40x40xf32>
    %cst_291 = arith.constant dense<0.000000e+00> : vector<40x40xf32>
    %292 = tpu.matmul %289, %291, %cst_291 {dimension_numbers = #tpu.dot_dimension_numbers<[1], [0], [0], [1], [0, 0, 1, 1], [], []>} : vector<40x40xf32>, vector<40x40xf32>, vector<40x40xf32> -> vector<40x40xf32>
    %c36_292 = arith.constant 36 : index
    %c0_293 = arith.constant 0 : index
    %c0_294 = arith.constant 0 : index
    %293 = vector.load %arg2[%c36_292, %c0_293, %c0_294] : memref<64x40x40xf32, #tpu.memory_space<vmem>>, vector<1x40x40xf32>
    %294 = vector.shape_cast %293 : vector<1x40x40xf32> to vector<40x40xf32>
    %295 = vector.shape_cast %292 : vector<40x40xf32> to vector<1x40x40xf32>
    tpu.vector_store %arg2[%c36_292, %c0_293, %c0_294], %295 {strides = array<i32>} : memref<64x40x40xf32, #tpu.memory_space<vmem>>, vector<1x40x40xf32>,
    %c74 = arith.constant 74 : index
    %c0_295 = arith.constant 0 : index
    %c0_296 = arith.constant 0 : index
    %296 = vector.load %arg0[%c74, %c0_295, %c0_296] : memref<128x40x40xf32, #tpu.memory_space<vmem>>, vector<1x40x40xf32>
    %297 = vector.shape_cast %296 : vector<1x40x40xf32> to vector<40x40xf32>
    %c75 = arith.constant 75 : index
    %c0_297 = arith.constant 0 : index
    %c0_298 = arith.constant 0 : index
    %298 = vector.load %arg0[%c75, %c0_297, %c0_298] : memref<128x40x40xf32, #tpu.memory_space<vmem>>, vector<1x40x40xf32>
    %299 = vector.shape_cast %298 : vector<1x40x40xf32> to vector<40x40xf32>
    %cst_299 = arith.constant dense<0.000000e+00> : vector<40x40xf32>
    %300 = tpu.matmul %297, %299, %cst_299 {dimension_numbers = #tpu.dot_dimension_numbers<[1], [0], [0], [1], [0, 0, 1, 1], [], []>} : vector<40x40xf32>, vector<40x40xf32>, vector<40x40xf32> -> vector<40x40xf32>
    %c37_300 = arith.constant 37 : index
    %c0_301 = arith.constant 0 : index
    %c0_302 = arith.constant 0 : index
    %301 = vector.load %arg2[%c37_300, %c0_301, %c0_302] : memref<64x40x40xf32, #tpu.memory_space<vmem>>, vector<1x40x40xf32>
    %302 = vector.shape_cast %301 : vector<1x40x40xf32> to vector<40x40xf32>
    %303 = vector.shape_cast %300 : vector<40x40xf32> to vector<1x40x40xf32>
    tpu.vector_store %arg2[%c37_300, %c0_301, %c0_302], %303 {strides = array<i32>} : memref<64x40x40xf32, #tpu.memory_space<vmem>>, vector<1x40x40xf32>,
    %c76 = arith.constant 76 : index
    %c0_303 = arith.constant 0 : index
    %c0_304 = arith.constant 0 : index
    %304 = vector.load %arg0[%c76, %c0_303, %c0_304] : memref<128x40x40xf32, #tpu.memory_space<vmem>>, vector<1x40x40xf32>
    %305 = vector.shape_cast %304 : vector<1x40x40xf32> to vector<40x40xf32>
    %c77 = arith.constant 77 : index
    %c0_305 = arith.constant 0 : index
    %c0_306 = arith.constant 0 : index
    %306 = vector.load %arg0[%c77, %c0_305, %c0_306] : memref<128x40x40xf32, #tpu.memory_space<vmem>>, vector<1x40x40xf32>
    %307 = vector.shape_cast %306 : vector<1x40x40xf32> to vector<40x40xf32>
    %cst_307 = arith.constant dense<0.000000e+00> : vector<40x40xf32>
    %308 = tpu.matmul %305, %307, %cst_307 {dimension_numbers = #tpu.dot_dimension_numbers<[1], [0], [0], [1], [0, 0, 1, 1], [], []>} : vector<40x40xf32>, vector<40x40xf32>, vector<40x40xf32> -> vector<40x40xf32>
    %c38_308 = arith.constant 38 : index
    %c0_309 = arith.constant 0 : index
    %c0_310 = arith.constant 0 : index
    %309 = vector.load %arg2[%c38_308, %c0_309, %c0_310] : memref<64x40x40xf32, #tpu.memory_space<vmem>>, vector<1x40x40xf32>
    %310 = vector.shape_cast %309 : vector<1x40x40xf32> to vector<40x40xf32>
    %311 = vector.shape_cast %308 : vector<40x40xf32> to vector<1x40x40xf32>
    tpu.vector_store %arg2[%c38_308, %c0_309, %c0_310], %311 {strides = array<i32>} : memref<64x40x40xf32, #tpu.memory_space<vmem>>, vector<1x40x40xf32>,
    %c78 = arith.constant 78 : index
    %c0_311 = arith.constant 0 : index
    %c0_312 = arith.constant 0 : index
    %312 = vector.load %arg0[%c78, %c0_311, %c0_312] : memref<128x40x40xf32, #tpu.memory_space<vmem>>, vector<1x40x40xf32>
    %313 = vector.shape_cast %312 : vector<1x40x40xf32> to vector<40x40xf32>
    %c79 = arith.constant 79 : index
    %c0_313 = arith.constant 0 : index
    %c0_314 = arith.constant 0 : index
    %314 = vector.load %arg0[%c79, %c0_313, %c0_314] : memref<128x40x40xf32, #tpu.memory_space<vmem>>, vector<1x40x40xf32>
    %315 = vector.shape_cast %314 : vector<1x40x40xf32> to vector<40x40xf32>
    %cst_315 = arith.constant dense<0.000000e+00> : vector<40x40xf32>
    %316 = tpu.matmul %313, %315, %cst_315 {dimension_numbers = #tpu.dot_dimension_numbers<[1], [0], [0], [1], [0, 0, 1, 1], [], []>} : vector<40x40xf32>, vector<40x40xf32>, vector<40x40xf32> -> vector<40x40xf32>
    %c39_316 = arith.constant 39 : index
    %c0_317 = arith.constant 0 : index
    %c0_318 = arith.constant 0 : index
    %317 = vector.load %arg2[%c39_316, %c0_317, %c0_318] : memref<64x40x40xf32, #tpu.memory_space<vmem>>, vector<1x40x40xf32>
    %318 = vector.shape_cast %317 : vector<1x40x40xf32> to vector<40x40xf32>
    %319 = vector.shape_cast %316 : vector<40x40xf32> to vector<1x40x40xf32>
    tpu.vector_store %arg2[%c39_316, %c0_317, %c0_318], %319 {strides = array<i32>} : memref<64x40x40xf32, #tpu.memory_space<vmem>>, vector<1x40x40xf32>,
    %c80 = arith.constant 80 : index
    %c0_319 = arith.constant 0 : index
    %c0_320 = arith.constant 0 : index
    %320 = vector.load %arg0[%c80, %c0_319, %c0_320] : memref<128x40x40xf32, #tpu.memory_space<vmem>>, vector<1x40x40xf32>
    %321 = vector.shape_cast %320 : vector<1x40x40xf32> to vector<40x40xf32>
    %c81 = arith.constant 81 : index
    %c0_321 = arith.constant 0 : index
    %c0_322 = arith.constant 0 : index
    %322 = vector.load %arg0[%c81, %c0_321, %c0_322] : memref<128x40x40xf32, #tpu.memory_space<vmem>>, vector<1x40x40xf32>
    %323 = vector.shape_cast %322 : vector<1x40x40xf32> to vector<40x40xf32>
    %cst_323 = arith.constant dense<0.000000e+00> : vector<40x40xf32>
    %324 = tpu.matmul %321, %323, %cst_323 {dimension_numbers = #tpu.dot_dimension_numbers<[1], [0], [0], [1], [0, 0, 1, 1], [], []>} : vector<40x40xf32>, vector<40x40xf32>, vector<40x40xf32> -> vector<40x40xf32>
    %c40_324 = arith.constant 40 : index
    %c0_325 = arith.constant 0 : index
    %c0_326 = arith.constant 0 : index
    %325 = vector.load %arg2[%c40_324, %c0_325, %c0_326] : memref<64x40x40xf32, #tpu.memory_space<vmem>>, vector<1x40x40xf32>
    %326 = vector.shape_cast %325 : vector<1x40x40xf32> to vector<40x40xf32>
    %327 = vector.shape_cast %324 : vector<40x40xf32> to vector<1x40x40xf32>
    tpu.vector_store %arg2[%c40_324, %c0_325, %c0_326], %327 {strides = array<i32>} : memref<64x40x40xf32, #tpu.memory_space<vmem>>, vector<1x40x40xf32>,
    %c82 = arith.constant 82 : index
    %c0_327 = arith.constant 0 : index
    %c0_328 = arith.constant 0 : index
    %328 = vector.load %arg0[%c82, %c0_327, %c0_328] : memref<128x40x40xf32, #tpu.memory_space<vmem>>, vector<1x40x40xf32>
    %329 = vector.shape_cast %328 : vector<1x40x40xf32> to vector<40x40xf32>
    %c83 = arith.constant 83 : index
    %c0_329 = arith.constant 0 : index
    %c0_330 = arith.constant 0 : index
    %330 = vector.load %arg0[%c83, %c0_329, %c0_330] : memref<128x40x40xf32, #tpu.memory_space<vmem>>, vector<1x40x40xf32>
    %331 = vector.shape_cast %330 : vector<1x40x40xf32> to vector<40x40xf32>
    %cst_331 = arith.constant dense<0.000000e+00> : vector<40x40xf32>
    %332 = tpu.matmul %329, %331, %cst_331 {dimension_numbers = #tpu.dot_dimension_numbers<[1], [0], [0], [1], [0, 0, 1, 1], [], []>} : vector<40x40xf32>, vector<40x40xf32>, vector<40x40xf32> -> vector<40x40xf32>
    %c41_332 = arith.constant 41 : index
    %c0_333 = arith.constant 0 : index
    %c0_334 = arith.constant 0 : index
    %333 = vector.load %arg2[%c41_332, %c0_333, %c0_334] : memref<64x40x40xf32, #tpu.memory_space<vmem>>, vector<1x40x40xf32>
    %334 = vector.shape_cast %333 : vector<1x40x40xf32> to vector<40x40xf32>
    %335 = vector.shape_cast %332 : vector<40x40xf32> to vector<1x40x40xf32>
    tpu.vector_store %arg2[%c41_332, %c0_333, %c0_334], %335 {strides = array<i32>} : memref<64x40x40xf32, #tpu.memory_space<vmem>>, vector<1x40x40xf32>,
    %c84 = arith.constant 84 : index
    %c0_335 = arith.constant 0 : index
    %c0_336 = arith.constant 0 : index
    %336 = vector.load %arg0[%c84, %c0_335, %c0_336] : memref<128x40x40xf32, #tpu.memory_space<vmem>>, vector<1x40x40xf32>
    %337 = vector.shape_cast %336 : vector<1x40x40xf32> to vector<40x40xf32>
    %c85 = arith.constant 85 : index
    %c0_337 = arith.constant 0 : index
    %c0_338 = arith.constant 0 : index
    %338 = vector.load %arg0[%c85, %c0_337, %c0_338] : memref<128x40x40xf32, #tpu.memory_space<vmem>>, vector<1x40x40xf32>
    %339 = vector.shape_cast %338 : vector<1x40x40xf32> to vector<40x40xf32>
    %cst_339 = arith.constant dense<0.000000e+00> : vector<40x40xf32>
    %340 = tpu.matmul %337, %339, %cst_339 {dimension_numbers = #tpu.dot_dimension_numbers<[1], [0], [0], [1], [0, 0, 1, 1], [], []>} : vector<40x40xf32>, vector<40x40xf32>, vector<40x40xf32> -> vector<40x40xf32>
    %c42_340 = arith.constant 42 : index
    %c0_341 = arith.constant 0 : index
    %c0_342 = arith.constant 0 : index
    %341 = vector.load %arg2[%c42_340, %c0_341, %c0_342] : memref<64x40x40xf32, #tpu.memory_space<vmem>>, vector<1x40x40xf32>
    %342 = vector.shape_cast %341 : vector<1x40x40xf32> to vector<40x40xf32>
    %343 = vector.shape_cast %340 : vector<40x40xf32> to vector<1x40x40xf32>
    tpu.vector_store %arg2[%c42_340, %c0_341, %c0_342], %343 {strides = array<i32>} : memref<64x40x40xf32, #tpu.memory_space<vmem>>, vector<1x40x40xf32>,
    %c86 = arith.constant 86 : index
    %c0_343 = arith.constant 0 : index
    %c0_344 = arith.constant 0 : index
    %344 = vector.load %arg0[%c86, %c0_343, %c0_344] : memref<128x40x40xf32, #tpu.memory_space<vmem>>, vector<1x40x40xf32>
    %345 = vector.shape_cast %344 : vector<1x40x40xf32> to vector<40x40xf32>
    %c87 = arith.constant 87 : index
    %c0_345 = arith.constant 0 : index
    %c0_346 = arith.constant 0 : index
    %346 = vector.load %arg0[%c87, %c0_345, %c0_346] : memref<128x40x40xf32, #tpu.memory_space<vmem>>, vector<1x40x40xf32>
    %347 = vector.shape_cast %346 : vector<1x40x40xf32> to vector<40x40xf32>
    %cst_347 = arith.constant dense<0.000000e+00> : vector<40x40xf32>
    %348 = tpu.matmul %345, %347, %cst_347 {dimension_numbers = #tpu.dot_dimension_numbers<[1], [0], [0], [1], [0, 0, 1, 1], [], []>} : vector<40x40xf32>, vector<40x40xf32>, vector<40x40xf32> -> vector<40x40xf32>
    %c43_348 = arith.constant 43 : index
    %c0_349 = arith.constant 0 : index
    %c0_350 = arith.constant 0 : index
    %349 = vector.load %arg2[%c43_348, %c0_349, %c0_350] : memref<64x40x40xf32, #tpu.memory_space<vmem>>, vector<1x40x40xf32>
    %350 = vector.shape_cast %349 : vector<1x40x40xf32> to vector<40x40xf32>
    %351 = vector.shape_cast %348 : vector<40x40xf32> to vector<1x40x40xf32>
    tpu.vector_store %arg2[%c43_348, %c0_349, %c0_350], %351 {strides = array<i32>} : memref<64x40x40xf32, #tpu.memory_space<vmem>>, vector<1x40x40xf32>,
    %c88 = arith.constant 88 : index
    %c0_351 = arith.constant 0 : index
    %c0_352 = arith.constant 0 : index
    %352 = vector.load %arg0[%c88, %c0_351, %c0_352] : memref<128x40x40xf32, #tpu.memory_space<vmem>>, vector<1x40x40xf32>
    %353 = vector.shape_cast %352 : vector<1x40x40xf32> to vector<40x40xf32>
    %c89 = arith.constant 89 : index
    %c0_353 = arith.constant 0 : index
    %c0_354 = arith.constant 0 : index
    %354 = vector.load %arg0[%c89, %c0_353, %c0_354] : memref<128x40x40xf32, #tpu.memory_space<vmem>>, vector<1x40x40xf32>
    %355 = vector.shape_cast %354 : vector<1x40x40xf32> to vector<40x40xf32>
    %cst_355 = arith.constant dense<0.000000e+00> : vector<40x40xf32>
    %356 = tpu.matmul %353, %355, %cst_355 {dimension_numbers = #tpu.dot_dimension_numbers<[1], [0], [0], [1], [0, 0, 1, 1], [], []>} : vector<40x40xf32>, vector<40x40xf32>, vector<40x40xf32> -> vector<40x40xf32>
    %c44_356 = arith.constant 44 : index
    %c0_357 = arith.constant 0 : index
    %c0_358 = arith.constant 0 : index
    %357 = vector.load %arg2[%c44_356, %c0_357, %c0_358] : memref<64x40x40xf32, #tpu.memory_space<vmem>>, vector<1x40x40xf32>
    %358 = vector.shape_cast %357 : vector<1x40x40xf32> to vector<40x40xf32>
    %359 = vector.shape_cast %356 : vector<40x40xf32> to vector<1x40x40xf32>
    tpu.vector_store %arg2[%c44_356, %c0_357, %c0_358], %359 {strides = array<i32>} : memref<64x40x40xf32, #tpu.memory_space<vmem>>, vector<1x40x40xf32>,
    %c90 = arith.constant 90 : index
    %c0_359 = arith.constant 0 : index
    %c0_360 = arith.constant 0 : index
    %360 = vector.load %arg0[%c90, %c0_359, %c0_360] : memref<128x40x40xf32, #tpu.memory_space<vmem>>, vector<1x40x40xf32>
    %361 = vector.shape_cast %360 : vector<1x40x40xf32> to vector<40x40xf32>
    %c91 = arith.constant 91 : index
    %c0_361 = arith.constant 0 : index
    %c0_362 = arith.constant 0 : index
    %362 = vector.load %arg0[%c91, %c0_361, %c0_362] : memref<128x40x40xf32, #tpu.memory_space<vmem>>, vector<1x40x40xf32>
    %363 = vector.shape_cast %362 : vector<1x40x40xf32> to vector<40x40xf32>
    %cst_363 = arith.constant dense<0.000000e+00> : vector<40x40xf32>
    %364 = tpu.matmul %361, %363, %cst_363 {dimension_numbers = #tpu.dot_dimension_numbers<[1], [0], [0], [1], [0, 0, 1, 1], [], []>} : vector<40x40xf32>, vector<40x40xf32>, vector<40x40xf32> -> vector<40x40xf32>
    %c45_364 = arith.constant 45 : index
    %c0_365 = arith.constant 0 : index
    %c0_366 = arith.constant 0 : index
    %365 = vector.load %arg2[%c45_364, %c0_365, %c0_366] : memref<64x40x40xf32, #tpu.memory_space<vmem>>, vector<1x40x40xf32>
    %366 = vector.shape_cast %365 : vector<1x40x40xf32> to vector<40x40xf32>
    %367 = vector.shape_cast %364 : vector<40x40xf32> to vector<1x40x40xf32>
    tpu.vector_store %arg2[%c45_364, %c0_365, %c0_366], %367 {strides = array<i32>} : memref<64x40x40xf32, #tpu.memory_space<vmem>>, vector<1x40x40xf32>,
    %c92 = arith.constant 92 : index
    %c0_367 = arith.constant 0 : index
    %c0_368 = arith.constant 0 : index
    %368 = vector.load %arg0[%c92, %c0_367, %c0_368] : memref<128x40x40xf32, #tpu.memory_space<vmem>>, vector<1x40x40xf32>
    %369 = vector.shape_cast %368 : vector<1x40x40xf32> to vector<40x40xf32>
    %c93 = arith.constant 93 : index
    %c0_369 = arith.constant 0 : index
    %c0_370 = arith.constant 0 : index
    %370 = vector.load %arg0[%c93, %c0_369, %c0_370] : memref<128x40x40xf32, #tpu.memory_space<vmem>>, vector<1x40x40xf32>
    %371 = vector.shape_cast %370 : vector<1x40x40xf32> to vector<40x40xf32>
    %cst_371 = arith.constant dense<0.000000e+00> : vector<40x40xf32>
    %372 = tpu.matmul %369, %371, %cst_371 {dimension_numbers = #tpu.dot_dimension_numbers<[1], [0], [0], [1], [0, 0, 1, 1], [], []>} : vector<40x40xf32>, vector<40x40xf32>, vector<40x40xf32> -> vector<40x40xf32>
    %c46_372 = arith.constant 46 : index
    %c0_373 = arith.constant 0 : index
    %c0_374 = arith.constant 0 : index
    %373 = vector.load %arg2[%c46_372, %c0_373, %c0_374] : memref<64x40x40xf32, #tpu.memory_space<vmem>>, vector<1x40x40xf32>
    %374 = vector.shape_cast %373 : vector<1x40x40xf32> to vector<40x40xf32>
    %375 = vector.shape_cast %372 : vector<40x40xf32> to vector<1x40x40xf32>
    tpu.vector_store %arg2[%c46_372, %c0_373, %c0_374], %375 {strides = array<i32>} : memref<64x40x40xf32, #tpu.memory_space<vmem>>, vector<1x40x40xf32>,
    %c94 = arith.constant 94 : index
    %c0_375 = arith.constant 0 : index
    %c0_376 = arith.constant 0 : index
    %376 = vector.load %arg0[%c94, %c0_375, %c0_376] : memref<128x40x40xf32, #tpu.memory_space<vmem>>, vector<1x40x40xf32>
    %377 = vector.shape_cast %376 : vector<1x40x40xf32> to vector<40x40xf32>
    %c95 = arith.constant 95 : index
    %c0_377 = arith.constant 0 : index
    %c0_378 = arith.constant 0 : index
    %378 = vector.load %arg0[%c95, %c0_377, %c0_378] : memref<128x40x40xf32, #tpu.memory_space<vmem>>, vector<1x40x40xf32>
    %379 = vector.shape_cast %378 : vector<1x40x40xf32> to vector<40x40xf32>
    %cst_379 = arith.constant dense<0.000000e+00> : vector<40x40xf32>
    %380 = tpu.matmul %377, %379, %cst_379 {dimension_numbers = #tpu.dot_dimension_numbers<[1], [0], [0], [1], [0, 0, 1, 1], [], []>} : vector<40x40xf32>, vector<40x40xf32>, vector<40x40xf32> -> vector<40x40xf32>
    %c47_380 = arith.constant 47 : index
    %c0_381 = arith.constant 0 : index
    %c0_382 = arith.constant 0 : index
    %381 = vector.load %arg2[%c47_380, %c0_381, %c0_382] : memref<64x40x40xf32, #tpu.memory_space<vmem>>, vector<1x40x40xf32>
    %382 = vector.shape_cast %381 : vector<1x40x40xf32> to vector<40x40xf32>
    %383 = vector.shape_cast %380 : vector<40x40xf32> to vector<1x40x40xf32>
    tpu.vector_store %arg2[%c47_380, %c0_381, %c0_382], %383 {strides = array<i32>} : memref<64x40x40xf32, #tpu.memory_space<vmem>>, vector<1x40x40xf32>,
    %c96 = arith.constant 96 : index
    %c0_383 = arith.constant 0 : index
    %c0_384 = arith.constant 0 : index
    %384 = vector.load %arg0[%c96, %c0_383, %c0_384] : memref<128x40x40xf32, #tpu.memory_space<vmem>>, vector<1x40x40xf32>
    %385 = vector.shape_cast %384 : vector<1x40x40xf32> to vector<40x40xf32>
    %c97 = arith.constant 97 : index
    %c0_385 = arith.constant 0 : index
    %c0_386 = arith.constant 0 : index
    %386 = vector.load %arg0[%c97, %c0_385, %c0_386] : memref<128x40x40xf32, #tpu.memory_space<vmem>>, vector<1x40x40xf32>
    %387 = vector.shape_cast %386 : vector<1x40x40xf32> to vector<40x40xf32>
    %cst_387 = arith.constant dense<0.000000e+00> : vector<40x40xf32>
    %388 = tpu.matmul %385, %387, %cst_387 {dimension_numbers = #tpu.dot_dimension_numbers<[1], [0], [0], [1], [0, 0, 1, 1], [], []>} : vector<40x40xf32>, vector<40x40xf32>, vector<40x40xf32> -> vector<40x40xf32>
    %c48_388 = arith.constant 48 : index
    %c0_389 = arith.constant 0 : index
    %c0_390 = arith.constant 0 : index
    %389 = vector.load %arg2[%c48_388, %c0_389, %c0_390] : memref<64x40x40xf32, #tpu.memory_space<vmem>>, vector<1x40x40xf32>
    %390 = vector.shape_cast %389 : vector<1x40x40xf32> to vector<40x40xf32>
    %391 = vector.shape_cast %388 : vector<40x40xf32> to vector<1x40x40xf32>
    tpu.vector_store %arg2[%c48_388, %c0_389, %c0_390], %391 {strides = array<i32>} : memref<64x40x40xf32, #tpu.memory_space<vmem>>, vector<1x40x40xf32>,
    %c98 = arith.constant 98 : index
    %c0_391 = arith.constant 0 : index
    %c0_392 = arith.constant 0 : index
    %392 = vector.load %arg0[%c98, %c0_391, %c0_392] : memref<128x40x40xf32, #tpu.memory_space<vmem>>, vector<1x40x40xf32>
    %393 = vector.shape_cast %392 : vector<1x40x40xf32> to vector<40x40xf32>
    %c99 = arith.constant 99 : index
    %c0_393 = arith.constant 0 : index
    %c0_394 = arith.constant 0 : index
    %394 = vector.load %arg0[%c99, %c0_393, %c0_394] : memref<128x40x40xf32, #tpu.memory_space<vmem>>, vector<1x40x40xf32>
    %395 = vector.shape_cast %394 : vector<1x40x40xf32> to vector<40x40xf32>
    %cst_395 = arith.constant dense<0.000000e+00> : vector<40x40xf32>
    %396 = tpu.matmul %393, %395, %cst_395 {dimension_numbers = #tpu.dot_dimension_numbers<[1], [0], [0], [1], [0, 0, 1, 1], [], []>} : vector<40x40xf32>, vector<40x40xf32>, vector<40x40xf32> -> vector<40x40xf32>
    %c49_396 = arith.constant 49 : index
    %c0_397 = arith.constant 0 : index
    %c0_398 = arith.constant 0 : index
    %397 = vector.load %arg2[%c49_396, %c0_397, %c0_398] : memref<64x40x40xf32, #tpu.memory_space<vmem>>, vector<1x40x40xf32>
    %398 = vector.shape_cast %397 : vector<1x40x40xf32> to vector<40x40xf32>
    %399 = vector.shape_cast %396 : vector<40x40xf32> to vector<1x40x40xf32>
    tpu.vector_store %arg2[%c49_396, %c0_397, %c0_398], %399 {strides = array<i32>} : memref<64x40x40xf32, #tpu.memory_space<vmem>>, vector<1x40x40xf32>,
    %c100 = arith.constant 100 : index
    %c0_399 = arith.constant 0 : index
    %c0_400 = arith.constant 0 : index
    %400 = vector.load %arg0[%c100, %c0_399, %c0_400] : memref<128x40x40xf32, #tpu.memory_space<vmem>>, vector<1x40x40xf32>
    %401 = vector.shape_cast %400 : vector<1x40x40xf32> to vector<40x40xf32>
    %c101 = arith.constant 101 : index
    %c0_401 = arith.constant 0 : index
    %c0_402 = arith.constant 0 : index
    %402 = vector.load %arg0[%c101, %c0_401, %c0_402] : memref<128x40x40xf32, #tpu.memory_space<vmem>>, vector<1x40x40xf32>
    %403 = vector.shape_cast %402 : vector<1x40x40xf32> to vector<40x40xf32>
    %cst_403 = arith.constant dense<0.000000e+00> : vector<40x40xf32>
    %404 = tpu.matmul %401, %403, %cst_403 {dimension_numbers = #tpu.dot_dimension_numbers<[1], [0], [0], [1], [0, 0, 1, 1], [], []>} : vector<40x40xf32>, vector<40x40xf32>, vector<40x40xf32> -> vector<40x40xf32>
    %c50_404 = arith.constant 50 : index
    %c0_405 = arith.constant 0 : index
    %c0_406 = arith.constant 0 : index
    %405 = vector.load %arg2[%c50_404, %c0_405, %c0_406] : memref<64x40x40xf32, #tpu.memory_space<vmem>>, vector<1x40x40xf32>
    %406 = vector.shape_cast %405 : vector<1x40x40xf32> to vector<40x40xf32>
    %407 = vector.shape_cast %404 : vector<40x40xf32> to vector<1x40x40xf32>
    tpu.vector_store %arg2[%c50_404, %c0_405, %c0_406], %407 {strides = array<i32>} : memref<64x40x40xf32, #tpu.memory_space<vmem>>, vector<1x40x40xf32>,
    %c102 = arith.constant 102 : index
    %c0_407 = arith.constant 0 : index
    %c0_408 = arith.constant 0 : index
    %408 = vector.load %arg0[%c102, %c0_407, %c0_408] : memref<128x40x40xf32, #tpu.memory_space<vmem>>, vector<1x40x40xf32>
    %409 = vector.shape_cast %408 : vector<1x40x40xf32> to vector<40x40xf32>
    %c103 = arith.constant 103 : index
    %c0_409 = arith.constant 0 : index
    %c0_410 = arith.constant 0 : index
    %410 = vector.load %arg0[%c103, %c0_409, %c0_410] : memref<128x40x40xf32, #tpu.memory_space<vmem>>, vector<1x40x40xf32>
    %411 = vector.shape_cast %410 : vector<1x40x40xf32> to vector<40x40xf32>
    %cst_411 = arith.constant dense<0.000000e+00> : vector<40x40xf32>
    %412 = tpu.matmul %409, %411, %cst_411 {dimension_numbers = #tpu.dot_dimension_numbers<[1], [0], [0], [1], [0, 0, 1, 1], [], []>} : vector<40x40xf32>, vector<40x40xf32>, vector<40x40xf32> -> vector<40x40xf32>
    %c51_412 = arith.constant 51 : index
    %c0_413 = arith.constant 0 : index
    %c0_414 = arith.constant 0 : index
    %413 = vector.load %arg2[%c51_412, %c0_413, %c0_414] : memref<64x40x40xf32, #tpu.memory_space<vmem>>, vector<1x40x40xf32>
    %414 = vector.shape_cast %413 : vector<1x40x40xf32> to vector<40x40xf32>
    %415 = vector.shape_cast %412 : vector<40x40xf32> to vector<1x40x40xf32>
    tpu.vector_store %arg2[%c51_412, %c0_413, %c0_414], %415 {strides = array<i32>} : memref<64x40x40xf32, #tpu.memory_space<vmem>>, vector<1x40x40xf32>,
    %c104 = arith.constant 104 : index
    %c0_415 = arith.constant 0 : index
    %c0_416 = arith.constant 0 : index
    %416 = vector.load %arg0[%c104, %c0_415, %c0_416] : memref<128x40x40xf32, #tpu.memory_space<vmem>>, vector<1x40x40xf32>
    %417 = vector.shape_cast %416 : vector<1x40x40xf32> to vector<40x40xf32>
    %c105 = arith.constant 105 : index
    %c0_417 = arith.constant 0 : index
    %c0_418 = arith.constant 0 : index
    %418 = vector.load %arg0[%c105, %c0_417, %c0_418] : memref<128x40x40xf32, #tpu.memory_space<vmem>>, vector<1x40x40xf32>
    %419 = vector.shape_cast %418 : vector<1x40x40xf32> to vector<40x40xf32>
    %cst_419 = arith.constant dense<0.000000e+00> : vector<40x40xf32>
    %420 = tpu.matmul %417, %419, %cst_419 {dimension_numbers = #tpu.dot_dimension_numbers<[1], [0], [0], [1], [0, 0, 1, 1], [], []>} : vector<40x40xf32>, vector<40x40xf32>, vector<40x40xf32> -> vector<40x40xf32>
    %c52_420 = arith.constant 52 : index
    %c0_421 = arith.constant 0 : index
    %c0_422 = arith.constant 0 : index
    %421 = vector.load %arg2[%c52_420, %c0_421, %c0_422] : memref<64x40x40xf32, #tpu.memory_space<vmem>>, vector<1x40x40xf32>
    %422 = vector.shape_cast %421 : vector<1x40x40xf32> to vector<40x40xf32>
    %423 = vector.shape_cast %420 : vector<40x40xf32> to vector<1x40x40xf32>
    tpu.vector_store %arg2[%c52_420, %c0_421, %c0_422], %423 {strides = array<i32>} : memref<64x40x40xf32, #tpu.memory_space<vmem>>, vector<1x40x40xf32>,
    %c106 = arith.constant 106 : index
    %c0_423 = arith.constant 0 : index
    %c0_424 = arith.constant 0 : index
    %424 = vector.load %arg0[%c106, %c0_423, %c0_424] : memref<128x40x40xf32, #tpu.memory_space<vmem>>, vector<1x40x40xf32>
    %425 = vector.shape_cast %424 : vector<1x40x40xf32> to vector<40x40xf32>
    %c107 = arith.constant 107 : index
    %c0_425 = arith.constant 0 : index
    %c0_426 = arith.constant 0 : index
    %426 = vector.load %arg0[%c107, %c0_425, %c0_426] : memref<128x40x40xf32, #tpu.memory_space<vmem>>, vector<1x40x40xf32>
    %427 = vector.shape_cast %426 : vector<1x40x40xf32> to vector<40x40xf32>
    %cst_427 = arith.constant dense<0.000000e+00> : vector<40x40xf32>
    %428 = tpu.matmul %425, %427, %cst_427 {dimension_numbers = #tpu.dot_dimension_numbers<[1], [0], [0], [1], [0, 0, 1, 1], [], []>} : vector<40x40xf32>, vector<40x40xf32>, vector<40x40xf32> -> vector<40x40xf32>
    %c53_428 = arith.constant 53 : index
    %c0_429 = arith.constant 0 : index
    %c0_430 = arith.constant 0 : index
    %429 = vector.load %arg2[%c53_428, %c0_429, %c0_430] : memref<64x40x40xf32, #tpu.memory_space<vmem>>, vector<1x40x40xf32>
    %430 = vector.shape_cast %429 : vector<1x40x40xf32> to vector<40x40xf32>
    %431 = vector.shape_cast %428 : vector<40x40xf32> to vector<1x40x40xf32>
    tpu.vector_store %arg2[%c53_428, %c0_429, %c0_430], %431 {strides = array<i32>} : memref<64x40x40xf32, #tpu.memory_space<vmem>>, vector<1x40x40xf32>,
    %c108 = arith.constant 108 : index
    %c0_431 = arith.constant 0 : index
    %c0_432 = arith.constant 0 : index
    %432 = vector.load %arg0[%c108, %c0_431, %c0_432] : memref<128x40x40xf32, #tpu.memory_space<vmem>>, vector<1x40x40xf32>
    %433 = vector.shape_cast %432 : vector<1x40x40xf32> to vector<40x40xf32>
    %c109 = arith.constant 109 : index
    %c0_433 = arith.constant 0 : index
    %c0_434 = arith.constant 0 : index
    %434 = vector.load %arg0[%c109, %c0_433, %c0_434] : memref<128x40x40xf32, #tpu.memory_space<vmem>>, vector<1x40x40xf32>
    %435 = vector.shape_cast %434 : vector<1x40x40xf32> to vector<40x40xf32>
    %cst_435 = arith.constant dense<0.000000e+00> : vector<40x40xf32>
    %436 = tpu.matmul %433, %435, %cst_435 {dimension_numbers = #tpu.dot_dimension_numbers<[1], [0], [0], [1], [0, 0, 1, 1], [], []>} : vector<40x40xf32>, vector<40x40xf32>, vector<40x40xf32> -> vector<40x40xf32>
    %c54_436 = arith.constant 54 : index
    %c0_437 = arith.constant 0 : index
    %c0_438 = arith.constant 0 : index
    %437 = vector.load %arg2[%c54_436, %c0_437, %c0_438] : memref<64x40x40xf32, #tpu.memory_space<vmem>>, vector<1x40x40xf32>
    %438 = vector.shape_cast %437 : vector<1x40x40xf32> to vector<40x40xf32>
    %439 = vector.shape_cast %436 : vector<40x40xf32> to vector<1x40x40xf32>
    tpu.vector_store %arg2[%c54_436, %c0_437, %c0_438], %439 {strides = array<i32>} : memref<64x40x40xf32, #tpu.memory_space<vmem>>, vector<1x40x40xf32>,
    %c110 = arith.constant 110 : index
    %c0_439 = arith.constant 0 : index
    %c0_440 = arith.constant 0 : index
    %440 = vector.load %arg0[%c110, %c0_439, %c0_440] : memref<128x40x40xf32, #tpu.memory_space<vmem>>, vector<1x40x40xf32>
    %441 = vector.shape_cast %440 : vector<1x40x40xf32> to vector<40x40xf32>
    %c111 = arith.constant 111 : index
    %c0_441 = arith.constant 0 : index
    %c0_442 = arith.constant 0 : index
    %442 = vector.load %arg0[%c111, %c0_441, %c0_442] : memref<128x40x40xf32, #tpu.memory_space<vmem>>, vector<1x40x40xf32>
    %443 = vector.shape_cast %442 : vector<1x40x40xf32> to vector<40x40xf32>
    %cst_443 = arith.constant dense<0.000000e+00> : vector<40x40xf32>
    %444 = tpu.matmul %441, %443, %cst_443 {dimension_numbers = #tpu.dot_dimension_numbers<[1], [0], [0], [1], [0, 0, 1, 1], [], []>} : vector<40x40xf32>, vector<40x40xf32>, vector<40x40xf32> -> vector<40x40xf32>
    %c55_444 = arith.constant 55 : index
    %c0_445 = arith.constant 0 : index
    %c0_446 = arith.constant 0 : index
    %445 = vector.load %arg2[%c55_444, %c0_445, %c0_446] : memref<64x40x40xf32, #tpu.memory_space<vmem>>, vector<1x40x40xf32>
    %446 = vector.shape_cast %445 : vector<1x40x40xf32> to vector<40x40xf32>
    %447 = vector.shape_cast %444 : vector<40x40xf32> to vector<1x40x40xf32>
    tpu.vector_store %arg2[%c55_444, %c0_445, %c0_446], %447 {strides = array<i32>} : memref<64x40x40xf32, #tpu.memory_space<vmem>>, vector<1x40x40xf32>,
    %c112 = arith.constant 112 : index
    %c0_447 = arith.constant 0 : index
    %c0_448 = arith.constant 0 : index
    %448 = vector.load %arg0[%c112, %c0_447, %c0_448] : memref<128x40x40xf32, #tpu.memory_space<vmem>>, vector<1x40x40xf32>
    %449 = vector.shape_cast %448 : vector<1x40x40xf32> to vector<40x40xf32>
    %c113 = arith.constant 113 : index
    %c0_449 = arith.constant 0 : index
    %c0_450 = arith.constant 0 : index
    %450 = vector.load %arg0[%c113, %c0_449, %c0_450] : memref<128x40x40xf32, #tpu.memory_space<vmem>>, vector<1x40x40xf32>
    %451 = vector.shape_cast %450 : vector<1x40x40xf32> to vector<40x40xf32>
    %cst_451 = arith.constant dense<0.000000e+00> : vector<40x40xf32>
    %452 = tpu.matmul %449, %451, %cst_451 {dimension_numbers = #tpu.dot_dimension_numbers<[1], [0], [0], [1], [0, 0, 1, 1], [], []>} : vector<40x40xf32>, vector<40x40xf32>, vector<40x40xf32> -> vector<40x40xf32>
    %c56_452 = arith.constant 56 : index
    %c0_453 = arith.constant 0 : index
    %c0_454 = arith.constant 0 : index
    %453 = vector.load %arg2[%c56_452, %c0_453, %c0_454] : memref<64x40x40xf32, #tpu.memory_space<vmem>>, vector<1x40x40xf32>
    %454 = vector.shape_cast %453 : vector<1x40x40xf32> to vector<40x40xf32>
    %455 = vector.shape_cast %452 : vector<40x40xf32> to vector<1x40x40xf32>
    tpu.vector_store %arg2[%c56_452, %c0_453, %c0_454], %455 {strides = array<i32>} : memref<64x40x40xf32, #tpu.memory_space<vmem>>, vector<1x40x40xf32>,
    %c114 = arith.constant 114 : index
    %c0_455 = arith.constant 0 : index
    %c0_456 = arith.constant 0 : index
    %456 = vector.load %arg0[%c114, %c0_455, %c0_456] : memref<128x40x40xf32, #tpu.memory_space<vmem>>, vector<1x40x40xf32>
    %457 = vector.shape_cast %456 : vector<1x40x40xf32> to vector<40x40xf32>
    %c115 = arith.constant 115 : index
    %c0_457 = arith.constant 0 : index
    %c0_458 = arith.constant 0 : index
    %458 = vector.load %arg0[%c115, %c0_457, %c0_458] : memref<128x40x40xf32, #tpu.memory_space<vmem>>, vector<1x40x40xf32>
    %459 = vector.shape_cast %458 : vector<1x40x40xf32> to vector<40x40xf32>
    %cst_459 = arith.constant dense<0.000000e+00> : vector<40x40xf32>
    %460 = tpu.matmul %457, %459, %cst_459 {dimension_numbers = #tpu.dot_dimension_numbers<[1], [0], [0], [1], [0, 0, 1, 1], [], []>} : vector<40x40xf32>, vector<40x40xf32>, vector<40x40xf32> -> vector<40x40xf32>
    %c57_460 = arith.constant 57 : index
    %c0_461 = arith.constant 0 : index
    %c0_462 = arith.constant 0 : index
    %461 = vector.load %arg2[%c57_460, %c0_461, %c0_462] : memref<64x40x40xf32, #tpu.memory_space<vmem>>, vector<1x40x40xf32>
    %462 = vector.shape_cast %461 : vector<1x40x40xf32> to vector<40x40xf32>
    %463 = vector.shape_cast %460 : vector<40x40xf32> to vector<1x40x40xf32>
    tpu.vector_store %arg2[%c57_460, %c0_461, %c0_462], %463 {strides = array<i32>} : memref<64x40x40xf32, #tpu.memory_space<vmem>>, vector<1x40x40xf32>,
    %c116 = arith.constant 116 : index
    %c0_463 = arith.constant 0 : index
    %c0_464 = arith.constant 0 : index
    %464 = vector.load %arg0[%c116, %c0_463, %c0_464] : memref<128x40x40xf32, #tpu.memory_space<vmem>>, vector<1x40x40xf32>
    %465 = vector.shape_cast %464 : vector<1x40x40xf32> to vector<40x40xf32>
    %c117 = arith.constant 117 : index
    %c0_465 = arith.constant 0 : index
    %c0_466 = arith.constant 0 : index
    %466 = vector.load %arg0[%c117, %c0_465, %c0_466] : memref<128x40x40xf32, #tpu.memory_space<vmem>>, vector<1x40x40xf32>
    %467 = vector.shape_cast %466 : vector<1x40x40xf32> to vector<40x40xf32>
    %cst_467 = arith.constant dense<0.000000e+00> : vector<40x40xf32>
    %468 = tpu.matmul %465, %467, %cst_467 {dimension_numbers = #tpu.dot_dimension_numbers<[1], [0], [0], [1], [0, 0, 1, 1], [], []>} : vector<40x40xf32>, vector<40x40xf32>, vector<40x40xf32> -> vector<40x40xf32>
    %c58_468 = arith.constant 58 : index
    %c0_469 = arith.constant 0 : index
    %c0_470 = arith.constant 0 : index
    %469 = vector.load %arg2[%c58_468, %c0_469, %c0_470] : memref<64x40x40xf32, #tpu.memory_space<vmem>>, vector<1x40x40xf32>
    %470 = vector.shape_cast %469 : vector<1x40x40xf32> to vector<40x40xf32>
    %471 = vector.shape_cast %468 : vector<40x40xf32> to vector<1x40x40xf32>
    tpu.vector_store %arg2[%c58_468, %c0_469, %c0_470], %471 {strides = array<i32>} : memref<64x40x40xf32, #tpu.memory_space<vmem>>, vector<1x40x40xf32>,
    %c118 = arith.constant 118 : index
    %c0_471 = arith.constant 0 : index
    %c0_472 = arith.constant 0 : index
    %472 = vector.load %arg0[%c118, %c0_471, %c0_472] : memref<128x40x40xf32, #tpu.memory_space<vmem>>, vector<1x40x40xf32>
    %473 = vector.shape_cast %472 : vector<1x40x40xf32> to vector<40x40xf32>
    %c119 = arith.constant 119 : index
    %c0_473 = arith.constant 0 : index
    %c0_474 = arith.constant 0 : index
    %474 = vector.load %arg0[%c119, %c0_473, %c0_474] : memref<128x40x40xf32, #tpu.memory_space<vmem>>, vector<1x40x40xf32>
    %475 = vector.shape_cast %474 : vector<1x40x40xf32> to vector<40x40xf32>
    %cst_475 = arith.constant dense<0.000000e+00> : vector<40x40xf32>
    %476 = tpu.matmul %473, %475, %cst_475 {dimension_numbers = #tpu.dot_dimension_numbers<[1], [0], [0], [1], [0, 0, 1, 1], [], []>} : vector<40x40xf32>, vector<40x40xf32>, vector<40x40xf32> -> vector<40x40xf32>
    %c59_476 = arith.constant 59 : index
    %c0_477 = arith.constant 0 : index
    %c0_478 = arith.constant 0 : index
    %477 = vector.load %arg2[%c59_476, %c0_477, %c0_478] : memref<64x40x40xf32, #tpu.memory_space<vmem>>, vector<1x40x40xf32>
    %478 = vector.shape_cast %477 : vector<1x40x40xf32> to vector<40x40xf32>
    %479 = vector.shape_cast %476 : vector<40x40xf32> to vector<1x40x40xf32>
    tpu.vector_store %arg2[%c59_476, %c0_477, %c0_478], %479 {strides = array<i32>} : memref<64x40x40xf32, #tpu.memory_space<vmem>>, vector<1x40x40xf32>,
    %c120 = arith.constant 120 : index
    %c0_479 = arith.constant 0 : index
    %c0_480 = arith.constant 0 : index
    %480 = vector.load %arg0[%c120, %c0_479, %c0_480] : memref<128x40x40xf32, #tpu.memory_space<vmem>>, vector<1x40x40xf32>
    %481 = vector.shape_cast %480 : vector<1x40x40xf32> to vector<40x40xf32>
    %c121 = arith.constant 121 : index
    %c0_481 = arith.constant 0 : index
    %c0_482 = arith.constant 0 : index
    %482 = vector.load %arg0[%c121, %c0_481, %c0_482] : memref<128x40x40xf32, #tpu.memory_space<vmem>>, vector<1x40x40xf32>
    %483 = vector.shape_cast %482 : vector<1x40x40xf32> to vector<40x40xf32>
    %cst_483 = arith.constant dense<0.000000e+00> : vector<40x40xf32>
    %484 = tpu.matmul %481, %483, %cst_483 {dimension_numbers = #tpu.dot_dimension_numbers<[1], [0], [0], [1], [0, 0, 1, 1], [], []>} : vector<40x40xf32>, vector<40x40xf32>, vector<40x40xf32> -> vector<40x40xf32>
    %c60_484 = arith.constant 60 : index
    %c0_485 = arith.constant 0 : index
    %c0_486 = arith.constant 0 : index
    %485 = vector.load %arg2[%c60_484, %c0_485, %c0_486] : memref<64x40x40xf32, #tpu.memory_space<vmem>>, vector<1x40x40xf32>
    %486 = vector.shape_cast %485 : vector<1x40x40xf32> to vector<40x40xf32>
    %487 = vector.shape_cast %484 : vector<40x40xf32> to vector<1x40x40xf32>
    tpu.vector_store %arg2[%c60_484, %c0_485, %c0_486], %487 {strides = array<i32>} : memref<64x40x40xf32, #tpu.memory_space<vmem>>, vector<1x40x40xf32>,
    %c122 = arith.constant 122 : index
    %c0_487 = arith.constant 0 : index
    %c0_488 = arith.constant 0 : index
    %488 = vector.load %arg0[%c122, %c0_487, %c0_488] : memref<128x40x40xf32, #tpu.memory_space<vmem>>, vector<1x40x40xf32>
    %489 = vector.shape_cast %488 : vector<1x40x40xf32> to vector<40x40xf32>
    %c123 = arith.constant 123 : index
    %c0_489 = arith.constant 0 : index
    %c0_490 = arith.constant 0 : index
    %490 = vector.load %arg0[%c123, %c0_489, %c0_490] : memref<128x40x40xf32, #tpu.memory_space<vmem>>, vector<1x40x40xf32>
    %491 = vector.shape_cast %490 : vector<1x40x40xf32> to vector<40x40xf32>
    %cst_491 = arith.constant dense<0.000000e+00> : vector<40x40xf32>
    %492 = tpu.matmul %489, %491, %cst_491 {dimension_numbers = #tpu.dot_dimension_numbers<[1], [0], [0], [1], [0, 0, 1, 1], [], []>} : vector<40x40xf32>, vector<40x40xf32>, vector<40x40xf32> -> vector<40x40xf32>
    %c61_492 = arith.constant 61 : index
    %c0_493 = arith.constant 0 : index
    %c0_494 = arith.constant 0 : index
    %493 = vector.load %arg2[%c61_492, %c0_493, %c0_494] : memref<64x40x40xf32, #tpu.memory_space<vmem>>, vector<1x40x40xf32>
    %494 = vector.shape_cast %493 : vector<1x40x40xf32> to vector<40x40xf32>
    %495 = vector.shape_cast %492 : vector<40x40xf32> to vector<1x40x40xf32>
    tpu.vector_store %arg2[%c61_492, %c0_493, %c0_494], %495 {strides = array<i32>} : memref<64x40x40xf32, #tpu.memory_space<vmem>>, vector<1x40x40xf32>,
    %c124 = arith.constant 124 : index
    %c0_495 = arith.constant 0 : index
    %c0_496 = arith.constant 0 : index
    %496 = vector.load %arg0[%c124, %c0_495, %c0_496] : memref<128x40x40xf32, #tpu.memory_space<vmem>>, vector<1x40x40xf32>
    %497 = vector.shape_cast %496 : vector<1x40x40xf32> to vector<40x40xf32>
    %c125 = arith.constant 125 : index
    %c0_497 = arith.constant 0 : index
    %c0_498 = arith.constant 0 : index
    %498 = vector.load %arg0[%c125, %c0_497, %c0_498] : memref<128x40x40xf32, #tpu.memory_space<vmem>>, vector<1x40x40xf32>
    %499 = vector.shape_cast %498 : vector<1x40x40xf32> to vector<40x40xf32>
    %cst_499 = arith.constant dense<0.000000e+00> : vector<40x40xf32>
    %500 = tpu.matmul %497, %499, %cst_499 {dimension_numbers = #tpu.dot_dimension_numbers<[1], [0], [0], [1], [0, 0, 1, 1], [], []>} : vector<40x40xf32>, vector<40x40xf32>, vector<40x40xf32> -> vector<40x40xf32>
    %c62_500 = arith.constant 62 : index
    %c0_501 = arith.constant 0 : index
    %c0_502 = arith.constant 0 : index
    %501 = vector.load %arg2[%c62_500, %c0_501, %c0_502] : memref<64x40x40xf32, #tpu.memory_space<vmem>>, vector<1x40x40xf32>
    %502 = vector.shape_cast %501 : vector<1x40x40xf32> to vector<40x40xf32>
    %503 = vector.shape_cast %500 : vector<40x40xf32> to vector<1x40x40xf32>
    tpu.vector_store %arg2[%c62_500, %c0_501, %c0_502], %503 {strides = array<i32>} : memref<64x40x40xf32, #tpu.memory_space<vmem>>, vector<1x40x40xf32>,
    %c126 = arith.constant 126 : index
    %c0_503 = arith.constant 0 : index
    %c0_504 = arith.constant 0 : index
    %504 = vector.load %arg0[%c126, %c0_503, %c0_504] : memref<128x40x40xf32, #tpu.memory_space<vmem>>, vector<1x40x40xf32>
    %505 = vector.shape_cast %504 : vector<1x40x40xf32> to vector<40x40xf32>
    %c127 = arith.constant 127 : index
    %c0_505 = arith.constant 0 : index
    %c0_506 = arith.constant 0 : index
    %506 = vector.load %arg0[%c127, %c0_505, %c0_506] : memref<128x40x40xf32, #tpu.memory_space<vmem>>, vector<1x40x40xf32>
    %507 = vector.shape_cast %506 : vector<1x40x40xf32> to vector<40x40xf32>
    %cst_507 = arith.constant dense<0.000000e+00> : vector<40x40xf32>
    %508 = tpu.matmul %505, %507, %cst_507 {dimension_numbers = #tpu.dot_dimension_numbers<[1], [0], [0], [1], [0, 0, 1, 1], [], []>} : vector<40x40xf32>, vector<40x40xf32>, vector<40x40xf32> -> vector<40x40xf32>
    %c63_508 = arith.constant 63 : index
    %c0_509 = arith.constant 0 : index
    %c0_510 = arith.constant 0 : index
    %509 = vector.load %arg2[%c63_508, %c0_509, %c0_510] : memref<64x40x40xf32, #tpu.memory_space<vmem>>, vector<1x40x40xf32>
    %510 = vector.shape_cast %509 : vector<1x40x40xf32> to vector<40x40xf32>
    %511 = vector.shape_cast %508 : vector<40x40xf32> to vector<1x40x40xf32>
    tpu.vector_store %arg2[%c63_508, %c0_509, %c0_510], %511 {strides = array<i32>} : memref<64x40x40xf32, #tpu.memory_space<vmem>>, vector<1x40x40xf32>,
    %c0_511 = arith.constant 0 : index
    %c0_512 = arith.constant 0 : index
    %c0_513 = arith.constant 0 : index
    %512 = vector.load %arg2[%c0_511, %c0_512, %c0_513] : memref<64x40x40xf32, #tpu.memory_space<vmem>>, vector<1x40x40xf32>
    %513 = vector.shape_cast %512 : vector<1x40x40xf32> to vector<40x40xf32>
    %c1_514 = arith.constant 1 : index
    %c0_515 = arith.constant 0 : index
    %c0_516 = arith.constant 0 : index
    %514 = vector.load %arg2[%c1_514, %c0_515, %c0_516] : memref<64x40x40xf32, #tpu.memory_space<vmem>>, vector<1x40x40xf32>
    %515 = vector.shape_cast %514 : vector<1x40x40xf32> to vector<40x40xf32>
    %cst_517 = arith.constant dense<0.000000e+00> : vector<40x40xf32>
    %516 = tpu.matmul %513, %515, %cst_517 {dimension_numbers = #tpu.dot_dimension_numbers<[1], [0], [0], [1], [0, 0, 1, 1], [], []>} : vector<40x40xf32>, vector<40x40xf32>, vector<40x40xf32> -> vector<40x40xf32>
    %c0_518 = arith.constant 0 : index
    %c0_519 = arith.constant 0 : index
    %c0_520 = arith.constant 0 : index
    %517 = vector.load %arg2[%c0_518, %c0_519, %c0_520] : memref<64x40x40xf32, #tpu.memory_space<vmem>>, vector<1x40x40xf32>
    %518 = vector.shape_cast %517 : vector<1x40x40xf32> to vector<40x40xf32>
    %519 = vector.shape_cast %516 : vector<40x40xf32> to vector<1x40x40xf32>
    tpu.vector_store %arg2[%c0_518, %c0_519, %c0_520], %519 {strides = array<i32>} : memref<64x40x40xf32, #tpu.memory_space<vmem>>, vector<1x40x40xf32>,
    %c2_521 = arith.constant 2 : index
    %c0_522 = arith.constant 0 : index
    %c0_523 = arith.constant 0 : index
    %520 = vector.load %arg2[%c2_521, %c0_522, %c0_523] : memref<64x40x40xf32, #tpu.memory_space<vmem>>, vector<1x40x40xf32>
    %521 = vector.shape_cast %520 : vector<1x40x40xf32> to vector<40x40xf32>
    %c3_524 = arith.constant 3 : index
    %c0_525 = arith.constant 0 : index
    %c0_526 = arith.constant 0 : index
    %522 = vector.load %arg2[%c3_524, %c0_525, %c0_526] : memref<64x40x40xf32, #tpu.memory_space<vmem>>, vector<1x40x40xf32>
    %523 = vector.shape_cast %522 : vector<1x40x40xf32> to vector<40x40xf32>
    %cst_527 = arith.constant dense<0.000000e+00> : vector<40x40xf32>
    %524 = tpu.matmul %521, %523, %cst_527 {dimension_numbers = #tpu.dot_dimension_numbers<[1], [0], [0], [1], [0, 0, 1, 1], [], []>} : vector<40x40xf32>, vector<40x40xf32>, vector<40x40xf32> -> vector<40x40xf32>
    %c1_528 = arith.constant 1 : index
    %c0_529 = arith.constant 0 : index
    %c0_530 = arith.constant 0 : index
    %525 = vector.load %arg2[%c1_528, %c0_529, %c0_530] : memref<64x40x40xf32, #tpu.memory_space<vmem>>, vector<1x40x40xf32>
    %526 = vector.shape_cast %525 : vector<1x40x40xf32> to vector<40x40xf32>
    %527 = vector.shape_cast %524 : vector<40x40xf32> to vector<1x40x40xf32>
    tpu.vector_store %arg2[%c1_528, %c0_529, %c0_530], %527 {strides = array<i32>} : memref<64x40x40xf32, #tpu.memory_space<vmem>>, vector<1x40x40xf32>,
    %c4_531 = arith.constant 4 : index
    %c0_532 = arith.constant 0 : index
    %c0_533 = arith.constant 0 : index
    %528 = vector.load %arg2[%c4_531, %c0_532, %c0_533] : memref<64x40x40xf32, #tpu.memory_space<vmem>>, vector<1x40x40xf32>
    %529 = vector.shape_cast %528 : vector<1x40x40xf32> to vector<40x40xf32>
    %c5_534 = arith.constant 5 : index
    %c0_535 = arith.constant 0 : index
    %c0_536 = arith.constant 0 : index
    %530 = vector.load %arg2[%c5_534, %c0_535, %c0_536] : memref<64x40x40xf32, #tpu.memory_space<vmem>>, vector<1x40x40xf32>
    %531 = vector.shape_cast %530 : vector<1x40x40xf32> to vector<40x40xf32>
    %cst_537 = arith.constant dense<0.000000e+00> : vector<40x40xf32>
    %532 = tpu.matmul %529, %531, %cst_537 {dimension_numbers = #tpu.dot_dimension_numbers<[1], [0], [0], [1], [0, 0, 1, 1], [], []>} : vector<40x40xf32>, vector<40x40xf32>, vector<40x40xf32> -> vector<40x40xf32>
    %c2_538 = arith.constant 2 : index
    %c0_539 = arith.constant 0 : index
    %c0_540 = arith.constant 0 : index
    %533 = vector.load %arg2[%c2_538, %c0_539, %c0_540] : memref<64x40x40xf32, #tpu.memory_space<vmem>>, vector<1x40x40xf32>
    %534 = vector.shape_cast %533 : vector<1x40x40xf32> to vector<40x40xf32>
    %535 = vector.shape_cast %532 : vector<40x40xf32> to vector<1x40x40xf32>
    tpu.vector_store %arg2[%c2_538, %c0_539, %c0_540], %535 {strides = array<i32>} : memref<64x40x40xf32, #tpu.memory_space<vmem>>, vector<1x40x40xf32>,
    %c6_541 = arith.constant 6 : index
    %c0_542 = arith.constant 0 : index
    %c0_543 = arith.constant 0 : index
    %536 = vector.load %arg2[%c6_541, %c0_542, %c0_543] : memref<64x40x40xf32, #tpu.memory_space<vmem>>, vector<1x40x40xf32>
    %537 = vector.shape_cast %536 : vector<1x40x40xf32> to vector<40x40xf32>
    %c7_544 = arith.constant 7 : index
    %c0_545 = arith.constant 0 : index
    %c0_546 = arith.constant 0 : index
    %538 = vector.load %arg2[%c7_544, %c0_545, %c0_546] : memref<64x40x40xf32, #tpu.memory_space<vmem>>, vector<1x40x40xf32>
    %539 = vector.shape_cast %538 : vector<1x40x40xf32> to vector<40x40xf32>
    %cst_547 = arith.constant dense<0.000000e+00> : vector<40x40xf32>
    %540 = tpu.matmul %537, %539, %cst_547 {dimension_numbers = #tpu.dot_dimension_numbers<[1], [0], [0], [1], [0, 0, 1, 1], [], []>} : vector<40x40xf32>, vector<40x40xf32>, vector<40x40xf32> -> vector<40x40xf32>
    %c3_548 = arith.constant 3 : index
    %c0_549 = arith.constant 0 : index
    %c0_550 = arith.constant 0 : index
    %541 = vector.load %arg2[%c3_548, %c0_549, %c0_550] : memref<64x40x40xf32, #tpu.memory_space<vmem>>, vector<1x40x40xf32>
    %542 = vector.shape_cast %541 : vector<1x40x40xf32> to vector<40x40xf32>
    %543 = vector.shape_cast %540 : vector<40x40xf32> to vector<1x40x40xf32>
    tpu.vector_store %arg2[%c3_548, %c0_549, %c0_550], %543 {strides = array<i32>} : memref<64x40x40xf32, #tpu.memory_space<vmem>>, vector<1x40x40xf32>,
    %c8_551 = arith.constant 8 : index
    %c0_552 = arith.constant 0 : index
    %c0_553 = arith.constant 0 : index
    %544 = vector.load %arg2[%c8_551, %c0_552, %c0_553] : memref<64x40x40xf32, #tpu.memory_space<vmem>>, vector<1x40x40xf32>
    %545 = vector.shape_cast %544 : vector<1x40x40xf32> to vector<40x40xf32>
    %c9_554 = arith.constant 9 : index
    %c0_555 = arith.constant 0 : index
    %c0_556 = arith.constant 0 : index
    %546 = vector.load %arg2[%c9_554, %c0_555, %c0_556] : memref<64x40x40xf32, #tpu.memory_space<vmem>>, vector<1x40x40xf32>
    %547 = vector.shape_cast %546 : vector<1x40x40xf32> to vector<40x40xf32>
    %cst_557 = arith.constant dense<0.000000e+00> : vector<40x40xf32>
    %548 = tpu.matmul %545, %547, %cst_557 {dimension_numbers = #tpu.dot_dimension_numbers<[1], [0], [0], [1], [0, 0, 1, 1], [], []>} : vector<40x40xf32>, vector<40x40xf32>, vector<40x40xf32> -> vector<40x40xf32>
    %c4_558 = arith.constant 4 : index
    %c0_559 = arith.constant 0 : index
    %c0_560 = arith.constant 0 : index
    %549 = vector.load %arg2[%c4_558, %c0_559, %c0_560] : memref<64x40x40xf32, #tpu.memory_space<vmem>>, vector<1x40x40xf32>
    %550 = vector.shape_cast %549 : vector<1x40x40xf32> to vector<40x40xf32>
    %551 = vector.shape_cast %548 : vector<40x40xf32> to vector<1x40x40xf32>
    tpu.vector_store %arg2[%c4_558, %c0_559, %c0_560], %551 {strides = array<i32>} : memref<64x40x40xf32, #tpu.memory_space<vmem>>, vector<1x40x40xf32>,
    %c10_561 = arith.constant 10 : index
    %c0_562 = arith.constant 0 : index
    %c0_563 = arith.constant 0 : index
    %552 = vector.load %arg2[%c10_561, %c0_562, %c0_563] : memref<64x40x40xf32, #tpu.memory_space<vmem>>, vector<1x40x40xf32>
    %553 = vector.shape_cast %552 : vector<1x40x40xf32> to vector<40x40xf32>
    %c11_564 = arith.constant 11 : index
    %c0_565 = arith.constant 0 : index
    %c0_566 = arith.constant 0 : index
    %554 = vector.load %arg2[%c11_564, %c0_565, %c0_566] : memref<64x40x40xf32, #tpu.memory_space<vmem>>, vector<1x40x40xf32>
    %555 = vector.shape_cast %554 : vector<1x40x40xf32> to vector<40x40xf32>
    %cst_567 = arith.constant dense<0.000000e+00> : vector<40x40xf32>
    %556 = tpu.matmul %553, %555, %cst_567 {dimension_numbers = #tpu.dot_dimension_numbers<[1], [0], [0], [1], [0, 0, 1, 1], [], []>} : vector<40x40xf32>, vector<40x40xf32>, vector<40x40xf32> -> vector<40x40xf32>
    %c5_568 = arith.constant 5 : index
    %c0_569 = arith.constant 0 : index
    %c0_570 = arith.constant 0 : index
    %557 = vector.load %arg2[%c5_568, %c0_569, %c0_570] : memref<64x40x40xf32, #tpu.memory_space<vmem>>, vector<1x40x40xf32>
    %558 = vector.shape_cast %557 : vector<1x40x40xf32> to vector<40x40xf32>
    %559 = vector.shape_cast %556 : vector<40x40xf32> to vector<1x40x40xf32>
    tpu.vector_store %arg2[%c5_568, %c0_569, %c0_570], %559 {strides = array<i32>} : memref<64x40x40xf32, #tpu.memory_space<vmem>>, vector<1x40x40xf32>,
    %c12_571 = arith.constant 12 : index
    %c0_572 = arith.constant 0 : index
    %c0_573 = arith.constant 0 : index
    %560 = vector.load %arg2[%c12_571, %c0_572, %c0_573] : memref<64x40x40xf32, #tpu.memory_space<vmem>>, vector<1x40x40xf32>
    %561 = vector.shape_cast %560 : vector<1x40x40xf32> to vector<40x40xf32>
    %c13_574 = arith.constant 13 : index
    %c0_575 = arith.constant 0 : index
    %c0_576 = arith.constant 0 : index
    %562 = vector.load %arg2[%c13_574, %c0_575, %c0_576] : memref<64x40x40xf32, #tpu.memory_space<vmem>>, vector<1x40x40xf32>
    %563 = vector.shape_cast %562 : vector<1x40x40xf32> to vector<40x40xf32>
    %cst_577 = arith.constant dense<0.000000e+00> : vector<40x40xf32>
    %564 = tpu.matmul %561, %563, %cst_577 {dimension_numbers = #tpu.dot_dimension_numbers<[1], [0], [0], [1], [0, 0, 1, 1], [], []>} : vector<40x40xf32>, vector<40x40xf32>, vector<40x40xf32> -> vector<40x40xf32>
    %c6_578 = arith.constant 6 : index
    %c0_579 = arith.constant 0 : index
    %c0_580 = arith.constant 0 : index
    %565 = vector.load %arg2[%c6_578, %c0_579, %c0_580] : memref<64x40x40xf32, #tpu.memory_space<vmem>>, vector<1x40x40xf32>
    %566 = vector.shape_cast %565 : vector<1x40x40xf32> to vector<40x40xf32>
    %567 = vector.shape_cast %564 : vector<40x40xf32> to vector<1x40x40xf32>
    tpu.vector_store %arg2[%c6_578, %c0_579, %c0_580], %567 {strides = array<i32>} : memref<64x40x40xf32, #tpu.memory_space<vmem>>, vector<1x40x40xf32>,
    %c14_581 = arith.constant 14 : index
    %c0_582 = arith.constant 0 : index
    %c0_583 = arith.constant 0 : index
    %568 = vector.load %arg2[%c14_581, %c0_582, %c0_583] : memref<64x40x40xf32, #tpu.memory_space<vmem>>, vector<1x40x40xf32>
    %569 = vector.shape_cast %568 : vector<1x40x40xf32> to vector<40x40xf32>
    %c15_584 = arith.constant 15 : index
    %c0_585 = arith.constant 0 : index
    %c0_586 = arith.constant 0 : index
    %570 = vector.load %arg2[%c15_584, %c0_585, %c0_586] : memref<64x40x40xf32, #tpu.memory_space<vmem>>, vector<1x40x40xf32>
    %571 = vector.shape_cast %570 : vector<1x40x40xf32> to vector<40x40xf32>
    %cst_587 = arith.constant dense<0.000000e+00> : vector<40x40xf32>
    %572 = tpu.matmul %569, %571, %cst_587 {dimension_numbers = #tpu.dot_dimension_numbers<[1], [0], [0], [1], [0, 0, 1, 1], [], []>} : vector<40x40xf32>, vector<40x40xf32>, vector<40x40xf32> -> vector<40x40xf32>
    %c7_588 = arith.constant 7 : index
    %c0_589 = arith.constant 0 : index
    %c0_590 = arith.constant 0 : index
    %573 = vector.load %arg2[%c7_588, %c0_589, %c0_590] : memref<64x40x40xf32, #tpu.memory_space<vmem>>, vector<1x40x40xf32>
    %574 = vector.shape_cast %573 : vector<1x40x40xf32> to vector<40x40xf32>
    %575 = vector.shape_cast %572 : vector<40x40xf32> to vector<1x40x40xf32>
    tpu.vector_store %arg2[%c7_588, %c0_589, %c0_590], %575 {strides = array<i32>} : memref<64x40x40xf32, #tpu.memory_space<vmem>>, vector<1x40x40xf32>,
    %c16_591 = arith.constant 16 : index
    %c0_592 = arith.constant 0 : index
    %c0_593 = arith.constant 0 : index
    %576 = vector.load %arg2[%c16_591, %c0_592, %c0_593] : memref<64x40x40xf32, #tpu.memory_space<vmem>>, vector<1x40x40xf32>
    %577 = vector.shape_cast %576 : vector<1x40x40xf32> to vector<40x40xf32>
    %c17_594 = arith.constant 17 : index
    %c0_595 = arith.constant 0 : index
    %c0_596 = arith.constant 0 : index
    %578 = vector.load %arg2[%c17_594, %c0_595, %c0_596] : memref<64x40x40xf32, #tpu.memory_space<vmem>>, vector<1x40x40xf32>
    %579 = vector.shape_cast %578 : vector<1x40x40xf32> to vector<40x40xf32>
    %cst_597 = arith.constant dense<0.000000e+00> : vector<40x40xf32>
    %580 = tpu.matmul %577, %579, %cst_597 {dimension_numbers = #tpu.dot_dimension_numbers<[1], [0], [0], [1], [0, 0, 1, 1], [], []>} : vector<40x40xf32>, vector<40x40xf32>, vector<40x40xf32> -> vector<40x40xf32>
    %c8_598 = arith.constant 8 : index
    %c0_599 = arith.constant 0 : index
    %c0_600 = arith.constant 0 : index
    %581 = vector.load %arg2[%c8_598, %c0_599, %c0_600] : memref<64x40x40xf32, #tpu.memory_space<vmem>>, vector<1x40x40xf32>
    %582 = vector.shape_cast %581 : vector<1x40x40xf32> to vector<40x40xf32>
    %583 = vector.shape_cast %580 : vector<40x40xf32> to vector<1x40x40xf32>
    tpu.vector_store %arg2[%c8_598, %c0_599, %c0_600], %583 {strides = array<i32>} : memref<64x40x40xf32, #tpu.memory_space<vmem>>, vector<1x40x40xf32>,
    %c18_601 = arith.constant 18 : index
    %c0_602 = arith.constant 0 : index
    %c0_603 = arith.constant 0 : index
    %584 = vector.load %arg2[%c18_601, %c0_602, %c0_603] : memref<64x40x40xf32, #tpu.memory_space<vmem>>, vector<1x40x40xf32>
    %585 = vector.shape_cast %584 : vector<1x40x40xf32> to vector<40x40xf32>
    %c19_604 = arith.constant 19 : index
    %c0_605 = arith.constant 0 : index
    %c0_606 = arith.constant 0 : index
    %586 = vector.load %arg2[%c19_604, %c0_605, %c0_606] : memref<64x40x40xf32, #tpu.memory_space<vmem>>, vector<1x40x40xf32>
    %587 = vector.shape_cast %586 : vector<1x40x40xf32> to vector<40x40xf32>
    %cst_607 = arith.constant dense<0.000000e+00> : vector<40x40xf32>
    %588 = tpu.matmul %585, %587, %cst_607 {dimension_numbers = #tpu.dot_dimension_numbers<[1], [0], [0], [1], [0, 0, 1, 1], [], []>} : vector<40x40xf32>, vector<40x40xf32>, vector<40x40xf32> -> vector<40x40xf32>
    %c9_608 = arith.constant 9 : index
    %c0_609 = arith.constant 0 : index
    %c0_610 = arith.constant 0 : index
    %589 = vector.load %arg2[%c9_608, %c0_609, %c0_610] : memref<64x40x40xf32, #tpu.memory_space<vmem>>, vector<1x40x40xf32>
    %590 = vector.shape_cast %589 : vector<1x40x40xf32> to vector<40x40xf32>
    %591 = vector.shape_cast %588 : vector<40x40xf32> to vector<1x40x40xf32>
    tpu.vector_store %arg2[%c9_608, %c0_609, %c0_610], %591 {strides = array<i32>} : memref<64x40x40xf32, #tpu.memory_space<vmem>>, vector<1x40x40xf32>,
    %c20_611 = arith.constant 20 : index
    %c0_612 = arith.constant 0 : index
    %c0_613 = arith.constant 0 : index
    %592 = vector.load %arg2[%c20_611, %c0_612, %c0_613] : memref<64x40x40xf32, #tpu.memory_space<vmem>>, vector<1x40x40xf32>
    %593 = vector.shape_cast %592 : vector<1x40x40xf32> to vector<40x40xf32>
    %c21_614 = arith.constant 21 : index
    %c0_615 = arith.constant 0 : index
    %c0_616 = arith.constant 0 : index
    %594 = vector.load %arg2[%c21_614, %c0_615, %c0_616] : memref<64x40x40xf32, #tpu.memory_space<vmem>>, vector<1x40x40xf32>
    %595 = vector.shape_cast %594 : vector<1x40x40xf32> to vector<40x40xf32>
    %cst_617 = arith.constant dense<0.000000e+00> : vector<40x40xf32>
    %596 = tpu.matmul %593, %595, %cst_617 {dimension_numbers = #tpu.dot_dimension_numbers<[1], [0], [0], [1], [0, 0, 1, 1], [], []>} : vector<40x40xf32>, vector<40x40xf32>, vector<40x40xf32> -> vector<40x40xf32>
    %c10_618 = arith.constant 10 : index
    %c0_619 = arith.constant 0 : index
    %c0_620 = arith.constant 0 : index
    %597 = vector.load %arg2[%c10_618, %c0_619, %c0_620] : memref<64x40x40xf32, #tpu.memory_space<vmem>>, vector<1x40x40xf32>
    %598 = vector.shape_cast %597 : vector<1x40x40xf32> to vector<40x40xf32>
    %599 = vector.shape_cast %596 : vector<40x40xf32> to vector<1x40x40xf32>
    tpu.vector_store %arg2[%c10_618, %c0_619, %c0_620], %599 {strides = array<i32>} : memref<64x40x40xf32, #tpu.memory_space<vmem>>, vector<1x40x40xf32>,
    %c22_621 = arith.constant 22 : index
    %c0_622 = arith.constant 0 : index
    %c0_623 = arith.constant 0 : index
    %600 = vector.load %arg2[%c22_621, %c0_622, %c0_623] : memref<64x40x40xf32, #tpu.memory_space<vmem>>, vector<1x40x40xf32>
    %601 = vector.shape_cast %600 : vector<1x40x40xf32> to vector<40x40xf32>
    %c23_624 = arith.constant 23 : index
    %c0_625 = arith.constant 0 : index
    %c0_626 = arith.constant 0 : index
    %602 = vector.load %arg2[%c23_624, %c0_625, %c0_626] : memref<64x40x40xf32, #tpu.memory_space<vmem>>, vector<1x40x40xf32>
    %603 = vector.shape_cast %602 : vector<1x40x40xf32> to vector<40x40xf32>
    %cst_627 = arith.constant dense<0.000000e+00> : vector<40x40xf32>
    %604 = tpu.matmul %601, %603, %cst_627 {dimension_numbers = #tpu.dot_dimension_numbers<[1], [0], [0], [1], [0, 0, 1, 1], [], []>} : vector<40x40xf32>, vector<40x40xf32>, vector<40x40xf32> -> vector<40x40xf32>
    %c11_628 = arith.constant 11 : index
    %c0_629 = arith.constant 0 : index
    %c0_630 = arith.constant 0 : index
    %605 = vector.load %arg2[%c11_628, %c0_629, %c0_630] : memref<64x40x40xf32, #tpu.memory_space<vmem>>, vector<1x40x40xf32>
    %606 = vector.shape_cast %605 : vector<1x40x40xf32> to vector<40x40xf32>
    %607 = vector.shape_cast %604 : vector<40x40xf32> to vector<1x40x40xf32>
    tpu.vector_store %arg2[%c11_628, %c0_629, %c0_630], %607 {strides = array<i32>} : memref<64x40x40xf32, #tpu.memory_space<vmem>>, vector<1x40x40xf32>,
    %c24_631 = arith.constant 24 : index
    %c0_632 = arith.constant 0 : index
    %c0_633 = arith.constant 0 : index
    %608 = vector.load %arg2[%c24_631, %c0_632, %c0_633] : memref<64x40x40xf32, #tpu.memory_space<vmem>>, vector<1x40x40xf32>
    %609 = vector.shape_cast %608 : vector<1x40x40xf32> to vector<40x40xf32>
    %c25_634 = arith.constant 25 : index
    %c0_635 = arith.constant 0 : index
    %c0_636 = arith.constant 0 : index
    %610 = vector.load %arg2[%c25_634, %c0_635, %c0_636] : memref<64x40x40xf32, #tpu.memory_space<vmem>>, vector<1x40x40xf32>
    %611 = vector.shape_cast %610 : vector<1x40x40xf32> to vector<40x40xf32>
    %cst_637 = arith.constant dense<0.000000e+00> : vector<40x40xf32>
    %612 = tpu.matmul %609, %611, %cst_637 {dimension_numbers = #tpu.dot_dimension_numbers<[1], [0], [0], [1], [0, 0, 1, 1], [], []>} : vector<40x40xf32>, vector<40x40xf32>, vector<40x40xf32> -> vector<40x40xf32>
    %c12_638 = arith.constant 12 : index
    %c0_639 = arith.constant 0 : index
    %c0_640 = arith.constant 0 : index
    %613 = vector.load %arg2[%c12_638, %c0_639, %c0_640] : memref<64x40x40xf32, #tpu.memory_space<vmem>>, vector<1x40x40xf32>
    %614 = vector.shape_cast %613 : vector<1x40x40xf32> to vector<40x40xf32>
    %615 = vector.shape_cast %612 : vector<40x40xf32> to vector<1x40x40xf32>
    tpu.vector_store %arg2[%c12_638, %c0_639, %c0_640], %615 {strides = array<i32>} : memref<64x40x40xf32, #tpu.memory_space<vmem>>, vector<1x40x40xf32>,
    %c26_641 = arith.constant 26 : index
    %c0_642 = arith.constant 0 : index
    %c0_643 = arith.constant 0 : index
    %616 = vector.load %arg2[%c26_641, %c0_642, %c0_643] : memref<64x40x40xf32, #tpu.memory_space<vmem>>, vector<1x40x40xf32>
    %617 = vector.shape_cast %616 : vector<1x40x40xf32> to vector<40x40xf32>
    %c27_644 = arith.constant 27 : index
    %c0_645 = arith.constant 0 : index
    %c0_646 = arith.constant 0 : index
    %618 = vector.load %arg2[%c27_644, %c0_645, %c0_646] : memref<64x40x40xf32, #tpu.memory_space<vmem>>, vector<1x40x40xf32>
    %619 = vector.shape_cast %618 : vector<1x40x40xf32> to vector<40x40xf32>
    %cst_647 = arith.constant dense<0.000000e+00> : vector<40x40xf32>
    %620 = tpu.matmul %617, %619, %cst_647 {dimension_numbers = #tpu.dot_dimension_numbers<[1], [0], [0], [1], [0, 0, 1, 1], [], []>} : vector<40x40xf32>, vector<40x40xf32>, vector<40x40xf32> -> vector<40x40xf32>
    %c13_648 = arith.constant 13 : index
    %c0_649 = arith.constant 0 : index
    %c0_650 = arith.constant 0 : index
    %621 = vector.load %arg2[%c13_648, %c0_649, %c0_650] : memref<64x40x40xf32, #tpu.memory_space<vmem>>, vector<1x40x40xf32>
    %622 = vector.shape_cast %621 : vector<1x40x40xf32> to vector<40x40xf32>
    %623 = vector.shape_cast %620 : vector<40x40xf32> to vector<1x40x40xf32>
    tpu.vector_store %arg2[%c13_648, %c0_649, %c0_650], %623 {strides = array<i32>} : memref<64x40x40xf32, #tpu.memory_space<vmem>>, vector<1x40x40xf32>,
    %c28_651 = arith.constant 28 : index
    %c0_652 = arith.constant 0 : index
    %c0_653 = arith.constant 0 : index
    %624 = vector.load %arg2[%c28_651, %c0_652, %c0_653] : memref<64x40x40xf32, #tpu.memory_space<vmem>>, vector<1x40x40xf32>
    %625 = vector.shape_cast %624 : vector<1x40x40xf32> to vector<40x40xf32>
    %c29_654 = arith.constant 29 : index
    %c0_655 = arith.constant 0 : index
    %c0_656 = arith.constant 0 : index
    %626 = vector.load %arg2[%c29_654, %c0_655, %c0_656] : memref<64x40x40xf32, #tpu.memory_space<vmem>>, vector<1x40x40xf32>
    %627 = vector.shape_cast %626 : vector<1x40x40xf32> to vector<40x40xf32>
    %cst_657 = arith.constant dense<0.000000e+00> : vector<40x40xf32>
    %628 = tpu.matmul %625, %627, %cst_657 {dimension_numbers = #tpu.dot_dimension_numbers<[1], [0], [0], [1], [0, 0, 1, 1], [], []>} : vector<40x40xf32>, vector<40x40xf32>, vector<40x40xf32> -> vector<40x40xf32>
    %c14_658 = arith.constant 14 : index
    %c0_659 = arith.constant 0 : index
    %c0_660 = arith.constant 0 : index
    %629 = vector.load %arg2[%c14_658, %c0_659, %c0_660] : memref<64x40x40xf32, #tpu.memory_space<vmem>>, vector<1x40x40xf32>
    %630 = vector.shape_cast %629 : vector<1x40x40xf32> to vector<40x40xf32>
    %631 = vector.shape_cast %628 : vector<40x40xf32> to vector<1x40x40xf32>
    tpu.vector_store %arg2[%c14_658, %c0_659, %c0_660], %631 {strides = array<i32>} : memref<64x40x40xf32, #tpu.memory_space<vmem>>, vector<1x40x40xf32>,
    %c30_661 = arith.constant 30 : index
    %c0_662 = arith.constant 0 : index
    %c0_663 = arith.constant 0 : index
    %632 = vector.load %arg2[%c30_661, %c0_662, %c0_663] : memref<64x40x40xf32, #tpu.memory_space<vmem>>, vector<1x40x40xf32>
    %633 = vector.shape_cast %632 : vector<1x40x40xf32> to vector<40x40xf32>
    %c31_664 = arith.constant 31 : index
    %c0_665 = arith.constant 0 : index
    %c0_666 = arith.constant 0 : index
    %634 = vector.load %arg2[%c31_664, %c0_665, %c0_666] : memref<64x40x40xf32, #tpu.memory_space<vmem>>, vector<1x40x40xf32>
    %635 = vector.shape_cast %634 : vector<1x40x40xf32> to vector<40x40xf32>
    %cst_667 = arith.constant dense<0.000000e+00> : vector<40x40xf32>
    %636 = tpu.matmul %633, %635, %cst_667 {dimension_numbers = #tpu.dot_dimension_numbers<[1], [0], [0], [1], [0, 0, 1, 1], [], []>} : vector<40x40xf32>, vector<40x40xf32>, vector<40x40xf32> -> vector<40x40xf32>
    %c15_668 = arith.constant 15 : index
    %c0_669 = arith.constant 0 : index
    %c0_670 = arith.constant 0 : index
    %637 = vector.load %arg2[%c15_668, %c0_669, %c0_670] : memref<64x40x40xf32, #tpu.memory_space<vmem>>, vector<1x40x40xf32>
    %638 = vector.shape_cast %637 : vector<1x40x40xf32> to vector<40x40xf32>
    %639 = vector.shape_cast %636 : vector<40x40xf32> to vector<1x40x40xf32>
    tpu.vector_store %arg2[%c15_668, %c0_669, %c0_670], %639 {strides = array<i32>} : memref<64x40x40xf32, #tpu.memory_space<vmem>>, vector<1x40x40xf32>,
    %c32_671 = arith.constant 32 : index
    %c0_672 = arith.constant 0 : index
    %c0_673 = arith.constant 0 : index
    %640 = vector.load %arg2[%c32_671, %c0_672, %c0_673] : memref<64x40x40xf32, #tpu.memory_space<vmem>>, vector<1x40x40xf32>
    %641 = vector.shape_cast %640 : vector<1x40x40xf32> to vector<40x40xf32>
    %c33_674 = arith.constant 33 : index
    %c0_675 = arith.constant 0 : index
    %c0_676 = arith.constant 0 : index
    %642 = vector.load %arg2[%c33_674, %c0_675, %c0_676] : memref<64x40x40xf32, #tpu.memory_space<vmem>>, vector<1x40x40xf32>
    %643 = vector.shape_cast %642 : vector<1x40x40xf32> to vector<40x40xf32>
    %cst_677 = arith.constant dense<0.000000e+00> : vector<40x40xf32>
    %644 = tpu.matmul %641, %643, %cst_677 {dimension_numbers = #tpu.dot_dimension_numbers<[1], [0], [0], [1], [0, 0, 1, 1], [], []>} : vector<40x40xf32>, vector<40x40xf32>, vector<40x40xf32> -> vector<40x40xf32>
    %c16_678 = arith.constant 16 : index
    %c0_679 = arith.constant 0 : index
    %c0_680 = arith.constant 0 : index
    %645 = vector.load %arg2[%c16_678, %c0_679, %c0_680] : memref<64x40x40xf32, #tpu.memory_space<vmem>>, vector<1x40x40xf32>
    %646 = vector.shape_cast %645 : vector<1x40x40xf32> to vector<40x40xf32>
    %647 = vector.shape_cast %644 : vector<40x40xf32> to vector<1x40x40xf32>
    tpu.vector_store %arg2[%c16_678, %c0_679, %c0_680], %647 {strides = array<i32>} : memref<64x40x40xf32, #tpu.memory_space<vmem>>, vector<1x40x40xf32>,
    %c34_681 = arith.constant 34 : index
    %c0_682 = arith.constant 0 : index
    %c0_683 = arith.constant 0 : index
    %648 = vector.load %arg2[%c34_681, %c0_682, %c0_683] : memref<64x40x40xf32, #tpu.memory_space<vmem>>, vector<1x40x40xf32>
    %649 = vector.shape_cast %648 : vector<1x40x40xf32> to vector<40x40xf32>
    %c35_684 = arith.constant 35 : index
    %c0_685 = arith.constant 0 : index
    %c0_686 = arith.constant 0 : index
    %650 = vector.load %arg2[%c35_684, %c0_685, %c0_686] : memref<64x40x40xf32, #tpu.memory_space<vmem>>, vector<1x40x40xf32>
    %651 = vector.shape_cast %650 : vector<1x40x40xf32> to vector<40x40xf32>
    %cst_687 = arith.constant dense<0.000000e+00> : vector<40x40xf32>
    %652 = tpu.matmul %649, %651, %cst_687 {dimension_numbers = #tpu.dot_dimension_numbers<[1], [0], [0], [1], [0, 0, 1, 1], [], []>} : vector<40x40xf32>, vector<40x40xf32>, vector<40x40xf32> -> vector<40x40xf32>
    %c17_688 = arith.constant 17 : index
    %c0_689 = arith.constant 0 : index
    %c0_690 = arith.constant 0 : index
    %653 = vector.load %arg2[%c17_688, %c0_689, %c0_690] : memref<64x40x40xf32, #tpu.memory_space<vmem>>, vector<1x40x40xf32>
    %654 = vector.shape_cast %653 : vector<1x40x40xf32> to vector<40x40xf32>
    %655 = vector.shape_cast %652 : vector<40x40xf32> to vector<1x40x40xf32>
    tpu.vector_store %arg2[%c17_688, %c0_689, %c0_690], %655 {strides = array<i32>} : memref<64x40x40xf32, #tpu.memory_space<vmem>>, vector<1x40x40xf32>,
    %c36_691 = arith.constant 36 : index
    %c0_692 = arith.constant 0 : index
    %c0_693 = arith.constant 0 : index
    %656 = vector.load %arg2[%c36_691, %c0_692, %c0_693] : memref<64x40x40xf32, #tpu.memory_space<vmem>>, vector<1x40x40xf32>
    %657 = vector.shape_cast %656 : vector<1x40x40xf32> to vector<40x40xf32>
    %c37_694 = arith.constant 37 : index
    %c0_695 = arith.constant 0 : index
    %c0_696 = arith.constant 0 : index
    %658 = vector.load %arg2[%c37_694, %c0_695, %c0_696] : memref<64x40x40xf32, #tpu.memory_space<vmem>>, vector<1x40x40xf32>
    %659 = vector.shape_cast %658 : vector<1x40x40xf32> to vector<40x40xf32>
    %cst_697 = arith.constant dense<0.000000e+00> : vector<40x40xf32>
    %660 = tpu.matmul %657, %659, %cst_697 {dimension_numbers = #tpu.dot_dimension_numbers<[1], [0], [0], [1], [0, 0, 1, 1], [], []>} : vector<40x40xf32>, vector<40x40xf32>, vector<40x40xf32> -> vector<40x40xf32>
    %c18_698 = arith.constant 18 : index
    %c0_699 = arith.constant 0 : index
    %c0_700 = arith.constant 0 : index
    %661 = vector.load %arg2[%c18_698, %c0_699, %c0_700] : memref<64x40x40xf32, #tpu.memory_space<vmem>>, vector<1x40x40xf32>
    %662 = vector.shape_cast %661 : vector<1x40x40xf32> to vector<40x40xf32>
    %663 = vector.shape_cast %660 : vector<40x40xf32> to vector<1x40x40xf32>
    tpu.vector_store %arg2[%c18_698, %c0_699, %c0_700], %663 {strides = array<i32>} : memref<64x40x40xf32, #tpu.memory_space<vmem>>, vector<1x40x40xf32>,
    %c38_701 = arith.constant 38 : index
    %c0_702 = arith.constant 0 : index
    %c0_703 = arith.constant 0 : index
    %664 = vector.load %arg2[%c38_701, %c0_702, %c0_703] : memref<64x40x40xf32, #tpu.memory_space<vmem>>, vector<1x40x40xf32>
    %665 = vector.shape_cast %664 : vector<1x40x40xf32> to vector<40x40xf32>
    %c39_704 = arith.constant 39 : index
    %c0_705 = arith.constant 0 : index
    %c0_706 = arith.constant 0 : index
    %666 = vector.load %arg2[%c39_704, %c0_705, %c0_706] : memref<64x40x40xf32, #tpu.memory_space<vmem>>, vector<1x40x40xf32>
    %667 = vector.shape_cast %666 : vector<1x40x40xf32> to vector<40x40xf32>
    %cst_707 = arith.constant dense<0.000000e+00> : vector<40x40xf32>
    %668 = tpu.matmul %665, %667, %cst_707 {dimension_numbers = #tpu.dot_dimension_numbers<[1], [0], [0], [1], [0, 0, 1, 1], [], []>} : vector<40x40xf32>, vector<40x40xf32>, vector<40x40xf32> -> vector<40x40xf32>
    %c19_708 = arith.constant 19 : index
    %c0_709 = arith.constant 0 : index
    %c0_710 = arith.constant 0 : index
    %669 = vector.load %arg2[%c19_708, %c0_709, %c0_710] : memref<64x40x40xf32, #tpu.memory_space<vmem>>, vector<1x40x40xf32>
    %670 = vector.shape_cast %669 : vector<1x40x40xf32> to vector<40x40xf32>
    %671 = vector.shape_cast %668 : vector<40x40xf32> to vector<1x40x40xf32>
    tpu.vector_store %arg2[%c19_708, %c0_709, %c0_710], %671 {strides = array<i32>} : memref<64x40x40xf32, #tpu.memory_space<vmem>>, vector<1x40x40xf32>,
    %c40_711 = arith.constant 40 : index
    %c0_712 = arith.constant 0 : index
    %c0_713 = arith.constant 0 : index
    %672 = vector.load %arg2[%c40_711, %c0_712, %c0_713] : memref<64x40x40xf32, #tpu.memory_space<vmem>>, vector<1x40x40xf32>
    %673 = vector.shape_cast %672 : vector<1x40x40xf32> to vector<40x40xf32>
    %c41_714 = arith.constant 41 : index
    %c0_715 = arith.constant 0 : index
    %c0_716 = arith.constant 0 : index
    %674 = vector.load %arg2[%c41_714, %c0_715, %c0_716] : memref<64x40x40xf32, #tpu.memory_space<vmem>>, vector<1x40x40xf32>
    %675 = vector.shape_cast %674 : vector<1x40x40xf32> to vector<40x40xf32>
    %cst_717 = arith.constant dense<0.000000e+00> : vector<40x40xf32>
    %676 = tpu.matmul %673, %675, %cst_717 {dimension_numbers = #tpu.dot_dimension_numbers<[1], [0], [0], [1], [0, 0, 1, 1], [], []>} : vector<40x40xf32>, vector<40x40xf32>, vector<40x40xf32> -> vector<40x40xf32>
    %c20_718 = arith.constant 20 : index
    %c0_719 = arith.constant 0 : index
    %c0_720 = arith.constant 0 : index
    %677 = vector.load %arg2[%c20_718, %c0_719, %c0_720] : memref<64x40x40xf32, #tpu.memory_space<vmem>>, vector<1x40x40xf32>
    %678 = vector.shape_cast %677 : vector<1x40x40xf32> to vector<40x40xf32>
    %679 = vector.shape_cast %676 : vector<40x40xf32> to vector<1x40x40xf32>
    tpu.vector_store %arg2[%c20_718, %c0_719, %c0_720], %679 {strides = array<i32>} : memref<64x40x40xf32, #tpu.memory_space<vmem>>, vector<1x40x40xf32>,
    %c42_721 = arith.constant 42 : index
    %c0_722 = arith.constant 0 : index
    %c0_723 = arith.constant 0 : index
    %680 = vector.load %arg2[%c42_721, %c0_722, %c0_723] : memref<64x40x40xf32, #tpu.memory_space<vmem>>, vector<1x40x40xf32>
    %681 = vector.shape_cast %680 : vector<1x40x40xf32> to vector<40x40xf32>
    %c43_724 = arith.constant 43 : index
    %c0_725 = arith.constant 0 : index
    %c0_726 = arith.constant 0 : index
    %682 = vector.load %arg2[%c43_724, %c0_725, %c0_726] : memref<64x40x40xf32, #tpu.memory_space<vmem>>, vector<1x40x40xf32>
    %683 = vector.shape_cast %682 : vector<1x40x40xf32> to vector<40x40xf32>
    %cst_727 = arith.constant dense<0.000000e+00> : vector<40x40xf32>
    %684 = tpu.matmul %681, %683, %cst_727 {dimension_numbers = #tpu.dot_dimension_numbers<[1], [0], [0], [1], [0, 0, 1, 1], [], []>} : vector<40x40xf32>, vector<40x40xf32>, vector<40x40xf32> -> vector<40x40xf32>
    %c21_728 = arith.constant 21 : index
    %c0_729 = arith.constant 0 : index
    %c0_730 = arith.constant 0 : index
    %685 = vector.load %arg2[%c21_728, %c0_729, %c0_730] : memref<64x40x40xf32, #tpu.memory_space<vmem>>, vector<1x40x40xf32>
    %686 = vector.shape_cast %685 : vector<1x40x40xf32> to vector<40x40xf32>
    %687 = vector.shape_cast %684 : vector<40x40xf32> to vector<1x40x40xf32>
    tpu.vector_store %arg2[%c21_728, %c0_729, %c0_730], %687 {strides = array<i32>} : memref<64x40x40xf32, #tpu.memory_space<vmem>>, vector<1x40x40xf32>,
    %c44_731 = arith.constant 44 : index
    %c0_732 = arith.constant 0 : index
    %c0_733 = arith.constant 0 : index
    %688 = vector.load %arg2[%c44_731, %c0_732, %c0_733] : memref<64x40x40xf32, #tpu.memory_space<vmem>>, vector<1x40x40xf32>
    %689 = vector.shape_cast %688 : vector<1x40x40xf32> to vector<40x40xf32>
    %c45_734 = arith.constant 45 : index
    %c0_735 = arith.constant 0 : index
    %c0_736 = arith.constant 0 : index
    %690 = vector.load %arg2[%c45_734, %c0_735, %c0_736] : memref<64x40x40xf32, #tpu.memory_space<vmem>>, vector<1x40x40xf32>
    %691 = vector.shape_cast %690 : vector<1x40x40xf32> to vector<40x40xf32>
    %cst_737 = arith.constant dense<0.000000e+00> : vector<40x40xf32>
    %692 = tpu.matmul %689, %691, %cst_737 {dimension_numbers = #tpu.dot_dimension_numbers<[1], [0], [0], [1], [0, 0, 1, 1], [], []>} : vector<40x40xf32>, vector<40x40xf32>, vector<40x40xf32> -> vector<40x40xf32>
    %c22_738 = arith.constant 22 : index
    %c0_739 = arith.constant 0 : index
    %c0_740 = arith.constant 0 : index
    %693 = vector.load %arg2[%c22_738, %c0_739, %c0_740] : memref<64x40x40xf32, #tpu.memory_space<vmem>>, vector<1x40x40xf32>
    %694 = vector.shape_cast %693 : vector<1x40x40xf32> to vector<40x40xf32>
    %695 = vector.shape_cast %692 : vector<40x40xf32> to vector<1x40x40xf32>
    tpu.vector_store %arg2[%c22_738, %c0_739, %c0_740], %695 {strides = array<i32>} : memref<64x40x40xf32, #tpu.memory_space<vmem>>, vector<1x40x40xf32>,
    %c46_741 = arith.constant 46 : index
    %c0_742 = arith.constant 0 : index
    %c0_743 = arith.constant 0 : index
    %696 = vector.load %arg2[%c46_741, %c0_742, %c0_743] : memref<64x40x40xf32, #tpu.memory_space<vmem>>, vector<1x40x40xf32>
    %697 = vector.shape_cast %696 : vector<1x40x40xf32> to vector<40x40xf32>
    %c47_744 = arith.constant 47 : index
    %c0_745 = arith.constant 0 : index
    %c0_746 = arith.constant 0 : index
    %698 = vector.load %arg2[%c47_744, %c0_745, %c0_746] : memref<64x40x40xf32, #tpu.memory_space<vmem>>, vector<1x40x40xf32>
    %699 = vector.shape_cast %698 : vector<1x40x40xf32> to vector<40x40xf32>
    %cst_747 = arith.constant dense<0.000000e+00> : vector<40x40xf32>
    %700 = tpu.matmul %697, %699, %cst_747 {dimension_numbers = #tpu.dot_dimension_numbers<[1], [0], [0], [1], [0, 0, 1, 1], [], []>} : vector<40x40xf32>, vector<40x40xf32>, vector<40x40xf32> -> vector<40x40xf32>
    %c23_748 = arith.constant 23 : index
    %c0_749 = arith.constant 0 : index
    %c0_750 = arith.constant 0 : index
    %701 = vector.load %arg2[%c23_748, %c0_749, %c0_750] : memref<64x40x40xf32, #tpu.memory_space<vmem>>, vector<1x40x40xf32>
    %702 = vector.shape_cast %701 : vector<1x40x40xf32> to vector<40x40xf32>
    %703 = vector.shape_cast %700 : vector<40x40xf32> to vector<1x40x40xf32>
    tpu.vector_store %arg2[%c23_748, %c0_749, %c0_750], %703 {strides = array<i32>} : memref<64x40x40xf32, #tpu.memory_space<vmem>>, vector<1x40x40xf32>,
    %c48_751 = arith.constant 48 : index
    %c0_752 = arith.constant 0 : index
    %c0_753 = arith.constant 0 : index
    %704 = vector.load %arg2[%c48_751, %c0_752, %c0_753] : memref<64x40x40xf32, #tpu.memory_space<vmem>>, vector<1x40x40xf32>
    %705 = vector.shape_cast %704 : vector<1x40x40xf32> to vector<40x40xf32>
    %c49_754 = arith.constant 49 : index
    %c0_755 = arith.constant 0 : index
    %c0_756 = arith.constant 0 : index
    %706 = vector.load %arg2[%c49_754, %c0_755, %c0_756] : memref<64x40x40xf32, #tpu.memory_space<vmem>>, vector<1x40x40xf32>
    %707 = vector.shape_cast %706 : vector<1x40x40xf32> to vector<40x40xf32>
    %cst_757 = arith.constant dense<0.000000e+00> : vector<40x40xf32>
    %708 = tpu.matmul %705, %707, %cst_757 {dimension_numbers = #tpu.dot_dimension_numbers<[1], [0], [0], [1], [0, 0, 1, 1], [], []>} : vector<40x40xf32>, vector<40x40xf32>, vector<40x40xf32> -> vector<40x40xf32>
    %c24_758 = arith.constant 24 : index
    %c0_759 = arith.constant 0 : index
    %c0_760 = arith.constant 0 : index
    %709 = vector.load %arg2[%c24_758, %c0_759, %c0_760] : memref<64x40x40xf32, #tpu.memory_space<vmem>>, vector<1x40x40xf32>
    %710 = vector.shape_cast %709 : vector<1x40x40xf32> to vector<40x40xf32>
    %711 = vector.shape_cast %708 : vector<40x40xf32> to vector<1x40x40xf32>
    tpu.vector_store %arg2[%c24_758, %c0_759, %c0_760], %711 {strides = array<i32>} : memref<64x40x40xf32, #tpu.memory_space<vmem>>, vector<1x40x40xf32>,
    %c50_761 = arith.constant 50 : index
    %c0_762 = arith.constant 0 : index
    %c0_763 = arith.constant 0 : index
    %712 = vector.load %arg2[%c50_761, %c0_762, %c0_763] : memref<64x40x40xf32, #tpu.memory_space<vmem>>, vector<1x40x40xf32>
    %713 = vector.shape_cast %712 : vector<1x40x40xf32> to vector<40x40xf32>
    %c51_764 = arith.constant 51 : index
    %c0_765 = arith.constant 0 : index
    %c0_766 = arith.constant 0 : index
    %714 = vector.load %arg2[%c51_764, %c0_765, %c0_766] : memref<64x40x40xf32, #tpu.memory_space<vmem>>, vector<1x40x40xf32>
    %715 = vector.shape_cast %714 : vector<1x40x40xf32> to vector<40x40xf32>
    %cst_767 = arith.constant dense<0.000000e+00> : vector<40x40xf32>
    %716 = tpu.matmul %713, %715, %cst_767 {dimension_numbers = #tpu.dot_dimension_numbers<[1], [0], [0], [1], [0, 0, 1, 1], [], []>} : vector<40x40xf32>, vector<40x40xf32>, vector<40x40xf32> -> vector<40x40xf32>
    %c25_768 = arith.constant 25 : index
    %c0_769 = arith.constant 0 : index
    %c0_770 = arith.constant 0 : index
    %717 = vector.load %arg2[%c25_768, %c0_769, %c0_770] : memref<64x40x40xf32, #tpu.memory_space<vmem>>, vector<1x40x40xf32>
    %718 = vector.shape_cast %717 : vector<1x40x40xf32> to vector<40x40xf32>
    %719 = vector.shape_cast %716 : vector<40x40xf32> to vector<1x40x40xf32>
    tpu.vector_store %arg2[%c25_768, %c0_769, %c0_770], %719 {strides = array<i32>} : memref<64x40x40xf32, #tpu.memory_space<vmem>>, vector<1x40x40xf32>,
    %c52_771 = arith.constant 52 : index
    %c0_772 = arith.constant 0 : index
    %c0_773 = arith.constant 0 : index
    %720 = vector.load %arg2[%c52_771, %c0_772, %c0_773] : memref<64x40x40xf32, #tpu.memory_space<vmem>>, vector<1x40x40xf32>
    %721 = vector.shape_cast %720 : vector<1x40x40xf32> to vector<40x40xf32>
    %c53_774 = arith.constant 53 : index
    %c0_775 = arith.constant 0 : index
    %c0_776 = arith.constant 0 : index
    %722 = vector.load %arg2[%c53_774, %c0_775, %c0_776] : memref<64x40x40xf32, #tpu.memory_space<vmem>>, vector<1x40x40xf32>
    %723 = vector.shape_cast %722 : vector<1x40x40xf32> to vector<40x40xf32>
    %cst_777 = arith.constant dense<0.000000e+00> : vector<40x40xf32>
    %724 = tpu.matmul %721, %723, %cst_777 {dimension_numbers = #tpu.dot_dimension_numbers<[1], [0], [0], [1], [0, 0, 1, 1], [], []>} : vector<40x40xf32>, vector<40x40xf32>, vector<40x40xf32> -> vector<40x40xf32>
    %c26_778 = arith.constant 26 : index
    %c0_779 = arith.constant 0 : index
    %c0_780 = arith.constant 0 : index
    %725 = vector.load %arg2[%c26_778, %c0_779, %c0_780] : memref<64x40x40xf32, #tpu.memory_space<vmem>>, vector<1x40x40xf32>
    %726 = vector.shape_cast %725 : vector<1x40x40xf32> to vector<40x40xf32>
    %727 = vector.shape_cast %724 : vector<40x40xf32> to vector<1x40x40xf32>
    tpu.vector_store %arg2[%c26_778, %c0_779, %c0_780], %727 {strides = array<i32>} : memref<64x40x40xf32, #tpu.memory_space<vmem>>, vector<1x40x40xf32>,
    %c54_781 = arith.constant 54 : index
    %c0_782 = arith.constant 0 : index
    %c0_783 = arith.constant 0 : index
    %728 = vector.load %arg2[%c54_781, %c0_782, %c0_783] : memref<64x40x40xf32, #tpu.memory_space<vmem>>, vector<1x40x40xf32>
    %729 = vector.shape_cast %728 : vector<1x40x40xf32> to vector<40x40xf32>
    %c55_784 = arith.constant 55 : index
    %c0_785 = arith.constant 0 : index
    %c0_786 = arith.constant 0 : index
    %730 = vector.load %arg2[%c55_784, %c0_785, %c0_786] : memref<64x40x40xf32, #tpu.memory_space<vmem>>, vector<1x40x40xf32>
    %731 = vector.shape_cast %730 : vector<1x40x40xf32> to vector<40x40xf32>
    %cst_787 = arith.constant dense<0.000000e+00> : vector<40x40xf32>
    %732 = tpu.matmul %729, %731, %cst_787 {dimension_numbers = #tpu.dot_dimension_numbers<[1], [0], [0], [1], [0, 0, 1, 1], [], []>} : vector<40x40xf32>, vector<40x40xf32>, vector<40x40xf32> -> vector<40x40xf32>
    %c27_788 = arith.constant 27 : index
    %c0_789 = arith.constant 0 : index
    %c0_790 = arith.constant 0 : index
    %733 = vector.load %arg2[%c27_788, %c0_789, %c0_790] : memref<64x40x40xf32, #tpu.memory_space<vmem>>, vector<1x40x40xf32>
    %734 = vector.shape_cast %733 : vector<1x40x40xf32> to vector<40x40xf32>
    %735 = vector.shape_cast %732 : vector<40x40xf32> to vector<1x40x40xf32>
    tpu.vector_store %arg2[%c27_788, %c0_789, %c0_790], %735 {strides = array<i32>} : memref<64x40x40xf32, #tpu.memory_space<vmem>>, vector<1x40x40xf32>,
    %c56_791 = arith.constant 56 : index
    %c0_792 = arith.constant 0 : index
    %c0_793 = arith.constant 0 : index
    %736 = vector.load %arg2[%c56_791, %c0_792, %c0_793] : memref<64x40x40xf32, #tpu.memory_space<vmem>>, vector<1x40x40xf32>
    %737 = vector.shape_cast %736 : vector<1x40x40xf32> to vector<40x40xf32>
    %c57_794 = arith.constant 57 : index
    %c0_795 = arith.constant 0 : index
    %c0_796 = arith.constant 0 : index
    %738 = vector.load %arg2[%c57_794, %c0_795, %c0_796] : memref<64x40x40xf32, #tpu.memory_space<vmem>>, vector<1x40x40xf32>
    %739 = vector.shape_cast %738 : vector<1x40x40xf32> to vector<40x40xf32>
    %cst_797 = arith.constant dense<0.000000e+00> : vector<40x40xf32>
    %740 = tpu.matmul %737, %739, %cst_797 {dimension_numbers = #tpu.dot_dimension_numbers<[1], [0], [0], [1], [0, 0, 1, 1], [], []>} : vector<40x40xf32>, vector<40x40xf32>, vector<40x40xf32> -> vector<40x40xf32>
    %c28_798 = arith.constant 28 : index
    %c0_799 = arith.constant 0 : index
    %c0_800 = arith.constant 0 : index
    %741 = vector.load %arg2[%c28_798, %c0_799, %c0_800] : memref<64x40x40xf32, #tpu.memory_space<vmem>>, vector<1x40x40xf32>
    %742 = vector.shape_cast %741 : vector<1x40x40xf32> to vector<40x40xf32>
    %743 = vector.shape_cast %740 : vector<40x40xf32> to vector<1x40x40xf32>
    tpu.vector_store %arg2[%c28_798, %c0_799, %c0_800], %743 {strides = array<i32>} : memref<64x40x40xf32, #tpu.memory_space<vmem>>, vector<1x40x40xf32>,
    %c58_801 = arith.constant 58 : index
    %c0_802 = arith.constant 0 : index
    %c0_803 = arith.constant 0 : index
    %744 = vector.load %arg2[%c58_801, %c0_802, %c0_803] : memref<64x40x40xf32, #tpu.memory_space<vmem>>, vector<1x40x40xf32>
    %745 = vector.shape_cast %744 : vector<1x40x40xf32> to vector<40x40xf32>
    %c59_804 = arith.constant 59 : index
    %c0_805 = arith.constant 0 : index
    %c0_806 = arith.constant 0 : index
    %746 = vector.load %arg2[%c59_804, %c0_805, %c0_806] : memref<64x40x40xf32, #tpu.memory_space<vmem>>, vector<1x40x40xf32>
    %747 = vector.shape_cast %746 : vector<1x40x40xf32> to vector<40x40xf32>
    %cst_807 = arith.constant dense<0.000000e+00> : vector<40x40xf32>
    %748 = tpu.matmul %745, %747, %cst_807 {dimension_numbers = #tpu.dot_dimension_numbers<[1], [0], [0], [1], [0, 0, 1, 1], [], []>} : vector<40x40xf32>, vector<40x40xf32>, vector<40x40xf32> -> vector<40x40xf32>
    %c29_808 = arith.constant 29 : index
    %c0_809 = arith.constant 0 : index
    %c0_810 = arith.constant 0 : index
    %749 = vector.load %arg2[%c29_808, %c0_809, %c0_810] : memref<64x40x40xf32, #tpu.memory_space<vmem>>, vector<1x40x40xf32>
    %750 = vector.shape_cast %749 : vector<1x40x40xf32> to vector<40x40xf32>
    %751 = vector.shape_cast %748 : vector<40x40xf32> to vector<1x40x40xf32>
    tpu.vector_store %arg2[%c29_808, %c0_809, %c0_810], %751 {strides = array<i32>} : memref<64x40x40xf32, #tpu.memory_space<vmem>>, vector<1x40x40xf32>,
    %c60_811 = arith.constant 60 : index
    %c0_812 = arith.constant 0 : index
    %c0_813 = arith.constant 0 : index
    %752 = vector.load %arg2[%c60_811, %c0_812, %c0_813] : memref<64x40x40xf32, #tpu.memory_space<vmem>>, vector<1x40x40xf32>
    %753 = vector.shape_cast %752 : vector<1x40x40xf32> to vector<40x40xf32>
    %c61_814 = arith.constant 61 : index
    %c0_815 = arith.constant 0 : index
    %c0_816 = arith.constant 0 : index
    %754 = vector.load %arg2[%c61_814, %c0_815, %c0_816] : memref<64x40x40xf32, #tpu.memory_space<vmem>>, vector<1x40x40xf32>
    %755 = vector.shape_cast %754 : vector<1x40x40xf32> to vector<40x40xf32>
    %cst_817 = arith.constant dense<0.000000e+00> : vector<40x40xf32>
    %756 = tpu.matmul %753, %755, %cst_817 {dimension_numbers = #tpu.dot_dimension_numbers<[1], [0], [0], [1], [0, 0, 1, 1], [], []>} : vector<40x40xf32>, vector<40x40xf32>, vector<40x40xf32> -> vector<40x40xf32>
    %c30_818 = arith.constant 30 : index
    %c0_819 = arith.constant 0 : index
    %c0_820 = arith.constant 0 : index
    %757 = vector.load %arg2[%c30_818, %c0_819, %c0_820] : memref<64x40x40xf32, #tpu.memory_space<vmem>>, vector<1x40x40xf32>
    %758 = vector.shape_cast %757 : vector<1x40x40xf32> to vector<40x40xf32>
    %759 = vector.shape_cast %756 : vector<40x40xf32> to vector<1x40x40xf32>
    tpu.vector_store %arg2[%c30_818, %c0_819, %c0_820], %759 {strides = array<i32>} : memref<64x40x40xf32, #tpu.memory_space<vmem>>, vector<1x40x40xf32>,
    %c62_821 = arith.constant 62 : index
    %c0_822 = arith.constant 0 : index
    %c0_823 = arith.constant 0 : index
    %760 = vector.load %arg2[%c62_821, %c0_822, %c0_823] : memref<64x40x40xf32, #tpu.memory_space<vmem>>, vector<1x40x40xf32>
    %761 = vector.shape_cast %760 : vector<1x40x40xf32> to vector<40x40xf32>
    %c63_824 = arith.constant 63 : index
    %c0_825 = arith.constant 0 : index
    %c0_826 = arith.constant 0 : index
    %762 = vector.load %arg2[%c63_824, %c0_825, %c0_826] : memref<64x40x40xf32, #tpu.memory_space<vmem>>, vector<1x40x40xf32>
    %763 = vector.shape_cast %762 : vector<1x40x40xf32> to vector<40x40xf32>
    %cst_827 = arith.constant dense<0.000000e+00> : vector<40x40xf32>
    %764 = tpu.matmul %761, %763, %cst_827 {dimension_numbers = #tpu.dot_dimension_numbers<[1], [0], [0], [1], [0, 0, 1, 1], [], []>} : vector<40x40xf32>, vector<40x40xf32>, vector<40x40xf32> -> vector<40x40xf32>
    %c31_828 = arith.constant 31 : index
    %c0_829 = arith.constant 0 : index
    %c0_830 = arith.constant 0 : index
    %765 = vector.load %arg2[%c31_828, %c0_829, %c0_830] : memref<64x40x40xf32, #tpu.memory_space<vmem>>, vector<1x40x40xf32>
    %766 = vector.shape_cast %765 : vector<1x40x40xf32> to vector<40x40xf32>
    %767 = vector.shape_cast %764 : vector<40x40xf32> to vector<1x40x40xf32>
    tpu.vector_store %arg2[%c31_828, %c0_829, %c0_830], %767 {strides = array<i32>} : memref<64x40x40xf32, #tpu.memory_space<vmem>>, vector<1x40x40xf32>,
    %c0_831 = arith.constant 0 : index
    %c0_832 = arith.constant 0 : index
    %c0_833 = arith.constant 0 : index
    %768 = vector.load %arg2[%c0_831, %c0_832, %c0_833] : memref<64x40x40xf32, #tpu.memory_space<vmem>>, vector<1x40x40xf32>
    %769 = vector.shape_cast %768 : vector<1x40x40xf32> to vector<40x40xf32>
    %c1_834 = arith.constant 1 : index
    %c0_835 = arith.constant 0 : index
    %c0_836 = arith.constant 0 : index
    %770 = vector.load %arg2[%c1_834, %c0_835, %c0_836] : memref<64x40x40xf32, #tpu.memory_space<vmem>>, vector<1x40x40xf32>
    %771 = vector.shape_cast %770 : vector<1x40x40xf32> to vector<40x40xf32>
    %cst_837 = arith.constant dense<0.000000e+00> : vector<40x40xf32>
    %772 = tpu.matmul %769, %771, %cst_837 {dimension_numbers = #tpu.dot_dimension_numbers<[1], [0], [0], [1], [0, 0, 1, 1], [], []>} : vector<40x40xf32>, vector<40x40xf32>, vector<40x40xf32> -> vector<40x40xf32>
    %c0_838 = arith.constant 0 : index
    %c0_839 = arith.constant 0 : index
    %c0_840 = arith.constant 0 : index
    %773 = vector.load %arg2[%c0_838, %c0_839, %c0_840] : memref<64x40x40xf32, #tpu.memory_space<vmem>>, vector<1x40x40xf32>
    %774 = vector.shape_cast %773 : vector<1x40x40xf32> to vector<40x40xf32>
    %775 = vector.shape_cast %772 : vector<40x40xf32> to vector<1x40x40xf32>
    tpu.vector_store %arg2[%c0_838, %c0_839, %c0_840], %775 {strides = array<i32>} : memref<64x40x40xf32, #tpu.memory_space<vmem>>, vector<1x40x40xf32>,
    %c2_841 = arith.constant 2 : index
    %c0_842 = arith.constant 0 : index
    %c0_843 = arith.constant 0 : index
    %776 = vector.load %arg2[%c2_841, %c0_842, %c0_843] : memref<64x40x40xf32, #tpu.memory_space<vmem>>, vector<1x40x40xf32>
    %777 = vector.shape_cast %776 : vector<1x40x40xf32> to vector<40x40xf32>
    %c3_844 = arith.constant 3 : index
    %c0_845 = arith.constant 0 : index
    %c0_846 = arith.constant 0 : index
    %778 = vector.load %arg2[%c3_844, %c0_845, %c0_846] : memref<64x40x40xf32, #tpu.memory_space<vmem>>, vector<1x40x40xf32>
    %779 = vector.shape_cast %778 : vector<1x40x40xf32> to vector<40x40xf32>
    %cst_847 = arith.constant dense<0.000000e+00> : vector<40x40xf32>
    %780 = tpu.matmul %777, %779, %cst_847 {dimension_numbers = #tpu.dot_dimension_numbers<[1], [0], [0], [1], [0, 0, 1, 1], [], []>} : vector<40x40xf32>, vector<40x40xf32>, vector<40x40xf32> -> vector<40x40xf32>
    %c1_848 = arith.constant 1 : index
    %c0_849 = arith.constant 0 : index
    %c0_850 = arith.constant 0 : index
    %781 = vector.load %arg2[%c1_848, %c0_849, %c0_850] : memref<64x40x40xf32, #tpu.memory_space<vmem>>, vector<1x40x40xf32>
    %782 = vector.shape_cast %781 : vector<1x40x40xf32> to vector<40x40xf32>
    %783 = vector.shape_cast %780 : vector<40x40xf32> to vector<1x40x40xf32>
    tpu.vector_store %arg2[%c1_848, %c0_849, %c0_850], %783 {strides = array<i32>} : memref<64x40x40xf32, #tpu.memory_space<vmem>>, vector<1x40x40xf32>,
    %c4_851 = arith.constant 4 : index
    %c0_852 = arith.constant 0 : index
    %c0_853 = arith.constant 0 : index
    %784 = vector.load %arg2[%c4_851, %c0_852, %c0_853] : memref<64x40x40xf32, #tpu.memory_space<vmem>>, vector<1x40x40xf32>
    %785 = vector.shape_cast %784 : vector<1x40x40xf32> to vector<40x40xf32>
    %c5_854 = arith.constant 5 : index
    %c0_855 = arith.constant 0 : index
    %c0_856 = arith.constant 0 : index
    %786 = vector.load %arg2[%c5_854, %c0_855, %c0_856] : memref<64x40x40xf32, #tpu.memory_space<vmem>>, vector<1x40x40xf32>
    %787 = vector.shape_cast %786 : vector<1x40x40xf32> to vector<40x40xf32>
    %cst_857 = arith.constant dense<0.000000e+00> : vector<40x40xf32>
    %788 = tpu.matmul %785, %787, %cst_857 {dimension_numbers = #tpu.dot_dimension_numbers<[1], [0], [0], [1], [0, 0, 1, 1], [], []>} : vector<40x40xf32>, vector<40x40xf32>, vector<40x40xf32> -> vector<40x40xf32>
    %c2_858 = arith.constant 2 : index
    %c0_859 = arith.constant 0 : index
    %c0_860 = arith.constant 0 : index
    %789 = vector.load %arg2[%c2_858, %c0_859, %c0_860] : memref<64x40x40xf32, #tpu.memory_space<vmem>>, vector<1x40x40xf32>
    %790 = vector.shape_cast %789 : vector<1x40x40xf32> to vector<40x40xf32>
    %791 = vector.shape_cast %788 : vector<40x40xf32> to vector<1x40x40xf32>
    tpu.vector_store %arg2[%c2_858, %c0_859, %c0_860], %791 {strides = array<i32>} : memref<64x40x40xf32, #tpu.memory_space<vmem>>, vector<1x40x40xf32>,
    %c6_861 = arith.constant 6 : index
    %c0_862 = arith.constant 0 : index
    %c0_863 = arith.constant 0 : index
    %792 = vector.load %arg2[%c6_861, %c0_862, %c0_863] : memref<64x40x40xf32, #tpu.memory_space<vmem>>, vector<1x40x40xf32>
    %793 = vector.shape_cast %792 : vector<1x40x40xf32> to vector<40x40xf32>
    %c7_864 = arith.constant 7 : index
    %c0_865 = arith.constant 0 : index
    %c0_866 = arith.constant 0 : index
    %794 = vector.load %arg2[%c7_864, %c0_865, %c0_866] : memref<64x40x40xf32, #tpu.memory_space<vmem>>, vector<1x40x40xf32>
    %795 = vector.shape_cast %794 : vector<1x40x40xf32> to vector<40x40xf32>
    %cst_867 = arith.constant dense<0.000000e+00> : vector<40x40xf32>
    %796 = tpu.matmul %793, %795, %cst_867 {dimension_numbers = #tpu.dot_dimension_numbers<[1], [0], [0], [1], [0, 0, 1, 1], [], []>} : vector<40x40xf32>, vector<40x40xf32>, vector<40x40xf32> -> vector<40x40xf32>
    %c3_868 = arith.constant 3 : index
    %c0_869 = arith.constant 0 : index
    %c0_870 = arith.constant 0 : index
    %797 = vector.load %arg2[%c3_868, %c0_869, %c0_870] : memref<64x40x40xf32, #tpu.memory_space<vmem>>, vector<1x40x40xf32>
    %798 = vector.shape_cast %797 : vector<1x40x40xf32> to vector<40x40xf32>
    %799 = vector.shape_cast %796 : vector<40x40xf32> to vector<1x40x40xf32>
    tpu.vector_store %arg2[%c3_868, %c0_869, %c0_870], %799 {strides = array<i32>} : memref<64x40x40xf32, #tpu.memory_space<vmem>>, vector<1x40x40xf32>,
    %c8_871 = arith.constant 8 : index
    %c0_872 = arith.constant 0 : index
    %c0_873 = arith.constant 0 : index
    %800 = vector.load %arg2[%c8_871, %c0_872, %c0_873] : memref<64x40x40xf32, #tpu.memory_space<vmem>>, vector<1x40x40xf32>
    %801 = vector.shape_cast %800 : vector<1x40x40xf32> to vector<40x40xf32>
    %c9_874 = arith.constant 9 : index
    %c0_875 = arith.constant 0 : index
    %c0_876 = arith.constant 0 : index
    %802 = vector.load %arg2[%c9_874, %c0_875, %c0_876] : memref<64x40x40xf32, #tpu.memory_space<vmem>>, vector<1x40x40xf32>
    %803 = vector.shape_cast %802 : vector<1x40x40xf32> to vector<40x40xf32>
    %cst_877 = arith.constant dense<0.000000e+00> : vector<40x40xf32>
    %804 = tpu.matmul %801, %803, %cst_877 {dimension_numbers = #tpu.dot_dimension_numbers<[1], [0], [0], [1], [0, 0, 1, 1], [], []>} : vector<40x40xf32>, vector<40x40xf32>, vector<40x40xf32> -> vector<40x40xf32>
    %c4_878 = arith.constant 4 : index
    %c0_879 = arith.constant 0 : index
    %c0_880 = arith.constant 0 : index
    %805 = vector.load %arg2[%c4_878, %c0_879, %c0_880] : memref<64x40x40xf32, #tpu.memory_space<vmem>>, vector<1x40x40xf32>
    %806 = vector.shape_cast %805 : vector<1x40x40xf32> to vector<40x40xf32>
    %807 = vector.shape_cast %804 : vector<40x40xf32> to vector<1x40x40xf32>
    tpu.vector_store %arg2[%c4_878, %c0_879, %c0_880], %807 {strides = array<i32>} : memref<64x40x40xf32, #tpu.memory_space<vmem>>, vector<1x40x40xf32>,
    %c10_881 = arith.constant 10 : index
    %c0_882 = arith.constant 0 : index
    %c0_883 = arith.constant 0 : index
    %808 = vector.load %arg2[%c10_881, %c0_882, %c0_883] : memref<64x40x40xf32, #tpu.memory_space<vmem>>, vector<1x40x40xf32>
    %809 = vector.shape_cast %808 : vector<1x40x40xf32> to vector<40x40xf32>
    %c11_884 = arith.constant 11 : index
    %c0_885 = arith.constant 0 : index
    %c0_886 = arith.constant 0 : index
    %810 = vector.load %arg2[%c11_884, %c0_885, %c0_886] : memref<64x40x40xf32, #tpu.memory_space<vmem>>, vector<1x40x40xf32>
    %811 = vector.shape_cast %810 : vector<1x40x40xf32> to vector<40x40xf32>
    %cst_887 = arith.constant dense<0.000000e+00> : vector<40x40xf32>
    %812 = tpu.matmul %809, %811, %cst_887 {dimension_numbers = #tpu.dot_dimension_numbers<[1], [0], [0], [1], [0, 0, 1, 1], [], []>} : vector<40x40xf32>, vector<40x40xf32>, vector<40x40xf32> -> vector<40x40xf32>
    %c5_888 = arith.constant 5 : index
    %c0_889 = arith.constant 0 : index
    %c0_890 = arith.constant 0 : index
    %813 = vector.load %arg2[%c5_888, %c0_889, %c0_890] : memref<64x40x40xf32, #tpu.memory_space<vmem>>, vector<1x40x40xf32>
    %814 = vector.shape_cast %813 : vector<1x40x40xf32> to vector<40x40xf32>
    %815 = vector.shape_cast %812 : vector<40x40xf32> to vector<1x40x40xf32>
    tpu.vector_store %arg2[%c5_888, %c0_889, %c0_890], %815 {strides = array<i32>} : memref<64x40x40xf32, #tpu.memory_space<vmem>>, vector<1x40x40xf32>,
    %c12_891 = arith.constant 12 : index
    %c0_892 = arith.constant 0 : index
    %c0_893 = arith.constant 0 : index
    %816 = vector.load %arg2[%c12_891, %c0_892, %c0_893] : memref<64x40x40xf32, #tpu.memory_space<vmem>>, vector<1x40x40xf32>
    %817 = vector.shape_cast %816 : vector<1x40x40xf32> to vector<40x40xf32>
    %c13_894 = arith.constant 13 : index
    %c0_895 = arith.constant 0 : index
    %c0_896 = arith.constant 0 : index
    %818 = vector.load %arg2[%c13_894, %c0_895, %c0_896] : memref<64x40x40xf32, #tpu.memory_space<vmem>>, vector<1x40x40xf32>
    %819 = vector.shape_cast %818 : vector<1x40x40xf32> to vector<40x40xf32>
    %cst_897 = arith.constant dense<0.000000e+00> : vector<40x40xf32>
    %820 = tpu.matmul %817, %819, %cst_897 {dimension_numbers = #tpu.dot_dimension_numbers<[1], [0], [0], [1], [0, 0, 1, 1], [], []>} : vector<40x40xf32>, vector<40x40xf32>, vector<40x40xf32> -> vector<40x40xf32>
    %c6_898 = arith.constant 6 : index
    %c0_899 = arith.constant 0 : index
    %c0_900 = arith.constant 0 : index
    %821 = vector.load %arg2[%c6_898, %c0_899, %c0_900] : memref<64x40x40xf32, #tpu.memory_space<vmem>>, vector<1x40x40xf32>
    %822 = vector.shape_cast %821 : vector<1x40x40xf32> to vector<40x40xf32>
    %823 = vector.shape_cast %820 : vector<40x40xf32> to vector<1x40x40xf32>
    tpu.vector_store %arg2[%c6_898, %c0_899, %c0_900], %823 {strides = array<i32>} : memref<64x40x40xf32, #tpu.memory_space<vmem>>, vector<1x40x40xf32>,
    %c14_901 = arith.constant 14 : index
    %c0_902 = arith.constant 0 : index
    %c0_903 = arith.constant 0 : index
    %824 = vector.load %arg2[%c14_901, %c0_902, %c0_903] : memref<64x40x40xf32, #tpu.memory_space<vmem>>, vector<1x40x40xf32>
    %825 = vector.shape_cast %824 : vector<1x40x40xf32> to vector<40x40xf32>
    %c15_904 = arith.constant 15 : index
    %c0_905 = arith.constant 0 : index
    %c0_906 = arith.constant 0 : index
    %826 = vector.load %arg2[%c15_904, %c0_905, %c0_906] : memref<64x40x40xf32, #tpu.memory_space<vmem>>, vector<1x40x40xf32>
    %827 = vector.shape_cast %826 : vector<1x40x40xf32> to vector<40x40xf32>
    %cst_907 = arith.constant dense<0.000000e+00> : vector<40x40xf32>
    %828 = tpu.matmul %825, %827, %cst_907 {dimension_numbers = #tpu.dot_dimension_numbers<[1], [0], [0], [1], [0, 0, 1, 1], [], []>} : vector<40x40xf32>, vector<40x40xf32>, vector<40x40xf32> -> vector<40x40xf32>
    %c7_908 = arith.constant 7 : index
    %c0_909 = arith.constant 0 : index
    %c0_910 = arith.constant 0 : index
    %829 = vector.load %arg2[%c7_908, %c0_909, %c0_910] : memref<64x40x40xf32, #tpu.memory_space<vmem>>, vector<1x40x40xf32>
    %830 = vector.shape_cast %829 : vector<1x40x40xf32> to vector<40x40xf32>
    %831 = vector.shape_cast %828 : vector<40x40xf32> to vector<1x40x40xf32>
    tpu.vector_store %arg2[%c7_908, %c0_909, %c0_910], %831 {strides = array<i32>} : memref<64x40x40xf32, #tpu.memory_space<vmem>>, vector<1x40x40xf32>,
    %c16_911 = arith.constant 16 : index
    %c0_912 = arith.constant 0 : index
    %c0_913 = arith.constant 0 : index
    %832 = vector.load %arg2[%c16_911, %c0_912, %c0_913] : memref<64x40x40xf32, #tpu.memory_space<vmem>>, vector<1x40x40xf32>
    %833 = vector.shape_cast %832 : vector<1x40x40xf32> to vector<40x40xf32>
    %c17_914 = arith.constant 17 : index
    %c0_915 = arith.constant 0 : index
    %c0_916 = arith.constant 0 : index
    %834 = vector.load %arg2[%c17_914, %c0_915, %c0_916] : memref<64x40x40xf32, #tpu.memory_space<vmem>>, vector<1x40x40xf32>
    %835 = vector.shape_cast %834 : vector<1x40x40xf32> to vector<40x40xf32>
    %cst_917 = arith.constant dense<0.000000e+00> : vector<40x40xf32>
    %836 = tpu.matmul %833, %835, %cst_917 {dimension_numbers = #tpu.dot_dimension_numbers<[1], [0], [0], [1], [0, 0, 1, 1], [], []>} : vector<40x40xf32>, vector<40x40xf32>, vector<40x40xf32> -> vector<40x40xf32>
    %c8_918 = arith.constant 8 : index
    %c0_919 = arith.constant 0 : index
    %c0_920 = arith.constant 0 : index
    %837 = vector.load %arg2[%c8_918, %c0_919, %c0_920] : memref<64x40x40xf32, #tpu.memory_space<vmem>>, vector<1x40x40xf32>
    %838 = vector.shape_cast %837 : vector<1x40x40xf32> to vector<40x40xf32>
    %839 = vector.shape_cast %836 : vector<40x40xf32> to vector<1x40x40xf32>
    tpu.vector_store %arg2[%c8_918, %c0_919, %c0_920], %839 {strides = array<i32>} : memref<64x40x40xf32, #tpu.memory_space<vmem>>, vector<1x40x40xf32>,
    %c18_921 = arith.constant 18 : index
    %c0_922 = arith.constant 0 : index
    %c0_923 = arith.constant 0 : index
    %840 = vector.load %arg2[%c18_921, %c0_922, %c0_923] : memref<64x40x40xf32, #tpu.memory_space<vmem>>, vector<1x40x40xf32>
    %841 = vector.shape_cast %840 : vector<1x40x40xf32> to vector<40x40xf32>
    %c19_924 = arith.constant 19 : index
    %c0_925 = arith.constant 0 : index
    %c0_926 = arith.constant 0 : index
    %842 = vector.load %arg2[%c19_924, %c0_925, %c0_926] : memref<64x40x40xf32, #tpu.memory_space<vmem>>, vector<1x40x40xf32>
    %843 = vector.shape_cast %842 : vector<1x40x40xf32> to vector<40x40xf32>
    %cst_927 = arith.constant dense<0.000000e+00> : vector<40x40xf32>
    %844 = tpu.matmul %841, %843, %cst_927 {dimension_numbers = #tpu.dot_dimension_numbers<[1], [0], [0], [1], [0, 0, 1, 1], [], []>} : vector<40x40xf32>, vector<40x40xf32>, vector<40x40xf32> -> vector<40x40xf32>
    %c9_928 = arith.constant 9 : index
    %c0_929 = arith.constant 0 : index
    %c0_930 = arith.constant 0 : index
    %845 = vector.load %arg2[%c9_928, %c0_929, %c0_930] : memref<64x40x40xf32, #tpu.memory_space<vmem>>, vector<1x40x40xf32>
    %846 = vector.shape_cast %845 : vector<1x40x40xf32> to vector<40x40xf32>
    %847 = vector.shape_cast %844 : vector<40x40xf32> to vector<1x40x40xf32>
    tpu.vector_store %arg2[%c9_928, %c0_929, %c0_930], %847 {strides = array<i32>} : memref<64x40x40xf32, #tpu.memory_space<vmem>>, vector<1x40x40xf32>,
    %c20_931 = arith.constant 20 : index
    %c0_932 = arith.constant 0 : index
    %c0_933 = arith.constant 0 : index
    %848 = vector.load %arg2[%c20_931, %c0_932, %c0_933] : memref<64x40x40xf32, #tpu.memory_space<vmem>>, vector<1x40x40xf32>
    %849 = vector.shape_cast %848 : vector<1x40x40xf32> to vector<40x40xf32>
    %c21_934 = arith.constant 21 : index
    %c0_935 = arith.constant 0 : index
    %c0_936 = arith.constant 0 : index
    %850 = vector.load %arg2[%c21_934, %c0_935, %c0_936] : memref<64x40x40xf32, #tpu.memory_space<vmem>>, vector<1x40x40xf32>
    %851 = vector.shape_cast %850 : vector<1x40x40xf32> to vector<40x40xf32>
    %cst_937 = arith.constant dense<0.000000e+00> : vector<40x40xf32>
    %852 = tpu.matmul %849, %851, %cst_937 {dimension_numbers = #tpu.dot_dimension_numbers<[1], [0], [0], [1], [0, 0, 1, 1], [], []>} : vector<40x40xf32>, vector<40x40xf32>, vector<40x40xf32> -> vector<40x40xf32>
    %c10_938 = arith.constant 10 : index
    %c0_939 = arith.constant 0 : index
    %c0_940 = arith.constant 0 : index
    %853 = vector.load %arg2[%c10_938, %c0_939, %c0_940] : memref<64x40x40xf32, #tpu.memory_space<vmem>>, vector<1x40x40xf32>
    %854 = vector.shape_cast %853 : vector<1x40x40xf32> to vector<40x40xf32>
    %855 = vector.shape_cast %852 : vector<40x40xf32> to vector<1x40x40xf32>
    tpu.vector_store %arg2[%c10_938, %c0_939, %c0_940], %855 {strides = array<i32>} : memref<64x40x40xf32, #tpu.memory_space<vmem>>, vector<1x40x40xf32>,
    %c22_941 = arith.constant 22 : index
    %c0_942 = arith.constant 0 : index
    %c0_943 = arith.constant 0 : index
    %856 = vector.load %arg2[%c22_941, %c0_942, %c0_943] : memref<64x40x40xf32, #tpu.memory_space<vmem>>, vector<1x40x40xf32>
    %857 = vector.shape_cast %856 : vector<1x40x40xf32> to vector<40x40xf32>
    %c23_944 = arith.constant 23 : index
    %c0_945 = arith.constant 0 : index
    %c0_946 = arith.constant 0 : index
    %858 = vector.load %arg2[%c23_944, %c0_945, %c0_946] : memref<64x40x40xf32, #tpu.memory_space<vmem>>, vector<1x40x40xf32>
    %859 = vector.shape_cast %858 : vector<1x40x40xf32> to vector<40x40xf32>
    %cst_947 = arith.constant dense<0.000000e+00> : vector<40x40xf32>
    %860 = tpu.matmul %857, %859, %cst_947 {dimension_numbers = #tpu.dot_dimension_numbers<[1], [0], [0], [1], [0, 0, 1, 1], [], []>} : vector<40x40xf32>, vector<40x40xf32>, vector<40x40xf32> -> vector<40x40xf32>
    %c11_948 = arith.constant 11 : index
    %c0_949 = arith.constant 0 : index
    %c0_950 = arith.constant 0 : index
    %861 = vector.load %arg2[%c11_948, %c0_949, %c0_950] : memref<64x40x40xf32, #tpu.memory_space<vmem>>, vector<1x40x40xf32>
    %862 = vector.shape_cast %861 : vector<1x40x40xf32> to vector<40x40xf32>
    %863 = vector.shape_cast %860 : vector<40x40xf32> to vector<1x40x40xf32>
    tpu.vector_store %arg2[%c11_948, %c0_949, %c0_950], %863 {strides = array<i32>} : memref<64x40x40xf32, #tpu.memory_space<vmem>>, vector<1x40x40xf32>,
    %c24_951 = arith.constant 24 : index
    %c0_952 = arith.constant 0 : index
    %c0_953 = arith.constant 0 : index
    %864 = vector.load %arg2[%c24_951, %c0_952, %c0_953] : memref<64x40x40xf32, #tpu.memory_space<vmem>>, vector<1x40x40xf32>
    %865 = vector.shape_cast %864 : vector<1x40x40xf32> to vector<40x40xf32>
    %c25_954 = arith.constant 25 : index
    %c0_955 = arith.constant 0 : index
    %c0_956 = arith.constant 0 : index
    %866 = vector.load %arg2[%c25_954, %c0_955, %c0_956] : memref<64x40x40xf32, #tpu.memory_space<vmem>>, vector<1x40x40xf32>
    %867 = vector.shape_cast %866 : vector<1x40x40xf32> to vector<40x40xf32>
    %cst_957 = arith.constant dense<0.000000e+00> : vector<40x40xf32>
    %868 = tpu.matmul %865, %867, %cst_957 {dimension_numbers = #tpu.dot_dimension_numbers<[1], [0], [0], [1], [0, 0, 1, 1], [], []>} : vector<40x40xf32>, vector<40x40xf32>, vector<40x40xf32> -> vector<40x40xf32>
    %c12_958 = arith.constant 12 : index
    %c0_959 = arith.constant 0 : index
    %c0_960 = arith.constant 0 : index
    %869 = vector.load %arg2[%c12_958, %c0_959, %c0_960] : memref<64x40x40xf32, #tpu.memory_space<vmem>>, vector<1x40x40xf32>
    %870 = vector.shape_cast %869 : vector<1x40x40xf32> to vector<40x40xf32>
    %871 = vector.shape_cast %868 : vector<40x40xf32> to vector<1x40x40xf32>
    tpu.vector_store %arg2[%c12_958, %c0_959, %c0_960], %871 {strides = array<i32>} : memref<64x40x40xf32, #tpu.memory_space<vmem>>, vector<1x40x40xf32>,
    %c26_961 = arith.constant 26 : index
    %c0_962 = arith.constant 0 : index
    %c0_963 = arith.constant 0 : index
    %872 = vector.load %arg2[%c26_961, %c0_962, %c0_963] : memref<64x40x40xf32, #tpu.memory_space<vmem>>, vector<1x40x40xf32>
    %873 = vector.shape_cast %872 : vector<1x40x40xf32> to vector<40x40xf32>
    %c27_964 = arith.constant 27 : index
    %c0_965 = arith.constant 0 : index
    %c0_966 = arith.constant 0 : index
    %874 = vector.load %arg2[%c27_964, %c0_965, %c0_966] : memref<64x40x40xf32, #tpu.memory_space<vmem>>, vector<1x40x40xf32>
    %875 = vector.shape_cast %874 : vector<1x40x40xf32> to vector<40x40xf32>
    %cst_967 = arith.constant dense<0.000000e+00> : vector<40x40xf32>
    %876 = tpu.matmul %873, %875, %cst_967 {dimension_numbers = #tpu.dot_dimension_numbers<[1], [0], [0], [1], [0, 0, 1, 1], [], []>} : vector<40x40xf32>, vector<40x40xf32>, vector<40x40xf32> -> vector<40x40xf32>
    %c13_968 = arith.constant 13 : index
    %c0_969 = arith.constant 0 : index
    %c0_970 = arith.constant 0 : index
    %877 = vector.load %arg2[%c13_968, %c0_969, %c0_970] : memref<64x40x40xf32, #tpu.memory_space<vmem>>, vector<1x40x40xf32>
    %878 = vector.shape_cast %877 : vector<1x40x40xf32> to vector<40x40xf32>
    %879 = vector.shape_cast %876 : vector<40x40xf32> to vector<1x40x40xf32>
    tpu.vector_store %arg2[%c13_968, %c0_969, %c0_970], %879 {strides = array<i32>} : memref<64x40x40xf32, #tpu.memory_space<vmem>>, vector<1x40x40xf32>,
    %c28_971 = arith.constant 28 : index
    %c0_972 = arith.constant 0 : index
    %c0_973 = arith.constant 0 : index
    %880 = vector.load %arg2[%c28_971, %c0_972, %c0_973] : memref<64x40x40xf32, #tpu.memory_space<vmem>>, vector<1x40x40xf32>
    %881 = vector.shape_cast %880 : vector<1x40x40xf32> to vector<40x40xf32>
    %c29_974 = arith.constant 29 : index
    %c0_975 = arith.constant 0 : index
    %c0_976 = arith.constant 0 : index
    %882 = vector.load %arg2[%c29_974, %c0_975, %c0_976] : memref<64x40x40xf32, #tpu.memory_space<vmem>>, vector<1x40x40xf32>
    %883 = vector.shape_cast %882 : vector<1x40x40xf32> to vector<40x40xf32>
    %cst_977 = arith.constant dense<0.000000e+00> : vector<40x40xf32>
    %884 = tpu.matmul %881, %883, %cst_977 {dimension_numbers = #tpu.dot_dimension_numbers<[1], [0], [0], [1], [0, 0, 1, 1], [], []>} : vector<40x40xf32>, vector<40x40xf32>, vector<40x40xf32> -> vector<40x40xf32>
    %c14_978 = arith.constant 14 : index
    %c0_979 = arith.constant 0 : index
    %c0_980 = arith.constant 0 : index
    %885 = vector.load %arg2[%c14_978, %c0_979, %c0_980] : memref<64x40x40xf32, #tpu.memory_space<vmem>>, vector<1x40x40xf32>
    %886 = vector.shape_cast %885 : vector<1x40x40xf32> to vector<40x40xf32>
    %887 = vector.shape_cast %884 : vector<40x40xf32> to vector<1x40x40xf32>
    tpu.vector_store %arg2[%c14_978, %c0_979, %c0_980], %887 {strides = array<i32>} : memref<64x40x40xf32, #tpu.memory_space<vmem>>, vector<1x40x40xf32>,
    %c30_981 = arith.constant 30 : index
    %c0_982 = arith.constant 0 : index
    %c0_983 = arith.constant 0 : index
    %888 = vector.load %arg2[%c30_981, %c0_982, %c0_983] : memref<64x40x40xf32, #tpu.memory_space<vmem>>, vector<1x40x40xf32>
    %889 = vector.shape_cast %888 : vector<1x40x40xf32> to vector<40x40xf32>
    %c31_984 = arith.constant 31 : index
    %c0_985 = arith.constant 0 : index
    %c0_986 = arith.constant 0 : index
    %890 = vector.load %arg2[%c31_984, %c0_985, %c0_986] : memref<64x40x40xf32, #tpu.memory_space<vmem>>, vector<1x40x40xf32>
    %891 = vector.shape_cast %890 : vector<1x40x40xf32> to vector<40x40xf32>
    %cst_987 = arith.constant dense<0.000000e+00> : vector<40x40xf32>
    %892 = tpu.matmul %889, %891, %cst_987 {dimension_numbers = #tpu.dot_dimension_numbers<[1], [0], [0], [1], [0, 0, 1, 1], [], []>} : vector<40x40xf32>, vector<40x40xf32>, vector<40x40xf32> -> vector<40x40xf32>
    %c15_988 = arith.constant 15 : index
    %c0_989 = arith.constant 0 : index
    %c0_990 = arith.constant 0 : index
    %893 = vector.load %arg2[%c15_988, %c0_989, %c0_990] : memref<64x40x40xf32, #tpu.memory_space<vmem>>, vector<1x40x40xf32>
    %894 = vector.shape_cast %893 : vector<1x40x40xf32> to vector<40x40xf32>
    %895 = vector.shape_cast %892 : vector<40x40xf32> to vector<1x40x40xf32>
    tpu.vector_store %arg2[%c15_988, %c0_989, %c0_990], %895 {strides = array<i32>} : memref<64x40x40xf32, #tpu.memory_space<vmem>>, vector<1x40x40xf32>,
    %c0_991 = arith.constant 0 : index
    %c0_992 = arith.constant 0 : index
    %c0_993 = arith.constant 0 : index
    %896 = vector.load %arg2[%c0_991, %c0_992, %c0_993] : memref<64x40x40xf32, #tpu.memory_space<vmem>>, vector<1x40x40xf32>
    %897 = vector.shape_cast %896 : vector<1x40x40xf32> to vector<40x40xf32>
    %c1_994 = arith.constant 1 : index
    %c0_995 = arith.constant 0 : index
    %c0_996 = arith.constant 0 : index
    %898 = vector.load %arg2[%c1_994, %c0_995, %c0_996] : memref<64x40x40xf32, #tpu.memory_space<vmem>>, vector<1x40x40xf32>
    %899 = vector.shape_cast %898 : vector<1x40x40xf32> to vector<40x40xf32>
    %cst_997 = arith.constant dense<0.000000e+00> : vector<40x40xf32>
    %900 = tpu.matmul %897, %899, %cst_997 {dimension_numbers = #tpu.dot_dimension_numbers<[1], [0], [0], [1], [0, 0, 1, 1], [], []>} : vector<40x40xf32>, vector<40x40xf32>, vector<40x40xf32> -> vector<40x40xf32>
    %c0_998 = arith.constant 0 : index
    %c0_999 = arith.constant 0 : index
    %c0_1000 = arith.constant 0 : index
    %901 = vector.load %arg2[%c0_998, %c0_999, %c0_1000] : memref<64x40x40xf32, #tpu.memory_space<vmem>>, vector<1x40x40xf32>
    %902 = vector.shape_cast %901 : vector<1x40x40xf32> to vector<40x40xf32>
    %903 = vector.shape_cast %900 : vector<40x40xf32> to vector<1x40x40xf32>
    tpu.vector_store %arg2[%c0_998, %c0_999, %c0_1000], %903 {strides = array<i32>} : memref<64x40x40xf32, #tpu.memory_space<vmem>>, vector<1x40x40xf32>,
    %c2_1001 = arith.constant 2 : index
    %c0_1002 = arith.constant 0 : index
    %c0_1003 = arith.constant 0 : index
    %904 = vector.load %arg2[%c2_1001, %c0_1002, %c0_1003] : memref<64x40x40xf32, #tpu.memory_space<vmem>>, vector<1x40x40xf32>
    %905 = vector.shape_cast %904 : vector<1x40x40xf32> to vector<40x40xf32>
    %c3_1004 = arith.constant 3 : index
    %c0_1005 = arith.constant 0 : index
    %c0_1006 = arith.constant 0 : index
    %906 = vector.load %arg2[%c3_1004, %c0_1005, %c0_1006] : memref<64x40x40xf32, #tpu.memory_space<vmem>>, vector<1x40x40xf32>
    %907 = vector.shape_cast %906 : vector<1x40x40xf32> to vector<40x40xf32>
    %cst_1007 = arith.constant dense<0.000000e+00> : vector<40x40xf32>
    %908 = tpu.matmul %905, %907, %cst_1007 {dimension_numbers = #tpu.dot_dimension_numbers<[1], [0], [0], [1], [0, 0, 1, 1], [], []>} : vector<40x40xf32>, vector<40x40xf32>, vector<40x40xf32> -> vector<40x40xf32>
    %c1_1008 = arith.constant 1 : index
    %c0_1009 = arith.constant 0 : index
    %c0_1010 = arith.constant 0 : index
    %909 = vector.load %arg2[%c1_1008, %c0_1009, %c0_1010] : memref<64x40x40xf32, #tpu.memory_space<vmem>>, vector<1x40x40xf32>
    %910 = vector.shape_cast %909 : vector<1x40x40xf32> to vector<40x40xf32>
    %911 = vector.shape_cast %908 : vector<40x40xf32> to vector<1x40x40xf32>
    tpu.vector_store %arg2[%c1_1008, %c0_1009, %c0_1010], %911 {strides = array<i32>} : memref<64x40x40xf32, #tpu.memory_space<vmem>>, vector<1x40x40xf32>,
    %c4_1011 = arith.constant 4 : index
    %c0_1012 = arith.constant 0 : index
    %c0_1013 = arith.constant 0 : index
    %912 = vector.load %arg2[%c4_1011, %c0_1012, %c0_1013] : memref<64x40x40xf32, #tpu.memory_space<vmem>>, vector<1x40x40xf32>
    %913 = vector.shape_cast %912 : vector<1x40x40xf32> to vector<40x40xf32>
    %c5_1014 = arith.constant 5 : index
    %c0_1015 = arith.constant 0 : index
    %c0_1016 = arith.constant 0 : index
    %914 = vector.load %arg2[%c5_1014, %c0_1015, %c0_1016] : memref<64x40x40xf32, #tpu.memory_space<vmem>>, vector<1x40x40xf32>
    %915 = vector.shape_cast %914 : vector<1x40x40xf32> to vector<40x40xf32>
    %cst_1017 = arith.constant dense<0.000000e+00> : vector<40x40xf32>
    %916 = tpu.matmul %913, %915, %cst_1017 {dimension_numbers = #tpu.dot_dimension_numbers<[1], [0], [0], [1], [0, 0, 1, 1], [], []>} : vector<40x40xf32>, vector<40x40xf32>, vector<40x40xf32> -> vector<40x40xf32>
    %c2_1018 = arith.constant 2 : index
    %c0_1019 = arith.constant 0 : index
    %c0_1020 = arith.constant 0 : index
    %917 = vector.load %arg2[%c2_1018, %c0_1019, %c0_1020] : memref<64x40x40xf32, #tpu.memory_space<vmem>>, vector<1x40x40xf32>
    %918 = vector.shape_cast %917 : vector<1x40x40xf32> to vector<40x40xf32>
    %919 = vector.shape_cast %916 : vector<40x40xf32> to vector<1x40x40xf32>
    tpu.vector_store %arg2[%c2_1018, %c0_1019, %c0_1020], %919 {strides = array<i32>} : memref<64x40x40xf32, #tpu.memory_space<vmem>>, vector<1x40x40xf32>,
    %c6_1021 = arith.constant 6 : index
    %c0_1022 = arith.constant 0 : index
    %c0_1023 = arith.constant 0 : index
    %920 = vector.load %arg2[%c6_1021, %c0_1022, %c0_1023] : memref<64x40x40xf32, #tpu.memory_space<vmem>>, vector<1x40x40xf32>
    %921 = vector.shape_cast %920 : vector<1x40x40xf32> to vector<40x40xf32>
    %c7_1024 = arith.constant 7 : index
    %c0_1025 = arith.constant 0 : index
    %c0_1026 = arith.constant 0 : index
    %922 = vector.load %arg2[%c7_1024, %c0_1025, %c0_1026] : memref<64x40x40xf32, #tpu.memory_space<vmem>>, vector<1x40x40xf32>
    %923 = vector.shape_cast %922 : vector<1x40x40xf32> to vector<40x40xf32>
    %cst_1027 = arith.constant dense<0.000000e+00> : vector<40x40xf32>
    %924 = tpu.matmul %921, %923, %cst_1027 {dimension_numbers = #tpu.dot_dimension_numbers<[1], [0], [0], [1], [0, 0, 1, 1], [], []>} : vector<40x40xf32>, vector<40x40xf32>, vector<40x40xf32> -> vector<40x40xf32>
    %c3_1028 = arith.constant 3 : index
    %c0_1029 = arith.constant 0 : index
    %c0_1030 = arith.constant 0 : index
    %925 = vector.load %arg2[%c3_1028, %c0_1029, %c0_1030] : memref<64x40x40xf32, #tpu.memory_space<vmem>>, vector<1x40x40xf32>
    %926 = vector.shape_cast %925 : vector<1x40x40xf32> to vector<40x40xf32>
    %927 = vector.shape_cast %924 : vector<40x40xf32> to vector<1x40x40xf32>
    tpu.vector_store %arg2[%c3_1028, %c0_1029, %c0_1030], %927 {strides = array<i32>} : memref<64x40x40xf32, #tpu.memory_space<vmem>>, vector<1x40x40xf32>,
    %c8_1031 = arith.constant 8 : index
    %c0_1032 = arith.constant 0 : index
    %c0_1033 = arith.constant 0 : index
    %928 = vector.load %arg2[%c8_1031, %c0_1032, %c0_1033] : memref<64x40x40xf32, #tpu.memory_space<vmem>>, vector<1x40x40xf32>
    %929 = vector.shape_cast %928 : vector<1x40x40xf32> to vector<40x40xf32>
    %c9_1034 = arith.constant 9 : index
    %c0_1035 = arith.constant 0 : index
    %c0_1036 = arith.constant 0 : index
    %930 = vector.load %arg2[%c9_1034, %c0_1035, %c0_1036] : memref<64x40x40xf32, #tpu.memory_space<vmem>>, vector<1x40x40xf32>
    %931 = vector.shape_cast %930 : vector<1x40x40xf32> to vector<40x40xf32>
    %cst_1037 = arith.constant dense<0.000000e+00> : vector<40x40xf32>
    %932 = tpu.matmul %929, %931, %cst_1037 {dimension_numbers = #tpu.dot_dimension_numbers<[1], [0], [0], [1], [0, 0, 1, 1], [], []>} : vector<40x40xf32>, vector<40x40xf32>, vector<40x40xf32> -> vector<40x40xf32>
    %c4_1038 = arith.constant 4 : index
    %c0_1039 = arith.constant 0 : index
    %c0_1040 = arith.constant 0 : index
    %933 = vector.load %arg2[%c4_1038, %c0_1039, %c0_1040] : memref<64x40x40xf32, #tpu.memory_space<vmem>>, vector<1x40x40xf32>
    %934 = vector.shape_cast %933 : vector<1x40x40xf32> to vector<40x40xf32>
    %935 = vector.shape_cast %932 : vector<40x40xf32> to vector<1x40x40xf32>
    tpu.vector_store %arg2[%c4_1038, %c0_1039, %c0_1040], %935 {strides = array<i32>} : memref<64x40x40xf32, #tpu.memory_space<vmem>>, vector<1x40x40xf32>,
    %c10_1041 = arith.constant 10 : index
    %c0_1042 = arith.constant 0 : index
    %c0_1043 = arith.constant 0 : index
    %936 = vector.load %arg2[%c10_1041, %c0_1042, %c0_1043] : memref<64x40x40xf32, #tpu.memory_space<vmem>>, vector<1x40x40xf32>
    %937 = vector.shape_cast %936 : vector<1x40x40xf32> to vector<40x40xf32>
    %c11_1044 = arith.constant 11 : index
    %c0_1045 = arith.constant 0 : index
    %c0_1046 = arith.constant 0 : index
    %938 = vector.load %arg2[%c11_1044, %c0_1045, %c0_1046] : memref<64x40x40xf32, #tpu.memory_space<vmem>>, vector<1x40x40xf32>
    %939 = vector.shape_cast %938 : vector<1x40x40xf32> to vector<40x40xf32>
    %cst_1047 = arith.constant dense<0.000000e+00> : vector<40x40xf32>
    %940 = tpu.matmul %937, %939, %cst_1047 {dimension_numbers = #tpu.dot_dimension_numbers<[1], [0], [0], [1], [0, 0, 1, 1], [], []>} : vector<40x40xf32>, vector<40x40xf32>, vector<40x40xf32> -> vector<40x40xf32>
    %c5_1048 = arith.constant 5 : index
    %c0_1049 = arith.constant 0 : index
    %c0_1050 = arith.constant 0 : index
    %941 = vector.load %arg2[%c5_1048, %c0_1049, %c0_1050] : memref<64x40x40xf32, #tpu.memory_space<vmem>>, vector<1x40x40xf32>
    %942 = vector.shape_cast %941 : vector<1x40x40xf32> to vector<40x40xf32>
    %943 = vector.shape_cast %940 : vector<40x40xf32> to vector<1x40x40xf32>
    tpu.vector_store %arg2[%c5_1048, %c0_1049, %c0_1050], %943 {strides = array<i32>} : memref<64x40x40xf32, #tpu.memory_space<vmem>>, vector<1x40x40xf32>,
    %c12_1051 = arith.constant 12 : index
    %c0_1052 = arith.constant 0 : index
    %c0_1053 = arith.constant 0 : index
    %944 = vector.load %arg2[%c12_1051, %c0_1052, %c0_1053] : memref<64x40x40xf32, #tpu.memory_space<vmem>>, vector<1x40x40xf32>
    %945 = vector.shape_cast %944 : vector<1x40x40xf32> to vector<40x40xf32>
    %c13_1054 = arith.constant 13 : index
    %c0_1055 = arith.constant 0 : index
    %c0_1056 = arith.constant 0 : index
    %946 = vector.load %arg2[%c13_1054, %c0_1055, %c0_1056] : memref<64x40x40xf32, #tpu.memory_space<vmem>>, vector<1x40x40xf32>
    %947 = vector.shape_cast %946 : vector<1x40x40xf32> to vector<40x40xf32>
    %cst_1057 = arith.constant dense<0.000000e+00> : vector<40x40xf32>
    %948 = tpu.matmul %945, %947, %cst_1057 {dimension_numbers = #tpu.dot_dimension_numbers<[1], [0], [0], [1], [0, 0, 1, 1], [], []>} : vector<40x40xf32>, vector<40x40xf32>, vector<40x40xf32> -> vector<40x40xf32>
    %c6_1058 = arith.constant 6 : index
    %c0_1059 = arith.constant 0 : index
    %c0_1060 = arith.constant 0 : index
    %949 = vector.load %arg2[%c6_1058, %c0_1059, %c0_1060] : memref<64x40x40xf32, #tpu.memory_space<vmem>>, vector<1x40x40xf32>
    %950 = vector.shape_cast %949 : vector<1x40x40xf32> to vector<40x40xf32>
    %951 = vector.shape_cast %948 : vector<40x40xf32> to vector<1x40x40xf32>
    tpu.vector_store %arg2[%c6_1058, %c0_1059, %c0_1060], %951 {strides = array<i32>} : memref<64x40x40xf32, #tpu.memory_space<vmem>>, vector<1x40x40xf32>,
    %c14_1061 = arith.constant 14 : index
    %c0_1062 = arith.constant 0 : index
    %c0_1063 = arith.constant 0 : index
    %952 = vector.load %arg2[%c14_1061, %c0_1062, %c0_1063] : memref<64x40x40xf32, #tpu.memory_space<vmem>>, vector<1x40x40xf32>
    %953 = vector.shape_cast %952 : vector<1x40x40xf32> to vector<40x40xf32>
    %c15_1064 = arith.constant 15 : index
    %c0_1065 = arith.constant 0 : index
    %c0_1066 = arith.constant 0 : index
    %954 = vector.load %arg2[%c15_1064, %c0_1065, %c0_1066] : memref<64x40x40xf32, #tpu.memory_space<vmem>>, vector<1x40x40xf32>
    %955 = vector.shape_cast %954 : vector<1x40x40xf32> to vector<40x40xf32>
    %cst_1067 = arith.constant dense<0.000000e+00> : vector<40x40xf32>
    %956 = tpu.matmul %953, %955, %cst_1067 {dimension_numbers = #tpu.dot_dimension_numbers<[1], [0], [0], [1], [0, 0, 1, 1], [], []>} : vector<40x40xf32>, vector<40x40xf32>, vector<40x40xf32> -> vector<40x40xf32>
    %c7_1068 = arith.constant 7 : index
    %c0_1069 = arith.constant 0 : index
    %c0_1070 = arith.constant 0 : index
    %957 = vector.load %arg2[%c7_1068, %c0_1069, %c0_1070] : memref<64x40x40xf32, #tpu.memory_space<vmem>>, vector<1x40x40xf32>
    %958 = vector.shape_cast %957 : vector<1x40x40xf32> to vector<40x40xf32>
    %959 = vector.shape_cast %956 : vector<40x40xf32> to vector<1x40x40xf32>
    tpu.vector_store %arg2[%c7_1068, %c0_1069, %c0_1070], %959 {strides = array<i32>} : memref<64x40x40xf32, #tpu.memory_space<vmem>>, vector<1x40x40xf32>,
    %c0_1071 = arith.constant 0 : index
    %c0_1072 = arith.constant 0 : index
    %c0_1073 = arith.constant 0 : index
    %960 = vector.load %arg2[%c0_1071, %c0_1072, %c0_1073] : memref<64x40x40xf32, #tpu.memory_space<vmem>>, vector<1x40x40xf32>
    %961 = vector.shape_cast %960 : vector<1x40x40xf32> to vector<40x40xf32>
    %c1_1074 = arith.constant 1 : index
    %c0_1075 = arith.constant 0 : index
    %c0_1076 = arith.constant 0 : index
    %962 = vector.load %arg2[%c1_1074, %c0_1075, %c0_1076] : memref<64x40x40xf32, #tpu.memory_space<vmem>>, vector<1x40x40xf32>
    %963 = vector.shape_cast %962 : vector<1x40x40xf32> to vector<40x40xf32>
    %cst_1077 = arith.constant dense<0.000000e+00> : vector<40x40xf32>
    %964 = tpu.matmul %961, %963, %cst_1077 {dimension_numbers = #tpu.dot_dimension_numbers<[1], [0], [0], [1], [0, 0, 1, 1], [], []>} : vector<40x40xf32>, vector<40x40xf32>, vector<40x40xf32> -> vector<40x40xf32>
    %c0_1078 = arith.constant 0 : index
    %c0_1079 = arith.constant 0 : index
    %c0_1080 = arith.constant 0 : index
    %965 = vector.load %arg2[%c0_1078, %c0_1079, %c0_1080] : memref<64x40x40xf32, #tpu.memory_space<vmem>>, vector<1x40x40xf32>
    %966 = vector.shape_cast %965 : vector<1x40x40xf32> to vector<40x40xf32>
    %967 = vector.shape_cast %964 : vector<40x40xf32> to vector<1x40x40xf32>
    tpu.vector_store %arg2[%c0_1078, %c0_1079, %c0_1080], %967 {strides = array<i32>} : memref<64x40x40xf32, #tpu.memory_space<vmem>>, vector<1x40x40xf32>,
    %c2_1081 = arith.constant 2 : index
    %c0_1082 = arith.constant 0 : index
    %c0_1083 = arith.constant 0 : index
    %968 = vector.load %arg2[%c2_1081, %c0_1082, %c0_1083] : memref<64x40x40xf32, #tpu.memory_space<vmem>>, vector<1x40x40xf32>
    %969 = vector.shape_cast %968 : vector<1x40x40xf32> to vector<40x40xf32>
    %c3_1084 = arith.constant 3 : index
    %c0_1085 = arith.constant 0 : index
    %c0_1086 = arith.constant 0 : index
    %970 = vector.load %arg2[%c3_1084, %c0_1085, %c0_1086] : memref<64x40x40xf32, #tpu.memory_space<vmem>>, vector<1x40x40xf32>
    %971 = vector.shape_cast %970 : vector<1x40x40xf32> to vector<40x40xf32>
    %cst_1087 = arith.constant dense<0.000000e+00> : vector<40x40xf32>
    %972 = tpu.matmul %969, %971, %cst_1087 {dimension_numbers = #tpu.dot_dimension_numbers<[1], [0], [0], [1], [0, 0, 1, 1], [], []>} : vector<40x40xf32>, vector<40x40xf32>, vector<40x40xf32> -> vector<40x40xf32>
    %c1_1088 = arith.constant 1 : index
    %c0_1089 = arith.constant 0 : index
    %c0_1090 = arith.constant 0 : index
    %973 = vector.load %arg2[%c1_1088, %c0_1089, %c0_1090] : memref<64x40x40xf32, #tpu.memory_space<vmem>>, vector<1x40x40xf32>
    %974 = vector.shape_cast %973 : vector<1x40x40xf32> to vector<40x40xf32>
    %975 = vector.shape_cast %972 : vector<40x40xf32> to vector<1x40x40xf32>
    tpu.vector_store %arg2[%c1_1088, %c0_1089, %c0_1090], %975 {strides = array<i32>} : memref<64x40x40xf32, #tpu.memory_space<vmem>>, vector<1x40x40xf32>,
    %c4_1091 = arith.constant 4 : index
    %c0_1092 = arith.constant 0 : index
    %c0_1093 = arith.constant 0 : index
    %976 = vector.load %arg2[%c4_1091, %c0_1092, %c0_1093] : memref<64x40x40xf32, #tpu.memory_space<vmem>>, vector<1x40x40xf32>
    %977 = vector.shape_cast %976 : vector<1x40x40xf32> to vector<40x40xf32>
    %c5_1094 = arith.constant 5 : index
    %c0_1095 = arith.constant 0 : index
    %c0_1096 = arith.constant 0 : index
    %978 = vector.load %arg2[%c5_1094, %c0_1095, %c0_1096] : memref<64x40x40xf32, #tpu.memory_space<vmem>>, vector<1x40x40xf32>
    %979 = vector.shape_cast %978 : vector<1x40x40xf32> to vector<40x40xf32>
    %cst_1097 = arith.constant dense<0.000000e+00> : vector<40x40xf32>
    %980 = tpu.matmul %977, %979, %cst_1097 {dimension_numbers = #tpu.dot_dimension_numbers<[1], [0], [0], [1], [0, 0, 1, 1], [], []>} : vector<40x40xf32>, vector<40x40xf32>, vector<40x40xf32> -> vector<40x40xf32>
    %c2_1098 = arith.constant 2 : index
    %c0_1099 = arith.constant 0 : index
    %c0_1100 = arith.constant 0 : index
    %981 = vector.load %arg2[%c2_1098, %c0_1099, %c0_1100] : memref<64x40x40xf32, #tpu.memory_space<vmem>>, vector<1x40x40xf32>
    %982 = vector.shape_cast %981 : vector<1x40x40xf32> to vector<40x40xf32>
    %983 = vector.shape_cast %980 : vector<40x40xf32> to vector<1x40x40xf32>
    tpu.vector_store %arg2[%c2_1098, %c0_1099, %c0_1100], %983 {strides = array<i32>} : memref<64x40x40xf32, #tpu.memory_space<vmem>>, vector<1x40x40xf32>,
    %c6_1101 = arith.constant 6 : index
    %c0_1102 = arith.constant 0 : index
    %c0_1103 = arith.constant 0 : index
    %984 = vector.load %arg2[%c6_1101, %c0_1102, %c0_1103] : memref<64x40x40xf32, #tpu.memory_space<vmem>>, vector<1x40x40xf32>
    %985 = vector.shape_cast %984 : vector<1x40x40xf32> to vector<40x40xf32>
    %c7_1104 = arith.constant 7 : index
    %c0_1105 = arith.constant 0 : index
    %c0_1106 = arith.constant 0 : index
    %986 = vector.load %arg2[%c7_1104, %c0_1105, %c0_1106] : memref<64x40x40xf32, #tpu.memory_space<vmem>>, vector<1x40x40xf32>
    %987 = vector.shape_cast %986 : vector<1x40x40xf32> to vector<40x40xf32>
    %cst_1107 = arith.constant dense<0.000000e+00> : vector<40x40xf32>
    %988 = tpu.matmul %985, %987, %cst_1107 {dimension_numbers = #tpu.dot_dimension_numbers<[1], [0], [0], [1], [0, 0, 1, 1], [], []>} : vector<40x40xf32>, vector<40x40xf32>, vector<40x40xf32> -> vector<40x40xf32>
    %c3_1108 = arith.constant 3 : index
    %c0_1109 = arith.constant 0 : index
    %c0_1110 = arith.constant 0 : index
    %989 = vector.load %arg2[%c3_1108, %c0_1109, %c0_1110] : memref<64x40x40xf32, #tpu.memory_space<vmem>>, vector<1x40x40xf32>
    %990 = vector.shape_cast %989 : vector<1x40x40xf32> to vector<40x40xf32>
    %991 = vector.shape_cast %988 : vector<40x40xf32> to vector<1x40x40xf32>
    tpu.vector_store %arg2[%c3_1108, %c0_1109, %c0_1110], %991 {strides = array<i32>} : memref<64x40x40xf32, #tpu.memory_space<vmem>>, vector<1x40x40xf32>,
    %c0_1111 = arith.constant 0 : index
    %c0_1112 = arith.constant 0 : index
    %c0_1113 = arith.constant 0 : index
    %992 = vector.load %arg2[%c0_1111, %c0_1112, %c0_1113] : memref<64x40x40xf32, #tpu.memory_space<vmem>>, vector<1x40x40xf32>
    %993 = vector.shape_cast %992 : vector<1x40x40xf32> to vector<40x40xf32>
    %c1_1114 = arith.constant 1 : index
    %c0_1115 = arith.constant 0 : index
    %c0_1116 = arith.constant 0 : index
    %994 = vector.load %arg2[%c1_1114, %c0_1115, %c0_1116] : memref<64x40x40xf32, #tpu.memory_space<vmem>>, vector<1x40x40xf32>
    %995 = vector.shape_cast %994 : vector<1x40x40xf32> to vector<40x40xf32>
    %cst_1117 = arith.constant dense<0.000000e+00> : vector<40x40xf32>
    %996 = tpu.matmul %993, %995, %cst_1117 {dimension_numbers = #tpu.dot_dimension_numbers<[1], [0], [0], [1], [0, 0, 1, 1], [], []>} : vector<40x40xf32>, vector<40x40xf32>, vector<40x40xf32> -> vector<40x40xf32>
    %c0_1118 = arith.constant 0 : index
    %c0_1119 = arith.constant 0 : index
    %c0_1120 = arith.constant 0 : index
    %997 = vector.load %arg2[%c0_1118, %c0_1119, %c0_1120] : memref<64x40x40xf32, #tpu.memory_space<vmem>>, vector<1x40x40xf32>
    %998 = vector.shape_cast %997 : vector<1x40x40xf32> to vector<40x40xf32>
    %999 = vector.shape_cast %996 : vector<40x40xf32> to vector<1x40x40xf32>
    tpu.vector_store %arg2[%c0_1118, %c0_1119, %c0_1120], %999 {strides = array<i32>} : memref<64x40x40xf32, #tpu.memory_space<vmem>>, vector<1x40x40xf32>,
    %c2_1121 = arith.constant 2 : index
    %c0_1122 = arith.constant 0 : index
    %c0_1123 = arith.constant 0 : index
    %1000 = vector.load %arg2[%c2_1121, %c0_1122, %c0_1123] : memref<64x40x40xf32, #tpu.memory_space<vmem>>, vector<1x40x40xf32>
    %1001 = vector.shape_cast %1000 : vector<1x40x40xf32> to vector<40x40xf32>
    %c3_1124 = arith.constant 3 : index
    %c0_1125 = arith.constant 0 : index
    %c0_1126 = arith.constant 0 : index
    %1002 = vector.load %arg2[%c3_1124, %c0_1125, %c0_1126] : memref<64x40x40xf32, #tpu.memory_space<vmem>>, vector<1x40x40xf32>
    %1003 = vector.shape_cast %1002 : vector<1x40x40xf32> to vector<40x40xf32>
    %cst_1127 = arith.constant dense<0.000000e+00> : vector<40x40xf32>
    %1004 = tpu.matmul %1001, %1003, %cst_1127 {dimension_numbers = #tpu.dot_dimension_numbers<[1], [0], [0], [1], [0, 0, 1, 1], [], []>} : vector<40x40xf32>, vector<40x40xf32>, vector<40x40xf32> -> vector<40x40xf32>
    %c1_1128 = arith.constant 1 : index
    %c0_1129 = arith.constant 0 : index
    %c0_1130 = arith.constant 0 : index
    %1005 = vector.load %arg2[%c1_1128, %c0_1129, %c0_1130] : memref<64x40x40xf32, #tpu.memory_space<vmem>>, vector<1x40x40xf32>
    %1006 = vector.shape_cast %1005 : vector<1x40x40xf32> to vector<40x40xf32>
    %1007 = vector.shape_cast %1004 : vector<40x40xf32> to vector<1x40x40xf32>
    tpu.vector_store %arg2[%c1_1128, %c0_1129, %c0_1130], %1007 {strides = array<i32>} : memref<64x40x40xf32, #tpu.memory_space<vmem>>, vector<1x40x40xf32>,
    %c0_1131 = arith.constant 0 : index
    %c0_1132 = arith.constant 0 : index
    %c0_1133 = arith.constant 0 : index
    %1008 = vector.load %arg2[%c0_1131, %c0_1132, %c0_1133] : memref<64x40x40xf32, #tpu.memory_space<vmem>>, vector<1x40x40xf32>
    %1009 = vector.shape_cast %1008 : vector<1x40x40xf32> to vector<40x40xf32>
    %c1_1134 = arith.constant 1 : index
    %c0_1135 = arith.constant 0 : index
    %c0_1136 = arith.constant 0 : index
    %1010 = vector.load %arg2[%c1_1134, %c0_1135, %c0_1136] : memref<64x40x40xf32, #tpu.memory_space<vmem>>, vector<1x40x40xf32>
    %1011 = vector.shape_cast %1010 : vector<1x40x40xf32> to vector<40x40xf32>
    %cst_1137 = arith.constant dense<0.000000e+00> : vector<40x40xf32>
    %1012 = tpu.matmul %1009, %1011, %cst_1137 {dimension_numbers = #tpu.dot_dimension_numbers<[1], [0], [0], [1], [0, 0, 1, 1], [], []>} : vector<40x40xf32>, vector<40x40xf32>, vector<40x40xf32> -> vector<40x40xf32>
    %c0_1138 = arith.constant 0 : index
    %c0_1139 = arith.constant 0 : index
    %c0_1140 = arith.constant 0 : index
    %1013 = vector.load %arg2[%c0_1138, %c0_1139, %c0_1140] : memref<64x40x40xf32, #tpu.memory_space<vmem>>, vector<1x40x40xf32>
    %1014 = vector.shape_cast %1013 : vector<1x40x40xf32> to vector<40x40xf32>
    %1015 = vector.shape_cast %1012 : vector<40x40xf32> to vector<1x40x40xf32>
    tpu.vector_store %arg2[%c0_1138, %c0_1139, %c0_1140], %1015 {strides = array<i32>} : memref<64x40x40xf32, #tpu.memory_space<vmem>>, vector<1x40x40xf32>,
    %c0_1141 = arith.constant 0 : index
    %c0_1142 = arith.constant 0 : index
    %c0_1143 = arith.constant 0 : index
    %1016 = vector.load %arg2[%c0_1141, %c0_1142, %c0_1143] : memref<64x40x40xf32, #tpu.memory_space<vmem>>, vector<1x40x40xf32>
    %1017 = vector.shape_cast %1016 : vector<1x40x40xf32> to vector<40x40xf32>
    %c0_1144 = arith.constant 0 : index
    %c0_1145 = arith.constant 0 : index
    %1018 = vector.load %arg1[%c0_1144, %c0_1145] : memref<40x40xf32, #tpu.memory_space<vmem>>, vector<40x40xf32>
    tpu.vector_store %arg1[%c0_1144, %c0_1145], %1017 {strides = array<i32>} : memref<40x40xf32, #tpu.memory_space<vmem>>, vector<40x40xf32>,
    return
  }
}

</mosaic_0001>

<llo_original>
// kernel: compose_affine_pallas.1
$region0: #{compose_affine_pallas.1}
  #allocation0 [shape = 'u32[]', space=smem, size = 0x4, offset = 0x4, fixed_abs, tag = 'smem constant byte address 0x4 - core index']
  #allocation1 [shape = 'u32[72,128]{1,0:T(1,128)}', space=vmem, size = 0x9000, scoped, tag = 'internal scratch']
  #allocation2 [shape = 'f32[64,40,40]{2,1,0:T(8,128)}', space=vmem, size = 0x140000, scoped, tag = 'scratch operand']
  %s0 = inlined_call_operand.vmem [shape: f32[128,40,40], index: 0, kind: input, shape index: {}]
  %s1 = inlined_call_operand.hbm [shape: f32[40,40], index: 1, kind: output, shape index: {}]
  %s2 = sld [smem:[#allocation0]]
  $region14: #{compose_affine_pallas.1} parent=0
    _
  %s4 = ssub.s32 1, %s2
  %s5 = scalar_select 0, %s4, %s2
  $region1: #{compose_affine_pallas.1} parent=0
    #allocation3 [shape = 'u8[20480]{0}', space=vmem, size = 0x5000, scoped, tag = 'output window, operand 0, single buffered']
    #allocation4 [shape = 's32[1]{0}', space=sflag, size = 0x4, scoped, tag = 'scoped memory for compose_affine_pallas.1']
    %6 = vsyncpa [#allocation4], 0
    // Predicated region
    $region2: #{compose_affine_pallas.1} parent=1 // pred_check
      _
    $region3: #{compose_affine_pallas.1} parent=1 // pred_check_branch
      %8 = sbr.rel (0) target = $region5
    $region4: #{compose_affine_pallas.1} parent=1 // pred_region
      _
    $region5: #{compose_affine_pallas.1} parent=1 // pred_fallthru
      _
    %v9 = vld [vmem:[%s0] sm:$0xff]
    %v10 = vld [vmem:[%s0 + $0x8] sm:$0xff]
    %v11 = vld [vmem:[%s0 + $0x10] sm:$0xff]
    %v12 = vld [vmem:[%s0 + $0x18] sm:$0xff]
    %v13 = vld [vmem:[%s0 + $0x20] sm:$0xff]
    %s14 = scalar_lea.vmem %s0, 40
    %v15 = vld [vmem:[%s14] sm:$0xff]
    %v16 = vld [vmem:[%s14 + $0x8] sm:$0xff]
    %v17 = vld [vmem:[%s14 + $0x10] sm:$0xff]
    %v18 = vld [vmem:[%s14 + $0x18] sm:$0xff]
    %v19 = vld [vmem:[%s14 + $0x20] sm:$0xff]
    %vm20 = vcmask 326656
    %v22 = vsel %vm20, %v9, 0
    %v25 = vsel %vm20, %v10, 0
    %v28 = vsel %vm20, %v11, 0
    %v31 = vsel %vm20, %v12, 0
    %v34 = vsel %vm20, %v13, 0
    %36 = vmatpush.msra.mxu0 0.0
    %37 = vmatpush.msra.mxu0 0.0
    %38 = vmatpush.msra.mxu0 0.0
    %39 = vmatpush.msra.mxu0 0.0
    %40 = vmatpush.msra.mxu0 0.0
    %41 = vmatpush.msra.mxu0 0.0
    %42 = vmatpush.msra.mxu0 0.0
    %43 = vmatpush.msra.mxu0 0.0
    %44 = vmatpush.msra.mxu0 0.0
    %45 = vmatpush.msra.mxu0 0.0
    %46 = vmatpush.msra.mxu0 0.0
    %47 = vmatpush.msra.mxu0 %v19
    %48 = vmatpush.msra.mxu0 %v18
    %49 = vmatpush.msra.mxu0 %v17
    %50 = vmatpush.msra.mxu0 %v16
    %51 = vmatpush.msra.mxu0 %v15
    %52 = vmatmul.f32.gmra.mxu0 %v22
    %v53 = vpop.f32.mrf.mxu0
    %v54 = vadd.f32 0.0, %v53
    %55 = vmatmul.f32.gmra.mxu0 %v25
    %v56 = vpop.f32.mrf.mxu0
    %v57 = vadd.f32 0.0, %v56
    %58 = vmatmul.f32.gmra.mxu0 %v28
    %v59 = vpop.f32.mrf.mxu0
    %v60 = vadd.f32 0.0, %v59
    %61 = vmatmul.f32.gmra.mxu0 %v31
    %v62 = vpop.f32.mrf.mxu0
    %v63 = vadd.f32 0.0, %v62
    %64 = vmatmul.f32.gmra.mxu0 %v34
    %v65 = vpop.f32.mrf.mxu0
    %v66 = vadd.f32 0.0, %v65
    %67 = vdwg.mxu0
    %68 = vst.msk [vmem:[#allocation2] sm:$0xff] %vm20, %v54
    %69 = vst.msk [vmem:[#allocation2 + $0x8] sm:$0xff] %vm20, %v57
    %70 = vst.msk [vmem:[#allocation2 + $0x10] sm:$0xff] %vm20, %v60
    %71 = vst.msk [vmem:[#allocation2 + $0x18] sm:$0xff] %vm20, %v63
    %72 = vst.msk [vmem:[#allocation2 + $0x20] sm:$0xff] %vm20, %v66
    %s73 = scalar_lea.vmem %s0, 80
    %v74 = vld [vmem:[%s73] sm:$0xff]
    %v75 = vld [vmem:[%s73 + $0x8] sm:$0xff]
    %v76 = vld [vmem:[%s73 + $0x10] sm:$0xff]
    %v77 = vld [vmem:[%s73 + $0x18] sm:$0xff]
    %v78 = vld [vmem:[%s73 + $0x20] sm:$0xff]
    %s79 = scalar_lea.vmem %s0, 120
    %v80 = vld [vmem:[%s79] sm:$0xff]
    %v81 = vld [vmem:[%s79 + $0x8] sm:$0xff]
    %v82 = vld [vmem:[%s79 + $0x10] sm:$0xff]
    %v83 = vld [vmem:[%s79 + $0x18] sm:$0xff]
    %v84 = vld [vmem:[%s79 + $0x20] sm:$0xff]
    %v86 = vsel %vm20, %v74, 0
    %v89 = vsel %vm20, %v75, 0
    %v92 = vsel %vm20, %v76, 0
    %v95 = vsel %vm20, %v77, 0
    %v98 = vsel %vm20, %v78, 0
    %100 = vmatpush.msra.mxu0 0.0
    %101 = vmatpush.msra.mxu0 0.0
    %102 = vmatpush.msra.mxu0 0.0
    %103 = vmatpush.msra.mxu0 0.0
    %104 = vmatpush.msra.mxu0 0.0
    %105 = vmatpush.msra.mxu0 0.0
    %106 = vmatpush.msra.mxu0 0.0
    %107 = vmatpush.msra.mxu0 0.0
    %108 = vmatpush.msra.mxu0 0.0
    %109 = vmatpush.msra.mxu0 0.0
    %110 = vmatpush.msra.mxu0 0.0
    %111 = vmatpush.msra.mxu0 %v84
    %112 = vmatpush.msra.mxu0 %v83
    %113 = vmatpush.msra.mxu0 %v82
    %114 = vmatpush.msra.mxu0 %v81
    %115 = vmatpush.msra.mxu0 %v80
    %116 = vmatmul.f32.gmra.mxu0 %v86
    %v117 = vpop.f32.mrf.mxu0
    %v118 = vadd.f32 0.0, %v117
    %119 = vmatmul.f32.gmra.mxu0 %v89
    %v120 = vpop.f32.mrf.mxu0
    %v121 = vadd.f32 0.0, %v120
    %122 = vmatmul.f32.gmra.mxu0 %v92
    %v123 = vpop.f32.mrf.mxu0
    %v124 = vadd.f32 0.0, %v123
    %125 = vmatmul.f32.gmra.mxu0 %v95
    %v126 = vpop.f32.mrf.mxu0
    %v127 = vadd.f32 0.0, %v126
    %128 = vmatmul.f32.gmra.mxu0 %v98
    %v129 = vpop.f32.mrf.mxu0
    %v130 = vadd.f32 0.0, %v129
    %131 = vdwg.mxu0
    %s132 = scalar_lea.vmem [#allocation2], 40
    %133 = vst.msk [vmem:[%s132] sm:$0xff] %vm20, %v118
    %134 = vst.msk [vmem:[%s132 + $0x8] sm:$0xff] %vm20, %v121
    %135 = vst.msk [vmem:[%s132 + $0x10] sm:$0xff] %vm20, %v124
    %136 = vst.msk [vmem:[%s132 + $0x18] sm:$0xff] %vm20, %v127
    %137 = vst.msk [vmem:[%s132 + $0x20] sm:$0xff] %vm20, %v130
    %s138 = scalar_lea.vmem %s0, 160
    %v139 = vld [vmem:[%s138] sm:$0xff]
    %v140 = vld [vmem:[%s138 + $0x8] sm:$0xff]
    %v141 = vld [vmem:[%s138 + $0x10] sm:$0xff]
    %v142 = vld [vmem:[%s138 + $0x18] sm:$0xff]
    %v143 = vld [vmem:[%s138 + $0x20] sm:$0xff]
    %s144 = scalar_lea.vmem %s0, 200
    %v145 = vld [vmem:[%s144] sm:$0xff]
    %v146 = vld [vmem:[%s144 + $0x8] sm:$0xff]
    %v147 = vld [vmem:[%s144 + $0x10] sm:$0xff]
    %v148 = vld [vmem:[%s144 + $0x18] sm:$0xff]
    %v149 = vld [vmem:[%s144 + $0x20] sm:$0xff]
    %v151 = vsel %vm20, %v139, 0
    %v154 = vsel %vm20, %v140, 0
    %v157 = vsel %vm20, %v141, 0
    %v160 = vsel %vm20, %v142, 0
    %v163 = vsel %vm20, %v143, 0
    %165 = vmatpush.msra.mxu0 0.0
    %166 = vmatpush.msra.mxu0 0.0
    %167 = vmatpush.msra.mxu0 0.0
    %168 = vmatpush.msra.mxu0 0.0
    %169 = vmatpush.msra.mxu0 0.0
    %170 = vmatpush.msra.mxu0 0.0
    %171 = vmatpush.msra.mxu0 0.0
    %172 = vmatpush.msra.mxu0 0.0
    %173 = vmatpush.msra.mxu0 0.0
    %174 = vmatpush.msra.mxu0 0.0
    %175 = vmatpush.msra.mxu0 0.0
    %176 = vmatpush.msra.mxu0 %v149
    %177 = vmatpush.msra.mxu0 %v148
    %178 = vmatpush.msra.mxu0 %v147
    %179 = vmatpush.msra.mxu0 %v146
    %180 = vmatpush.msra.mxu0 %v145
    %181 = vmatmul.f32.gmra.mxu0 %v151
    %v182 = vpop.f32.mrf.mxu0
    %v183 = vadd.f32 0.0, %v182
    %184 = vmatmul.f32.gmra.mxu0 %v154
    %v185 = vpop.f32.mrf.mxu0
    %v186 = vadd.f32 0.0, %v185
    %187 = vmatmul.f32.gmra.mxu0 %v157
    %v188 = vpop.f32.mrf.mxu0
    %v189 = vadd.f32 0.0, %v188
    %190 = vmatmul.f32.gmra.mxu0 %v160
    %v191 = vpop.f32.mrf.mxu0
    %v192 = vadd.f32 0.0, %v191
    %193 = vmatmul.f32.gmra.mxu0 %v163
    %v194 = vpop.f32.mrf.mxu0
    %v195 = vadd.f32 0.0, %v194
    %196 = vdwg.mxu0
    %s197 = scalar_lea.vmem [#allocation2], 80
    %198 = vst.msk [vmem:[%s197] sm:$0xff] %vm20, %v183
    %199 = vst.msk [vmem:[%s197 + $0x8] sm:$0xff] %vm20, %v186
    %200 = vst.msk [vmem:[%s197 + $0x10] sm:$0xff] %vm20, %v189
    %201 = vst.msk [vmem:[%s197 + $0x18] sm:$0xff] %vm20, %v192
    %202 = vst.msk [vmem:[%s197 + $0x20] sm:$0xff] %vm20, %v195
    %s203 = scalar_lea.vmem %s0, 240
    %v204 = vld [vmem:[%s203] sm:$0xff]
    %v205 = vld [vmem:[%s203 + $0x8] sm:$0xff]
    %v206 = vld [vmem:[%s203 + $0x10] sm:$0xff]
    %v207 = vld [vmem:[%s203 + $0x18] sm:$0xff]
    %v208 = vld [vmem:[%s203 + $0x20] sm:$0xff]
    %s209 = scalar_lea.vmem %s0, 280
    %v210 = vld [vmem:[%s209] sm:$0xff]
    %v211 = vld [vmem:[%s209 + $0x8] sm:$0xff]
    %v212 = vld [vmem:[%s209 + $0x10] sm:$0xff]
    %v213 = vld [vmem:[%s209 + $0x18] sm:$0xff]
    %v214 = vld [vmem:[%s209 + $0x20] sm:$0xff]
    %v216 = vsel %vm20, %v204, 0
    %v219 = vsel %vm20, %v205, 0
    %v222 = vsel %vm20, %v206, 0
    %v225 = vsel %vm20, %v207, 0
    %v228 = vsel %vm20, %v208, 0
    %230 = vmatpush.msra.mxu0 0.0
    %231 = vmatpush.msra.mxu0 0.0
    %232 = vmatpush.msra.mxu0 0.0
    %233 = vmatpush.msra.mxu0 0.0
    %234 = vmatpush.msra.mxu0 0.0
    %235 = vmatpush.msra.mxu0 0.0
    %236 = vmatpush.msra.mxu0 0.0
    %237 = vmatpush.msra.mxu0 0.0
    %238 = vmatpush.msra.mxu0 0.0
    %239 = vmatpush.msra.mxu0 0.0
    %240 = vmatpush.msra.mxu0 0.0
    %241 = vmatpush.msra.mxu0 %v214
    %242 = vmatpush.msra.mxu0 %v213
    %243 = vmatpush.msra.mxu0 %v212
    %244 = vmatpush.msra.mxu0 %v211
    %245 = vmatpush.msra.mxu0 %v210
    %246 = vmatmul.f32.gmra.mxu0 %v216
    %v247 = vpop.f32.mrf.mxu0
    %v248 = vadd.f32 0.0, %v247
    %249 = vmatmul.f32.gmra.mxu0 %v219
    %v250 = vpop.f32.mrf.mxu0
    %v251 = vadd.f32 0.0, %v250
    %252 = vmatmul.f32.gmra.mxu0 %v222
    %v253 = vpop.f32.mrf.mxu0
    %v254 = vadd.f32 0.0, %v253
    %255 = vmatmul.f32.gmra.mxu0 %v225
    %v256 = vpop.f32.mrf.mxu0
    %v257 = vadd.f32 0.0, %v256
    %258 = vmatmul.f32.gmra.mxu0 %v228
    %v259 = vpop.f32.mrf.mxu0
    %v260 = vadd.f32 0.0, %v259
    %261 = vdwg.mxu0
    %s262 = scalar_lea.vmem [#allocation2], 120
    %263 = vst.msk [vmem:[%s262] sm:$0xff] %vm20, %v248
    %264 = vst.msk [vmem:[%s262 + $0x8] sm:$0xff] %vm20, %v251
    %265 = vst.msk [vmem:[%s262 + $0x10] sm:$0xff] %vm20, %v254
    %266 = vst.msk [vmem:[%s262 + $0x18] sm:$0xff] %vm20, %v257
    %267 = vst.msk [vmem:[%s262 + $0x20] sm:$0xff] %vm20, %v260
    %s268 = scalar_lea.vmem %s0, 320
    %v269 = vld [vmem:[%s268] sm:$0xff]
    %v270 = vld [vmem:[%s268 + $0x8] sm:$0xff]
    %v271 = vld [vmem:[%s268 + $0x10] sm:$0xff]
    %v272 = vld [vmem:[%s268 + $0x18] sm:$0xff]
    %v273 = vld [vmem:[%s268 + $0x20] sm:$0xff]
    %s274 = scalar_lea.vmem %s0, 360
    %v275 = vld [vmem:[%s274] sm:$0xff]
    %v276 = vld [vmem:[%s274 + $0x8] sm:$0xff]
    %v277 = vld [vmem:[%s274 + $0x10] sm:$0xff]
    %v278 = vld [vmem:[%s274 + $0x18] sm:$0xff]
    %v279 = vld [vmem:[%s274 + $0x20] sm:$0xff]
    %v281 = vsel %vm20, %v269, 0
    %v284 = vsel %vm20, %v270, 0
    %v287 = vsel %vm20, %v271, 0
    %v290 = vsel %vm20, %v272, 0
    %v293 = vsel %vm20, %v273, 0
    %295 = vmatpush.msra.mxu0 0.0
    %296 = vmatpush.msra.mxu0 0.0
    %297 = vmatpush.msra.mxu0 0.0
    %298 = vmatpush.msra.mxu0 0.0
    %299 = vmatpush.msra.mxu0 0.0
    %300 = vmatpush.msra.mxu0 0.0
    %301 = vmatpush.msra.mxu0 0.0
    %302 = vmatpush.msra.mxu0 0.0
    %303 = vmatpush.msra.mxu0 0.0
    %304 = vmatpush.msra.mxu0 0.0
    %305 = vmatpush.msra.mxu0 0.0
    %306 = vmatpush.msra.mxu0 %v279
    %307 = vmatpush.msra.mxu0 %v278
    %308 = vmatpush.msra.mxu0 %v277
    %309 = vmatpush.msra.mxu0 %v276
    %310 = vmatpush.msra.mxu0 %v275
    %311 = vmatmul.f32.gmra.mxu0 %v281
    %v312 = vpop.f32.mrf.mxu0
    %v313 = vadd.f32 0.0, %v312
    %314 = vmatmul.f32.gmra.mxu0 %v284
    %v315 = vpop.f32.mrf.mxu0
    %v316 = vadd.f32 0.0, %v315
    %317 = vmatmul.f32.gmra.mxu0 %v287
    %v318 = vpop.f32.mrf.mxu0
    %v319 = vadd.f32 0.0, %v318
    %320 = vmatmul.f32.gmra.mxu0 %v290
    %v321 = vpop.f32.mrf.mxu0
    %v322 = vadd.f32 0.0, %v321
    %323 = vmatmul.f32.gmra.mxu0 %v293
    %v324 = vpop.f32.mrf.mxu0
    %v325 = vadd.f32 0.0, %v324
    %326 = vdwg.mxu0
    %s327 = scalar_lea.vmem [#allocation2], 160
    %328 = vst.msk [vmem:[%s327] sm:$0xff] %vm20, %v313
    %329 = vst.msk [vmem:[%s327 + $0x8] sm:$0xff] %vm20, %v316
    %330 = vst.msk [vmem:[%s327 + $0x10] sm:$0xff] %vm20, %v319
    %331 = vst.msk [vmem:[%s327 + $0x18] sm:$0xff] %vm20, %v322
    %332 = vst.msk [vmem:[%s327 + $0x20] sm:$0xff] %vm20, %v325
    %s333 = scalar_lea.vmem %s0, 400
    %v334 = vld [vmem:[%s333] sm:$0xff]
    %v335 = vld [vmem:[%s333 + $0x8] sm:$0xff]
    %v336 = vld [vmem:[%s333 + $0x10] sm:$0xff]
    %v337 = vld [vmem:[%s333 + $0x18] sm:$0xff]
    %v338 = vld [vmem:[%s333 + $0x20] sm:$0xff]
    %s339 = scalar_lea.vmem %s0, 440
    %v340 = vld [vmem:[%s339] sm:$0xff]
    %v341 = vld [vmem:[%s339 + $0x8] sm:$0xff]
    %v342 = vld [vmem:[%s339 + $0x10] sm:$0xff]
    %v343 = vld [vmem:[%s339 + $0x18] sm:$0xff]
    %v344 = vld [vmem:[%s339 + $0x20] sm:$0xff]
    %v346 = vsel %vm20, %v334, 0
    %v349 = vsel %vm20, %v335, 0
    %v352 = vsel %vm20, %v336, 0
    %v355 = vsel %vm20, %v337, 0
    %v358 = vsel %vm20, %v338, 0
    %360 = vmatpush.msra.mxu0 0.0
    %361 = vmatpush.msra.mxu0 0.0
    %362 = vmatpush.msra.mxu0 0.0
    %363 = vmatpush.msra.mxu0 0.0
    %364 = vmatpush.msra.mxu0 0.0
    %365 = vmatpush.msra.mxu0 0.0
    %366 = vmatpush.msra.mxu0 0.0
    %367 = vmatpush.msra.mxu0 0.0
    %368 = vmatpush.msra.mxu0 0.0
    %369 = vmatpush.msra.mxu0 0.0
    %370 = vmatpush.msra.mxu0 0.0
    %371 = vmatpush.msra.mxu0 %v344
    %372 = vmatpush.msra.mxu0 %v343
    %373 = vmatpush.msra.mxu0 %v342
    %374 = vmatpush.msra.mxu0 %v341
    %375 = vmatpush.msra.mxu0 %v340
    %376 = vmatmul.f32.gmra.mxu0 %v346
    %v377 = vpop.f32.mrf.mxu0
    %v378 = vadd.f32 0.0, %v377
    %379 = vmatmul.f32.gmra.mxu0 %v349
    %v380 = vpop.f32.mrf.mxu0
    %v381 = vadd.f32 0.0, %v380
    %382 = vmatmul.f32.gmra.mxu0 %v352
    %v383 = vpop.f32.mrf.mxu0
    %v384 = vadd.f32 0.0, %v383
    %385 = vmatmul.f32.gmra.mxu0 %v355
    %v386 = vpop.f32.mrf.mxu0
    %v387 = vadd.f32 0.0, %v386
    %388 = vmatmul.f32.gmra.mxu0 %v358
    %v389 = vpop.f32.mrf.mxu0
    %v390 = vadd.f32 0.0, %v389
    %391 = vdwg.mxu0
    %s392 = scalar_lea.vmem [#allocation2], 200
    %393 = vst.msk [vmem:[%s392] sm:$0xff] %vm20, %v378
    %394 = vst.msk [vmem:[%s392 + $0x8] sm:$0xff] %vm20, %v381
    %395 = vst.msk [vmem:[%s392 + $0x10] sm:$0xff] %vm20, %v384
    %396 = vst.msk [vmem:[%s392 + $0x18] sm:$0xff] %vm20, %v387
    %397 = vst.msk [vmem:[%s392 + $0x20] sm:$0xff] %vm20, %v390
    %s398 = scalar_lea.vmem %s0, 480
    %v399 = vld [vmem:[%s398] sm:$0xff]
    %v400 = vld [vmem:[%s398 + $0x8] sm:$0xff]
    %v401 = vld [vmem:[%s398 + $0x10] sm:$0xff]
    %v402 = vld [vmem:[%s398 + $0x18] sm:$0xff]
    %v403 = vld [vmem:[%s398 + $0x20] sm:$0xff]
    %s404 = scalar_lea.vmem %s0, 520
    %v405 = vld [vmem:[%s404] sm:$0xff]
    %v406 = vld [vmem:[%s404 + $0x8] sm:$0xff]
    %v407 = vld [vmem:[%s404 + $0x10] sm:$0xff]
    %v408 = vld [vmem:[%s404 + $0x18] sm:$0xff]
    %v409 = vld [vmem:[%s404 + $0x20] sm:$0xff]
    %v411 = vsel %vm20, %v399, 0
    %v414 = vsel %vm20, %v400, 0
    %v417 = vsel %vm20, %v401, 0
    %v420 = vsel %vm20, %v402, 0
    %v423 = vsel %vm20, %v403, 0
    %425 = vmatpush.msra.mxu0 0.0
    %426 = vmatpush.msra.mxu0 0.0
    %427 = vmatpush.msra.mxu0 0.0
    %428 = vmatpush.msra.mxu0 0.0
    %429 = vmatpush.msra.mxu0 0.0
    %430 = vmatpush.msra.mxu0 0.0
    %431 = vmatpush.msra.mxu0 0.0
    %432 = vmatpush.msra.mxu0 0.0
    %433 = vmatpush.msra.mxu0 0.0
    %434 = vmatpush.msra.mxu0 0.0
    %435 = vmatpush.msra.mxu0 0.0
    %436 = vmatpush.msra.mxu0 %v409
    %437 = vmatpush.msra.mxu0 %v408
    %438 = vmatpush.msra.mxu0 %v407
    %439 = vmatpush.msra.mxu0 %v406
    %440 = vmatpush.msra.mxu0 %v405
    %441 = vmatmul.f32.gmra.mxu0 %v411
    %v442 = vpop.f32.mrf.mxu0
    %v443 = vadd.f32 0.0, %v442
    %444 = vmatmul.f32.gmra.mxu0 %v414
    %v445 = vpop.f32.mrf.mxu0
    %v446 = vadd.f32 0.0, %v445
    %447 = vmatmul.f32.gmra.mxu0 %v417
    %v448 = vpop.f32.mrf.mxu0
    %v449 = vadd.f32 0.0, %v448
    %450 = vmatmul.f32.gmra.mxu0 %v420
    %v451 = vpop.f32.mrf.mxu0
    %v452 = vadd.f32 0.0, %v451
    %453 = vmatmul.f32.gmra.mxu0 %v423
    %v454 = vpop.f32.mrf.mxu0
    %v455 = vadd.f32 0.0, %v454
    %456 = vdwg.mxu0
    %s457 = scalar_lea.vmem [#allocation2], 240
    %458 = vst.msk [vmem:[%s457] sm:$0xff] %vm20, %v443
    %459 = vst.msk [vmem:[%s457 + $0x8] sm:$0xff] %vm20, %v446
    %460 = vst.msk [vmem:[%s457 + $0x10] sm:$0xff] %vm20, %v449
    %461 = vst.msk [vmem:[%s457 + $0x18] sm:$0xff] %vm20, %v452
    %462 = vst.msk [vmem:[%s457 + $0x20] sm:$0xff] %vm20, %v455
    %s463 = scalar_lea.vmem %s0, 560
    %v464 = vld [vmem:[%s463] sm:$0xff]
    %v465 = vld [vmem:[%s463 + $0x8] sm:$0xff]
    %v466 = vld [vmem:[%s463 + $0x10] sm:$0xff]
    %v467 = vld [vmem:[%s463 + $0x18] sm:$0xff]
    %v468 = vld [vmem:[%s463 + $0x20] sm:$0xff]
    %s469 = scalar_lea.vmem %s0, 600
    %v470 = vld [vmem:[%s469] sm:$0xff]
    %v471 = vld [vmem:[%s469 + $0x8] sm:$0xff]
    %v472 = vld [vmem:[%s469 + $0x10] sm:$0xff]
    %v473 = vld [vmem:[%s469 + $0x18] sm:$0xff]
    %v474 = vld [vmem:[%s469 + $0x20] sm:$0xff]
    %v476 = vsel %vm20, %v464, 0
    %v479 = vsel %vm20, %v465, 0
    %v482 = vsel %vm20, %v466, 0
    %v485 = vsel %vm20, %v467, 0
    %v488 = vsel %vm20, %v468, 0
    %490 = vmatpush.msra.mxu0 0.0
    %491 = vmatpush.msra.mxu0 0.0
    %492 = vmatpush.msra.mxu0 0.0
    %493 = vmatpush.msra.mxu0 0.0
    %494 = vmatpush.msra.mxu0 0.0
    %495 = vmatpush.msra.mxu0 0.0
    %496 = vmatpush.msra.mxu0 0.0
    %497 = vmatpush.msra.mxu0 0.0
    %498 = vmatpush.msra.mxu0 0.0
    %499 = vmatpush.msra.mxu0 0.0
    %500 = vmatpush.msra.mxu0 0.0
    %501 = vmatpush.msra.mxu0 %v474
    %502 = vmatpush.msra.mxu0 %v473
    %503 = vmatpush.msra.mxu0 %v472
    %504 = vmatpush.msra.mxu0 %v471
    %505 = vmatpush.msra.mxu0 %v470
    %506 = vmatmul.f32.gmra.mxu0 %v476
    %v507 = vpop.f32.mrf.mxu0
    %v508 = vadd.f32 0.0, %v507
    %509 = vmatmul.f32.gmra.mxu0 %v479
    %v510 = vpop.f32.mrf.mxu0
    %v511 = vadd.f32 0.0, %v510
    %512 = vmatmul.f32.gmra.mxu0 %v482
    %v513 = vpop.f32.mrf.mxu0
    %v514 = vadd.f32 0.0, %v513
    %515 = vmatmul.f32.gmra.mxu0 %v485
    %v516 = vpop.f32.mrf.mxu0
    %v517 = vadd.f32 0.0, %v516
    %518 = vmatmul.f32.gmra.mxu0 %v488
    %v519 = vpop.f32.mrf.mxu0
    %v520 = vadd.f32 0.0, %v519
    %521 = vdwg.mxu0
    %s522 = scalar_lea.vmem [#allocation2], 280
    %523 = vst.msk [vmem:[%s522] sm:$0xff] %vm20, %v508
    %524 = vst.msk [vmem:[%s522 + $0x8] sm:$0xff] %vm20, %v511
    %525 = vst.msk [vmem:[%s522 + $0x10] sm:$0xff] %vm20, %v514
    %526 = vst.msk [vmem:[%s522 + $0x18] sm:$0xff] %vm20, %v517
    %527 = vst.msk [vmem:[%s522 + $0x20] sm:$0xff] %vm20, %v520
    %s528 = scalar_lea.vmem %s0, 640
    %v529 = vld [vmem:[%s528] sm:$0xff]
    %v530 = vld [vmem:[%s528 + $0x8] sm:$0xff]
    %v531 = vld [vmem:[%s528 + $0x10] sm:$0xff]
    %v532 = vld [vmem:[%s528 + $0x18] sm:$0xff]
    %v533 = vld [vmem:[%s528 + $0x20] sm:$0xff]
    %s534 = scalar_lea.vmem %s0, 680
    %v535 = vld [vmem:[%s534] sm:$0xff]
    %v536 = vld [vmem:[%s534 + $0x8] sm:$0xff]
    %v537 = vld [vmem:[%s534 + $0x10] sm:$0xff]
    %v538 = vld [vmem:[%s534 + $0x18] sm:$0xff]
    %v539 = vld [vmem:[%s534 + $0x20] sm:$0xff]
    %v541 = vsel %vm20, %v529, 0
    %v544 = vsel %vm20, %v530, 0
    %v547 = vsel %vm20, %v531, 0
    %v550 = vsel %vm20, %v532, 0
    %v553 = vsel %vm20, %v533, 0
    %555 = vmatpush.msra.mxu0 0.0
    %556 = vmatpush.msra.mxu0 0.0
    %557 = vmatpush.msra.mxu0 0.0
    %558 = vmatpush.msra.mxu0 0.0
    %559 = vmatpush.msra.mxu0 0.0
    %560 = vmatpush.msra.mxu0 0.0
    %561 = vmatpush.msra.mxu0 0.0
    %562 = vmatpush.msra.mxu0 0.0
    %563 = vmatpush.msra.mxu0 0.0
    %564 = vmatpush.msra.mxu0 0.0
    %565 = vmatpush.msra.mxu0 0.0
    %566 = vmatpush.msra.mxu0 %v539
    %567 = vmatpush.msra.mxu0 %v538
    %568 = vmatpush.msra.mxu0 %v537
    %569 = vmatpush.msra.mxu0 %v536
    %570 = vmatpush.msra.mxu0 %v535
    %571 = vmatmul.f32.gmra.mxu0 %v541
    %v572 = vpop.f32.mrf.mxu0
    %v573 = vadd.f32 0.0, %v572
    %574 = vmatmul.f32.gmra.mxu0 %v544
    %v575 = vpop.f32.mrf.mxu0
    %v576 = vadd.f32 0.0, %v575
    %577 = vmatmul.f32.gmra.mxu0 %v547
    %v578 = vpop.f32.mrf.mxu0
    %v579 = vadd.f32 0.0, %v578
    %580 = vmatmul.f32.gmra.mxu0 %v550
    %v581 = vpop.f32.mrf.mxu0
    %v582 = vadd.f32 0.0, %v581
    %583 = vmatmul.f32.gmra.mxu0 %v553
    %v584 = vpop.f32.mrf.mxu0
    %v585 = vadd.f32 0.0, %v584
    %586 = vdwg.mxu0
    %s587 = scalar_lea.vmem [#allocation2], 320
    %588 = vst.msk [vmem:[%s587] sm:$0xff] %vm20, %v573
    %589 = vst.msk [vmem:[%s587 + $0x8] sm:$0xff] %vm20, %v576
    %590 = vst.msk [vmem:[%s587 + $0x10] sm:$0xff] %vm20, %v579
    %591 = vst.msk [vmem:[%s587 + $0x18] sm:$0xff] %vm20, %v582
    %592 = vst.msk [vmem:[%s587 + $0x20] sm:$0xff] %vm20, %v585
    %s593 = scalar_lea.vmem %s0, 720
    %v594 = vld [vmem:[%s593] sm:$0xff]
    %v595 = vld [vmem:[%s593 + $0x8] sm:$0xff]
    %v596 = vld [vmem:[%s593 + $0x10] sm:$0xff]
    %v597 = vld [vmem:[%s593 + $0x18] sm:$0xff]
    %v598 = vld [vmem:[%s593 + $0x20] sm:$0xff]
    %s599 = scalar_lea.vmem %s0, 760
    %v600 = vld [vmem:[%s599] sm:$0xff]
    %v601 = vld [vmem:[%s599 + $0x8] sm:$0xff]
    %v602 = vld [vmem:[%s599 + $0x10] sm:$0xff]
    %v603 = vld [vmem:[%s599 + $0x18] sm:$0xff]
    %v604 = vld [vmem:[%s599 + $0x20] sm:$0xff]
    %v606 = vsel %vm20, %v594, 0
    %v609 = vsel %vm20, %v595, 0
    %v612 = vsel %vm20, %v596, 0
    %v615 = vsel %vm20, %v597, 0
    %v618 = vsel %vm20, %v598, 0
    %620 = vmatpush.msra.mxu0 0.0
    %621 = vmatpush.msra.mxu0 0.0
    %622 = vmatpush.msra.mxu0 0.0
    %623 = vmatpush.msra.mxu0 0.0
    %624 = vmatpush.msra.mxu0 0.0
    %625 = vmatpush.msra.mxu0 0.0
    %626 = vmatpush.msra.mxu0 0.0
    %627 = vmatpush.msra.mxu0 0.0
    %628 = vmatpush.msra.mxu0 0.0
    %629 = vmatpush.msra.mxu0 0.0
    %630 = vmatpush.msra.mxu0 0.0
    %631 = vmatpush.msra.mxu0 %v604
    %632 = vmatpush.msra.mxu0 %v603
    %633 = vmatpush.msra.mxu0 %v602
    %634 = vmatpush.msra.mxu0 %v601
    %635 = vmatpush.msra.mxu0 %v600
    %636 = vmatmul.f32.gmra.mxu0 %v606
    %v637 = vpop.f32.mrf.mxu0
    %v638 = vadd.f32 0.0, %v637
    %639 = vmatmul.f32.gmra.mxu0 %v609
    %v640 = vpop.f32.mrf.mxu0
    %v641 = vadd.f32 0.0, %v640
    %642 = vmatmul.f32.gmra.mxu0 %v612
    %v643 = vpop.f32.mrf.mxu0
    %v644 = vadd.f32 0.0, %v643
    %645 = vmatmul.f32.gmra.mxu0 %v615
    %v646 = vpop.f32.mrf.mxu0
    %v647 = vadd.f32 0.0, %v646
    %648 = vmatmul.f32.gmra.mxu0 %v618
    %v649 = vpop.f32.mrf.mxu0
    %v650 = vadd.f32 0.0, %v649
    %651 = vdwg.mxu0
    %s652 = scalar_lea.vmem [#allocation2], 360
    %653 = vst.msk [vmem:[%s652] sm:$0xff] %vm20, %v638
    %654 = vst.msk [vmem:[%s652 + $0x8] sm:$0xff] %vm20, %v641
    %655 = vst.msk [vmem:[%s652 + $0x10] sm:$0xff] %vm20, %v644
    %656 = vst.msk [vmem:[%s652 + $0x18] sm:$0xff] %vm20, %v647
    %657 = vst.msk [vmem:[%s652 + $0x20] sm:$0xff] %vm20, %v650
    %s658 = scalar_lea.vmem %s0, 800
    %v659 = vld [vmem:[%s658] sm:$0xff]
    %v660 = vld [vmem:[%s658 + $0x8] sm:$0xff]
    %v661 = vld [vmem:[%s658 + $0x10] sm:$0xff]
    %v662 = vld [vmem:[%s658 + $0x18] sm:$0xff]
    %v663 = vld [vmem:[%s658 + $0x20] sm:$0xff]
    %s664 = scalar_lea.vmem %s0, 840
    %v665 = vld [vmem:[%s664] sm:$0xff]
    %v666 = vld [vmem:[%s664 + $0x8] sm:$0xff]
    %v667 = vld [vmem:[%s664 + $0x10] sm:$0xff]
    %v668 = vld [vmem:[%s664 + $0x18] sm:$0xff]
    %v669 = vld [vmem:[%s664 + $0x20] sm:$0xff]
    %v671 = vsel %vm20, %v659, 0
    %v674 = vsel %vm20, %v660, 0
    %v677 = vsel %vm20, %v661, 0
    %v680 = vsel %vm20, %v662, 0
    %v683 = vsel %vm20, %v663, 0
    %685 = vmatpush.msra.mxu0 0.0
    %686 = vmatpush.msra.mxu0 0.0
    %687 = vmatpush.msra.mxu0 0.0
    %688 = vmatpush.msra.mxu0 0.0
    %689 = vmatpush.msra.mxu0 0.0
    %690 = vmatpush.msra.mxu0 0.0
    %691 = vmatpush.msra.mxu0 0.0
    %692 = vmatpush.msra.mxu0 0.0
    %693 = vmatpush.msra.mxu0 0.0
    %694 = vmatpush.msra.mxu0 0.0
    %695 = vmatpush.msra.mxu0 0.0
    %696 = vmatpush.msra.mxu0 %v669
    %697 = vmatpush.msra.mxu0 %v668
    %698 = vmatpush.msra.mxu0 %v667
    %699 = vmatpush.msra.mxu0 %v666
    %700 = vmatpush.msra.mxu0 %v665
    %701 = vmatmul.f32.gmra.mxu0 %v671
    %v702 = vpop.f32.mrf.mxu0
    %v703 = vadd.f32 0.0, %v702
    %704 = vmatmul.f32.gmra.mxu0 %v674
    %v705 = vpop.f32.mrf.mxu0
    %v706 = vadd.f32 0.0, %v705
    %707 = vmatmul.f32.gmra.mxu0 %v677
    %v708 = vpop.f32.mrf.mxu0
    %v709 = vadd.f32 0.0, %v708
    %710 = vmatmul.f32.gmra.mxu0 %v680
    %v711 = vpop.f32.mrf.mxu0
    %v712 = vadd.f32 0.0, %v711
    %713 = vmatmul.f32.gmra.mxu0 %v683
    %v714 = vpop.f32.mrf.mxu0
    %v715 = vadd.f32 0.0, %v714
    %716 = vdwg.mxu0
    %s717 = scalar_lea.vmem [#allocation2], 400
    %718 = vst.msk [vmem:[%s717] sm:$0xff] %vm20, %v703
    %719 = vst.msk [vmem:[%s717 + $0x8] sm:$0xff] %vm20, %v706
    %720 = vst.msk [vmem:[%s717 + $0x10] sm:$0xff] %vm20, %v709
    %721 = vst.msk [vmem:[%s717 + $0x18] sm:$0xff] %vm20, %v712
    %722 = vst.msk [vmem:[%s717 + $0x20] sm:$0xff] %vm20, %v715
    %s723 = scalar_lea.vmem %s0, 880
    %v724 = vld [vmem:[%s723] sm:$0xff]
    %v725 = vld [vmem:[%s723 + $0x8] sm:$0xff]
    %v726 = vld [vmem:[%s723 + $0x10] sm:$0xff]
    %v727 = vld [vmem:[%s723 + $0x18] sm:$0xff]
    %v728 = vld [vmem:[%s723 + $0x20] sm:$0xff]
    %s729 = scalar_lea.vmem %s0, 920
    %v730 = vld [vmem:[%s729] sm:$0xff]
    %v731 = vld [vmem:[%s729 + $0x8] sm:$0xff]
    %v732 = vld [vmem:[%s729 + $0x10] sm:$0xff]
    %v733 = vld [vmem:[%s729 + $0x18] sm:$0xff]
    %v734 = vld [vmem:[%s729 + $0x20] sm:$0xff]
    %v736 = vsel %vm20, %v724, 0
    %v739 = vsel %vm20, %v725, 0
    %v742 = vsel %vm20, %v726, 0
    %v745 = vsel %vm20, %v727, 0
    %v748 = vsel %vm20, %v728, 0
    %750 = vmatpush.msra.mxu0 0.0
    %751 = vmatpush.msra.mxu0 0.0
    %752 = vmatpush.msra.mxu0 0.0
    %753 = vmatpush.msra.mxu0 0.0
    %754 = vmatpush.msra.mxu0 0.0
    %755 = vmatpush.msra.mxu0 0.0
    %756 = vmatpush.msra.mxu0 0.0
    %757 = vmatpush.msra.mxu0 0.0
    %758 = vmatpush.msra.mxu0 0.0
    %759 = vmatpush.msra.mxu0 0.0
    %760 = vmatpush.msra.mxu0 0.0
    %761 = vmatpush.msra.mxu0 %v734
    %762 = vmatpush.msra.mxu0 %v733
    %763 = vmatpush.msra.mxu0 %v732
    %764 = vmatpush.msra.mxu0 %v731
    %765 = vmatpush.msra.mxu0 %v730
    %766 = vmatmul.f32.gmra.mxu0 %v736
    %v767 = vpop.f32.mrf.mxu0
    %v768 = vadd.f32 0.0, %v767
    %769 = vmatmul.f32.gmra.mxu0 %v739
    %v770 = vpop.f32.mrf.mxu0
    %v771 = vadd.f32 0.0, %v770
    %772 = vmatmul.f32.gmra.mxu0 %v742
    %v773 = vpop.f32.mrf.mxu0
    %v774 = vadd.f32 0.0, %v773
    %775 = vmatmul.f32.gmra.mxu0 %v745
    %v776 = vpop.f32.mrf.mxu0
    %v777 = vadd.f32 0.0, %v776
    %778 = vmatmul.f32.gmra.mxu0 %v748
    %v779 = vpop.f32.mrf.mxu0
    %v780 = vadd.f32 0.0, %v779
    %781 = vdwg.mxu0
    %s782 = scalar_lea.vmem [#allocation2], 440
    %783 = vst.msk [vmem:[%s782] sm:$0xff] %vm20, %v768
    %784 = vst.msk [vmem:[%s782 + $0x8] sm:$0xff] %vm20, %v771
    %785 = vst.msk [vmem:[%s782 + $0x10] sm:$0xff] %vm20, %v774
    %786 = vst.msk [vmem:[%s782 + $0x18] sm:$0xff] %vm20, %v777
    %787 = vst.msk [vmem:[%s782 + $0x20] sm:$0xff] %vm20, %v780
    %s788 = scalar_lea.vmem %s0, 960
    %v789 = vld [vmem:[%s788] sm:$0xff]
    %v790 = vld [vmem:[%s788 + $0x8] sm:$0xff]
    %v791 = vld [vmem:[%s788 + $0x10] sm:$0xff]
    %v792 = vld [vmem:[%s788 + $0x18] sm:$0xff]
    %v793 = vld [vmem:[%s788 + $0x20] sm:$0xff]
    %s794 = scalar_lea.vmem %s0, 1000
    %v795 = vld [vmem:[%s794] sm:$0xff]
    %v796 = vld [vmem:[%s794 + $0x8] sm:$0xff]
    %v797 = vld [vmem:[%s794 + $0x10] sm:$0xff]
    %v798 = vld [vmem:[%s794 + $0x18] sm:$0xff]
    %v799 = vld [vmem:[%s794 + $0x20] sm:$0xff]
    %v801 = vsel %vm20, %v789, 0
    %v804 = vsel %vm20, %v790, 0
    %v807 = vsel %vm20, %v791, 0
    %v810 = vsel %vm20, %v792, 0
    %v813 = vsel %vm20, %v793, 0
    %815 = vmatpush.msra.mxu0 0.0
    %816 = vmatpush.msra.mxu0 0.0
    %817 = vmatpush.msra.mxu0 0.0
    %818 = vmatpush.msra.mxu0 0.0
    %819 = vmatpush.msra.mxu0 0.0
    %820 = vmatpush.msra.mxu0 0.0
    %821 = vmatpush.msra.mxu0 0.0
    %822 = vmatpush.msra.mxu0 0.0
    %823 = vmatpush.msra.mxu0 0.0
    %824 = vmatpush.msra.mxu0 0.0
    %825 = vmatpush.msra.mxu0 0.0
    %826 = vmatpush.msra.mxu0 %v799
    %827 = vmatpush.msra.mxu0 %v798
    %828 = vmatpush.msra.mxu0 %v797
    %829 = vmatpush.msra.mxu0 %v796
    %830 = vmatpush.msra.mxu0 %v795
    %831 = vmatmul.f32.gmra.mxu0 %v801
    %v832 = vpop.f32.mrf.mxu0
    %v833 = vadd.f32 0.0, %v832
    %834 = vmatmul.f32.gmra.mxu0 %v804
    %v835 = vpop.f32.mrf.mxu0
    %v836 = vadd.f32 0.0, %v835
    %837 = vmatmul.f32.gmra.mxu0 %v807
    %v838 = vpop.f32.mrf.mxu0
    %v839 = vadd.f32 0.0, %v838
    %840 = vmatmul.f32.gmra.mxu0 %v810
    %v841 = vpop.f32.mrf.mxu0
    %v842 = vadd.f32 0.0, %v841
    %843 = vmatmul.f32.gmra.mxu0 %v813
    %v844 = vpop.f32.mrf.mxu0
    %v845 = vadd.f32 0.0, %v844
    %846 = vdwg.mxu0
    %s847 = scalar_lea.vmem [#allocation2], 480
    %848 = vst.msk [vmem:[%s847] sm:$0xff] %vm20, %v833
    %849 = vst.msk [vmem:[%s847 + $0x8] sm:$0xff] %vm20, %v836
    %850 = vst.msk [vmem:[%s847 + $0x10] sm:$0xff] %vm20, %v839
    %851 = vst.msk [vmem:[%s847 + $0x18] sm:$0xff] %vm20, %v842
    %852 = vst.msk [vmem:[%s847 + $0x20] sm:$0xff] %vm20, %v845
    %s853 = scalar_lea.vmem %s0, 1040
    %v854 = vld [vmem:[%s853] sm:$0xff]
    %v855 = vld [vmem:[%s853 + $0x8] sm:$0xff]
    %v856 = vld [vmem:[%s853 + $0x10] sm:$0xff]
    %v857 = vld [vmem:[%s853 + $0x18] sm:$0xff]
    %v858 = vld [vmem:[%s853 + $0x20] sm:$0xff]
    %s859 = scalar_lea.vmem %s0, 1080
    %v860 = vld [vmem:[%s859] sm:$0xff]
    %v861 = vld [vmem:[%s859 + $0x8] sm:$0xff]
    %v862 = vld [vmem:[%s859 + $0x10] sm:$0xff]
    %v863 = vld [vmem:[%s859 + $0x18] sm:$0xff]
    %v864 = vld [vmem:[%s859 + $0x20] sm:$0xff]
    %v866 = vsel %vm20, %v854, 0
    %v869 = vsel %vm20, %v855, 0
    %v872 = vsel %vm20, %v856, 0
    %v875 = vsel %vm20, %v857, 0
    %v878 = vsel %vm20, %v858, 0
    %880 = vmatpush.msra.mxu0 0.0
    %881 = vmatpush.msra.mxu0 0.0
    %882 = vmatpush.msra.mxu0 0.0
    %883 = vmatpush.msra.mxu0 0.0
    %884 = vmatpush.msra.mxu0 0.0
    %885 = vmatpush.msra.mxu0 0.0
    %886 = vmatpush.msra.mxu0 0.0
    %887 = vmatpush.msra.mxu0 0.0
    %888 = vmatpush.msra.mxu0 0.0
    %889 = vmatpush.msra.mxu0 0.0
    %890 = vmatpush.msra.mxu0 0.0
    %891 = vmatpush.msra.mxu0 %v864
    %892 = vmatpush.msra.mxu0 %v863
    %893 = vmatpush.msra.mxu0 %v862
    %894 = vmatpush.msra.mxu0 %v861
    %895 = vmatpush.msra.mxu0 %v860
    %896 = vmatmul.f32.gmra.mxu0 %v866
    %v897 = vpop.f32.mrf.mxu0
    %v898 = vadd.f32 0.0, %v897
    %899 = vmatmul.f32.gmra.mxu0 %v869
    %v900 = vpop.f32.mrf.mxu0
    %v901 = vadd.f32 0.0, %v900
    %902 = vmatmul.f32.gmra.mxu0 %v872
    %v903 = vpop.f32.mrf.mxu0
    %v904 = vadd.f32 0.0, %v903
    %905 = vmatmul.f32.gmra.mxu0 %v875
    %v906 = vpop.f32.mrf.mxu0
    %v907 = vadd.f32 0.0, %v906
    %908 = vmatmul.f32.gmra.mxu0 %v878
    %v909 = vpop.f32.mrf.mxu0
    %v910 = vadd.f32 0.0, %v909
    %911 = vdwg.mxu0
    %s912 = scalar_lea.vmem [#allocation2], 520
    %913 = vst.msk [vmem:[%s912] sm:$0xff] %vm20, %v898
    %914 = vst.msk [vmem:[%s912 + $0x8] sm:$0xff] %vm20, %v901
    %915 = vst.msk [vmem:[%s912 + $0x10] sm:$0xff] %vm20, %v904
    %916 = vst.msk [vmem:[%s912 + $0x18] sm:$0xff] %vm20, %v907
    %917 = vst.msk [vmem:[%s912 + $0x20] sm:$0xff] %vm20, %v910
    %s918 = scalar_lea.vmem %s0, 1120
    %v919 = vld [vmem:[%s918] sm:$0xff]
    %v920 = vld [vmem:[%s918 + $0x8] sm:$0xff]
    %v921 = vld [vmem:[%s918 + $0x10] sm:$0xff]
    %v922 = vld [vmem:[%s918 + $0x18] sm:$0xff]
    %v923 = vld [vmem:[%s918 + $0x20] sm:$0xff]
    %s924 = scalar_lea.vmem %s0, 1160
    %v925 = vld [vmem:[%s924] sm:$0xff]
    %v926 = vld [vmem:[%s924 + $0x8] sm:$0xff]
    %v927 = vld [vmem:[%s924 + $0x10] sm:$0xff]
    %v928 = vld [vmem:[%s924 + $0x18] sm:$0xff]
    %v929 = vld [vmem:[%s924 + $0x20] sm:$0xff]
    %v931 = vsel %vm20, %v919, 0
    %v934 = vsel %vm20, %v920, 0
    %v937 = vsel %vm20, %v921, 0
    %v940 = vsel %vm20, %v922, 0
    %v943 = vsel %vm20, %v923, 0
    %945 = vmatpush.msra.mxu0 0.0
    %946 = vmatpush.msra.mxu0 0.0
    %947 = vmatpush.msra.mxu0 0.0
    %948 = vmatpush.msra.mxu0 0.0
    %949 = vmatpush.msra.mxu0 0.0
    %950 = vmatpush.msra.mxu0 0.0
    %951 = vmatpush.msra.mxu0 0.0
    %952 = vmatpush.msra.mxu0 0.0
    %953 = vmatpush.msra.mxu0 0.0
    %954 = vmatpush.msra.mxu0 0.0
    %955 = vmatpush.msra.mxu0 0.0
    %956 = vmatpush.msra.mxu0 %v929
    %957 = vmatpush.msra.mxu0 %v928
    %958 = vmatpush.msra.mxu0 %v927
    %959 = vmatpush.msra.mxu0 %v926
    %960 = vmatpush.msra.mxu0 %v925
    %961 = vmatmul.f32.gmra.mxu0 %v931
    %v962 = vpop.f32.mrf.mxu0
    %v963 = vadd.f32 0.0, %v962
    %964 = vmatmul.f32.gmra.mxu0 %v934
    %v965 = vpop.f32.mrf.mxu0
    %v966 = vadd.f32 0.0, %v965
    %967 = vmatmul.f32.gmra.mxu0 %v937
    %v968 = vpop.f32.mrf.mxu0
    %v969 = vadd.f32 0.0, %v968
    %970 = vmatmul.f32.gmra.mxu0 %v940
    %v971 = vpop.f32.mrf.mxu0
    %v972 = vadd.f32 0.0, %v971
    %973 = vmatmul.f32.gmra.mxu0 %v943
    %v974 = vpop.f32.mrf.mxu0
    %v975 = vadd.f32 0.0, %v974
    %976 = vdwg.mxu0
    %s977 = scalar_lea.vmem [#allocation2], 560
    %978 = vst.msk [vmem:[%s977] sm:$0xff] %vm20, %v963
    %979 = vst.msk [vmem:[%s977 + $0x8] sm:$0xff] %vm20, %v966
    %980 = vst.msk [vmem:[%s977 + $0x10] sm:$0xff] %vm20, %v969
    %981 = vst.msk [vmem:[%s977 + $0x18] sm:$0xff] %vm20, %v972
    %982 = vst.msk [vmem:[%s977 + $0x20] sm:$0xff] %vm20, %v975
    %s983 = scalar_lea.vmem %s0, 1200
    %v984 = vld [vmem:[%s983] sm:$0xff]
    %v985 = vld [vmem:[%s983 + $0x8] sm:$0xff]
    %v986 = vld [vmem:[%s983 + $0x10] sm:$0xff]
    %v987 = vld [vmem:[%s983 + $0x18] sm:$0xff]
    %v988 = vld [vmem:[%s983 + $0x20] sm:$0xff]
    %s989 = scalar_lea.vmem %s0, 1240
    %v990 = vld [vmem:[%s989] sm:$0xff]
    %v991 = vld [vmem:[%s989 + $0x8] sm:$0xff]
    %v992 = vld [vmem:[%s989 + $0x10] sm:$0xff]
    %v993 = vld [vmem:[%s989 + $0x18] sm:$0xff]
    %v994 = vld [vmem:[%s989 + $0x20] sm:$0xff]
    %v996 = vsel %vm20, %v984, 0
    %v999 = vsel %vm20, %v985, 0
    %v1002 = vsel %vm20, %v986, 0
    %v1005 = vsel %vm20, %v987, 0
    %v1008 = vsel %vm20, %v988, 0
    %1010 = vmatpush.msra.mxu0 0.0
    %1011 = vmatpush.msra.mxu0 0.0
    %1012 = vmatpush.msra.mxu0 0.0
    %1013 = vmatpush.msra.mxu0 0.0
    %1014 = vmatpush.msra.mxu0 0.0
    %1015 = vmatpush.msra.mxu0 0.0
    %1016 = vmatpush.msra.mxu0 0.0
    %1017 = vmatpush.msra.mxu0 0.0
    %1018 = vmatpush.msra.mxu0 0.0
    %1019 = vmatpush.msra.mxu0 0.0
    %1020 = vmatpush.msra.mxu0 0.0
    %1021 = vmatpush.msra.mxu0 %v994
    %1022 = vmatpush.msra.mxu0 %v993
    %1023 = vmatpush.msra.mxu0 %v992
    %1024 = vmatpush.msra.mxu0 %v991
    %1025 = vmatpush.msra.mxu0 %v990
    %1026 = vmatmul.f32.gmra.mxu0 %v996
    %v1027 = vpop.f32.mrf.mxu0
    %v1028 = vadd.f32 0.0, %v1027
    %1029 = vmatmul.f32.gmra.mxu0 %v999
    %v1030 = vpop.f32.mrf.mxu0
    %v1031 = vadd.f32 0.0, %v1030
    %1032 = vmatmul.f32.gmra.mxu0 %v1002
    %v1033 = vpop.f32.mrf.mxu0
    %v1034 = vadd.f32 0.0, %v1033
    %1035 = vmatmul.f32.gmra.mxu0 %v1005
    %v1036 = vpop.f32.mrf.mxu0
    %v1037 = vadd.f32 0.0, %v1036
    %1038 = vmatmul.f32.gmra.mxu0 %v1008
    %v1039 = vpop.f32.mrf.mxu0
    %v1040 = vadd.f32 0.0, %v1039
    %1041 = vdwg.mxu0
    %s1042 = scalar_lea.vmem [#allocation2], 600
    %1043 = vst.msk [vmem:[%s1042] sm:$0xff] %vm20, %v1028
    %1044 = vst.msk [vmem:[%s1042 + $0x8] sm:$0xff] %vm20, %v1031
    %1045 = vst.msk [vmem:[%s1042 + $0x10] sm:$0xff] %vm20, %v1034
    %1046 = vst.msk [vmem:[%s1042 + $0x18] sm:$0xff] %vm20, %v1037
    %1047 = vst.msk [vmem:[%s1042 + $0x20] sm:$0xff] %vm20, %v1040
    %s1048 = scalar_lea.vmem %s0, 1280
    %v1049 = vld [vmem:[%s1048] sm:$0xff]
    %v1050 = vld [vmem:[%s1048 + $0x8] sm:$0xff]
    %v1051 = vld [vmem:[%s1048 + $0x10] sm:$0xff]
    %v1052 = vld [vmem:[%s1048 + $0x18] sm:$0xff]
    %v1053 = vld [vmem:[%s1048 + $0x20] sm:$0xff]
    %s1054 = scalar_lea.vmem %s0, 1320
    %v1055 = vld [vmem:[%s1054] sm:$0xff]
    %v1056 = vld [vmem:[%s1054 + $0x8] sm:$0xff]
    %v1057 = vld [vmem:[%s1054 + $0x10] sm:$0xff]
    %v1058 = vld [vmem:[%s1054 + $0x18] sm:$0xff]
    %v1059 = vld [vmem:[%s1054 + $0x20] sm:$0xff]
    %v1061 = vsel %vm20, %v1049, 0
    %v1064 = vsel %vm20, %v1050, 0
    %v1067 = vsel %vm20, %v1051, 0
    %v1070 = vsel %vm20, %v1052, 0
    %v1073 = vsel %vm20, %v1053, 0
    %1075 = vmatpush.msra.mxu0 0.0
    %1076 = vmatpush.msra.mxu0 0.0
    %1077 = vmatpush.msra.mxu0 0.0
    %1078 = vmatpush.msra.mxu0 0.0
    %1079 = vmatpush.msra.mxu0 0.0
    %1080 = vmatpush.msra.mxu0 0.0
    %1081 = vmatpush.msra.mxu0 0.0
    %1082 = vmatpush.msra.mxu0 0.0
    %1083 = vmatpush.msra.mxu0 0.0
    %1084 = vmatpush.msra.mxu0 0.0
    %1085 = vmatpush.msra.mxu0 0.0
    %1086 = vmatpush.msra.mxu0 %v1059
    %1087 = vmatpush.msra.mxu0 %v1058
    %1088 = vmatpush.msra.mxu0 %v1057
    %1089 = vmatpush.msra.mxu0 %v1056
    %1090 = vmatpush.msra.mxu0 %v1055
    %1091 = vmatmul.f32.gmra.mxu0 %v1061
    %v1092 = vpop.f32.mrf.mxu0
    %v1093 = vadd.f32 0.0, %v1092
    %1094 = vmatmul.f32.gmra.mxu0 %v1064
    %v1095 = vpop.f32.mrf.mxu0
    %v1096 = vadd.f32 0.0, %v1095
    %1097 = vmatmul.f32.gmra.mxu0 %v1067
    %v1098 = vpop.f32.mrf.mxu0
    %v1099 = vadd.f32 0.0, %v1098
    %1100 = vmatmul.f32.gmra.mxu0 %v1070
    %v1101 = vpop.f32.mrf.mxu0
    %v1102 = vadd.f32 0.0, %v1101
    %1103 = vmatmul.f32.gmra.mxu0 %v1073
    %v1104 = vpop.f32.mrf.mxu0
    %v1105 = vadd.f32 0.0, %v1104
    %1106 = vdwg.mxu0
    %s1107 = scalar_lea.vmem [#allocation2], 640
    %1108 = vst.msk [vmem:[%s1107] sm:$0xff] %vm20, %v1093
    %1109 = vst.msk [vmem:[%s1107 + $0x8] sm:$0xff] %vm20, %v1096
    %1110 = vst.msk [vmem:[%s1107 + $0x10] sm:$0xff] %vm20, %v1099
    %1111 = vst.msk [vmem:[%s1107 + $0x18] sm:$0xff] %vm20, %v1102
    %1112 = vst.msk [vmem:[%s1107 + $0x20] sm:$0xff] %vm20, %v1105
    %s1113 = scalar_lea.vmem %s0, 1360
    %v1114 = vld [vmem:[%s1113] sm:$0xff]
    %v1115 = vld [vmem:[%s1113 + $0x8] sm:$0xff]
    %v1116 = vld [vmem:[%s1113 + $0x10] sm:$0xff]
    %v1117 = vld [vmem:[%s1113 + $0x18] sm:$0xff]
    %v1118 = vld [vmem:[%s1113 + $0x20] sm:$0xff]
    %s1119 = scalar_lea.vmem %s0, 1400
    %v1120 = vld [vmem:[%s1119] sm:$0xff]
    %v1121 = vld [vmem:[%s1119 + $0x8] sm:$0xff]
    %v1122 = vld [vmem:[%s1119 + $0x10] sm:$0xff]
    %v1123 = vld [vmem:[%s1119 + $0x18] sm:$0xff]
    %v1124 = vld [vmem:[%s1119 + $0x20] sm:$0xff]
    %v1126 = vsel %vm20, %v1114, 0
    %v1129 = vsel %vm20, %v1115, 0
    %v1132 = vsel %vm20, %v1116, 0
    %v1135 = vsel %vm20, %v1117, 0
    %v1138 = vsel %vm20, %v1118, 0
    %1140 = vmatpush.msra.mxu0 0.0
    %1141 = vmatpush.msra.mxu0 0.0
    %1142 = vmatpush.msra.mxu0 0.0
    %1143 = vmatpush.msra.mxu0 0.0
    %1144 = vmatpush.msra.mxu0 0.0
    %1145 = vmatpush.msra.mxu0 0.0
    %1146 = vmatpush.msra.mxu0 0.0
    %1147 = vmatpush.msra.mxu0 0.0
    %1148 = vmatpush.msra.mxu0 0.0
    %1149 = vmatpush.msra.mxu0 0.0
    %1150 = vmatpush.msra.mxu0 0.0
    %1151 = vmatpush.msra.mxu0 %v1124
    %1152 = vmatpush.msra.mxu0 %v1123
    %1153 = vmatpush.msra.mxu0 %v1122
    %1154 = vmatpush.msra.mxu0 %v1121
    %1155 = vmatpush.msra.mxu0 %v1120
    %1156 = vmatmul.f32.gmra.mxu0 %v1126
    %v1157 = vpop.f32.mrf.mxu0
    %v1158 = vadd.f32 0.0, %v1157
    %1159 = vmatmul.f32.gmra.mxu0 %v1129
    %v1160 = vpop.f32.mrf.mxu0
    %v1161 = vadd.f32 0.0, %v1160
    %1162 = vmatmul.f32.gmra.mxu0 %v1132
    %v1163 = vpop.f32.mrf.mxu0
    %v1164 = vadd.f32 0.0, %v1163
    %1165 = vmatmul.f32.gmra.mxu0 %v1135
    %v1166 = vpop.f32.mrf.mxu0
    %v1167 = vadd.f32 0.0, %v1166
    %1168 = vmatmul.f32.gmra.mxu0 %v1138
    %v1169 = vpop.f32.mrf.mxu0
    %v1170 = vadd.f32 0.0, %v1169
    %1171 = vdwg.mxu0
    %s1172 = scalar_lea.vmem [#allocation2], 680
    %1173 = vst.msk [vmem:[%s1172] sm:$0xff] %vm20, %v1158
    %1174 = vst.msk [vmem:[%s1172 + $0x8] sm:$0xff] %vm20, %v1161
    %1175 = vst.msk [vmem:[%s1172 + $0x10] sm:$0xff] %vm20, %v1164
    %1176 = vst.msk [vmem:[%s1172 + $0x18] sm:$0xff] %vm20, %v1167
    %1177 = vst.msk [vmem:[%s1172 + $0x20] sm:$0xff] %vm20, %v1170
    %s1178 = scalar_lea.vmem %s0, 1440
    %v1179 = vld [vmem:[%s1178] sm:$0xff]
    %v1180 = vld [vmem:[%s1178 + $0x8] sm:$0xff]
    %v1181 = vld [vmem:[%s1178 + $0x10] sm:$0xff]
    %v1182 = vld [vmem:[%s1178 + $0x18] sm:$0xff]
    %v1183 = vld [vmem:[%s1178 + $0x20] sm:$0xff]
    %s1184 = scalar_lea.vmem %s0, 1480
    %v1185 = vld [vmem:[%s1184] sm:$0xff]
    %v1186 = vld [vmem:[%s1184 + $0x8] sm:$0xff]
    %v1187 = vld [vmem:[%s1184 + $0x10] sm:$0xff]
    %v1188 = vld [vmem:[%s1184 + $0x18] sm:$0xff]
    %v1189 = vld [vmem:[%s1184 + $0x20] sm:$0xff]
    %v1191 = vsel %vm20, %v1179, 0
    %v1194 = vsel %vm20, %v1180, 0
    %v1197 = vsel %vm20, %v1181, 0
    %v1200 = vsel %vm20, %v1182, 0
    %v1203 = vsel %vm20, %v1183, 0
    %1205 = vmatpush.msra.mxu0 0.0
    %1206 = vmatpush.msra.mxu0 0.0
    %1207 = vmatpush.msra.mxu0 0.0
    %1208 = vmatpush.msra.mxu0 0.0
    %1209 = vmatpush.msra.mxu0 0.0
    %1210 = vmatpush.msra.mxu0 0.0
    %1211 = vmatpush.msra.mxu0 0.0
    %1212 = vmatpush.msra.mxu0 0.0
    %1213 = vmatpush.msra.mxu0 0.0
    %1214 = vmatpush.msra.mxu0 0.0
    %1215 = vmatpush.msra.mxu0 0.0
    %1216 = vmatpush.msra.mxu0 %v1189
    %1217 = vmatpush.msra.mxu0 %v1188
    %1218 = vmatpush.msra.mxu0 %v1187
    %1219 = vmatpush.msra.mxu0 %v1186
    %1220 = vmatpush.msra.mxu0 %v1185
    %1221 = vmatmul.f32.gmra.mxu0 %v1191
    %v1222 = vpop.f32.mrf.mxu0
    %v1223 = vadd.f32 0.0, %v1222
    %1224 = vmatmul.f32.gmra.mxu0 %v1194
    %v1225 = vpop.f32.mrf.mxu0
    %v1226 = vadd.f32 0.0, %v1225
    %1227 = vmatmul.f32.gmra.mxu0 %v1197
    %v1228 = vpop.f32.mrf.mxu0
    %v1229 = vadd.f32 0.0, %v1228
    %1230 = vmatmul.f32.gmra.mxu0 %v1200
    %v1231 = vpop.f32.mrf.mxu0
    %v1232 = vadd.f32 0.0, %v1231
    %1233 = vmatmul.f32.gmra.mxu0 %v1203
    %v1234 = vpop.f32.mrf.mxu0
    %v1235 = vadd.f32 0.0, %v1234
    %1236 = vdwg.mxu0
    %s1237 = scalar_lea.vmem [#allocation2], 720
    %1238 = vst.msk [vmem:[%s1237] sm:$0xff] %vm20, %v1223
    %1239 = vst.msk [vmem:[%s1237 + $0x8] sm:$0xff] %vm20, %v1226
    %1240 = vst.msk [vmem:[%s1237 + $0x10] sm:$0xff] %vm20, %v1229
    %1241 = vst.msk [vmem:[%s1237 + $0x18] sm:$0xff] %vm20, %v1232
    %1242 = vst.msk [vmem:[%s1237 + $0x20] sm:$0xff] %vm20, %v1235
    %s1243 = scalar_lea.vmem %s0, 1520
    %v1244 = vld [vmem:[%s1243] sm:$0xff]
    %v1245 = vld [vmem:[%s1243 + $0x8] sm:$0xff]
    %v1246 = vld [vmem:[%s1243 + $0x10] sm:$0xff]
    %v1247 = vld [vmem:[%s1243 + $0x18] sm:$0xff]
    %v1248 = vld [vmem:[%s1243 + $0x20] sm:$0xff]
    %s1249 = scalar_lea.vmem %s0, 1560
    %v1250 = vld [vmem:[%s1249] sm:$0xff]
    %v1251 = vld [vmem:[%s1249 + $0x8] sm:$0xff]
    %v1252 = vld [vmem:[%s1249 + $0x10] sm:$0xff]
    %v1253 = vld [vmem:[%s1249 + $0x18] sm:$0xff]
    %v1254 = vld [vmem:[%s1249 + $0x20] sm:$0xff]
    %v1256 = vsel %vm20, %v1244, 0
    %v1259 = vsel %vm20, %v1245, 0
    %v1262 = vsel %vm20, %v1246, 0
    %v1265 = vsel %vm20, %v1247, 0
    %v1268 = vsel %vm20, %v1248, 0
    %1270 = vmatpush.msra.mxu0 0.0
    %1271 = vmatpush.msra.mxu0 0.0
    %1272 = vmatpush.msra.mxu0 0.0
    %1273 = vmatpush.msra.mxu0 0.0
    %1274 = vmatpush.msra.mxu0 0.0
    %1275 = vmatpush.msra.mxu0 0.0
    %1276 = vmatpush.msra.mxu0 0.0
    %1277 = vmatpush.msra.mxu0 0.0
    %1278 = vmatpush.msra.mxu0 0.0
    %1279 = vmatpush.msra.mxu0 0.0
    %1280 = vmatpush.msra.mxu0 0.0
    %1281 = vmatpush.msra.mxu0 %v1254
    %1282 = vmatpush.msra.mxu0 %v1253
    %1283 = vmatpush.msra.mxu0 %v1252
    %1284 = vmatpush.msra.mxu0 %v1251
    %1285 = vmatpush.msra.mxu0 %v1250
    %1286 = vmatmul.f32.gmra.mxu0 %v1256
    %v1287 = vpop.f32.mrf.mxu0
    %v1288 = vadd.f32 0.0, %v1287
    %1289 = vmatmul.f32.gmra.mxu0 %v1259
    %v1290 = vpop.f32.mrf.mxu0
    %v1291 = vadd.f32 0.0, %v1290
    %1292 = vmatmul.f32.gmra.mxu0 %v1262
    %v1293 = vpop.f32.mrf.mxu0
    %v1294 = vadd.f32 0.0, %v1293
    %1295 = vmatmul.f32.gmra.mxu0 %v1265
    %v1296 = vpop.f32.mrf.mxu0
    %v1297 = vadd.f32 0.0, %v1296
    %1298 = vmatmul.f32.gmra.mxu0 %v1268
    %v1299 = vpop.f32.mrf.mxu0
    %v1300 = vadd.f32 0.0, %v1299
    %1301 = vdwg.mxu0
    %s1302 = scalar_lea.vmem [#allocation2], 760
    %1303 = vst.msk [vmem:[%s1302] sm:$0xff] %vm20, %v1288
    %1304 = vst.msk [vmem:[%s1302 + $0x8] sm:$0xff] %vm20, %v1291
    %1305 = vst.msk [vmem:[%s1302 + $0x10] sm:$0xff] %vm20, %v1294
    %1306 = vst.msk [vmem:[%s1302 + $0x18] sm:$0xff] %vm20, %v1297
    %1307 = vst.msk [vmem:[%s1302 + $0x20] sm:$0xff] %vm20, %v1300
    %s1308 = scalar_lea.vmem %s0, 1600
    %v1309 = vld [vmem:[%s1308] sm:$0xff]
    %v1310 = vld [vmem:[%s1308 + $0x8] sm:$0xff]
    %v1311 = vld [vmem:[%s1308 + $0x10] sm:$0xff]
    %v1312 = vld [vmem:[%s1308 + $0x18] sm:$0xff]
    %v1313 = vld [vmem:[%s1308 + $0x20] sm:$0xff]
    %s1314 = scalar_lea.vmem %s0, 1640
    %v1315 = vld [vmem:[%s1314] sm:$0xff]
    %v1316 = vld [vmem:[%s1314 + $0x8] sm:$0xff]
    %v1317 = vld [vmem:[%s1314 + $0x10] sm:$0xff]
    %v1318 = vld [vmem:[%s1314 + $0x18] sm:$0xff]
    %v1319 = vld [vmem:[%s1314 + $0x20] sm:$0xff]
    %v1321 = vsel %vm20, %v1309, 0
    %v1324 = vsel %vm20, %v1310, 0
    %v1327 = vsel %vm20, %v1311, 0
    %v1330 = vsel %vm20, %v1312, 0
    %v1333 = vsel %vm20, %v1313, 0
    %1335 = vmatpush.msra.mxu0 0.0
    %1336 = vmatpush.msra.mxu0 0.0
    %1337 = vmatpush.msra.mxu0 0.0
    %1338 = vmatpush.msra.mxu0 0.0
    %1339 = vmatpush.msra.mxu0 0.0
    %1340 = vmatpush.msra.mxu0 0.0
    %1341 = vmatpush.msra.mxu0 0.0
    %1342 = vmatpush.msra.mxu0 0.0
    %1343 = vmatpush.msra.mxu0 0.0
    %1344 = vmatpush.msra.mxu0 0.0
    %1345 = vmatpush.msra.mxu0 0.0
    %1346 = vmatpush.msra.mxu0 %v1319
    %1347 = vmatpush.msra.mxu0 %v1318
    %1348 = vmatpush.msra.mxu0 %v1317
    %1349 = vmatpush.msra.mxu0 %v1316
    %1350 = vmatpush.msra.mxu0 %v1315
    %1351 = vmatmul.f32.gmra.mxu0 %v1321
    %v1352 = vpop.f32.mrf.mxu0
    %v1353 = vadd.f32 0.0, %v1352
    %1354 = vmatmul.f32.gmra.mxu0 %v1324
    %v1355 = vpop.f32.mrf.mxu0
    %v1356 = vadd.f32 0.0, %v1355
    %1357 = vmatmul.f32.gmra.mxu0 %v1327
    %v1358 = vpop.f32.mrf.mxu0
    %v1359 = vadd.f32 0.0, %v1358
    %1360 = vmatmul.f32.gmra.mxu0 %v1330
    %v1361 = vpop.f32.mrf.mxu0
    %v1362 = vadd.f32 0.0, %v1361
    %1363 = vmatmul.f32.gmra.mxu0 %v1333
    %v1364 = vpop.f32.mrf.mxu0
    %v1365 = vadd.f32 0.0, %v1364
    %1366 = vdwg.mxu0
    %s1367 = scalar_lea.vmem [#allocation2], 800
    %1368 = vst.msk [vmem:[%s1367] sm:$0xff] %vm20, %v1353
    %1369 = vst.msk [vmem:[%s1367 + $0x8] sm:$0xff] %vm20, %v1356
    %1370 = vst.msk [vmem:[%s1367 + $0x10] sm:$0xff] %vm20, %v1359
    %1371 = vst.msk [vmem:[%s1367 + $0x18] sm:$0xff] %vm20, %v1362
    %1372 = vst.msk [vmem:[%s1367 + $0x20] sm:$0xff] %vm20, %v1365
    %s1373 = scalar_lea.vmem %s0, 1680
    %v1374 = vld [vmem:[%s1373] sm:$0xff]
    %v1375 = vld [vmem:[%s1373 + $0x8] sm:$0xff]
    %v1376 = vld [vmem:[%s1373 + $0x10] sm:$0xff]
    %v1377 = vld [vmem:[%s1373 + $0x18] sm:$0xff]
    %v1378 = vld [vmem:[%s1373 + $0x20] sm:$0xff]
    %s1379 = scalar_lea.vmem %s0, 1720
    %v1380 = vld [vmem:[%s1379] sm:$0xff]
    %v1381 = vld [vmem:[%s1379 + $0x8] sm:$0xff]
    %v1382 = vld [vmem:[%s1379 + $0x10] sm:$0xff]
    %v1383 = vld [vmem:[%s1379 + $0x18] sm:$0xff]
    %v1384 = vld [vmem:[%s1379 + $0x20] sm:$0xff]
    %v1386 = vsel %vm20, %v1374, 0
    %v1389 = vsel %vm20, %v1375, 0
    %v1392 = vsel %vm20, %v1376, 0
    %v1395 = vsel %vm20, %v1377, 0
    %v1398 = vsel %vm20, %v1378, 0
    %1400 = vmatpush.msra.mxu0 0.0
    %1401 = vmatpush.msra.mxu0 0.0
    %1402 = vmatpush.msra.mxu0 0.0
    %1403 = vmatpush.msra.mxu0 0.0
    %1404 = vmatpush.msra.mxu0 0.0
    %1405 = vmatpush.msra.mxu0 0.0
    %1406 = vmatpush.msra.mxu0 0.0
    %1407 = vmatpush.msra.mxu0 0.0
    %1408 = vmatpush.msra.mxu0 0.0
    %1409 = vmatpush.msra.mxu0 0.0
    %1410 = vmatpush.msra.mxu0 0.0
    %1411 = vmatpush.msra.mxu0 %v1384
    %1412 = vmatpush.msra.mxu0 %v1383
    %1413 = vmatpush.msra.mxu0 %v1382
    %1414 = vmatpush.msra.mxu0 %v1381
    %1415 = vmatpush.msra.mxu0 %v1380
    %1416 = vmatmul.f32.gmra.mxu0 %v1386
    %v1417 = vpop.f32.mrf.mxu0
    %v1418 = vadd.f32 0.0, %v1417
    %1419 = vmatmul.f32.gmra.mxu0 %v1389
    %v1420 = vpop.f32.mrf.mxu0
    %v1421 = vadd.f32 0.0, %v1420
    %1422 = vmatmul.f32.gmra.mxu0 %v1392
    %v1423 = vpop.f32.mrf.mxu0
    %v1424 = vadd.f32 0.0, %v1423
    %1425 = vmatmul.f32.gmra.mxu0 %v1395
    %v1426 = vpop.f32.mrf.mxu0
    %v1427 = vadd.f32 0.0, %v1426
    %1428 = vmatmul.f32.gmra.mxu0 %v1398
    %v1429 = vpop.f32.mrf.mxu0
    %v1430 = vadd.f32 0.0, %v1429
    %1431 = vdwg.mxu0
    %s1432 = scalar_lea.vmem [#allocation2], 840
    %1433 = vst.msk [vmem:[%s1432] sm:$0xff] %vm20, %v1418
    %1434 = vst.msk [vmem:[%s1432 + $0x8] sm:$0xff] %vm20, %v1421
    %1435 = vst.msk [vmem:[%s1432 + $0x10] sm:$0xff] %vm20, %v1424
    %1436 = vst.msk [vmem:[%s1432 + $0x18] sm:$0xff] %vm20, %v1427
    %1437 = vst.msk [vmem:[%s1432 + $0x20] sm:$0xff] %vm20, %v1430
    %s1438 = scalar_lea.vmem %s0, 1760
    %v1439 = vld [vmem:[%s1438] sm:$0xff]
    %v1440 = vld [vmem:[%s1438 + $0x8] sm:$0xff]
    %v1441 = vld [vmem:[%s1438 + $0x10] sm:$0xff]
    %v1442 = vld [vmem:[%s1438 + $0x18] sm:$0xff]
    %v1443 = vld [vmem:[%s1438 + $0x20] sm:$0xff]
    %s1444 = scalar_lea.vmem %s0, 1800
    %v1445 = vld [vmem:[%s1444] sm:$0xff]
    %v1446 = vld [vmem:[%s1444 + $0x8] sm:$0xff]
    %v1447 = vld [vmem:[%s1444 + $0x10] sm:$0xff]
    %v1448 = vld [vmem:[%s1444 + $0x18] sm:$0xff]
    %v1449 = vld [vmem:[%s1444 + $0x20] sm:$0xff]
    %v1451 = vsel %vm20, %v1439, 0
    %v1454 = vsel %vm20, %v1440, 0
    %v1457 = vsel %vm20, %v1441, 0
    %v1460 = vsel %vm20, %v1442, 0
    %v1463 = vsel %vm20, %v1443, 0
    %1465 = vmatpush.msra.mxu0 0.0
    %1466 = vmatpush.msra.mxu0 0.0
    %1467 = vmatpush.msra.mxu0 0.0
    %1468 = vmatpush.msra.mxu0 0.0
    %1469 = vmatpush.msra.mxu0 0.0
    %1470 = vmatpush.msra.mxu0 0.0
    %1471 = vmatpush.msra.mxu0 0.0
    %1472 = vmatpush.msra.mxu0 0.0
    %1473 = vmatpush.msra.mxu0 0.0
    %1474 = vmatpush.msra.mxu0 0.0
    %1475 = vmatpush.msra.mxu0 0.0
    %1476 = vmatpush.msra.mxu0 %v1449
    %1477 = vmatpush.msra.mxu0 %v1448
    %1478 = vmatpush.msra.mxu0 %v1447
    %1479 = vmatpush.msra.mxu0 %v1446
    %1480 = vmatpush.msra.mxu0 %v1445
    %1481 = vmatmul.f32.gmra.mxu0 %v1451
    %v1482 = vpop.f32.mrf.mxu0
    %v1483 = vadd.f32 0.0, %v1482
    %1484 = vmatmul.f32.gmra.mxu0 %v1454
    %v1485 = vpop.f32.mrf.mxu0
    %v1486 = vadd.f32 0.0, %v1485
    %1487 = vmatmul.f32.gmra.mxu0 %v1457
    %v1488 = vpop.f32.mrf.mxu0
    %v1489 = vadd.f32 0.0, %v1488
    %1490 = vmatmul.f32.gmra.mxu0 %v1460
    %v1491 = vpop.f32.mrf.mxu0
    %v1492 = vadd.f32 0.0, %v1491
    %1493 = vmatmul.f32.gmra.mxu0 %v1463
    %v1494 = vpop.f32.mrf.mxu0
    %v1495 = vadd.f32 0.0, %v1494
    %1496 = vdwg.mxu0
    %s1497 = scalar_lea.vmem [#allocation2], 880
    %1498 = vst.msk [vmem:[%s1497] sm:$0xff] %vm20, %v1483
    %1499 = vst.msk [vmem:[%s1497 + $0x8] sm:$0xff] %vm20, %v1486
    %1500 = vst.msk [vmem:[%s1497 + $0x10] sm:$0xff] %vm20, %v1489
    %1501 = vst.msk [vmem:[%s1497 + $0x18] sm:$0xff] %vm20, %v1492
    %1502 = vst.msk [vmem:[%s1497 + $0x20] sm:$0xff] %vm20, %v1495
    %s1503 = scalar_lea.vmem %s0, 1840
    %v1504 = vld [vmem:[%s1503] sm:$0xff]
    %v1505 = vld [vmem:[%s1503 + $0x8] sm:$0xff]
    %v1506 = vld [vmem:[%s1503 + $0x10] sm:$0xff]
    %v1507 = vld [vmem:[%s1503 + $0x18] sm:$0xff]
    %v1508 = vld [vmem:[%s1503 + $0x20] sm:$0xff]
    %s1509 = scalar_lea.vmem %s0, 1880
    %v1510 = vld [vmem:[%s1509] sm:$0xff]
    %v1511 = vld [vmem:[%s1509 + $0x8] sm:$0xff]
    %v1512 = vld [vmem:[%s1509 + $0x10] sm:$0xff]
    %v1513 = vld [vmem:[%s1509 + $0x18] sm:$0xff]
    %v1514 = vld [vmem:[%s1509 + $0x20] sm:$0xff]
    %v1516 = vsel %vm20, %v1504, 0
    %v1519 = vsel %vm20, %v1505, 0
    %v1522 = vsel %vm20, %v1506, 0
    %v1525 = vsel %vm20, %v1507, 0
    %v1528 = vsel %vm20, %v1508, 0
    %1530 = vmatpush.msra.mxu0 0.0
    %1531 = vmatpush.msra.mxu0 0.0
    %1532 = vmatpush.msra.mxu0 0.0
    %1533 = vmatpush.msra.mxu0 0.0
    %1534 = vmatpush.msra.mxu0 0.0
    %1535 = vmatpush.msra.mxu0 0.0
    %1536 = vmatpush.msra.mxu0 0.0
    %1537 = vmatpush.msra.mxu0 0.0
    %1538 = vmatpush.msra.mxu0 0.0
    %1539 = vmatpush.msra.mxu0 0.0
    %1540 = vmatpush.msra.mxu0 0.0
    %1541 = vmatpush.msra.mxu0 %v1514
    %1542 = vmatpush.msra.mxu0 %v1513
    %1543 = vmatpush.msra.mxu0 %v1512
    %1544 = vmatpush.msra.mxu0 %v1511
    %1545 = vmatpush.msra.mxu0 %v1510
    %1546 = vmatmul.f32.gmra.mxu0 %v1516
    %v1547 = vpop.f32.mrf.mxu0
    %v1548 = vadd.f32 0.0, %v1547
    %1549 = vmatmul.f32.gmra.mxu0 %v1519
    %v1550 = vpop.f32.mrf.mxu0
    %v1551 = vadd.f32 0.0, %v1550
    %1552 = vmatmul.f32.gmra.mxu0 %v1522
    %v1553 = vpop.f32.mrf.mxu0
    %v1554 = vadd.f32 0.0, %v1553
    %1555 = vmatmul.f32.gmra.mxu0 %v1525
    %v1556 = vpop.f32.mrf.mxu0
    %v1557 = vadd.f32 0.0, %v1556
    %1558 = vmatmul.f32.gmra.mxu0 %v1528
    %v1559 = vpop.f32.mrf.mxu0
    %v1560 = vadd.f32 0.0, %v1559
    %1561 = vdwg.mxu0
    %s1562 = scalar_lea.vmem [#allocation2], 920
    %1563 = vst.msk [vmem:[%s1562] sm:$0xff] %vm20, %v1548
    %1564 = vst.msk [vmem:[%s1562 + $0x8] sm:$0xff] %vm20, %v1551
    %1565 = vst.msk [vmem:[%s1562 + $0x10] sm:$0xff] %vm20, %v1554
    %1566 = vst.msk [vmem:[%s1562 + $0x18] sm:$0xff] %vm20, %v1557
    %1567 = vst.msk [vmem:[%s1562 + $0x20] sm:$0xff] %vm20, %v1560
    %s1568 = scalar_lea.vmem %s0, 1920
    %v1569 = vld [vmem:[%s1568] sm:$0xff]
    %v1570 = vld [vmem:[%s1568 + $0x8] sm:$0xff]
    %v1571 = vld [vmem:[%s1568 + $0x10] sm:$0xff]
    %v1572 = vld [vmem:[%s1568 + $0x18] sm:$0xff]
    %v1573 = vld [vmem:[%s1568 + $0x20] sm:$0xff]
    %s1574 = scalar_lea.vmem %s0, 1960
    %v1575 = vld [vmem:[%s1574] sm:$0xff]
    %v1576 = vld [vmem:[%s1574 + $0x8] sm:$0xff]
    %v1577 = vld [vmem:[%s1574 + $0x10] sm:$0xff]
    %v1578 = vld [vmem:[%s1574 + $0x18] sm:$0xff]
    %v1579 = vld [vmem:[%s1574 + $0x20] sm:$0xff]
    %v1581 = vsel %vm20, %v1569, 0
    %v1584 = vsel %vm20, %v1570, 0
    %v1587 = vsel %vm20, %v1571, 0
    %v1590 = vsel %vm20, %v1572, 0
    %v1593 = vsel %vm20, %v1573, 0
    %1595 = vmatpush.msra.mxu0 0.0
    %1596 = vmatpush.msra.mxu0 0.0
    %1597 = vmatpush.msra.mxu0 0.0
    %1598 = vmatpush.msra.mxu0 0.0
    %1599 = vmatpush.msra.mxu0 0.0
    %1600 = vmatpush.msra.mxu0 0.0
    %1601 = vmatpush.msra.mxu0 0.0
    %1602 = vmatpush.msra.mxu0 0.0
    %1603 = vmatpush.msra.mxu0 0.0
    %1604 = vmatpush.msra.mxu0 0.0
    %1605 = vmatpush.msra.mxu0 0.0
    %1606 = vmatpush.msra.mxu0 %v1579
    %1607 = vmatpush.msra.mxu0 %v1578
    %1608 = vmatpush.msra.mxu0 %v1577
    %1609 = vmatpush.msra.mxu0 %v1576
    %1610 = vmatpush.msra.mxu0 %v1575
    %1611 = vmatmul.f32.gmra.mxu0 %v1581
    %v1612 = vpop.f32.mrf.mxu0
    %v1613 = vadd.f32 0.0, %v1612
    %1614 = vmatmul.f32.gmra.mxu0 %v1584
    %v1615 = vpop.f32.mrf.mxu0
    %v1616 = vadd.f32 0.0, %v1615
    %1617 = vmatmul.f32.gmra.mxu0 %v1587
    %v1618 = vpop.f32.mrf.mxu0
    %v1619 = vadd.f32 0.0, %v1618
    %1620 = vmatmul.f32.gmra.mxu0 %v1590
    %v1621 = vpop.f32.mrf.mxu0
    %v1622 = vadd.f32 0.0, %v1621
    %1623 = vmatmul.f32.gmra.mxu0 %v1593
    %v1624 = vpop.f32.mrf.mxu0
    %v1625 = vadd.f32 0.0, %v1624
    %1626 = vdwg.mxu0
    %s1627 = scalar_lea.vmem [#allocation2], 960
    %1628 = vst.msk [vmem:[%s1627] sm:$0xff] %vm20, %v1613
    %1629 = vst.msk [vmem:[%s1627 + $0x8] sm:$0xff] %vm20, %v1616
    %1630 = vst.msk [vmem:[%s1627 + $0x10] sm:$0xff] %vm20, %v1619
    %1631 = vst.msk [vmem:[%s1627 + $0x18] sm:$0xff] %vm20, %v1622
    %1632 = vst.msk [vmem:[%s1627 + $0x20] sm:$0xff] %vm20, %v1625
    %s1633 = scalar_lea.vmem %s0, 2000
    %v1634 = vld [vmem:[%s1633] sm:$0xff]
    %v1635 = vld [vmem:[%s1633 + $0x8] sm:$0xff]
    %v1636 = vld [vmem:[%s1633 + $0x10] sm:$0xff]
    %v1637 = vld [vmem:[%s1633 + $0x18] sm:$0xff]
    %v1638 = vld [vmem:[%s1633 + $0x20] sm:$0xff]
    %s1639 = scalar_lea.vmem %s0, 2040
    %v1640 = vld [vmem:[%s1639] sm:$0xff]
    %v1641 = vld [vmem:[%s1639 + $0x8] sm:$0xff]
    %v1642 = vld [vmem:[%s1639 + $0x10] sm:$0xff]
    %v1643 = vld [vmem:[%s1639 + $0x18] sm:$0xff]
    %v1644 = vld [vmem:[%s1639 + $0x20] sm:$0xff]
    %v1646 = vsel %vm20, %v1634, 0
    %v1649 = vsel %vm20, %v1635, 0
    %v1652 = vsel %vm20, %v1636, 0
    %v1655 = vsel %vm20, %v1637, 0
    %v1658 = vsel %vm20, %v1638, 0
    %1660 = vmatpush.msra.mxu0 0.0
    %1661 = vmatpush.msra.mxu0 0.0
    %1662 = vmatpush.msra.mxu0 0.0
    %1663 = vmatpush.msra.mxu0 0.0
    %1664 = vmatpush.msra.mxu0 0.0
    %1665 = vmatpush.msra.mxu0 0.0
    %1666 = vmatpush.msra.mxu0 0.0
    %1667 = vmatpush.msra.mxu0 0.0
    %1668 = vmatpush.msra.mxu0 0.0
    %1669 = vmatpush.msra.mxu0 0.0
    %1670 = vmatpush.msra.mxu0 0.0
    %1671 = vmatpush.msra.mxu0 %v1644
    %1672 = vmatpush.msra.mxu0 %v1643
    %1673 = vmatpush.msra.mxu0 %v1642
    %1674 = vmatpush.msra.mxu0 %v1641
    %1675 = vmatpush.msra.mxu0 %v1640
    %1676 = vmatmul.f32.gmra.mxu0 %v1646
    %v1677 = vpop.f32.mrf.mxu0
    %v1678 = vadd.f32 0.0, %v1677
    %1679 = vmatmul.f32.gmra.mxu0 %v1649
    %v1680 = vpop.f32.mrf.mxu0
    %v1681 = vadd.f32 0.0, %v1680
    %1682 = vmatmul.f32.gmra.mxu0 %v1652
    %v1683 = vpop.f32.mrf.mxu0
    %v1684 = vadd.f32 0.0, %v1683
    %1685 = vmatmul.f32.gmra.mxu0 %v1655
    %v1686 = vpop.f32.mrf.mxu0
    %v1687 = vadd.f32 0.0, %v1686
    %1688 = vmatmul.f32.gmra.mxu0 %v1658
    %v1689 = vpop.f32.mrf.mxu0
    %v1690 = vadd.f32 0.0, %v1689
    %1691 = vdwg.mxu0
    %s1692 = scalar_lea.vmem [#allocation2], 1000
    %1693 = vst.msk [vmem:[%s1692] sm:$0xff] %vm20, %v1678
    %1694 = vst.msk [vmem:[%s1692 + $0x8] sm:$0xff] %vm20, %v1681
    %1695 = vst.msk [vmem:[%s1692 + $0x10] sm:$0xff] %vm20, %v1684
    %1696 = vst.msk [vmem:[%s1692 + $0x18] sm:$0xff] %vm20, %v1687
    %1697 = vst.msk [vmem:[%s1692 + $0x20] sm:$0xff] %vm20, %v1690
    %s1698 = scalar_lea.vmem %s0, 2080
    %v1699 = vld [vmem:[%s1698] sm:$0xff]
    %v1700 = vld [vmem:[%s1698 + $0x8] sm:$0xff]
    %v1701 = vld [vmem:[%s1698 + $0x10] sm:$0xff]
    %v1702 = vld [vmem:[%s1698 + $0x18] sm:$0xff]
    %v1703 = vld [vmem:[%s1698 + $0x20] sm:$0xff]
    %s1704 = scalar_lea.vmem %s0, 2120
    %v1705 = vld [vmem:[%s1704] sm:$0xff]
    %v1706 = vld [vmem:[%s1704 + $0x8] sm:$0xff]
    %v1707 = vld [vmem:[%s1704 + $0x10] sm:$0xff]
    %v1708 = vld [vmem:[%s1704 + $0x18] sm:$0xff]
    %v1709 = vld [vmem:[%s1704 + $0x20] sm:$0xff]
    %v1711 = vsel %vm20, %v1699, 0
    %v1714 = vsel %vm20, %v1700, 0
    %v1717 = vsel %vm20, %v1701, 0
    %v1720 = vsel %vm20, %v1702, 0
    %v1723 = vsel %vm20, %v1703, 0
    %1725 = vmatpush.msra.mxu0 0.0
    %1726 = vmatpush.msra.mxu0 0.0
    %1727 = vmatpush.msra.mxu0 0.0
    %1728 = vmatpush.msra.mxu0 0.0
    %1729 = vmatpush.msra.mxu0 0.0
    %1730 = vmatpush.msra.mxu0 0.0
    %1731 = vmatpush.msra.mxu0 0.0
    %1732 = vmatpush.msra.mxu0 0.0
    %1733 = vmatpush.msra.mxu0 0.0
    %1734 = vmatpush.msra.mxu0 0.0
    %1735 = vmatpush.msra.mxu0 0.0
    %1736 = vmatpush.msra.mxu0 %v1709
    %1737 = vmatpush.msra.mxu0 %v1708
    %1738 = vmatpush.msra.mxu0 %v1707
    %1739 = vmatpush.msra.mxu0 %v1706
    %1740 = vmatpush.msra.mxu0 %v1705
    %1741 = vmatmul.f32.gmra.mxu0 %v1711
    %v1742 = vpop.f32.mrf.mxu0
    %v1743 = vadd.f32 0.0, %v1742
    %1744 = vmatmul.f32.gmra.mxu0 %v1714
    %v1745 = vpop.f32.mrf.mxu0
    %v1746 = vadd.f32 0.0, %v1745
    %1747 = vmatmul.f32.gmra.mxu0 %v1717
    %v1748 = vpop.f32.mrf.mxu0
    %v1749 = vadd.f32 0.0, %v1748
    %1750 = vmatmul.f32.gmra.mxu0 %v1720
    %v1751 = vpop.f32.mrf.mxu0
    %v1752 = vadd.f32 0.0, %v1751
    %1753 = vmatmul.f32.gmra.mxu0 %v1723
    %v1754 = vpop.f32.mrf.mxu0
    %v1755 = vadd.f32 0.0, %v1754
    %1756 = vdwg.mxu0
    %s1757 = scalar_lea.vmem [#allocation2], 1040
    %1758 = vst.msk [vmem:[%s1757] sm:$0xff] %vm20, %v1743
    %1759 = vst.msk [vmem:[%s1757 + $0x8] sm:$0xff] %vm20, %v1746
    %1760 = vst.msk [vmem:[%s1757 + $0x10] sm:$0xff] %vm20, %v1749
    %1761 = vst.msk [vmem:[%s1757 + $0x18] sm:$0xff] %vm20, %v1752
    %1762 = vst.msk [vmem:[%s1757 + $0x20] sm:$0xff] %vm20, %v1755
    %s1763 = scalar_lea.vmem %s0, 2160
    %v1764 = vld [vmem:[%s1763] sm:$0xff]
    %v1765 = vld [vmem:[%s1763 + $0x8] sm:$0xff]
    %v1766 = vld [vmem:[%s1763 + $0x10] sm:$0xff]
    %v1767 = vld [vmem:[%s1763 + $0x18] sm:$0xff]
    %v1768 = vld [vmem:[%s1763 + $0x20] sm:$0xff]
    %s1769 = scalar_lea.vmem %s0, 2200
    %v1770 = vld [vmem:[%s1769] sm:$0xff]
    %v1771 = vld [vmem:[%s1769 + $0x8] sm:$0xff]
    %v1772 = vld [vmem:[%s1769 + $0x10] sm:$0xff]
    %v1773 = vld [vmem:[%s1769 + $0x18] sm:$0xff]
    %v1774 = vld [vmem:[%s1769 + $0x20] sm:$0xff]
    %v1776 = vsel %vm20, %v1764, 0
    %v1779 = vsel %vm20, %v1765, 0
    %v1782 = vsel %vm20, %v1766, 0
    %v1785 = vsel %vm20, %v1767, 0
    %v1788 = vsel %vm20, %v1768, 0
    %1790 = vmatpush.msra.mxu0 0.0
    %1791 = vmatpush.msra.mxu0 0.0
    %1792 = vmatpush.msra.mxu0 0.0
    %1793 = vmatpush.msra.mxu0 0.0
    %1794 = vmatpush.msra.mxu0 0.0
    %1795 = vmatpush.msra.mxu0 0.0
    %1796 = vmatpush.msra.mxu0 0.0
    %1797 = vmatpush.msra.mxu0 0.0
    %1798 = vmatpush.msra.mxu0 0.0
    %1799 = vmatpush.msra.mxu0 0.0
    %1800 = vmatpush.msra.mxu0 0.0
    %1801 = vmatpush.msra.mxu0 %v1774
    %1802 = vmatpush.msra.mxu0 %v1773
    %1803 = vmatpush.msra.mxu0 %v1772
    %1804 = vmatpush.msra.mxu0 %v1771
    %1805 = vmatpush.msra.mxu0 %v1770
    %1806 = vmatmul.f32.gmra.mxu0 %v1776
    %v1807 = vpop.f32.mrf.mxu0
    %v1808 = vadd.f32 0.0, %v1807
    %1809 = vmatmul.f32.gmra.mxu0 %v1779
    %v1810 = vpop.f32.mrf.mxu0
    %v1811 = vadd.f32 0.0, %v1810
    %1812 = vmatmul.f32.gmra.mxu0 %v1782
    %v1813 = vpop.f32.mrf.mxu0
    %v1814 = vadd.f32 0.0, %v1813
    %1815 = vmatmul.f32.gmra.mxu0 %v1785
    %v1816 = vpop.f32.mrf.mxu0
    %v1817 = vadd.f32 0.0, %v1816
    %1818 = vmatmul.f32.gmra.mxu0 %v1788
    %v1819 = vpop.f32.mrf.mxu0
    %v1820 = vadd.f32 0.0, %v1819
    %1821 = vdwg.mxu0
    %s1822 = scalar_lea.vmem [#allocation2], 1080
    %1823 = vst.msk [vmem:[%s1822] sm:$0xff] %vm20, %v1808
    %1824 = vst.msk [vmem:[%s1822 + $0x8] sm:$0xff] %vm20, %v1811
    %1825 = vst.msk [vmem:[%s1822 + $0x10] sm:$0xff] %vm20, %v1814
    %1826 = vst.msk [vmem:[%s1822 + $0x18] sm:$0xff] %vm20, %v1817
    %1827 = vst.msk [vmem:[%s1822 + $0x20] sm:$0xff] %vm20, %v1820
    %s1828 = scalar_lea.vmem %s0, 2240
    %v1829 = vld [vmem:[%s1828] sm:$0xff]
    %v1830 = vld [vmem:[%s1828 + $0x8] sm:$0xff]
    %v1831 = vld [vmem:[%s1828 + $0x10] sm:$0xff]
    %v1832 = vld [vmem:[%s1828 + $0x18] sm:$0xff]
    %v1833 = vld [vmem:[%s1828 + $0x20] sm:$0xff]
    %s1834 = scalar_lea.vmem %s0, 2280
    %v1835 = vld [vmem:[%s1834] sm:$0xff]
    %v1836 = vld [vmem:[%s1834 + $0x8] sm:$0xff]
    %v1837 = vld [vmem:[%s1834 + $0x10] sm:$0xff]
    %v1838 = vld [vmem:[%s1834 + $0x18] sm:$0xff]
    %v1839 = vld [vmem:[%s1834 + $0x20] sm:$0xff]
    %v1841 = vsel %vm20, %v1829, 0
    %v1844 = vsel %vm20, %v1830, 0
    %v1847 = vsel %vm20, %v1831, 0
    %v1850 = vsel %vm20, %v1832, 0
    %v1853 = vsel %vm20, %v1833, 0
    %1855 = vmatpush.msra.mxu0 0.0
    %1856 = vmatpush.msra.mxu0 0.0
    %1857 = vmatpush.msra.mxu0 0.0
    %1858 = vmatpush.msra.mxu0 0.0
    %1859 = vmatpush.msra.mxu0 0.0
    %1860 = vmatpush.msra.mxu0 0.0
    %1861 = vmatpush.msra.mxu0 0.0
    %1862 = vmatpush.msra.mxu0 0.0
    %1863 = vmatpush.msra.mxu0 0.0
    %1864 = vmatpush.msra.mxu0 0.0
    %1865 = vmatpush.msra.mxu0 0.0
    %1866 = vmatpush.msra.mxu0 %v1839
    %1867 = vmatpush.msra.mxu0 %v1838
    %1868 = vmatpush.msra.mxu0 %v1837
    %1869 = vmatpush.msra.mxu0 %v1836
    %1870 = vmatpush.msra.mxu0 %v1835
    %1871 = vmatmul.f32.gmra.mxu0 %v1841
    %v1872 = vpop.f32.mrf.mxu0
    %v1873 = vadd.f32 0.0, %v1872
    %1874 = vmatmul.f32.gmra.mxu0 %v1844
    %v1875 = vpop.f32.mrf.mxu0
    %v1876 = vadd.f32 0.0, %v1875
    %1877 = vmatmul.f32.gmra.mxu0 %v1847
    %v1878 = vpop.f32.mrf.mxu0
    %v1879 = vadd.f32 0.0, %v1878
    %1880 = vmatmul.f32.gmra.mxu0 %v1850
    %v1881 = vpop.f32.mrf.mxu0
    %v1882 = vadd.f32 0.0, %v1881
    %1883 = vmatmul.f32.gmra.mxu0 %v1853
    %v1884 = vpop.f32.mrf.mxu0
    %v1885 = vadd.f32 0.0, %v1884
    %1886 = vdwg.mxu0
    %s1887 = scalar_lea.vmem [#allocation2], 1120
    %1888 = vst.msk [vmem:[%s1887] sm:$0xff] %vm20, %v1873
    %1889 = vst.msk [vmem:[%s1887 + $0x8] sm:$0xff] %vm20, %v1876
    %1890 = vst.msk [vmem:[%s1887 + $0x10] sm:$0xff] %vm20, %v1879
    %1891 = vst.msk [vmem:[%s1887 + $0x18] sm:$0xff] %vm20, %v1882
    %1892 = vst.msk [vmem:[%s1887 + $0x20] sm:$0xff] %vm20, %v1885
    %s1893 = scalar_lea.vmem %s0, 2320
    %v1894 = vld [vmem:[%s1893] sm:$0xff]
    %v1895 = vld [vmem:[%s1893 + $0x8] sm:$0xff]
    %v1896 = vld [vmem:[%s1893 + $0x10] sm:$0xff]
    %v1897 = vld [vmem:[%s1893 + $0x18] sm:$0xff]
    %v1898 = vld [vmem:[%s1893 + $0x20] sm:$0xff]
    %s1899 = scalar_lea.vmem %s0, 2360
    %v1900 = vld [vmem:[%s1899] sm:$0xff]
    %v1901 = vld [vmem:[%s1899 + $0x8] sm:$0xff]
    %v1902 = vld [vmem:[%s1899 + $0x10] sm:$0xff]
    %v1903 = vld [vmem:[%s1899 + $0x18] sm:$0xff]
    %v1904 = vld [vmem:[%s1899 + $0x20] sm:$0xff]
    %v1906 = vsel %vm20, %v1894, 0
    %v1909 = vsel %vm20, %v1895, 0
    %v1912 = vsel %vm20, %v1896, 0
    %v1915 = vsel %vm20, %v1897, 0
    %v1918 = vsel %vm20, %v1898, 0
    %1920 = vmatpush.msra.mxu0 0.0
    %1921 = vmatpush.msra.mxu0 0.0
    %1922 = vmatpush.msra.mxu0 0.0
    %1923 = vmatpush.msra.mxu0 0.0
    %1924 = vmatpush.msra.mxu0 0.0
    %1925 = vmatpush.msra.mxu0 0.0
    %1926 = vmatpush.msra.mxu0 0.0
    %1927 = vmatpush.msra.mxu0 0.0
    %1928 = vmatpush.msra.mxu0 0.0
    %1929 = vmatpush.msra.mxu0 0.0
    %1930 = vmatpush.msra.mxu0 0.0
    %1931 = vmatpush.msra.mxu0 %v1904
    %1932 = vmatpush.msra.mxu0 %v1903
    %1933 = vmatpush.msra.mxu0 %v1902
    %1934 = vmatpush.msra.mxu0 %v1901
    %1935 = vmatpush.msra.mxu0 %v1900
    %1936 = vmatmul.f32.gmra.mxu0 %v1906
    %v1937 = vpop.f32.mrf.mxu0
    %v1938 = vadd.f32 0.0, %v1937
    %1939 = vmatmul.f32.gmra.mxu0 %v1909
    %v1940 = vpop.f32.mrf.mxu0
    %v1941 = vadd.f32 0.0, %v1940
    %1942 = vmatmul.f32.gmra.mxu0 %v1912
    %v1943 = vpop.f32.mrf.mxu0
    %v1944 = vadd.f32 0.0, %v1943
    %1945 = vmatmul.f32.gmra.mxu0 %v1915
    %v1946 = vpop.f32.mrf.mxu0
    %v1947 = vadd.f32 0.0, %v1946
    %1948 = vmatmul.f32.gmra.mxu0 %v1918
    %v1949 = vpop.f32.mrf.mxu0
    %v1950 = vadd.f32 0.0, %v1949
    %1951 = vdwg.mxu0
    %s1952 = scalar_lea.vmem [#allocation2], 1160
    %1953 = vst.msk [vmem:[%s1952] sm:$0xff] %vm20, %v1938
    %1954 = vst.msk [vmem:[%s1952 + $0x8] sm:$0xff] %vm20, %v1941
    %1955 = vst.msk [vmem:[%s1952 + $0x10] sm:$0xff] %vm20, %v1944
    %1956 = vst.msk [vmem:[%s1952 + $0x18] sm:$0xff] %vm20, %v1947
    %1957 = vst.msk [vmem:[%s1952 + $0x20] sm:$0xff] %vm20, %v1950
    %s1958 = scalar_lea.vmem %s0, 2400
    %v1959 = vld [vmem:[%s1958] sm:$0xff]
    %v1960 = vld [vmem:[%s1958 + $0x8] sm:$0xff]
    %v1961 = vld [vmem:[%s1958 + $0x10] sm:$0xff]
    %v1962 = vld [vmem:[%s1958 + $0x18] sm:$0xff]
    %v1963 = vld [vmem:[%s1958 + $0x20] sm:$0xff]
    %s1964 = scalar_lea.vmem %s0, 2440
    %v1965 = vld [vmem:[%s1964] sm:$0xff]
    %v1966 = vld [vmem:[%s1964 + $0x8] sm:$0xff]
    %v1967 = vld [vmem:[%s1964 + $0x10] sm:$0xff]
    %v1968 = vld [vmem:[%s1964 + $0x18] sm:$0xff]
    %v1969 = vld [vmem:[%s1964 + $0x20] sm:$0xff]
    %v1971 = vsel %vm20, %v1959, 0
    %v1974 = vsel %vm20, %v1960, 0
    %v1977 = vsel %vm20, %v1961, 0
    %v1980 = vsel %vm20, %v1962, 0
    %v1983 = vsel %vm20, %v1963, 0
    %1985 = vmatpush.msra.mxu0 0.0
    %1986 = vmatpush.msra.mxu0 0.0
    %1987 = vmatpush.msra.mxu0 0.0
    %1988 = vmatpush.msra.mxu0 0.0
    %1989 = vmatpush.msra.mxu0 0.0
    %1990 = vmatpush.msra.mxu0 0.0
    %1991 = vmatpush.msra.mxu0 0.0
    %1992 = vmatpush.msra.mxu0 0.0
    %1993 = vmatpush.msra.mxu0 0.0
    %1994 = vmatpush.msra.mxu0 0.0
    %1995 = vmatpush.msra.mxu0 0.0
    %1996 = vmatpush.msra.mxu0 %v1969
    %1997 = vmatpush.msra.mxu0 %v1968
    %1998 = vmatpush.msra.mxu0 %v1967
    %1999 = vmatpush.msra.mxu0 %v1966
    %2000 = vmatpush.msra.mxu0 %v1965
    %2001 = vmatmul.f32.gmra.mxu0 %v1971
    %v2002 = vpop.f32.mrf.mxu0
    %v2003 = vadd.f32 0.0, %v2002
    %2004 = vmatmul.f32.gmra.mxu0 %v1974
    %v2005 = vpop.f32.mrf.mxu0
    %v2006 = vadd.f32 0.0, %v2005
    %2007 = vmatmul.f32.gmra.mxu0 %v1977
    %v2008 = vpop.f32.mrf.mxu0
    %v2009 = vadd.f32 0.0, %v2008
    %2010 = vmatmul.f32.gmra.mxu0 %v1980
    %v2011 = vpop.f32.mrf.mxu0
    %v2012 = vadd.f32 0.0, %v2011
    %2013 = vmatmul.f32.gmra.mxu0 %v1983
    %v2014 = vpop.f32.mrf.mxu0
    %v2015 = vadd.f32 0.0, %v2014
    %2016 = vdwg.mxu0
    %s2017 = scalar_lea.vmem [#allocation2], 1200
    %2018 = vst.msk [vmem:[%s2017] sm:$0xff] %vm20, %v2003
    %2019 = vst.msk [vmem:[%s2017 + $0x8] sm:$0xff] %vm20, %v2006
    %2020 = vst.msk [vmem:[%s2017 + $0x10] sm:$0xff] %vm20, %v2009
    %2021 = vst.msk [vmem:[%s2017 + $0x18] sm:$0xff] %vm20, %v2012
    %2022 = vst.msk [vmem:[%s2017 + $0x20] sm:$0xff] %vm20, %v2015
    %s2023 = scalar_lea.vmem %s0, 2480
    %v2024 = vld [vmem:[%s2023] sm:$0xff]
    %v2025 = vld [vmem:[%s2023 + $0x8] sm:$0xff]
    %v2026 = vld [vmem:[%s2023 + $0x10] sm:$0xff]
    %v2027 = vld [vmem:[%s2023 + $0x18] sm:$0xff]
    %v2028 = vld [vmem:[%s2023 + $0x20] sm:$0xff]
    %s2029 = scalar_lea.vmem %s0, 2520
    %v2030 = vld [vmem:[%s2029] sm:$0xff]
    %v2031 = vld [vmem:[%s2029 + $0x8] sm:$0xff]
    %v2032 = vld [vmem:[%s2029 + $0x10] sm:$0xff]
    %v2033 = vld [vmem:[%s2029 + $0x18] sm:$0xff]
    %v2034 = vld [vmem:[%s2029 + $0x20] sm:$0xff]
    %v2036 = vsel %vm20, %v2024, 0
    %v2039 = vsel %vm20, %v2025, 0
    %v2042 = vsel %vm20, %v2026, 0
    %v2045 = vsel %vm20, %v2027, 0
    %v2048 = vsel %vm20, %v2028, 0
    %2050 = vmatpush.msra.mxu0 0.0
    %2051 = vmatpush.msra.mxu0 0.0
    %2052 = vmatpush.msra.mxu0 0.0
    %2053 = vmatpush.msra.mxu0 0.0
    %2054 = vmatpush.msra.mxu0 0.0
    %2055 = vmatpush.msra.mxu0 0.0
    %2056 = vmatpush.msra.mxu0 0.0
    %2057 = vmatpush.msra.mxu0 0.0
    %2058 = vmatpush.msra.mxu0 0.0
    %2059 = vmatpush.msra.mxu0 0.0
    %2060 = vmatpush.msra.mxu0 0.0
    %2061 = vmatpush.msra.mxu0 %v2034
    %2062 = vmatpush.msra.mxu0 %v2033
    %2063 = vmatpush.msra.mxu0 %v2032
    %2064 = vmatpush.msra.mxu0 %v2031
    %2065 = vmatpush.msra.mxu0 %v2030
    %2066 = vmatmul.f32.gmra.mxu0 %v2036
    %v2067 = vpop.f32.mrf.mxu0
    %v2068 = vadd.f32 0.0, %v2067
    %2069 = vmatmul.f32.gmra.mxu0 %v2039
    %v2070 = vpop.f32.mrf.mxu0
    %v2071 = vadd.f32 0.0, %v2070
    %2072 = vmatmul.f32.gmra.mxu0 %v2042
    %v2073 = vpop.f32.mrf.mxu0
    %v2074 = vadd.f32 0.0, %v2073
    %2075 = vmatmul.f32.gmra.mxu0 %v2045
    %v2076 = vpop.f32.mrf.mxu0
    %v2077 = vadd.f32 0.0, %v2076
    %2078 = vmatmul.f32.gmra.mxu0 %v2048
    %v2079 = vpop.f32.mrf.mxu0
    %v2080 = vadd.f32 0.0, %v2079
    %2081 = vdwg.mxu0
    %s2082 = scalar_lea.vmem [#allocation2], 1240
    %2083 = vst.msk [vmem:[%s2082] sm:$0xff] %vm20, %v2068
    %2084 = vst.msk [vmem:[%s2082 + $0x8] sm:$0xff] %vm20, %v2071
    %2085 = vst.msk [vmem:[%s2082 + $0x10] sm:$0xff] %vm20, %v2074
    %2086 = vst.msk [vmem:[%s2082 + $0x18] sm:$0xff] %vm20, %v2077
    %2087 = vst.msk [vmem:[%s2082 + $0x20] sm:$0xff] %vm20, %v2080
    %s2088 = scalar_lea.vmem %s0, 2560
    %v2089 = vld [vmem:[%s2088] sm:$0xff]
    %v2090 = vld [vmem:[%s2088 + $0x8] sm:$0xff]
    %v2091 = vld [vmem:[%s2088 + $0x10] sm:$0xff]
    %v2092 = vld [vmem:[%s2088 + $0x18] sm:$0xff]
    %v2093 = vld [vmem:[%s2088 + $0x20] sm:$0xff]
    %s2094 = scalar_lea.vmem %s0, 2600
    %v2095 = vld [vmem:[%s2094] sm:$0xff]
    %v2096 = vld [vmem:[%s2094 + $0x8] sm:$0xff]
    %v2097 = vld [vmem:[%s2094 + $0x10] sm:$0xff]
    %v2098 = vld [vmem:[%s2094 + $0x18] sm:$0xff]
    %v2099 = vld [vmem:[%s2094 + $0x20] sm:$0xff]
    %v2101 = vsel %vm20, %v2089, 0
    %v2104 = vsel %vm20, %v2090, 0
    %v2107 = vsel %vm20, %v2091, 0
    %v2110 = vsel %vm20, %v2092, 0
    %v2113 = vsel %vm20, %v2093, 0
    %2115 = vmatpush.msra.mxu0 0.0
    %2116 = vmatpush.msra.mxu0 0.0
    %2117 = vmatpush.msra.mxu0 0.0
    %2118 = vmatpush.msra.mxu0 0.0
    %2119 = vmatpush.msra.mxu0 0.0
    %2120 = vmatpush.msra.mxu0 0.0
    %2121 = vmatpush.msra.mxu0 0.0
    %2122 = vmatpush.msra.mxu0 0.0
    %2123 = vmatpush.msra.mxu0 0.0
    %2124 = vmatpush.msra.mxu0 0.0
    %2125 = vmatpush.msra.mxu0 0.0
    %2126 = vmatpush.msra.mxu0 %v2099
    %2127 = vmatpush.msra.mxu0 %v2098
    %2128 = vmatpush.msra.mxu0 %v2097
    %2129 = vmatpush.msra.mxu0 %v2096
    %2130 = vmatpush.msra.mxu0 %v2095
    %2131 = vmatmul.f32.gmra.mxu0 %v2101
    %v2132 = vpop.f32.mrf.mxu0
    %v2133 = vadd.f32 0.0, %v2132
    %2134 = vmatmul.f32.gmra.mxu0 %v2104
    %v2135 = vpop.f32.mrf.mxu0
    %v2136 = vadd.f32 0.0, %v2135
    %2137 = vmatmul.f32.gmra.mxu0 %v2107
    %v2138 = vpop.f32.mrf.mxu0
    %v2139 = vadd.f32 0.0, %v2138
    %2140 = vmatmul.f32.gmra.mxu0 %v2110
    %v2141 = vpop.f32.mrf.mxu0
    %v2142 = vadd.f32 0.0, %v2141
    %2143 = vmatmul.f32.gmra.mxu0 %v2113
    %v2144 = vpop.f32.mrf.mxu0
    %v2145 = vadd.f32 0.0, %v2144
    %2146 = vdwg.mxu0
    %s2147 = scalar_lea.vmem [#allocation2], 1280
    %2148 = vst.msk [vmem:[%s2147] sm:$0xff] %vm20, %v2133
    %2149 = vst.msk [vmem:[%s2147 + $0x8] sm:$0xff] %vm20, %v2136
    %2150 = vst.msk [vmem:[%s2147 + $0x10] sm:$0xff] %vm20, %v2139
    %2151 = vst.msk [vmem:[%s2147 + $0x18] sm:$0xff] %vm20, %v2142
    %2152 = vst.msk [vmem:[%s2147 + $0x20] sm:$0xff] %vm20, %v2145
    %s2153 = scalar_lea.vmem %s0, 2640
    %v2154 = vld [vmem:[%s2153] sm:$0xff]
    %v2155 = vld [vmem:[%s2153 + $0x8] sm:$0xff]
    %v2156 = vld [vmem:[%s2153 + $0x10] sm:$0xff]
    %v2157 = vld [vmem:[%s2153 + $0x18] sm:$0xff]
    %v2158 = vld [vmem:[%s2153 + $0x20] sm:$0xff]
    %s2159 = scalar_lea.vmem %s0, 2680
    %v2160 = vld [vmem:[%s2159] sm:$0xff]
    %v2161 = vld [vmem:[%s2159 + $0x8] sm:$0xff]
    %v2162 = vld [vmem:[%s2159 + $0x10] sm:$0xff]
    %v2163 = vld [vmem:[%s2159 + $0x18] sm:$0xff]
    %v2164 = vld [vmem:[%s2159 + $0x20] sm:$0xff]
    %v2166 = vsel %vm20, %v2154, 0
    %v2169 = vsel %vm20, %v2155, 0
    %v2172 = vsel %vm20, %v2156, 0
    %v2175 = vsel %vm20, %v2157, 0
    %v2178 = vsel %vm20, %v2158, 0
    %2180 = vmatpush.msra.mxu0 0.0
    %2181 = vmatpush.msra.mxu0 0.0
    %2182 = vmatpush.msra.mxu0 0.0
    %2183 = vmatpush.msra.mxu0 0.0
    %2184 = vmatpush.msra.mxu0 0.0
    %2185 = vmatpush.msra.mxu0 0.0
    %2186 = vmatpush.msra.mxu0 0.0
    %2187 = vmatpush.msra.mxu0 0.0
    %2188 = vmatpush.msra.mxu0 0.0
    %2189 = vmatpush.msra.mxu0 0.0
    %2190 = vmatpush.msra.mxu0 0.0
    %2191 = vmatpush.msra.mxu0 %v2164
    %2192 = vmatpush.msra.mxu0 %v2163
    %2193 = vmatpush.msra.mxu0 %v2162
    %2194 = vmatpush.msra.mxu0 %v2161
    %2195 = vmatpush.msra.mxu0 %v2160
    %2196 = vmatmul.f32.gmra.mxu0 %v2166
    %v2197 = vpop.f32.mrf.mxu0
    %v2198 = vadd.f32 0.0, %v2197
    %2199 = vmatmul.f32.gmra.mxu0 %v2169
    %v2200 = vpop.f32.mrf.mxu0
    %v2201 = vadd.f32 0.0, %v2200
    %2202 = vmatmul.f32.gmra.mxu0 %v2172
    %v2203 = vpop.f32.mrf.mxu0
    %v2204 = vadd.f32 0.0, %v2203
    %2205 = vmatmul.f32.gmra.mxu0 %v2175
    %v2206 = vpop.f32.mrf.mxu0
    %v2207 = vadd.f32 0.0, %v2206
    %2208 = vmatmul.f32.gmra.mxu0 %v2178
    %v2209 = vpop.f32.mrf.mxu0
    %v2210 = vadd.f32 0.0, %v2209
    %2211 = vdwg.mxu0
    %s2212 = scalar_lea.vmem [#allocation2], 1320
    %2213 = vst.msk [vmem:[%s2212] sm:$0xff] %vm20, %v2198
    %2214 = vst.msk [vmem:[%s2212 + $0x8] sm:$0xff] %vm20, %v2201
    %2215 = vst.msk [vmem:[%s2212 + $0x10] sm:$0xff] %vm20, %v2204
    %2216 = vst.msk [vmem:[%s2212 + $0x18] sm:$0xff] %vm20, %v2207
    %2217 = vst.msk [vmem:[%s2212 + $0x20] sm:$0xff] %vm20, %v2210
    %s2218 = scalar_lea.vmem %s0, 2720
    %v2219 = vld [vmem:[%s2218] sm:$0xff]
    %v2220 = vld [vmem:[%s2218 + $0x8] sm:$0xff]
    %v2221 = vld [vmem:[%s2218 + $0x10] sm:$0xff]
    %v2222 = vld [vmem:[%s2218 + $0x18] sm:$0xff]
    %v2223 = vld [vmem:[%s2218 + $0x20] sm:$0xff]
    %s2224 = scalar_lea.vmem %s0, 2760
    %v2225 = vld [vmem:[%s2224] sm:$0xff]
    %v2226 = vld [vmem:[%s2224 + $0x8] sm:$0xff]
    %v2227 = vld [vmem:[%s2224 + $0x10] sm:$0xff]
    %v2228 = vld [vmem:[%s2224 + $0x18] sm:$0xff]
    %v2229 = vld [vmem:[%s2224 + $0x20] sm:$0xff]
    %v2231 = vsel %vm20, %v2219, 0
    %v2234 = vsel %vm20, %v2220, 0
    %v2237 = vsel %vm20, %v2221, 0
    %v2240 = vsel %vm20, %v2222, 0
    %v2243 = vsel %vm20, %v2223, 0
    %2245 = vmatpush.msra.mxu0 0.0
    %2246 = vmatpush.msra.mxu0 0.0
    %2247 = vmatpush.msra.mxu0 0.0
    %2248 = vmatpush.msra.mxu0 0.0
    %2249 = vmatpush.msra.mxu0 0.0
    %2250 = vmatpush.msra.mxu0 0.0
    %2251 = vmatpush.msra.mxu0 0.0
    %2252 = vmatpush.msra.mxu0 0.0
    %2253 = vmatpush.msra.mxu0 0.0
    %2254 = vmatpush.msra.mxu0 0.0
    %2255 = vmatpush.msra.mxu0 0.0
    %2256 = vmatpush.msra.mxu0 %v2229
    %2257 = vmatpush.msra.mxu0 %v2228
    %2258 = vmatpush.msra.mxu0 %v2227
    %2259 = vmatpush.msra.mxu0 %v2226
    %2260 = vmatpush.msra.mxu0 %v2225
    %2261 = vmatmul.f32.gmra.mxu0 %v2231
    %v2262 = vpop.f32.mrf.mxu0
    %v2263 = vadd.f32 0.0, %v2262
    %2264 = vmatmul.f32.gmra.mxu0 %v2234
    %v2265 = vpop.f32.mrf.mxu0
    %v2266 = vadd.f32 0.0, %v2265
    %2267 = vmatmul.f32.gmra.mxu0 %v2237
    %v2268 = vpop.f32.mrf.mxu0
    %v2269 = vadd.f32 0.0, %v2268
    %2270 = vmatmul.f32.gmra.mxu0 %v2240
    %v2271 = vpop.f32.mrf.mxu0
    %v2272 = vadd.f32 0.0, %v2271
    %2273 = vmatmul.f32.gmra.mxu0 %v2243
    %v2274 = vpop.f32.mrf.mxu0
    %v2275 = vadd.f32 0.0, %v2274
    %2276 = vdwg.mxu0
    %s2277 = scalar_lea.vmem [#allocation2], 1360
    %2278 = vst.msk [vmem:[%s2277] sm:$0xff] %vm20, %v2263
    %2279 = vst.msk [vmem:[%s2277 + $0x8] sm:$0xff] %vm20, %v2266
    %2280 = vst.msk [vmem:[%s2277 + $0x10] sm:$0xff] %vm20, %v2269
    %2281 = vst.msk [vmem:[%s2277 + $0x18] sm:$0xff] %vm20, %v2272
    %2282 = vst.msk [vmem:[%s2277 + $0x20] sm:$0xff] %vm20, %v2275
    %s2283 = scalar_lea.vmem %s0, 2800
    %v2284 = vld [vmem:[%s2283] sm:$0xff]
    %v2285 = vld [vmem:[%s2283 + $0x8] sm:$0xff]
    %v2286 = vld [vmem:[%s2283 + $0x10] sm:$0xff]
    %v2287 = vld [vmem:[%s2283 + $0x18] sm:$0xff]
    %v2288 = vld [vmem:[%s2283 + $0x20] sm:$0xff]
    %s2289 = scalar_lea.vmem %s0, 2840
    %v2290 = vld [vmem:[%s2289] sm:$0xff]
    %v2291 = vld [vmem:[%s2289 + $0x8] sm:$0xff]
    %v2292 = vld [vmem:[%s2289 + $0x10] sm:$0xff]
    %v2293 = vld [vmem:[%s2289 + $0x18] sm:$0xff]
    %v2294 = vld [vmem:[%s2289 + $0x20] sm:$0xff]
    %v2296 = vsel %vm20, %v2284, 0
    %v2299 = vsel %vm20, %v2285, 0
    %v2302 = vsel %vm20, %v2286, 0
    %v2305 = vsel %vm20, %v2287, 0
    %v2308 = vsel %vm20, %v2288, 0
    %2310 = vmatpush.msra.mxu0 0.0
    %2311 = vmatpush.msra.mxu0 0.0
    %2312 = vmatpush.msra.mxu0 0.0
    %2313 = vmatpush.msra.mxu0 0.0
    %2314 = vmatpush.msra.mxu0 0.0
    %2315 = vmatpush.msra.mxu0 0.0
    %2316 = vmatpush.msra.mxu0 0.0
    %2317 = vmatpush.msra.mxu0 0.0
    %2318 = vmatpush.msra.mxu0 0.0
    %2319 = vmatpush.msra.mxu0 0.0
    %2320 = vmatpush.msra.mxu0 0.0
    %2321 = vmatpush.msra.mxu0 %v2294
    %2322 = vmatpush.msra.mxu0 %v2293
    %2323 = vmatpush.msra.mxu0 %v2292
    %2324 = vmatpush.msra.mxu0 %v2291
    %2325 = vmatpush.msra.mxu0 %v2290
    %2326 = vmatmul.f32.gmra.mxu0 %v2296
    %v2327 = vpop.f32.mrf.mxu0
    %v2328 = vadd.f32 0.0, %v2327
    %2329 = vmatmul.f32.gmra.mxu0 %v2299
    %v2330 = vpop.f32.mrf.mxu0
    %v2331 = vadd.f32 0.0, %v2330
    %2332 = vmatmul.f32.gmra.mxu0 %v2302
    %v2333 = vpop.f32.mrf.mxu0
    %v2334 = vadd.f32 0.0, %v2333
    %2335 = vmatmul.f32.gmra.mxu0 %v2305
    %v2336 = vpop.f32.mrf.mxu0
    %v2337 = vadd.f32 0.0, %v2336
    %2338 = vmatmul.f32.gmra.mxu0 %v2308
    %v2339 = vpop.f32.mrf.mxu0
    %v2340 = vadd.f32 0.0, %v2339
    %2341 = vdwg.mxu0
    %s2342 = scalar_lea.vmem [#allocation2], 1400
    %2343 = vst.msk [vmem:[%s2342] sm:$0xff] %vm20, %v2328
    %2344 = vst.msk [vmem:[%s2342 + $0x8] sm:$0xff] %vm20, %v2331
    %2345 = vst.msk [vmem:[%s2342 + $0x10] sm:$0xff] %vm20, %v2334
    %2346 = vst.msk [vmem:[%s2342 + $0x18] sm:$0xff] %vm20, %v2337
    %2347 = vst.msk [vmem:[%s2342 + $0x20] sm:$0xff] %vm20, %v2340
    %s2348 = scalar_lea.vmem %s0, 2880
    %v2349 = vld [vmem:[%s2348] sm:$0xff]
    %v2350 = vld [vmem:[%s2348 + $0x8] sm:$0xff]
    %v2351 = vld [vmem:[%s2348 + $0x10] sm:$0xff]
    %v2352 = vld [vmem:[%s2348 + $0x18] sm:$0xff]
    %v2353 = vld [vmem:[%s2348 + $0x20] sm:$0xff]
    %s2354 = scalar_lea.vmem %s0, 2920
    %v2355 = vld [vmem:[%s2354] sm:$0xff]
    %v2356 = vld [vmem:[%s2354 + $0x8] sm:$0xff]
    %v2357 = vld [vmem:[%s2354 + $0x10] sm:$0xff]
    %v2358 = vld [vmem:[%s2354 + $0x18] sm:$0xff]
    %v2359 = vld [vmem:[%s2354 + $0x20] sm:$0xff]
    %v2361 = vsel %vm20, %v2349, 0
    %v2364 = vsel %vm20, %v2350, 0
    %v2367 = vsel %vm20, %v2351, 0
    %v2370 = vsel %vm20, %v2352, 0
    %v2373 = vsel %vm20, %v2353, 0
    %2375 = vmatpush.msra.mxu0 0.0
    %2376 = vmatpush.msra.mxu0 0.0
    %2377 = vmatpush.msra.mxu0 0.0
    %2378 = vmatpush.msra.mxu0 0.0
    %2379 = vmatpush.msra.mxu0 0.0
    %2380 = vmatpush.msra.mxu0 0.0
    %2381 = vmatpush.msra.mxu0 0.0
    %2382 = vmatpush.msra.mxu0 0.0
    %2383 = vmatpush.msra.mxu0 0.0
    %2384 = vmatpush.msra.mxu0 0.0
    %2385 = vmatpush.msra.mxu0 0.0
    %2386 = vmatpush.msra.mxu0 %v2359
    %2387 = vmatpush.msra.mxu0 %v2358
    %2388 = vmatpush.msra.mxu0 %v2357
    %2389 = vmatpush.msra.mxu0 %v2356
    %2390 = vmatpush.msra.mxu0 %v2355
    %2391 = vmatmul.f32.gmra.mxu0 %v2361
    %v2392 = vpop.f32.mrf.mxu0
    %v2393 = vadd.f32 0.0, %v2392
    %2394 = vmatmul.f32.gmra.mxu0 %v2364
    %v2395 = vpop.f32.mrf.mxu0
    %v2396 = vadd.f32 0.0, %v2395
    %2397 = vmatmul.f32.gmra.mxu0 %v2367
    %v2398 = vpop.f32.mrf.mxu0
    %v2399 = vadd.f32 0.0, %v2398
    %2400 = vmatmul.f32.gmra.mxu0 %v2370
    %v2401 = vpop.f32.mrf.mxu0
    %v2402 = vadd.f32 0.0, %v2401
    %2403 = vmatmul.f32.gmra.mxu0 %v2373
    %v2404 = vpop.f32.mrf.mxu0
    %v2405 = vadd.f32 0.0, %v2404
    %2406 = vdwg.mxu0
    %s2407 = scalar_lea.vmem [#allocation2], 1440
    %2408 = vst.msk [vmem:[%s2407] sm:$0xff] %vm20, %v2393
    %2409 = vst.msk [vmem:[%s2407 + $0x8] sm:$0xff] %vm20, %v2396
    %2410 = vst.msk [vmem:[%s2407 + $0x10] sm:$0xff] %vm20, %v2399
    %2411 = vst.msk [vmem:[%s2407 + $0x18] sm:$0xff] %vm20, %v2402
    %2412 = vst.msk [vmem:[%s2407 + $0x20] sm:$0xff] %vm20, %v2405
    %s2413 = scalar_lea.vmem %s0, 2960
    %v2414 = vld [vmem:[%s2413] sm:$0xff]
    %v2415 = vld [vmem:[%s2413 + $0x8] sm:$0xff]
    %v2416 = vld [vmem:[%s2413 + $0x10] sm:$0xff]
    %v2417 = vld [vmem:[%s2413 + $0x18] sm:$0xff]
    %v2418 = vld [vmem:[%s2413 + $0x20] sm:$0xff]
    %s2419 = scalar_lea.vmem %s0, 3000
    %v2420 = vld [vmem:[%s2419] sm:$0xff]
    %v2421 = vld [vmem:[%s2419 + $0x8] sm:$0xff]
    %v2422 = vld [vmem:[%s2419 + $0x10] sm:$0xff]
    %v2423 = vld [vmem:[%s2419 + $0x18] sm:$0xff]
    %v2424 = vld [vmem:[%s2419 + $0x20] sm:$0xff]
    %v2426 = vsel %vm20, %v2414, 0
    %v2429 = vsel %vm20, %v2415, 0
    %v2432 = vsel %vm20, %v2416, 0
    %v2435 = vsel %vm20, %v2417, 0
    %v2438 = vsel %vm20, %v2418, 0
    %2440 = vmatpush.msra.mxu0 0.0
    %2441 = vmatpush.msra.mxu0 0.0
    %2442 = vmatpush.msra.mxu0 0.0
    %2443 = vmatpush.msra.mxu0 0.0
    %2444 = vmatpush.msra.mxu0 0.0
    %2445 = vmatpush.msra.mxu0 0.0
    %2446 = vmatpush.msra.mxu0 0.0
    %2447 = vmatpush.msra.mxu0 0.0
    %2448 = vmatpush.msra.mxu0 0.0
    %2449 = vmatpush.msra.mxu0 0.0
    %2450 = vmatpush.msra.mxu0 0.0
    %2451 = vmatpush.msra.mxu0 %v2424
    %2452 = vmatpush.msra.mxu0 %v2423
    %2453 = vmatpush.msra.mxu0 %v2422
    %2454 = vmatpush.msra.mxu0 %v2421
    %2455 = vmatpush.msra.mxu0 %v2420
    %2456 = vmatmul.f32.gmra.mxu0 %v2426
    %v2457 = vpop.f32.mrf.mxu0
    %v2458 = vadd.f32 0.0, %v2457
    %2459 = vmatmul.f32.gmra.mxu0 %v2429
    %v2460 = vpop.f32.mrf.mxu0
    %v2461 = vadd.f32 0.0, %v2460
    %2462 = vmatmul.f32.gmra.mxu0 %v2432
    %v2463 = vpop.f32.mrf.mxu0
    %v2464 = vadd.f32 0.0, %v2463
    %2465 = vmatmul.f32.gmra.mxu0 %v2435
    %v2466 = vpop.f32.mrf.mxu0
    %v2467 = vadd.f32 0.0, %v2466
    %2468 = vmatmul.f32.gmra.mxu0 %v2438
    %v2469 = vpop.f32.mrf.mxu0
    %v2470 = vadd.f32 0.0, %v2469
    %2471 = vdwg.mxu0
    %s2472 = scalar_lea.vmem [#allocation2], 1480
    %2473 = vst.msk [vmem:[%s2472] sm:$0xff] %vm20, %v2458
    %2474 = vst.msk [vmem:[%s2472 + $0x8] sm:$0xff] %vm20, %v2461
    %2475 = vst.msk [vmem:[%s2472 + $0x10] sm:$0xff] %vm20, %v2464
    %2476 = vst.msk [vmem:[%s2472 + $0x18] sm:$0xff] %vm20, %v2467
    %2477 = vst.msk [vmem:[%s2472 + $0x20] sm:$0xff] %vm20, %v2470
    %s2478 = scalar_lea.vmem %s0, 3040
    %v2479 = vld [vmem:[%s2478] sm:$0xff]
    %v2480 = vld [vmem:[%s2478 + $0x8] sm:$0xff]
    %v2481 = vld [vmem:[%s2478 + $0x10] sm:$0xff]
    %v2482 = vld [vmem:[%s2478 + $0x18] sm:$0xff]
    %v2483 = vld [vmem:[%s2478 + $0x20] sm:$0xff]
    %s2484 = scalar_lea.vmem %s0, 3080
    %v2485 = vld [vmem:[%s2484] sm:$0xff]
    %v2486 = vld [vmem:[%s2484 + $0x8] sm:$0xff]
    %v2487 = vld [vmem:[%s2484 + $0x10] sm:$0xff]
    %v2488 = vld [vmem:[%s2484 + $0x18] sm:$0xff]
    %v2489 = vld [vmem:[%s2484 + $0x20] sm:$0xff]
    %v2491 = vsel %vm20, %v2479, 0
    %v2494 = vsel %vm20, %v2480, 0
    %v2497 = vsel %vm20, %v2481, 0
    %v2500 = vsel %vm20, %v2482, 0
    %v2503 = vsel %vm20, %v2483, 0
    %2505 = vmatpush.msra.mxu0 0.0
    %2506 = vmatpush.msra.mxu0 0.0
    %2507 = vmatpush.msra.mxu0 0.0
    %2508 = vmatpush.msra.mxu0 0.0
    %2509 = vmatpush.msra.mxu0 0.0
    %2510 = vmatpush.msra.mxu0 0.0
    %2511 = vmatpush.msra.mxu0 0.0
    %2512 = vmatpush.msra.mxu0 0.0
    %2513 = vmatpush.msra.mxu0 0.0
    %2514 = vmatpush.msra.mxu0 0.0
    %2515 = vmatpush.msra.mxu0 0.0
    %2516 = vmatpush.msra.mxu0 %v2489
    %2517 = vmatpush.msra.mxu0 %v2488
    %2518 = vmatpush.msra.mxu0 %v2487
    %2519 = vmatpush.msra.mxu0 %v2486
    %2520 = vmatpush.msra.mxu0 %v2485
    %2521 = vmatmul.f32.gmra.mxu0 %v2491
    %v2522 = vpop.f32.mrf.mxu0
    %v2523 = vadd.f32 0.0, %v2522
    %2524 = vmatmul.f32.gmra.mxu0 %v2494
    %v2525 = vpop.f32.mrf.mxu0
    %v2526 = vadd.f32 0.0, %v2525
    %2527 = vmatmul.f32.gmra.mxu0 %v2497
    %v2528 = vpop.f32.mrf.mxu0
    %v2529 = vadd.f32 0.0, %v2528
    %2530 = vmatmul.f32.gmra.mxu0 %v2500
    %v2531 = vpop.f32.mrf.mxu0
    %v2532 = vadd.f32 0.0, %v2531
    %2533 = vmatmul.f32.gmra.mxu0 %v2503
    %v2534 = vpop.f32.mrf.mxu0
    %v2535 = vadd.f32 0.0, %v2534
    %2536 = vdwg.mxu0
    %s2537 = scalar_lea.vmem [#allocation2], 1520
    %2538 = vst.msk [vmem:[%s2537] sm:$0xff] %vm20, %v2523
    %2539 = vst.msk [vmem:[%s2537 + $0x8] sm:$0xff] %vm20, %v2526
    %2540 = vst.msk [vmem:[%s2537 + $0x10] sm:$0xff] %vm20, %v2529
    %2541 = vst.msk [vmem:[%s2537 + $0x18] sm:$0xff] %vm20, %v2532
    %2542 = vst.msk [vmem:[%s2537 + $0x20] sm:$0xff] %vm20, %v2535
    %s2543 = scalar_lea.vmem %s0, 3120
    %v2544 = vld [vmem:[%s2543] sm:$0xff]
    %v2545 = vld [vmem:[%s2543 + $0x8] sm:$0xff]
    %v2546 = vld [vmem:[%s2543 + $0x10] sm:$0xff]
    %v2547 = vld [vmem:[%s2543 + $0x18] sm:$0xff]
    %v2548 = vld [vmem:[%s2543 + $0x20] sm:$0xff]
    %s2549 = scalar_lea.vmem %s0, 3160
    %v2550 = vld [vmem:[%s2549] sm:$0xff]
    %v2551 = vld [vmem:[%s2549 + $0x8] sm:$0xff]
    %v2552 = vld [vmem:[%s2549 + $0x10] sm:$0xff]
    %v2553 = vld [vmem:[%s2549 + $0x18] sm:$0xff]
    %v2554 = vld [vmem:[%s2549 + $0x20] sm:$0xff]
    %v2556 = vsel %vm20, %v2544, 0
    %v2559 = vsel %vm20, %v2545, 0
    %v2562 = vsel %vm20, %v2546, 0
    %v2565 = vsel %vm20, %v2547, 0
    %v2568 = vsel %vm20, %v2548, 0
    %2570 = vmatpush.msra.mxu0 0.0
    %2571 = vmatpush.msra.mxu0 0.0
    %2572 = vmatpush.msra.mxu0 0.0
    %2573 = vmatpush.msra.mxu0 0.0
    %2574 = vmatpush.msra.mxu0 0.0
    %2575 = vmatpush.msra.mxu0 0.0
    %2576 = vmatpush.msra.mxu0 0.0
    %2577 = vmatpush.msra.mxu0 0.0
    %2578 = vmatpush.msra.mxu0 0.0
    %2579 = vmatpush.msra.mxu0 0.0
    %2580 = vmatpush.msra.mxu0 0.0
    %2581 = vmatpush.msra.mxu0 %v2554
    %2582 = vmatpush.msra.mxu0 %v2553
    %2583 = vmatpush.msra.mxu0 %v2552
    %2584 = vmatpush.msra.mxu0 %v2551
    %2585 = vmatpush.msra.mxu0 %v2550
    %2586 = vmatmul.f32.gmra.mxu0 %v2556
    %v2587 = vpop.f32.mrf.mxu0
    %v2588 = vadd.f32 0.0, %v2587
    %2589 = vmatmul.f32.gmra.mxu0 %v2559
    %v2590 = vpop.f32.mrf.mxu0
    %v2591 = vadd.f32 0.0, %v2590
    %2592 = vmatmul.f32.gmra.mxu0 %v2562
    %v2593 = vpop.f32.mrf.mxu0
    %v2594 = vadd.f32 0.0, %v2593
    %2595 = vmatmul.f32.gmra.mxu0 %v2565
    %v2596 = vpop.f32.mrf.mxu0
    %v2597 = vadd.f32 0.0, %v2596
    %2598 = vmatmul.f32.gmra.mxu0 %v2568
    %v2599 = vpop.f32.mrf.mxu0
    %v2600 = vadd.f32 0.0, %v2599
    %2601 = vdwg.mxu0
    %s2602 = scalar_lea.vmem [#allocation2], 1560
    %2603 = vst.msk [vmem:[%s2602] sm:$0xff] %vm20, %v2588
    %2604 = vst.msk [vmem:[%s2602 + $0x8] sm:$0xff] %vm20, %v2591
    %2605 = vst.msk [vmem:[%s2602 + $0x10] sm:$0xff] %vm20, %v2594
    %2606 = vst.msk [vmem:[%s2602 + $0x18] sm:$0xff] %vm20, %v2597
    %2607 = vst.msk [vmem:[%s2602 + $0x20] sm:$0xff] %vm20, %v2600
    %s2608 = scalar_lea.vmem %s0, 3200
    %v2609 = vld [vmem:[%s2608] sm:$0xff]
    %v2610 = vld [vmem:[%s2608 + $0x8] sm:$0xff]
    %v2611 = vld [vmem:[%s2608 + $0x10] sm:$0xff]
    %v2612 = vld [vmem:[%s2608 + $0x18] sm:$0xff]
    %v2613 = vld [vmem:[%s2608 + $0x20] sm:$0xff]
    %s2614 = scalar_lea.vmem %s0, 3240
    %v2615 = vld [vmem:[%s2614] sm:$0xff]
    %v2616 = vld [vmem:[%s2614 + $0x8] sm:$0xff]
    %v2617 = vld [vmem:[%s2614 + $0x10] sm:$0xff]
    %v2618 = vld [vmem:[%s2614 + $0x18] sm:$0xff]
    %v2619 = vld [vmem:[%s2614 + $0x20] sm:$0xff]
    %v2621 = vsel %vm20, %v2609, 0
    %v2624 = vsel %vm20, %v2610, 0
    %v2627 = vsel %vm20, %v2611, 0
    %v2630 = vsel %vm20, %v2612, 0
    %v2633 = vsel %vm20, %v2613, 0
    %2635 = vmatpush.msra.mxu0 0.0
    %2636 = vmatpush.msra.mxu0 0.0
    %2637 = vmatpush.msra.mxu0 0.0
    %2638 = vmatpush.msra.mxu0 0.0
    %2639 = vmatpush.msra.mxu0 0.0
    %2640 = vmatpush.msra.mxu0 0.0
    %2641 = vmatpush.msra.mxu0 0.0
    %2642 = vmatpush.msra.mxu0 0.0
    %2643 = vmatpush.msra.mxu0 0.0
    %2644 = vmatpush.msra.mxu0 0.0
    %2645 = vmatpush.msra.mxu0 0.0
    %2646 = vmatpush.msra.mxu0 %v2619
    %2647 = vmatpush.msra.mxu0 %v2618
    %2648 = vmatpush.msra.mxu0 %v2617
    %2649 = vmatpush.msra.mxu0 %v2616
    %2650 = vmatpush.msra.mxu0 %v2615
    %2651 = vmatmul.f32.gmra.mxu0 %v2621
    %v2652 = vpop.f32.mrf.mxu0
    %v2653 = vadd.f32 0.0, %v2652
    %2654 = vmatmul.f32.gmra.mxu0 %v2624
    %v2655 = vpop.f32.mrf.mxu0
    %v2656 = vadd.f32 0.0, %v2655
    %2657 = vmatmul.f32.gmra.mxu0 %v2627
    %v2658 = vpop.f32.mrf.mxu0
    %v2659 = vadd.f32 0.0, %v2658
    %2660 = vmatmul.f32.gmra.mxu0 %v2630
    %v2661 = vpop.f32.mrf.mxu0
    %v2662 = vadd.f32 0.0, %v2661
    %2663 = vmatmul.f32.gmra.mxu0 %v2633
    %v2664 = vpop.f32.mrf.mxu0
    %v2665 = vadd.f32 0.0, %v2664
    %2666 = vdwg.mxu0
    %s2667 = scalar_lea.vmem [#allocation2], 1600
    %2668 = vst.msk [vmem:[%s2667] sm:$0xff] %vm20, %v2653
    %2669 = vst.msk [vmem:[%s2667 + $0x8] sm:$0xff] %vm20, %v2656
    %2670 = vst.msk [vmem:[%s2667 + $0x10] sm:$0xff] %vm20, %v2659
    %2671 = vst.msk [vmem:[%s2667 + $0x18] sm:$0xff] %vm20, %v2662
    %2672 = vst.msk [vmem:[%s2667 + $0x20] sm:$0xff] %vm20, %v2665
    %s2673 = scalar_lea.vmem %s0, 3280
    %v2674 = vld [vmem:[%s2673] sm:$0xff]
    %v2675 = vld [vmem:[%s2673 + $0x8] sm:$0xff]
    %v2676 = vld [vmem:[%s2673 + $0x10] sm:$0xff]
    %v2677 = vld [vmem:[%s2673 + $0x18] sm:$0xff]
    %v2678 = vld [vmem:[%s2673 + $0x20] sm:$0xff]
    %s2679 = scalar_lea.vmem %s0, 3320
    %v2680 = vld [vmem:[%s2679] sm:$0xff]
    %v2681 = vld [vmem:[%s2679 + $0x8] sm:$0xff]
    %v2682 = vld [vmem:[%s2679 + $0x10] sm:$0xff]
    %v2683 = vld [vmem:[%s2679 + $0x18] sm:$0xff]
    %v2684 = vld [vmem:[%s2679 + $0x20] sm:$0xff]
    %v2686 = vsel %vm20, %v2674, 0
    %v2689 = vsel %vm20, %v2675, 0
    %v2692 = vsel %vm20, %v2676, 0
    %v2695 = vsel %vm20, %v2677, 0
    %v2698 = vsel %vm20, %v2678, 0
    %2700 = vmatpush.msra.mxu0 0.0
    %2701 = vmatpush.msra.mxu0 0.0
    %2702 = vmatpush.msra.mxu0 0.0
    %2703 = vmatpush.msra.mxu0 0.0
    %2704 = vmatpush.msra.mxu0 0.0
    %2705 = vmatpush.msra.mxu0 0.0
    %2706 = vmatpush.msra.mxu0 0.0
    %2707 = vmatpush.msra.mxu0 0.0
    %2708 = vmatpush.msra.mxu0 0.0
    %2709 = vmatpush.msra.mxu0 0.0
    %2710 = vmatpush.msra.mxu0 0.0
    %2711 = vmatpush.msra.mxu0 %v2684
    %2712 = vmatpush.msra.mxu0 %v2683
    %2713 = vmatpush.msra.mxu0 %v2682
    %2714 = vmatpush.msra.mxu0 %v2681
    %2715 = vmatpush.msra.mxu0 %v2680
    %2716 = vmatmul.f32.gmra.mxu0 %v2686
    %v2717 = vpop.f32.mrf.mxu0
    %v2718 = vadd.f32 0.0, %v2717
    %2719 = vmatmul.f32.gmra.mxu0 %v2689
    %v2720 = vpop.f32.mrf.mxu0
    %v2721 = vadd.f32 0.0, %v2720
    %2722 = vmatmul.f32.gmra.mxu0 %v2692
    %v2723 = vpop.f32.mrf.mxu0
    %v2724 = vadd.f32 0.0, %v2723
    %2725 = vmatmul.f32.gmra.mxu0 %v2695
    %v2726 = vpop.f32.mrf.mxu0
    %v2727 = vadd.f32 0.0, %v2726
    %2728 = vmatmul.f32.gmra.mxu0 %v2698
    %v2729 = vpop.f32.mrf.mxu0
    %v2730 = vadd.f32 0.0, %v2729
    %2731 = vdwg.mxu0
    %s2732 = scalar_lea.vmem [#allocation2], 1640
    %2733 = vst.msk [vmem:[%s2732] sm:$0xff] %vm20, %v2718
    %2734 = vst.msk [vmem:[%s2732 + $0x8] sm:$0xff] %vm20, %v2721
    %2735 = vst.msk [vmem:[%s2732 + $0x10] sm:$0xff] %vm20, %v2724
    %2736 = vst.msk [vmem:[%s2732 + $0x18] sm:$0xff] %vm20, %v2727
    %2737 = vst.msk [vmem:[%s2732 + $0x20] sm:$0xff] %vm20, %v2730
    %s2738 = scalar_lea.vmem %s0, 3360
    %v2739 = vld [vmem:[%s2738] sm:$0xff]
    %v2740 = vld [vmem:[%s2738 + $0x8] sm:$0xff]
    %v2741 = vld [vmem:[%s2738 + $0x10] sm:$0xff]
    %v2742 = vld [vmem:[%s2738 + $0x18] sm:$0xff]
    %v2743 = vld [vmem:[%s2738 + $0x20] sm:$0xff]
    %s2744 = scalar_lea.vmem %s0, 3400
    %v2745 = vld [vmem:[%s2744] sm:$0xff]
    %v2746 = vld [vmem:[%s2744 + $0x8] sm:$0xff]
    %v2747 = vld [vmem:[%s2744 + $0x10] sm:$0xff]
    %v2748 = vld [vmem:[%s2744 + $0x18] sm:$0xff]
    %v2749 = vld [vmem:[%s2744 + $0x20] sm:$0xff]
    %v2751 = vsel %vm20, %v2739, 0
    %v2754 = vsel %vm20, %v2740, 0
    %v2757 = vsel %vm20, %v2741, 0
    %v2760 = vsel %vm20, %v2742, 0
    %v2763 = vsel %vm20, %v2743, 0
    %2765 = vmatpush.msra.mxu0 0.0
    %2766 = vmatpush.msra.mxu0 0.0
    %2767 = vmatpush.msra.mxu0 0.0
    %2768 = vmatpush.msra.mxu0 0.0
    %2769 = vmatpush.msra.mxu0 0.0
    %2770 = vmatpush.msra.mxu0 0.0
    %2771 = vmatpush.msra.mxu0 0.0
    %2772 = vmatpush.msra.mxu0 0.0
    %2773 = vmatpush.msra.mxu0 0.0
    %2774 = vmatpush.msra.mxu0 0.0
    %2775 = vmatpush.msra.mxu0 0.0
    %2776 = vmatpush.msra.mxu0 %v2749
    %2777 = vmatpush.msra.mxu0 %v2748
    %2778 = vmatpush.msra.mxu0 %v2747
    %2779 = vmatpush.msra.mxu0 %v2746
    %2780 = vmatpush.msra.mxu0 %v2745
    %2781 = vmatmul.f32.gmra.mxu0 %v2751
    %v2782 = vpop.f32.mrf.mxu0
    %v2783 = vadd.f32 0.0, %v2782
    %2784 = vmatmul.f32.gmra.mxu0 %v2754
    %v2785 = vpop.f32.mrf.mxu0
    %v2786 = vadd.f32 0.0, %v2785
    %2787 = vmatmul.f32.gmra.mxu0 %v2757
    %v2788 = vpop.f32.mrf.mxu0
    %v2789 = vadd.f32 0.0, %v2788
    %2790 = vmatmul.f32.gmra.mxu0 %v2760
    %v2791 = vpop.f32.mrf.mxu0
    %v2792 = vadd.f32 0.0, %v2791
    %2793 = vmatmul.f32.gmra.mxu0 %v2763
    %v2794 = vpop.f32.mrf.mxu0
    %v2795 = vadd.f32 0.0, %v2794
    %2796 = vdwg.mxu0
    %s2797 = scalar_lea.vmem [#allocation2], 1680
    %2798 = vst.msk [vmem:[%s2797] sm:$0xff] %vm20, %v2783
    %2799 = vst.msk [vmem:[%s2797 + $0x8] sm:$0xff] %vm20, %v2786
    %2800 = vst.msk [vmem:[%s2797 + $0x10] sm:$0xff] %vm20, %v2789
    %2801 = vst.msk [vmem:[%s2797 + $0x18] sm:$0xff] %vm20, %v2792
    %2802 = vst.msk [vmem:[%s2797 + $0x20] sm:$0xff] %vm20, %v2795
    %s2803 = scalar_lea.vmem %s0, 3440
    %v2804 = vld [vmem:[%s2803] sm:$0xff]
    %v2805 = vld [vmem:[%s2803 + $0x8] sm:$0xff]
    %v2806 = vld [vmem:[%s2803 + $0x10] sm:$0xff]
    %v2807 = vld [vmem:[%s2803 + $0x18] sm:$0xff]
    %v2808 = vld [vmem:[%s2803 + $0x20] sm:$0xff]
    %s2809 = scalar_lea.vmem %s0, 3480
    %v2810 = vld [vmem:[%s2809] sm:$0xff]
    %v2811 = vld [vmem:[%s2809 + $0x8] sm:$0xff]
    %v2812 = vld [vmem:[%s2809 + $0x10] sm:$0xff]
    %v2813 = vld [vmem:[%s2809 + $0x18] sm:$0xff]
    %v2814 = vld [vmem:[%s2809 + $0x20] sm:$0xff]
    %v2816 = vsel %vm20, %v2804, 0
    %v2819 = vsel %vm20, %v2805, 0
    %v2822 = vsel %vm20, %v2806, 0
    %v2825 = vsel %vm20, %v2807, 0
    %v2828 = vsel %vm20, %v2808, 0
    %2830 = vmatpush.msra.mxu0 0.0
    %2831 = vmatpush.msra.mxu0 0.0
    %2832 = vmatpush.msra.mxu0 0.0
    %2833 = vmatpush.msra.mxu0 0.0
    %2834 = vmatpush.msra.mxu0 0.0
    %2835 = vmatpush.msra.mxu0 0.0
    %2836 = vmatpush.msra.mxu0 0.0
    %2837 = vmatpush.msra.mxu0 0.0
    %2838 = vmatpush.msra.mxu0 0.0
    %2839 = vmatpush.msra.mxu0 0.0
    %2840 = vmatpush.msra.mxu0 0.0
    %2841 = vmatpush.msra.mxu0 %v2814
    %2842 = vmatpush.msra.mxu0 %v2813
    %2843 = vmatpush.msra.mxu0 %v2812
    %2844 = vmatpush.msra.mxu0 %v2811
    %2845 = vmatpush.msra.mxu0 %v2810
    %2846 = vmatmul.f32.gmra.mxu0 %v2816
    %v2847 = vpop.f32.mrf.mxu0
    %v2848 = vadd.f32 0.0, %v2847
    %2849 = vmatmul.f32.gmra.mxu0 %v2819
    %v2850 = vpop.f32.mrf.mxu0
    %v2851 = vadd.f32 0.0, %v2850
    %2852 = vmatmul.f32.gmra.mxu0 %v2822
    %v2853 = vpop.f32.mrf.mxu0
    %v2854 = vadd.f32 0.0, %v2853
    %2855 = vmatmul.f32.gmra.mxu0 %v2825
    %v2856 = vpop.f32.mrf.mxu0
    %v2857 = vadd.f32 0.0, %v2856
    %2858 = vmatmul.f32.gmra.mxu0 %v2828
    %v2859 = vpop.f32.mrf.mxu0
    %v2860 = vadd.f32 0.0, %v2859
    %2861 = vdwg.mxu0
    %s2862 = scalar_lea.vmem [#allocation2], 1720
    %2863 = vst.msk [vmem:[%s2862] sm:$0xff] %vm20, %v2848
    %2864 = vst.msk [vmem:[%s2862 + $0x8] sm:$0xff] %vm20, %v2851
    %2865 = vst.msk [vmem:[%s2862 + $0x10] sm:$0xff] %vm20, %v2854
    %2866 = vst.msk [vmem:[%s2862 + $0x18] sm:$0xff] %vm20, %v2857
    %2867 = vst.msk [vmem:[%s2862 + $0x20] sm:$0xff] %vm20, %v2860
    %s2868 = scalar_lea.vmem %s0, 3520
    %v2869 = vld [vmem:[%s2868] sm:$0xff]
    %v2870 = vld [vmem:[%s2868 + $0x8] sm:$0xff]
    %v2871 = vld [vmem:[%s2868 + $0x10] sm:$0xff]
    %v2872 = vld [vmem:[%s2868 + $0x18] sm:$0xff]
    %v2873 = vld [vmem:[%s2868 + $0x20] sm:$0xff]
    %s2874 = scalar_lea.vmem %s0, 3560
    %v2875 = vld [vmem:[%s2874] sm:$0xff]
    %v2876 = vld [vmem:[%s2874 + $0x8] sm:$0xff]
    %v2877 = vld [vmem:[%s2874 + $0x10] sm:$0xff]
    %v2878 = vld [vmem:[%s2874 + $0x18] sm:$0xff]
    %v2879 = vld [vmem:[%s2874 + $0x20] sm:$0xff]
    %v2881 = vsel %vm20, %v2869, 0
    %v2884 = vsel %vm20, %v2870, 0
    %v2887 = vsel %vm20, %v2871, 0
    %v2890 = vsel %vm20, %v2872, 0
    %v2893 = vsel %vm20, %v2873, 0
    %2895 = vmatpush.msra.mxu0 0.0
    %2896 = vmatpush.msra.mxu0 0.0
    %2897 = vmatpush.msra.mxu0 0.0
    %2898 = vmatpush.msra.mxu0 0.0
    %2899 = vmatpush.msra.mxu0 0.0
    %2900 = vmatpush.msra.mxu0 0.0
    %2901 = vmatpush.msra.mxu0 0.0
    %2902 = vmatpush.msra.mxu0 0.0
    %2903 = vmatpush.msra.mxu0 0.0
    %2904 = vmatpush.msra.mxu0 0.0
    %2905 = vmatpush.msra.mxu0 0.0
    %2906 = vmatpush.msra.mxu0 %v2879
    %2907 = vmatpush.msra.mxu0 %v2878
    %2908 = vmatpush.msra.mxu0 %v2877
    %2909 = vmatpush.msra.mxu0 %v2876
    %2910 = vmatpush.msra.mxu0 %v2875
    %2911 = vmatmul.f32.gmra.mxu0 %v2881
    %v2912 = vpop.f32.mrf.mxu0
    %v2913 = vadd.f32 0.0, %v2912
    %2914 = vmatmul.f32.gmra.mxu0 %v2884
    %v2915 = vpop.f32.mrf.mxu0
    %v2916 = vadd.f32 0.0, %v2915
    %2917 = vmatmul.f32.gmra.mxu0 %v2887
    %v2918 = vpop.f32.mrf.mxu0
    %v2919 = vadd.f32 0.0, %v2918
    %2920 = vmatmul.f32.gmra.mxu0 %v2890
    %v2921 = vpop.f32.mrf.mxu0
    %v2922 = vadd.f32 0.0, %v2921
    %2923 = vmatmul.f32.gmra.mxu0 %v2893
    %v2924 = vpop.f32.mrf.mxu0
    %v2925 = vadd.f32 0.0, %v2924
    %2926 = vdwg.mxu0
    %s2927 = scalar_lea.vmem [#allocation2], 1760
    %2928 = vst.msk [vmem:[%s2927] sm:$0xff] %vm20, %v2913
    %2929 = vst.msk [vmem:[%s2927 + $0x8] sm:$0xff] %vm20, %v2916
    %2930 = vst.msk [vmem:[%s2927 + $0x10] sm:$0xff] %vm20, %v2919
    %2931 = vst.msk [vmem:[%s2927 + $0x18] sm:$0xff] %vm20, %v2922
    %2932 = vst.msk [vmem:[%s2927 + $0x20] sm:$0xff] %vm20, %v2925
    %s2933 = scalar_lea.vmem %s0, 3600
    %v2934 = vld [vmem:[%s2933] sm:$0xff]
    %v2935 = vld [vmem:[%s2933 + $0x8] sm:$0xff]
    %v2936 = vld [vmem:[%s2933 + $0x10] sm:$0xff]
    %v2937 = vld [vmem:[%s2933 + $0x18] sm:$0xff]
    %v2938 = vld [vmem:[%s2933 + $0x20] sm:$0xff]
    %s2939 = scalar_lea.vmem %s0, 3640
    %v2940 = vld [vmem:[%s2939] sm:$0xff]
    %v2941 = vld [vmem:[%s2939 + $0x8] sm:$0xff]
    %v2942 = vld [vmem:[%s2939 + $0x10] sm:$0xff]
    %v2943 = vld [vmem:[%s2939 + $0x18] sm:$0xff]
    %v2944 = vld [vmem:[%s2939 + $0x20] sm:$0xff]
    %v2946 = vsel %vm20, %v2934, 0
    %v2949 = vsel %vm20, %v2935, 0
    %v2952 = vsel %vm20, %v2936, 0
    %v2955 = vsel %vm20, %v2937, 0
    %v2958 = vsel %vm20, %v2938, 0
    %2960 = vmatpush.msra.mxu0 0.0
    %2961 = vmatpush.msra.mxu0 0.0
    %2962 = vmatpush.msra.mxu0 0.0
    %2963 = vmatpush.msra.mxu0 0.0
    %2964 = vmatpush.msra.mxu0 0.0
    %2965 = vmatpush.msra.mxu0 0.0
    %2966 = vmatpush.msra.mxu0 0.0
    %2967 = vmatpush.msra.mxu0 0.0
    %2968 = vmatpush.msra.mxu0 0.0
    %2969 = vmatpush.msra.mxu0 0.0
    %2970 = vmatpush.msra.mxu0 0.0
    %2971 = vmatpush.msra.mxu0 %v2944
    %2972 = vmatpush.msra.mxu0 %v2943
    %2973 = vmatpush.msra.mxu0 %v2942
    %2974 = vmatpush.msra.mxu0 %v2941
    %2975 = vmatpush.msra.mxu0 %v2940
    %2976 = vmatmul.f32.gmra.mxu0 %v2946
    %v2977 = vpop.f32.mrf.mxu0
    %v2978 = vadd.f32 0.0, %v2977
    %2979 = vmatmul.f32.gmra.mxu0 %v2949
    %v2980 = vpop.f32.mrf.mxu0
    %v2981 = vadd.f32 0.0, %v2980
    %2982 = vmatmul.f32.gmra.mxu0 %v2952
    %v2983 = vpop.f32.mrf.mxu0
    %v2984 = vadd.f32 0.0, %v2983
    %2985 = vmatmul.f32.gmra.mxu0 %v2955
    %v2986 = vpop.f32.mrf.mxu0
    %v2987 = vadd.f32 0.0, %v2986
    %2988 = vmatmul.f32.gmra.mxu0 %v2958
    %v2989 = vpop.f32.mrf.mxu0
    %v2990 = vadd.f32 0.0, %v2989
    %2991 = vdwg.mxu0
    %s2992 = scalar_lea.vmem [#allocation2], 1800
    %2993 = vst.msk [vmem:[%s2992] sm:$0xff] %vm20, %v2978
    %2994 = vst.msk [vmem:[%s2992 + $0x8] sm:$0xff] %vm20, %v2981
    %2995 = vst.msk [vmem:[%s2992 + $0x10] sm:$0xff] %vm20, %v2984
    %2996 = vst.msk [vmem:[%s2992 + $0x18] sm:$0xff] %vm20, %v2987
    %2997 = vst.msk [vmem:[%s2992 + $0x20] sm:$0xff] %vm20, %v2990
    %s2998 = scalar_lea.vmem %s0, 3680
    %v2999 = vld [vmem:[%s2998] sm:$0xff]
    %v3000 = vld [vmem:[%s2998 + $0x8] sm:$0xff]
    %v3001 = vld [vmem:[%s2998 + $0x10] sm:$0xff]
    %v3002 = vld [vmem:[%s2998 + $0x18] sm:$0xff]
    %v3003 = vld [vmem:[%s2998 + $0x20] sm:$0xff]
    %s3004 = scalar_lea.vmem %s0, 3720
    %v3005 = vld [vmem:[%s3004] sm:$0xff]
    %v3006 = vld [vmem:[%s3004 + $0x8] sm:$0xff]
    %v3007 = vld [vmem:[%s3004 + $0x10] sm:$0xff]
    %v3008 = vld [vmem:[%s3004 + $0x18] sm:$0xff]
    %v3009 = vld [vmem:[%s3004 + $0x20] sm:$0xff]
    %v3011 = vsel %vm20, %v2999, 0
    %v3014 = vsel %vm20, %v3000, 0
    %v3017 = vsel %vm20, %v3001, 0
    %v3020 = vsel %vm20, %v3002, 0
    %v3023 = vsel %vm20, %v3003, 0
    %3025 = vmatpush.msra.mxu0 0.0
    %3026 = vmatpush.msra.mxu0 0.0
    %3027 = vmatpush.msra.mxu0 0.0
    %3028 = vmatpush.msra.mxu0 0.0
    %3029 = vmatpush.msra.mxu0 0.0
    %3030 = vmatpush.msra.mxu0 0.0
    %3031 = vmatpush.msra.mxu0 0.0
    %3032 = vmatpush.msra.mxu0 0.0
    %3033 = vmatpush.msra.mxu0 0.0
    %3034 = vmatpush.msra.mxu0 0.0
    %3035 = vmatpush.msra.mxu0 0.0
    %3036 = vmatpush.msra.mxu0 %v3009
    %3037 = vmatpush.msra.mxu0 %v3008
    %3038 = vmatpush.msra.mxu0 %v3007
    %3039 = vmatpush.msra.mxu0 %v3006
    %3040 = vmatpush.msra.mxu0 %v3005
    %3041 = vmatmul.f32.gmra.mxu0 %v3011
    %v3042 = vpop.f32.mrf.mxu0
    %v3043 = vadd.f32 0.0, %v3042
    %3044 = vmatmul.f32.gmra.mxu0 %v3014
    %v3045 = vpop.f32.mrf.mxu0
    %v3046 = vadd.f32 0.0, %v3045
    %3047 = vmatmul.f32.gmra.mxu0 %v3017
    %v3048 = vpop.f32.mrf.mxu0
    %v3049 = vadd.f32 0.0, %v3048
    %3050 = vmatmul.f32.gmra.mxu0 %v3020
    %v3051 = vpop.f32.mrf.mxu0
    %v3052 = vadd.f32 0.0, %v3051
    %3053 = vmatmul.f32.gmra.mxu0 %v3023
    %v3054 = vpop.f32.mrf.mxu0
    %v3055 = vadd.f32 0.0, %v3054
    %3056 = vdwg.mxu0
    %s3057 = scalar_lea.vmem [#allocation2], 1840
    %3058 = vst.msk [vmem:[%s3057] sm:$0xff] %vm20, %v3043
    %3059 = vst.msk [vmem:[%s3057 + $0x8] sm:$0xff] %vm20, %v3046
    %3060 = vst.msk [vmem:[%s3057 + $0x10] sm:$0xff] %vm20, %v3049
    %3061 = vst.msk [vmem:[%s3057 + $0x18] sm:$0xff] %vm20, %v3052
    %3062 = vst.msk [vmem:[%s3057 + $0x20] sm:$0xff] %vm20, %v3055
    %s3063 = scalar_lea.vmem %s0, 3760
    %v3064 = vld [vmem:[%s3063] sm:$0xff]
    %v3065 = vld [vmem:[%s3063 + $0x8] sm:$0xff]
    %v3066 = vld [vmem:[%s3063 + $0x10] sm:$0xff]
    %v3067 = vld [vmem:[%s3063 + $0x18] sm:$0xff]
    %v3068 = vld [vmem:[%s3063 + $0x20] sm:$0xff]
    %s3069 = scalar_lea.vmem %s0, 3800
    %v3070 = vld [vmem:[%s3069] sm:$0xff]
    %v3071 = vld [vmem:[%s3069 + $0x8] sm:$0xff]
    %v3072 = vld [vmem:[%s3069 + $0x10] sm:$0xff]
    %v3073 = vld [vmem:[%s3069 + $0x18] sm:$0xff]
    %v3074 = vld [vmem:[%s3069 + $0x20] sm:$0xff]
    %v3076 = vsel %vm20, %v3064, 0
    %v3079 = vsel %vm20, %v3065, 0
    %v3082 = vsel %vm20, %v3066, 0
    %v3085 = vsel %vm20, %v3067, 0
    %v3088 = vsel %vm20, %v3068, 0
    %3090 = vmatpush.msra.mxu0 0.0
    %3091 = vmatpush.msra.mxu0 0.0
    %3092 = vmatpush.msra.mxu0 0.0
    %3093 = vmatpush.msra.mxu0 0.0
    %3094 = vmatpush.msra.mxu0 0.0
    %3095 = vmatpush.msra.mxu0 0.0
    %3096 = vmatpush.msra.mxu0 0.0
    %3097 = vmatpush.msra.mxu0 0.0
    %3098 = vmatpush.msra.mxu0 0.0
    %3099 = vmatpush.msra.mxu0 0.0
    %3100 = vmatpush.msra.mxu0 0.0
    %3101 = vmatpush.msra.mxu0 %v3074
    %3102 = vmatpush.msra.mxu0 %v3073
    %3103 = vmatpush.msra.mxu0 %v3072
    %3104 = vmatpush.msra.mxu0 %v3071
    %3105 = vmatpush.msra.mxu0 %v3070
    %3106 = vmatmul.f32.gmra.mxu0 %v3076
    %v3107 = vpop.f32.mrf.mxu0
    %v3108 = vadd.f32 0.0, %v3107
    %3109 = vmatmul.f32.gmra.mxu0 %v3079
    %v3110 = vpop.f32.mrf.mxu0
    %v3111 = vadd.f32 0.0, %v3110
    %3112 = vmatmul.f32.gmra.mxu0 %v3082
    %v3113 = vpop.f32.mrf.mxu0
    %v3114 = vadd.f32 0.0, %v3113
    %3115 = vmatmul.f32.gmra.mxu0 %v3085
    %v3116 = vpop.f32.mrf.mxu0
    %v3117 = vadd.f32 0.0, %v3116
    %3118 = vmatmul.f32.gmra.mxu0 %v3088
    %v3119 = vpop.f32.mrf.mxu0
    %v3120 = vadd.f32 0.0, %v3119
    %3121 = vdwg.mxu0
    %s3122 = scalar_lea.vmem [#allocation2], 1880
    %3123 = vst.msk [vmem:[%s3122] sm:$0xff] %vm20, %v3108
    %3124 = vst.msk [vmem:[%s3122 + $0x8] sm:$0xff] %vm20, %v3111
    %3125 = vst.msk [vmem:[%s3122 + $0x10] sm:$0xff] %vm20, %v3114
    %3126 = vst.msk [vmem:[%s3122 + $0x18] sm:$0xff] %vm20, %v3117
    %3127 = vst.msk [vmem:[%s3122 + $0x20] sm:$0xff] %vm20, %v3120
    %s3128 = scalar_lea.vmem %s0, 3840
    %v3129 = vld [vmem:[%s3128] sm:$0xff]
    %v3130 = vld [vmem:[%s3128 + $0x8] sm:$0xff]
    %v3131 = vld [vmem:[%s3128 + $0x10] sm:$0xff]
    %v3132 = vld [vmem:[%s3128 + $0x18] sm:$0xff]
    %v3133 = vld [vmem:[%s3128 + $0x20] sm:$0xff]
    %s3134 = scalar_lea.vmem %s0, 3880
    %v3135 = vld [vmem:[%s3134] sm:$0xff]
    %v3136 = vld [vmem:[%s3134 + $0x8] sm:$0xff]
    %v3137 = vld [vmem:[%s3134 + $0x10] sm:$0xff]
    %v3138 = vld [vmem:[%s3134 + $0x18] sm:$0xff]
    %v3139 = vld [vmem:[%s3134 + $0x20] sm:$0xff]
    %v3141 = vsel %vm20, %v3129, 0
    %v3144 = vsel %vm20, %v3130, 0
    %v3147 = vsel %vm20, %v3131, 0
    %v3150 = vsel %vm20, %v3132, 0
    %v3153 = vsel %vm20, %v3133, 0
    %3155 = vmatpush.msra.mxu0 0.0
    %3156 = vmatpush.msra.mxu0 0.0
    %3157 = vmatpush.msra.mxu0 0.0
    %3158 = vmatpush.msra.mxu0 0.0
    %3159 = vmatpush.msra.mxu0 0.0
    %3160 = vmatpush.msra.mxu0 0.0
    %3161 = vmatpush.msra.mxu0 0.0
    %3162 = vmatpush.msra.mxu0 0.0
    %3163 = vmatpush.msra.mxu0 0.0
    %3164 = vmatpush.msra.mxu0 0.0
    %3165 = vmatpush.msra.mxu0 0.0
    %3166 = vmatpush.msra.mxu0 %v3139
    %3167 = vmatpush.msra.mxu0 %v3138
    %3168 = vmatpush.msra.mxu0 %v3137
    %3169 = vmatpush.msra.mxu0 %v3136
    %3170 = vmatpush.msra.mxu0 %v3135
    %3171 = vmatmul.f32.gmra.mxu0 %v3141
    %v3172 = vpop.f32.mrf.mxu0
    %v3173 = vadd.f32 0.0, %v3172
    %3174 = vmatmul.f32.gmra.mxu0 %v3144
    %v3175 = vpop.f32.mrf.mxu0
    %v3176 = vadd.f32 0.0, %v3175
    %3177 = vmatmul.f32.gmra.mxu0 %v3147
    %v3178 = vpop.f32.mrf.mxu0
    %v3179 = vadd.f32 0.0, %v3178
    %3180 = vmatmul.f32.gmra.mxu0 %v3150
    %v3181 = vpop.f32.mrf.mxu0
    %v3182 = vadd.f32 0.0, %v3181
    %3183 = vmatmul.f32.gmra.mxu0 %v3153
    %v3184 = vpop.f32.mrf.mxu0
    %v3185 = vadd.f32 0.0, %v3184
    %3186 = vdwg.mxu0
    %s3187 = scalar_lea.vmem [#allocation2], 1920
    %3188 = vst.msk [vmem:[%s3187] sm:$0xff] %vm20, %v3173
    %3189 = vst.msk [vmem:[%s3187 + $0x8] sm:$0xff] %vm20, %v3176
    %3190 = vst.msk [vmem:[%s3187 + $0x10] sm:$0xff] %vm20, %v3179
    %3191 = vst.msk [vmem:[%s3187 + $0x18] sm:$0xff] %vm20, %v3182
    %3192 = vst.msk [vmem:[%s3187 + $0x20] sm:$0xff] %vm20, %v3185
    %s3193 = scalar_lea.vmem %s0, 3920
    %v3194 = vld [vmem:[%s3193] sm:$0xff]
    %v3195 = vld [vmem:[%s3193 + $0x8] sm:$0xff]
    %v3196 = vld [vmem:[%s3193 + $0x10] sm:$0xff]
    %v3197 = vld [vmem:[%s3193 + $0x18] sm:$0xff]
    %v3198 = vld [vmem:[%s3193 + $0x20] sm:$0xff]
    %s3199 = scalar_lea.vmem %s0, 3960
    %v3200 = vld [vmem:[%s3199] sm:$0xff]
    %v3201 = vld [vmem:[%s3199 + $0x8] sm:$0xff]
    %v3202 = vld [vmem:[%s3199 + $0x10] sm:$0xff]
    %v3203 = vld [vmem:[%s3199 + $0x18] sm:$0xff]
    %v3204 = vld [vmem:[%s3199 + $0x20] sm:$0xff]
    %v3206 = vsel %vm20, %v3194, 0
    %v3209 = vsel %vm20, %v3195, 0
    %v3212 = vsel %vm20, %v3196, 0
    %v3215 = vsel %vm20, %v3197, 0
    %v3218 = vsel %vm20, %v3198, 0
    %3220 = vmatpush.msra.mxu0 0.0
    %3221 = vmatpush.msra.mxu0 0.0
    %3222 = vmatpush.msra.mxu0 0.0
    %3223 = vmatpush.msra.mxu0 0.0
    %3224 = vmatpush.msra.mxu0 0.0
    %3225 = vmatpush.msra.mxu0 0.0
    %3226 = vmatpush.msra.mxu0 0.0
    %3227 = vmatpush.msra.mxu0 0.0
    %3228 = vmatpush.msra.mxu0 0.0
    %3229 = vmatpush.msra.mxu0 0.0
    %3230 = vmatpush.msra.mxu0 0.0
    %3231 = vmatpush.msra.mxu0 %v3204
    %3232 = vmatpush.msra.mxu0 %v3203
    %3233 = vmatpush.msra.mxu0 %v3202
    %3234 = vmatpush.msra.mxu0 %v3201
    %3235 = vmatpush.msra.mxu0 %v3200
    %3236 = vmatmul.f32.gmra.mxu0 %v3206
    %v3237 = vpop.f32.mrf.mxu0
    %v3238 = vadd.f32 0.0, %v3237
    %3239 = vmatmul.f32.gmra.mxu0 %v3209
    %v3240 = vpop.f32.mrf.mxu0
    %v3241 = vadd.f32 0.0, %v3240
    %3242 = vmatmul.f32.gmra.mxu0 %v3212
    %v3243 = vpop.f32.mrf.mxu0
    %v3244 = vadd.f32 0.0, %v3243
    %3245 = vmatmul.f32.gmra.mxu0 %v3215
    %v3246 = vpop.f32.mrf.mxu0
    %v3247 = vadd.f32 0.0, %v3246
    %3248 = vmatmul.f32.gmra.mxu0 %v3218
    %v3249 = vpop.f32.mrf.mxu0
    %v3250 = vadd.f32 0.0, %v3249
    %3251 = vdwg.mxu0
    %s3252 = scalar_lea.vmem [#allocation2], 1960
    %3253 = vst.msk [vmem:[%s3252] sm:$0xff] %vm20, %v3238
    %3254 = vst.msk [vmem:[%s3252 + $0x8] sm:$0xff] %vm20, %v3241
    %3255 = vst.msk [vmem:[%s3252 + $0x10] sm:$0xff] %vm20, %v3244
    %3256 = vst.msk [vmem:[%s3252 + $0x18] sm:$0xff] %vm20, %v3247
    %3257 = vst.msk [vmem:[%s3252 + $0x20] sm:$0xff] %vm20, %v3250
    %s3258 = scalar_lea.vmem %s0, 4000
    %v3259 = vld [vmem:[%s3258] sm:$0xff]
    %v3260 = vld [vmem:[%s3258 + $0x8] sm:$0xff]
    %v3261 = vld [vmem:[%s3258 + $0x10] sm:$0xff]
    %v3262 = vld [vmem:[%s3258 + $0x18] sm:$0xff]
    %v3263 = vld [vmem:[%s3258 + $0x20] sm:$0xff]
    %s3264 = scalar_lea.vmem %s0, 4040
    %v3265 = vld [vmem:[%s3264] sm:$0xff]
    %v3266 = vld [vmem:[%s3264 + $0x8] sm:$0xff]
    %v3267 = vld [vmem:[%s3264 + $0x10] sm:$0xff]
    %v3268 = vld [vmem:[%s3264 + $0x18] sm:$0xff]
    %v3269 = vld [vmem:[%s3264 + $0x20] sm:$0xff]
    %v3271 = vsel %vm20, %v3259, 0
    %v3274 = vsel %vm20, %v3260, 0
    %v3277 = vsel %vm20, %v3261, 0
    %v3280 = vsel %vm20, %v3262, 0
    %v3283 = vsel %vm20, %v3263, 0
    %3285 = vmatpush.msra.mxu0 0.0
    %3286 = vmatpush.msra.mxu0 0.0
    %3287 = vmatpush.msra.mxu0 0.0
    %3288 = vmatpush.msra.mxu0 0.0
    %3289 = vmatpush.msra.mxu0 0.0
    %3290 = vmatpush.msra.mxu0 0.0
    %3291 = vmatpush.msra.mxu0 0.0
    %3292 = vmatpush.msra.mxu0 0.0
    %3293 = vmatpush.msra.mxu0 0.0
    %3294 = vmatpush.msra.mxu0 0.0
    %3295 = vmatpush.msra.mxu0 0.0
    %3296 = vmatpush.msra.mxu0 %v3269
    %3297 = vmatpush.msra.mxu0 %v3268
    %3298 = vmatpush.msra.mxu0 %v3267
    %3299 = vmatpush.msra.mxu0 %v3266
    %3300 = vmatpush.msra.mxu0 %v3265
    %3301 = vmatmul.f32.gmra.mxu0 %v3271
    %v3302 = vpop.f32.mrf.mxu0
    %v3303 = vadd.f32 0.0, %v3302
    %3304 = vmatmul.f32.gmra.mxu0 %v3274
    %v3305 = vpop.f32.mrf.mxu0
    %v3306 = vadd.f32 0.0, %v3305
    %3307 = vmatmul.f32.gmra.mxu0 %v3277
    %v3308 = vpop.f32.mrf.mxu0
    %v3309 = vadd.f32 0.0, %v3308
    %3310 = vmatmul.f32.gmra.mxu0 %v3280
    %v3311 = vpop.f32.mrf.mxu0
    %v3312 = vadd.f32 0.0, %v3311
    %3313 = vmatmul.f32.gmra.mxu0 %v3283
    %v3314 = vpop.f32.mrf.mxu0
    %v3315 = vadd.f32 0.0, %v3314
    %3316 = vdwg.mxu0
    %s3317 = scalar_lea.vmem [#allocation2], 2000
    %3318 = vst.msk [vmem:[%s3317] sm:$0xff] %vm20, %v3303
    %3319 = vst.msk [vmem:[%s3317 + $0x8] sm:$0xff] %vm20, %v3306
    %3320 = vst.msk [vmem:[%s3317 + $0x10] sm:$0xff] %vm20, %v3309
    %3321 = vst.msk [vmem:[%s3317 + $0x18] sm:$0xff] %vm20, %v3312
    %3322 = vst.msk [vmem:[%s3317 + $0x20] sm:$0xff] %vm20, %v3315
    %s3323 = scalar_lea.vmem %s0, 4080
    %v3324 = vld [vmem:[%s3323] sm:$0xff]
    %v3325 = vld [vmem:[%s3323 + $0x8] sm:$0xff]
    %v3326 = vld [vmem:[%s3323 + $0x10] sm:$0xff]
    %v3327 = vld [vmem:[%s3323 + $0x18] sm:$0xff]
    %v3328 = vld [vmem:[%s3323 + $0x20] sm:$0xff]
    %s3329 = scalar_lea.vmem %s0, 4120
    %v3330 = vld [vmem:[%s3329] sm:$0xff]
    %v3331 = vld [vmem:[%s3329 + $0x8] sm:$0xff]
    %v3332 = vld [vmem:[%s3329 + $0x10] sm:$0xff]
    %v3333 = vld [vmem:[%s3329 + $0x18] sm:$0xff]
    %v3334 = vld [vmem:[%s3329 + $0x20] sm:$0xff]
    %v3336 = vsel %vm20, %v3324, 0
    %v3339 = vsel %vm20, %v3325, 0
    %v3342 = vsel %vm20, %v3326, 0
    %v3345 = vsel %vm20, %v3327, 0
    %v3348 = vsel %vm20, %v3328, 0
    %3350 = vmatpush.msra.mxu0 0.0
    %3351 = vmatpush.msra.mxu0 0.0
    %3352 = vmatpush.msra.mxu0 0.0
    %3353 = vmatpush.msra.mxu0 0.0
    %3354 = vmatpush.msra.mxu0 0.0
    %3355 = vmatpush.msra.mxu0 0.0
    %3356 = vmatpush.msra.mxu0 0.0
    %3357 = vmatpush.msra.mxu0 0.0
    %3358 = vmatpush.msra.mxu0 0.0
    %3359 = vmatpush.msra.mxu0 0.0
    %3360 = vmatpush.msra.mxu0 0.0
    %3361 = vmatpush.msra.mxu0 %v3334
    %3362 = vmatpush.msra.mxu0 %v3333
    %3363 = vmatpush.msra.mxu0 %v3332
    %3364 = vmatpush.msra.mxu0 %v3331
    %3365 = vmatpush.msra.mxu0 %v3330
    %3366 = vmatmul.f32.gmra.mxu0 %v3336
    %v3367 = vpop.f32.mrf.mxu0
    %v3368 = vadd.f32 0.0, %v3367
    %3369 = vmatmul.f32.gmra.mxu0 %v3339
    %v3370 = vpop.f32.mrf.mxu0
    %v3371 = vadd.f32 0.0, %v3370
    %3372 = vmatmul.f32.gmra.mxu0 %v3342
    %v3373 = vpop.f32.mrf.mxu0
    %v3374 = vadd.f32 0.0, %v3373
    %3375 = vmatmul.f32.gmra.mxu0 %v3345
    %v3376 = vpop.f32.mrf.mxu0
    %v3377 = vadd.f32 0.0, %v3376
    %3378 = vmatmul.f32.gmra.mxu0 %v3348
    %v3379 = vpop.f32.mrf.mxu0
    %v3380 = vadd.f32 0.0, %v3379
    %3381 = vdwg.mxu0
    %s3382 = scalar_lea.vmem [#allocation2], 2040
    %3383 = vst.msk [vmem:[%s3382] sm:$0xff] %vm20, %v3368
    %3384 = vst.msk [vmem:[%s3382 + $0x8] sm:$0xff] %vm20, %v3371
    %3385 = vst.msk [vmem:[%s3382 + $0x10] sm:$0xff] %vm20, %v3374
    %3386 = vst.msk [vmem:[%s3382 + $0x18] sm:$0xff] %vm20, %v3377
    %3387 = vst.msk [vmem:[%s3382 + $0x20] sm:$0xff] %vm20, %v3380
    %s3388 = scalar_lea.vmem %s0, 4160
    %v3389 = vld [vmem:[%s3388] sm:$0xff]
    %v3390 = vld [vmem:[%s3388 + $0x8] sm:$0xff]
    %v3391 = vld [vmem:[%s3388 + $0x10] sm:$0xff]
    %v3392 = vld [vmem:[%s3388 + $0x18] sm:$0xff]
    %v3393 = vld [vmem:[%s3388 + $0x20] sm:$0xff]
    %s3394 = scalar_lea.vmem %s0, 4200
    %v3395 = vld [vmem:[%s3394] sm:$0xff]
    %v3396 = vld [vmem:[%s3394 + $0x8] sm:$0xff]
    %v3397 = vld [vmem:[%s3394 + $0x10] sm:$0xff]
    %v3398 = vld [vmem:[%s3394 + $0x18] sm:$0xff]
    %v3399 = vld [vmem:[%s3394 + $0x20] sm:$0xff]
    %v3401 = vsel %vm20, %v3389, 0
    %v3404 = vsel %vm20, %v3390, 0
    %v3407 = vsel %vm20, %v3391, 0
    %v3410 = vsel %vm20, %v3392, 0
    %v3413 = vsel %vm20, %v3393, 0
    %3415 = vmatpush.msra.mxu0 0.0
    %3416 = vmatpush.msra.mxu0 0.0
    %3417 = vmatpush.msra.mxu0 0.0
    %3418 = vmatpush.msra.mxu0 0.0
    %3419 = vmatpush.msra.mxu0 0.0
    %3420 = vmatpush.msra.mxu0 0.0
    %3421 = vmatpush.msra.mxu0 0.0
    %3422 = vmatpush.msra.mxu0 0.0
    %3423 = vmatpush.msra.mxu0 0.0
    %3424 = vmatpush.msra.mxu0 0.0
    %3425 = vmatpush.msra.mxu0 0.0
    %3426 = vmatpush.msra.mxu0 %v3399
    %3427 = vmatpush.msra.mxu0 %v3398
    %3428 = vmatpush.msra.mxu0 %v3397
    %3429 = vmatpush.msra.mxu0 %v3396
    %3430 = vmatpush.msra.mxu0 %v3395
    %3431 = vmatmul.f32.gmra.mxu0 %v3401
    %v3432 = vpop.f32.mrf.mxu0
    %v3433 = vadd.f32 0.0, %v3432
    %3434 = vmatmul.f32.gmra.mxu0 %v3404
    %v3435 = vpop.f32.mrf.mxu0
    %v3436 = vadd.f32 0.0, %v3435
    %3437 = vmatmul.f32.gmra.mxu0 %v3407
    %v3438 = vpop.f32.mrf.mxu0
    %v3439 = vadd.f32 0.0, %v3438
    %3440 = vmatmul.f32.gmra.mxu0 %v3410
    %v3441 = vpop.f32.mrf.mxu0
    %v3442 = vadd.f32 0.0, %v3441
    %3443 = vmatmul.f32.gmra.mxu0 %v3413
    %v3444 = vpop.f32.mrf.mxu0
    %v3445 = vadd.f32 0.0, %v3444
    %3446 = vdwg.mxu0
    %s3447 = scalar_lea.vmem [#allocation2], 2080
    %3448 = vst.msk [vmem:[%s3447] sm:$0xff] %vm20, %v3433
    %3449 = vst.msk [vmem:[%s3447 + $0x8] sm:$0xff] %vm20, %v3436
    %3450 = vst.msk [vmem:[%s3447 + $0x10] sm:$0xff] %vm20, %v3439
    %3451 = vst.msk [vmem:[%s3447 + $0x18] sm:$0xff] %vm20, %v3442
    %3452 = vst.msk [vmem:[%s3447 + $0x20] sm:$0xff] %vm20, %v3445
    %s3453 = scalar_lea.vmem %s0, 4240
    %v3454 = vld [vmem:[%s3453] sm:$0xff]
    %v3455 = vld [vmem:[%s3453 + $0x8] sm:$0xff]
    %v3456 = vld [vmem:[%s3453 + $0x10] sm:$0xff]
    %v3457 = vld [vmem:[%s3453 + $0x18] sm:$0xff]
    %v3458 = vld [vmem:[%s3453 + $0x20] sm:$0xff]
    %s3459 = scalar_lea.vmem %s0, 4280
    %v3460 = vld [vmem:[%s3459] sm:$0xff]
    %v3461 = vld [vmem:[%s3459 + $0x8] sm:$0xff]
    %v3462 = vld [vmem:[%s3459 + $0x10] sm:$0xff]
    %v3463 = vld [vmem:[%s3459 + $0x18] sm:$0xff]
    %v3464 = vld [vmem:[%s3459 + $0x20] sm:$0xff]
    %v3466 = vsel %vm20, %v3454, 0
    %v3469 = vsel %vm20, %v3455, 0
    %v3472 = vsel %vm20, %v3456, 0
    %v3475 = vsel %vm20, %v3457, 0
    %v3478 = vsel %vm20, %v3458, 0
    %3480 = vmatpush.msra.mxu0 0.0
    %3481 = vmatpush.msra.mxu0 0.0
    %3482 = vmatpush.msra.mxu0 0.0
    %3483 = vmatpush.msra.mxu0 0.0
    %3484 = vmatpush.msra.mxu0 0.0
    %3485 = vmatpush.msra.mxu0 0.0
    %3486 = vmatpush.msra.mxu0 0.0
    %3487 = vmatpush.msra.mxu0 0.0
    %3488 = vmatpush.msra.mxu0 0.0
    %3489 = vmatpush.msra.mxu0 0.0
    %3490 = vmatpush.msra.mxu0 0.0
    %3491 = vmatpush.msra.mxu0 %v3464
    %3492 = vmatpush.msra.mxu0 %v3463
    %3493 = vmatpush.msra.mxu0 %v3462
    %3494 = vmatpush.msra.mxu0 %v3461
    %3495 = vmatpush.msra.mxu0 %v3460
    %3496 = vmatmul.f32.gmra.mxu0 %v3466
    %v3497 = vpop.f32.mrf.mxu0
    %v3498 = vadd.f32 0.0, %v3497
    %3499 = vmatmul.f32.gmra.mxu0 %v3469
    %v3500 = vpop.f32.mrf.mxu0
    %v3501 = vadd.f32 0.0, %v3500
    %3502 = vmatmul.f32.gmra.mxu0 %v3472
    %v3503 = vpop.f32.mrf.mxu0
    %v3504 = vadd.f32 0.0, %v3503
    %3505 = vmatmul.f32.gmra.mxu0 %v3475
    %v3506 = vpop.f32.mrf.mxu0
    %v3507 = vadd.f32 0.0, %v3506
    %3508 = vmatmul.f32.gmra.mxu0 %v3478
    %v3509 = vpop.f32.mrf.mxu0
    %v3510 = vadd.f32 0.0, %v3509
    %3511 = vdwg.mxu0
    %s3512 = scalar_lea.vmem [#allocation2], 2120
    %3513 = vst.msk [vmem:[%s3512] sm:$0xff] %vm20, %v3498
    %3514 = vst.msk [vmem:[%s3512 + $0x8] sm:$0xff] %vm20, %v3501
    %3515 = vst.msk [vmem:[%s3512 + $0x10] sm:$0xff] %vm20, %v3504
    %3516 = vst.msk [vmem:[%s3512 + $0x18] sm:$0xff] %vm20, %v3507
    %3517 = vst.msk [vmem:[%s3512 + $0x20] sm:$0xff] %vm20, %v3510
    %s3518 = scalar_lea.vmem %s0, 4320
    %v3519 = vld [vmem:[%s3518] sm:$0xff]
    %v3520 = vld [vmem:[%s3518 + $0x8] sm:$0xff]
    %v3521 = vld [vmem:[%s3518 + $0x10] sm:$0xff]
    %v3522 = vld [vmem:[%s3518 + $0x18] sm:$0xff]
    %v3523 = vld [vmem:[%s3518 + $0x20] sm:$0xff]
    %s3524 = scalar_lea.vmem %s0, 4360
    %v3525 = vld [vmem:[%s3524] sm:$0xff]
    %v3526 = vld [vmem:[%s3524 + $0x8] sm:$0xff]
    %v3527 = vld [vmem:[%s3524 + $0x10] sm:$0xff]
    %v3528 = vld [vmem:[%s3524 + $0x18] sm:$0xff]
    %v3529 = vld [vmem:[%s3524 + $0x20] sm:$0xff]
    %v3531 = vsel %vm20, %v3519, 0
    %v3534 = vsel %vm20, %v3520, 0
    %v3537 = vsel %vm20, %v3521, 0
    %v3540 = vsel %vm20, %v3522, 0
    %v3543 = vsel %vm20, %v3523, 0
    %3545 = vmatpush.msra.mxu0 0.0
    %3546 = vmatpush.msra.mxu0 0.0
    %3547 = vmatpush.msra.mxu0 0.0
    %3548 = vmatpush.msra.mxu0 0.0
    %3549 = vmatpush.msra.mxu0 0.0
    %3550 = vmatpush.msra.mxu0 0.0
    %3551 = vmatpush.msra.mxu0 0.0
    %3552 = vmatpush.msra.mxu0 0.0
    %3553 = vmatpush.msra.mxu0 0.0
    %3554 = vmatpush.msra.mxu0 0.0
    %3555 = vmatpush.msra.mxu0 0.0
    %3556 = vmatpush.msra.mxu0 %v3529
    %3557 = vmatpush.msra.mxu0 %v3528
    %3558 = vmatpush.msra.mxu0 %v3527
    %3559 = vmatpush.msra.mxu0 %v3526
    %3560 = vmatpush.msra.mxu0 %v3525
    %3561 = vmatmul.f32.gmra.mxu0 %v3531
    %v3562 = vpop.f32.mrf.mxu0
    %v3563 = vadd.f32 0.0, %v3562
    %3564 = vmatmul.f32.gmra.mxu0 %v3534
    %v3565 = vpop.f32.mrf.mxu0
    %v3566 = vadd.f32 0.0, %v3565
    %3567 = vmatmul.f32.gmra.mxu0 %v3537
    %v3568 = vpop.f32.mrf.mxu0
    %v3569 = vadd.f32 0.0, %v3568
    %3570 = vmatmul.f32.gmra.mxu0 %v3540
    %v3571 = vpop.f32.mrf.mxu0
    %v3572 = vadd.f32 0.0, %v3571
    %3573 = vmatmul.f32.gmra.mxu0 %v3543
    %v3574 = vpop.f32.mrf.mxu0
    %v3575 = vadd.f32 0.0, %v3574
    %3576 = vdwg.mxu0
    %s3577 = scalar_lea.vmem [#allocation2], 2160
    %3578 = vst.msk [vmem:[%s3577] sm:$0xff] %vm20, %v3563
    %3579 = vst.msk [vmem:[%s3577 + $0x8] sm:$0xff] %vm20, %v3566
    %3580 = vst.msk [vmem:[%s3577 + $0x10] sm:$0xff] %vm20, %v3569
    %3581 = vst.msk [vmem:[%s3577 + $0x18] sm:$0xff] %vm20, %v3572
    %3582 = vst.msk [vmem:[%s3577 + $0x20] sm:$0xff] %vm20, %v3575
    %s3583 = scalar_lea.vmem %s0, 4400
    %v3584 = vld [vmem:[%s3583] sm:$0xff]
    %v3585 = vld [vmem:[%s3583 + $0x8] sm:$0xff]
    %v3586 = vld [vmem:[%s3583 + $0x10] sm:$0xff]
    %v3587 = vld [vmem:[%s3583 + $0x18] sm:$0xff]
    %v3588 = vld [vmem:[%s3583 + $0x20] sm:$0xff]
    %s3589 = scalar_lea.vmem %s0, 4440
    %v3590 = vld [vmem:[%s3589] sm:$0xff]
    %v3591 = vld [vmem:[%s3589 + $0x8] sm:$0xff]
    %v3592 = vld [vmem:[%s3589 + $0x10] sm:$0xff]
    %v3593 = vld [vmem:[%s3589 + $0x18] sm:$0xff]
    %v3594 = vld [vmem:[%s3589 + $0x20] sm:$0xff]
    %v3596 = vsel %vm20, %v3584, 0
    %v3599 = vsel %vm20, %v3585, 0
    %v3602 = vsel %vm20, %v3586, 0
    %v3605 = vsel %vm20, %v3587, 0
    %v3608 = vsel %vm20, %v3588, 0
    %3610 = vmatpush.msra.mxu0 0.0
    %3611 = vmatpush.msra.mxu0 0.0
    %3612 = vmatpush.msra.mxu0 0.0
    %3613 = vmatpush.msra.mxu0 0.0
    %3614 = vmatpush.msra.mxu0 0.0
    %3615 = vmatpush.msra.mxu0 0.0
    %3616 = vmatpush.msra.mxu0 0.0
    %3617 = vmatpush.msra.mxu0 0.0
    %3618 = vmatpush.msra.mxu0 0.0
    %3619 = vmatpush.msra.mxu0 0.0
    %3620 = vmatpush.msra.mxu0 0.0
    %3621 = vmatpush.msra.mxu0 %v3594
    %3622 = vmatpush.msra.mxu0 %v3593
    %3623 = vmatpush.msra.mxu0 %v3592
    %3624 = vmatpush.msra.mxu0 %v3591
    %3625 = vmatpush.msra.mxu0 %v3590
    %3626 = vmatmul.f32.gmra.mxu0 %v3596
    %v3627 = vpop.f32.mrf.mxu0
    %v3628 = vadd.f32 0.0, %v3627
    %3629 = vmatmul.f32.gmra.mxu0 %v3599
    %v3630 = vpop.f32.mrf.mxu0
    %v3631 = vadd.f32 0.0, %v3630
    %3632 = vmatmul.f32.gmra.mxu0 %v3602
    %v3633 = vpop.f32.mrf.mxu0
    %v3634 = vadd.f32 0.0, %v3633
    %3635 = vmatmul.f32.gmra.mxu0 %v3605
    %v3636 = vpop.f32.mrf.mxu0
    %v3637 = vadd.f32 0.0, %v3636
    %3638 = vmatmul.f32.gmra.mxu0 %v3608
    %v3639 = vpop.f32.mrf.mxu0
    %v3640 = vadd.f32 0.0, %v3639
    %3641 = vdwg.mxu0
    %s3642 = scalar_lea.vmem [#allocation2], 2200
    %3643 = vst.msk [vmem:[%s3642] sm:$0xff] %vm20, %v3628
    %3644 = vst.msk [vmem:[%s3642 + $0x8] sm:$0xff] %vm20, %v3631
    %3645 = vst.msk [vmem:[%s3642 + $0x10] sm:$0xff] %vm20, %v3634
    %3646 = vst.msk [vmem:[%s3642 + $0x18] sm:$0xff] %vm20, %v3637
    %3647 = vst.msk [vmem:[%s3642 + $0x20] sm:$0xff] %vm20, %v3640
    %s3648 = scalar_lea.vmem %s0, 4480
    %v3649 = vld [vmem:[%s3648] sm:$0xff]
    %v3650 = vld [vmem:[%s3648 + $0x8] sm:$0xff]
    %v3651 = vld [vmem:[%s3648 + $0x10] sm:$0xff]
    %v3652 = vld [vmem:[%s3648 + $0x18] sm:$0xff]
    %v3653 = vld [vmem:[%s3648 + $0x20] sm:$0xff]
    %s3654 = scalar_lea.vmem %s0, 4520
    %v3655 = vld [vmem:[%s3654] sm:$0xff]
    %v3656 = vld [vmem:[%s3654 + $0x8] sm:$0xff]
    %v3657 = vld [vmem:[%s3654 + $0x10] sm:$0xff]
    %v3658 = vld [vmem:[%s3654 + $0x18] sm:$0xff]
    %v3659 = vld [vmem:[%s3654 + $0x20] sm:$0xff]
    %v3661 = vsel %vm20, %v3649, 0
    %v3664 = vsel %vm20, %v3650, 0
    %v3667 = vsel %vm20, %v3651, 0
    %v3670 = vsel %vm20, %v3652, 0
    %v3673 = vsel %vm20, %v3653, 0
    %3675 = vmatpush.msra.mxu0 0.0
    %3676 = vmatpush.msra.mxu0 0.0
    %3677 = vmatpush.msra.mxu0 0.0
    %3678 = vmatpush.msra.mxu0 0.0
    %3679 = vmatpush.msra.mxu0 0.0
    %3680 = vmatpush.msra.mxu0 0.0
    %3681 = vmatpush.msra.mxu0 0.0
    %3682 = vmatpush.msra.mxu0 0.0
    %3683 = vmatpush.msra.mxu0 0.0
    %3684 = vmatpush.msra.mxu0 0.0
    %3685 = vmatpush.msra.mxu0 0.0
    %3686 = vmatpush.msra.mxu0 %v3659
    %3687 = vmatpush.msra.mxu0 %v3658
    %3688 = vmatpush.msra.mxu0 %v3657
    %3689 = vmatpush.msra.mxu0 %v3656
    %3690 = vmatpush.msra.mxu0 %v3655
    %3691 = vmatmul.f32.gmra.mxu0 %v3661
    %v3692 = vpop.f32.mrf.mxu0
    %v3693 = vadd.f32 0.0, %v3692
    %3694 = vmatmul.f32.gmra.mxu0 %v3664
    %v3695 = vpop.f32.mrf.mxu0
    %v3696 = vadd.f32 0.0, %v3695
    %3697 = vmatmul.f32.gmra.mxu0 %v3667
    %v3698 = vpop.f32.mrf.mxu0
    %v3699 = vadd.f32 0.0, %v3698
    %3700 = vmatmul.f32.gmra.mxu0 %v3670
    %v3701 = vpop.f32.mrf.mxu0
    %v3702 = vadd.f32 0.0, %v3701
    %3703 = vmatmul.f32.gmra.mxu0 %v3673
    %v3704 = vpop.f32.mrf.mxu0
    %v3705 = vadd.f32 0.0, %v3704
    %3706 = vdwg.mxu0
    %s3707 = scalar_lea.vmem [#allocation2], 2240
    %3708 = vst.msk [vmem:[%s3707] sm:$0xff] %vm20, %v3693
    %3709 = vst.msk [vmem:[%s3707 + $0x8] sm:$0xff] %vm20, %v3696
    %3710 = vst.msk [vmem:[%s3707 + $0x10] sm:$0xff] %vm20, %v3699
    %3711 = vst.msk [vmem:[%s3707 + $0x18] sm:$0xff] %vm20, %v3702
    %3712 = vst.msk [vmem:[%s3707 + $0x20] sm:$0xff] %vm20, %v3705
    %s3713 = scalar_lea.vmem %s0, 4560
    %v3714 = vld [vmem:[%s3713] sm:$0xff]
    %v3715 = vld [vmem:[%s3713 + $0x8] sm:$0xff]
    %v3716 = vld [vmem:[%s3713 + $0x10] sm:$0xff]
    %v3717 = vld [vmem:[%s3713 + $0x18] sm:$0xff]
    %v3718 = vld [vmem:[%s3713 + $0x20] sm:$0xff]
    %s3719 = scalar_lea.vmem %s0, 4600
    %v3720 = vld [vmem:[%s3719] sm:$0xff]
    %v3721 = vld [vmem:[%s3719 + $0x8] sm:$0xff]
    %v3722 = vld [vmem:[%s3719 + $0x10] sm:$0xff]
    %v3723 = vld [vmem:[%s3719 + $0x18] sm:$0xff]
    %v3724 = vld [vmem:[%s3719 + $0x20] sm:$0xff]
    %v3726 = vsel %vm20, %v3714, 0
    %v3729 = vsel %vm20, %v3715, 0
    %v3732 = vsel %vm20, %v3716, 0
    %v3735 = vsel %vm20, %v3717, 0
    %v3738 = vsel %vm20, %v3718, 0
    %3740 = vmatpush.msra.mxu0 0.0
    %3741 = vmatpush.msra.mxu0 0.0
    %3742 = vmatpush.msra.mxu0 0.0
    %3743 = vmatpush.msra.mxu0 0.0
    %3744 = vmatpush.msra.mxu0 0.0
    %3745 = vmatpush.msra.mxu0 0.0
    %3746 = vmatpush.msra.mxu0 0.0
    %3747 = vmatpush.msra.mxu0 0.0
    %3748 = vmatpush.msra.mxu0 0.0
    %3749 = vmatpush.msra.mxu0 0.0
    %3750 = vmatpush.msra.mxu0 0.0
    %3751 = vmatpush.msra.mxu0 %v3724
    %3752 = vmatpush.msra.mxu0 %v3723
    %3753 = vmatpush.msra.mxu0 %v3722
    %3754 = vmatpush.msra.mxu0 %v3721
    %3755 = vmatpush.msra.mxu0 %v3720
    %3756 = vmatmul.f32.gmra.mxu0 %v3726
    %v3757 = vpop.f32.mrf.mxu0
    %v3758 = vadd.f32 0.0, %v3757
    %3759 = vmatmul.f32.gmra.mxu0 %v3729
    %v3760 = vpop.f32.mrf.mxu0
    %v3761 = vadd.f32 0.0, %v3760
    %3762 = vmatmul.f32.gmra.mxu0 %v3732
    %v3763 = vpop.f32.mrf.mxu0
    %v3764 = vadd.f32 0.0, %v3763
    %3765 = vmatmul.f32.gmra.mxu0 %v3735
    %v3766 = vpop.f32.mrf.mxu0
    %v3767 = vadd.f32 0.0, %v3766
    %3768 = vmatmul.f32.gmra.mxu0 %v3738
    %v3769 = vpop.f32.mrf.mxu0
    %v3770 = vadd.f32 0.0, %v3769
    %3771 = vdwg.mxu0
    %s3772 = scalar_lea.vmem [#allocation2], 2280
    %3773 = vst.msk [vmem:[%s3772] sm:$0xff] %vm20, %v3758
    %3774 = vst.msk [vmem:[%s3772 + $0x8] sm:$0xff] %vm20, %v3761
    %3775 = vst.msk [vmem:[%s3772 + $0x10] sm:$0xff] %vm20, %v3764
    %3776 = vst.msk [vmem:[%s3772 + $0x18] sm:$0xff] %vm20, %v3767
    %3777 = vst.msk [vmem:[%s3772 + $0x20] sm:$0xff] %vm20, %v3770
    %s3778 = scalar_lea.vmem %s0, 4640
    %v3779 = vld [vmem:[%s3778] sm:$0xff]
    %v3780 = vld [vmem:[%s3778 + $0x8] sm:$0xff]
    %v3781 = vld [vmem:[%s3778 + $0x10] sm:$0xff]
    %v3782 = vld [vmem:[%s3778 + $0x18] sm:$0xff]
    %v3783 = vld [vmem:[%s3778 + $0x20] sm:$0xff]
    %s3784 = scalar_lea.vmem %s0, 4680
    %v3785 = vld [vmem:[%s3784] sm:$0xff]
    %v3786 = vld [vmem:[%s3784 + $0x8] sm:$0xff]
    %v3787 = vld [vmem:[%s3784 + $0x10] sm:$0xff]
    %v3788 = vld [vmem:[%s3784 + $0x18] sm:$0xff]
    %v3789 = vld [vmem:[%s3784 + $0x20] sm:$0xff]
    %v3791 = vsel %vm20, %v3779, 0
    %v3794 = vsel %vm20, %v3780, 0
    %v3797 = vsel %vm20, %v3781, 0
    %v3800 = vsel %vm20, %v3782, 0
    %v3803 = vsel %vm20, %v3783, 0
    %3805 = vmatpush.msra.mxu0 0.0
    %3806 = vmatpush.msra.mxu0 0.0
    %3807 = vmatpush.msra.mxu0 0.0
    %3808 = vmatpush.msra.mxu0 0.0
    %3809 = vmatpush.msra.mxu0 0.0
    %3810 = vmatpush.msra.mxu0 0.0
    %3811 = vmatpush.msra.mxu0 0.0
    %3812 = vmatpush.msra.mxu0 0.0
    %3813 = vmatpush.msra.mxu0 0.0
    %3814 = vmatpush.msra.mxu0 0.0
    %3815 = vmatpush.msra.mxu0 0.0
    %3816 = vmatpush.msra.mxu0 %v3789
    %3817 = vmatpush.msra.mxu0 %v3788
    %3818 = vmatpush.msra.mxu0 %v3787
    %3819 = vmatpush.msra.mxu0 %v3786
    %3820 = vmatpush.msra.mxu0 %v3785
    %3821 = vmatmul.f32.gmra.mxu0 %v3791
    %v3822 = vpop.f32.mrf.mxu0
    %v3823 = vadd.f32 0.0, %v3822
    %3824 = vmatmul.f32.gmra.mxu0 %v3794
    %v3825 = vpop.f32.mrf.mxu0
    %v3826 = vadd.f32 0.0, %v3825
    %3827 = vmatmul.f32.gmra.mxu0 %v3797
    %v3828 = vpop.f32.mrf.mxu0
    %v3829 = vadd.f32 0.0, %v3828
    %3830 = vmatmul.f32.gmra.mxu0 %v3800
    %v3831 = vpop.f32.mrf.mxu0
    %v3832 = vadd.f32 0.0, %v3831
    %3833 = vmatmul.f32.gmra.mxu0 %v3803
    %v3834 = vpop.f32.mrf.mxu0
    %v3835 = vadd.f32 0.0, %v3834
    %3836 = vdwg.mxu0
    %s3837 = scalar_lea.vmem [#allocation2], 2320
    %3838 = vst.msk [vmem:[%s3837] sm:$0xff] %vm20, %v3823
    %3839 = vst.msk [vmem:[%s3837 + $0x8] sm:$0xff] %vm20, %v3826
    %3840 = vst.msk [vmem:[%s3837 + $0x10] sm:$0xff] %vm20, %v3829
    %3841 = vst.msk [vmem:[%s3837 + $0x18] sm:$0xff] %vm20, %v3832
    %3842 = vst.msk [vmem:[%s3837 + $0x20] sm:$0xff] %vm20, %v3835
    %s3843 = scalar_lea.vmem %s0, 4720
    %v3844 = vld [vmem:[%s3843] sm:$0xff]
    %v3845 = vld [vmem:[%s3843 + $0x8] sm:$0xff]
    %v3846 = vld [vmem:[%s3843 + $0x10] sm:$0xff]
    %v3847 = vld [vmem:[%s3843 + $0x18] sm:$0xff]
    %v3848 = vld [vmem:[%s3843 + $0x20] sm:$0xff]
    %s3849 = scalar_lea.vmem %s0, 4760
    %v3850 = vld [vmem:[%s3849] sm:$0xff]
    %v3851 = vld [vmem:[%s3849 + $0x8] sm:$0xff]
    %v3852 = vld [vmem:[%s3849 + $0x10] sm:$0xff]
    %v3853 = vld [vmem:[%s3849 + $0x18] sm:$0xff]
    %v3854 = vld [vmem:[%s3849 + $0x20] sm:$0xff]
    %v3856 = vsel %vm20, %v3844, 0
    %v3859 = vsel %vm20, %v3845, 0
    %v3862 = vsel %vm20, %v3846, 0
    %v3865 = vsel %vm20, %v3847, 0
    %v3868 = vsel %vm20, %v3848, 0
    %3870 = vmatpush.msra.mxu0 0.0
    %3871 = vmatpush.msra.mxu0 0.0
    %3872 = vmatpush.msra.mxu0 0.0
    %3873 = vmatpush.msra.mxu0 0.0
    %3874 = vmatpush.msra.mxu0 0.0
    %3875 = vmatpush.msra.mxu0 0.0
    %3876 = vmatpush.msra.mxu0 0.0
    %3877 = vmatpush.msra.mxu0 0.0
    %3878 = vmatpush.msra.mxu0 0.0
    %3879 = vmatpush.msra.mxu0 0.0
    %3880 = vmatpush.msra.mxu0 0.0
    %3881 = vmatpush.msra.mxu0 %v3854
    %3882 = vmatpush.msra.mxu0 %v3853
    %3883 = vmatpush.msra.mxu0 %v3852
    %3884 = vmatpush.msra.mxu0 %v3851
    %3885 = vmatpush.msra.mxu0 %v3850
    %3886 = vmatmul.f32.gmra.mxu0 %v3856
    %v3887 = vpop.f32.mrf.mxu0
    %v3888 = vadd.f32 0.0, %v3887
    %3889 = vmatmul.f32.gmra.mxu0 %v3859
    %v3890 = vpop.f32.mrf.mxu0
    %v3891 = vadd.f32 0.0, %v3890
    %3892 = vmatmul.f32.gmra.mxu0 %v3862
    %v3893 = vpop.f32.mrf.mxu0
    %v3894 = vadd.f32 0.0, %v3893
    %3895 = vmatmul.f32.gmra.mxu0 %v3865
    %v3896 = vpop.f32.mrf.mxu0
    %v3897 = vadd.f32 0.0, %v3896
    %3898 = vmatmul.f32.gmra.mxu0 %v3868
    %v3899 = vpop.f32.mrf.mxu0
    %v3900 = vadd.f32 0.0, %v3899
    %3901 = vdwg.mxu0
    %s3902 = scalar_lea.vmem [#allocation2], 2360
    %3903 = vst.msk [vmem:[%s3902] sm:$0xff] %vm20, %v3888
    %3904 = vst.msk [vmem:[%s3902 + $0x8] sm:$0xff] %vm20, %v3891
    %3905 = vst.msk [vmem:[%s3902 + $0x10] sm:$0xff] %vm20, %v3894
    %3906 = vst.msk [vmem:[%s3902 + $0x18] sm:$0xff] %vm20, %v3897
    %3907 = vst.msk [vmem:[%s3902 + $0x20] sm:$0xff] %vm20, %v3900
    %s3908 = scalar_lea.vmem %s0, 4800
    %v3909 = vld [vmem:[%s3908] sm:$0xff]
    %v3910 = vld [vmem:[%s3908 + $0x8] sm:$0xff]
    %v3911 = vld [vmem:[%s3908 + $0x10] sm:$0xff]
    %v3912 = vld [vmem:[%s3908 + $0x18] sm:$0xff]
    %v3913 = vld [vmem:[%s3908 + $0x20] sm:$0xff]
    %s3914 = scalar_lea.vmem %s0, 4840
    %v3915 = vld [vmem:[%s3914] sm:$0xff]
    %v3916 = vld [vmem:[%s3914 + $0x8] sm:$0xff]
    %v3917 = vld [vmem:[%s3914 + $0x10] sm:$0xff]
    %v3918 = vld [vmem:[%s3914 + $0x18] sm:$0xff]
    %v3919 = vld [vmem:[%s3914 + $0x20] sm:$0xff]
    %v3921 = vsel %vm20, %v3909, 0
    %v3924 = vsel %vm20, %v3910, 0
    %v3927 = vsel %vm20, %v3911, 0
    %v3930 = vsel %vm20, %v3912, 0
    %v3933 = vsel %vm20, %v3913, 0
    %3935 = vmatpush.msra.mxu0 0.0
    %3936 = vmatpush.msra.mxu0 0.0
    %3937 = vmatpush.msra.mxu0 0.0
    %3938 = vmatpush.msra.mxu0 0.0
    %3939 = vmatpush.msra.mxu0 0.0
    %3940 = vmatpush.msra.mxu0 0.0
    %3941 = vmatpush.msra.mxu0 0.0
    %3942 = vmatpush.msra.mxu0 0.0
    %3943 = vmatpush.msra.mxu0 0.0
    %3944 = vmatpush.msra.mxu0 0.0
    %3945 = vmatpush.msra.mxu0 0.0
    %3946 = vmatpush.msra.mxu0 %v3919
    %3947 = vmatpush.msra.mxu0 %v3918
    %3948 = vmatpush.msra.mxu0 %v3917
    %3949 = vmatpush.msra.mxu0 %v3916
    %3950 = vmatpush.msra.mxu0 %v3915
    %3951 = vmatmul.f32.gmra.mxu0 %v3921
    %v3952 = vpop.f32.mrf.mxu0
    %v3953 = vadd.f32 0.0, %v3952
    %3954 = vmatmul.f32.gmra.mxu0 %v3924
    %v3955 = vpop.f32.mrf.mxu0
    %v3956 = vadd.f32 0.0, %v3955
    %3957 = vmatmul.f32.gmra.mxu0 %v3927
    %v3958 = vpop.f32.mrf.mxu0
    %v3959 = vadd.f32 0.0, %v3958
    %3960 = vmatmul.f32.gmra.mxu0 %v3930
    %v3961 = vpop.f32.mrf.mxu0
    %v3962 = vadd.f32 0.0, %v3961
    %3963 = vmatmul.f32.gmra.mxu0 %v3933
    %v3964 = vpop.f32.mrf.mxu0
    %v3965 = vadd.f32 0.0, %v3964
    %3966 = vdwg.mxu0
    %s3967 = scalar_lea.vmem [#allocation2], 2400
    %3968 = vst.msk [vmem:[%s3967] sm:$0xff] %vm20, %v3953
    %3969 = vst.msk [vmem:[%s3967 + $0x8] sm:$0xff] %vm20, %v3956
    %3970 = vst.msk [vmem:[%s3967 + $0x10] sm:$0xff] %vm20, %v3959
    %3971 = vst.msk [vmem:[%s3967 + $0x18] sm:$0xff] %vm20, %v3962
    %3972 = vst.msk [vmem:[%s3967 + $0x20] sm:$0xff] %vm20, %v3965
    %s3973 = scalar_lea.vmem %s0, 4880
    %v3974 = vld [vmem:[%s3973] sm:$0xff]
    %v3975 = vld [vmem:[%s3973 + $0x8] sm:$0xff]
    %v3976 = vld [vmem:[%s3973 + $0x10] sm:$0xff]
    %v3977 = vld [vmem:[%s3973 + $0x18] sm:$0xff]
    %v3978 = vld [vmem:[%s3973 + $0x20] sm:$0xff]
    %s3979 = scalar_lea.vmem %s0, 4920
    %v3980 = vld [vmem:[%s3979] sm:$0xff]
    %v3981 = vld [vmem:[%s3979 + $0x8] sm:$0xff]
    %v3982 = vld [vmem:[%s3979 + $0x10] sm:$0xff]
    %v3983 = vld [vmem:[%s3979 + $0x18] sm:$0xff]
    %v3984 = vld [vmem:[%s3979 + $0x20] sm:$0xff]
    %v3986 = vsel %vm20, %v3974, 0
    %v3989 = vsel %vm20, %v3975, 0
    %v3992 = vsel %vm20, %v3976, 0
    %v3995 = vsel %vm20, %v3977, 0
    %v3998 = vsel %vm20, %v3978, 0
    %4000 = vmatpush.msra.mxu0 0.0
    %4001 = vmatpush.msra.mxu0 0.0
    %4002 = vmatpush.msra.mxu0 0.0
    %4003 = vmatpush.msra.mxu0 0.0
    %4004 = vmatpush.msra.mxu0 0.0
    %4005 = vmatpush.msra.mxu0 0.0
    %4006 = vmatpush.msra.mxu0 0.0
    %4007 = vmatpush.msra.mxu0 0.0
    %4008 = vmatpush.msra.mxu0 0.0
    %4009 = vmatpush.msra.mxu0 0.0
    %4010 = vmatpush.msra.mxu0 0.0
    %4011 = vmatpush.msra.mxu0 %v3984
    %4012 = vmatpush.msra.mxu0 %v3983
    %4013 = vmatpush.msra.mxu0 %v3982
    %4014 = vmatpush.msra.mxu0 %v3981
    %4015 = vmatpush.msra.mxu0 %v3980
    %4016 = vmatmul.f32.gmra.mxu0 %v3986
    %v4017 = vpop.f32.mrf.mxu0
    %v4018 = vadd.f32 0.0, %v4017
    %4019 = vmatmul.f32.gmra.mxu0 %v3989
    %v4020 = vpop.f32.mrf.mxu0
    %v4021 = vadd.f32 0.0, %v4020
    %4022 = vmatmul.f32.gmra.mxu0 %v3992
    %v4023 = vpop.f32.mrf.mxu0
    %v4024 = vadd.f32 0.0, %v4023
    %4025 = vmatmul.f32.gmra.mxu0 %v3995
    %v4026 = vpop.f32.mrf.mxu0
    %v4027 = vadd.f32 0.0, %v4026
    %4028 = vmatmul.f32.gmra.mxu0 %v3998
    %v4029 = vpop.f32.mrf.mxu0
    %v4030 = vadd.f32 0.0, %v4029
    %4031 = vdwg.mxu0
    %s4032 = scalar_lea.vmem [#allocation2], 2440
    %4033 = vst.msk [vmem:[%s4032] sm:$0xff] %vm20, %v4018
    %4034 = vst.msk [vmem:[%s4032 + $0x8] sm:$0xff] %vm20, %v4021
    %4035 = vst.msk [vmem:[%s4032 + $0x10] sm:$0xff] %vm20, %v4024
    %4036 = vst.msk [vmem:[%s4032 + $0x18] sm:$0xff] %vm20, %v4027
    %4037 = vst.msk [vmem:[%s4032 + $0x20] sm:$0xff] %vm20, %v4030
    %s4038 = scalar_lea.vmem %s0, 4960
    %v4039 = vld [vmem:[%s4038] sm:$0xff]
    %v4040 = vld [vmem:[%s4038 + $0x8] sm:$0xff]
    %v4041 = vld [vmem:[%s4038 + $0x10] sm:$0xff]
    %v4042 = vld [vmem:[%s4038 + $0x18] sm:$0xff]
    %v4043 = vld [vmem:[%s4038 + $0x20] sm:$0xff]
    %s4044 = scalar_lea.vmem %s0, 5000
    %v4045 = vld [vmem:[%s4044] sm:$0xff]
    %v4046 = vld [vmem:[%s4044 + $0x8] sm:$0xff]
    %v4047 = vld [vmem:[%s4044 + $0x10] sm:$0xff]
    %v4048 = vld [vmem:[%s4044 + $0x18] sm:$0xff]
    %v4049 = vld [vmem:[%s4044 + $0x20] sm:$0xff]
    %v4051 = vsel %vm20, %v4039, 0
    %v4054 = vsel %vm20, %v4040, 0
    %v4057 = vsel %vm20, %v4041, 0
    %v4060 = vsel %vm20, %v4042, 0
    %v4063 = vsel %vm20, %v4043, 0
    %4065 = vmatpush.msra.mxu0 0.0
    %4066 = vmatpush.msra.mxu0 0.0
    %4067 = vmatpush.msra.mxu0 0.0
    %4068 = vmatpush.msra.mxu0 0.0
    %4069 = vmatpush.msra.mxu0 0.0
    %4070 = vmatpush.msra.mxu0 0.0
    %4071 = vmatpush.msra.mxu0 0.0
    %4072 = vmatpush.msra.mxu0 0.0
    %4073 = vmatpush.msra.mxu0 0.0
    %4074 = vmatpush.msra.mxu0 0.0
    %4075 = vmatpush.msra.mxu0 0.0
    %4076 = vmatpush.msra.mxu0 %v4049
    %4077 = vmatpush.msra.mxu0 %v4048
    %4078 = vmatpush.msra.mxu0 %v4047
    %4079 = vmatpush.msra.mxu0 %v4046
    %4080 = vmatpush.msra.mxu0 %v4045
    %4081 = vmatmul.f32.gmra.mxu0 %v4051
    %v4082 = vpop.f32.mrf.mxu0
    %v4083 = vadd.f32 0.0, %v4082
    %4084 = vmatmul.f32.gmra.mxu0 %v4054
    %v4085 = vpop.f32.mrf.mxu0
    %v4086 = vadd.f32 0.0, %v4085
    %4087 = vmatmul.f32.gmra.mxu0 %v4057
    %v4088 = vpop.f32.mrf.mxu0
    %v4089 = vadd.f32 0.0, %v4088
    %4090 = vmatmul.f32.gmra.mxu0 %v4060
    %v4091 = vpop.f32.mrf.mxu0
    %v4092 = vadd.f32 0.0, %v4091
    %4093 = vmatmul.f32.gmra.mxu0 %v4063
    %v4094 = vpop.f32.mrf.mxu0
    %v4095 = vadd.f32 0.0, %v4094
    %4096 = vdwg.mxu0
    %s4097 = scalar_lea.vmem [#allocation2], 2480
    %4098 = vst.msk [vmem:[%s4097] sm:$0xff] %vm20, %v4083
    %4099 = vst.msk [vmem:[%s4097 + $0x8] sm:$0xff] %vm20, %v4086
    %4100 = vst.msk [vmem:[%s4097 + $0x10] sm:$0xff] %vm20, %v4089
    %4101 = vst.msk [vmem:[%s4097 + $0x18] sm:$0xff] %vm20, %v4092
    %4102 = vst.msk [vmem:[%s4097 + $0x20] sm:$0xff] %vm20, %v4095
    %s4103 = scalar_lea.vmem %s0, 5040
    %v4104 = vld [vmem:[%s4103] sm:$0xff]
    %v4105 = vld [vmem:[%s4103 + $0x8] sm:$0xff]
    %v4106 = vld [vmem:[%s4103 + $0x10] sm:$0xff]
    %v4107 = vld [vmem:[%s4103 + $0x18] sm:$0xff]
    %v4108 = vld [vmem:[%s4103 + $0x20] sm:$0xff]
    %s4109 = scalar_lea.vmem %s0, 5080
    %v4110 = vld [vmem:[%s4109] sm:$0xff]
    %v4111 = vld [vmem:[%s4109 + $0x8] sm:$0xff]
    %v4112 = vld [vmem:[%s4109 + $0x10] sm:$0xff]
    %v4113 = vld [vmem:[%s4109 + $0x18] sm:$0xff]
    %v4114 = vld [vmem:[%s4109 + $0x20] sm:$0xff]
    %v4116 = vsel %vm20, %v4104, 0
    %v4119 = vsel %vm20, %v4105, 0
    %v4122 = vsel %vm20, %v4106, 0
    %v4125 = vsel %vm20, %v4107, 0
    %v4128 = vsel %vm20, %v4108, 0
    %4130 = vmatpush.msra.mxu0 0.0
    %4131 = vmatpush.msra.mxu0 0.0
    %4132 = vmatpush.msra.mxu0 0.0
    %4133 = vmatpush.msra.mxu0 0.0
    %4134 = vmatpush.msra.mxu0 0.0
    %4135 = vmatpush.msra.mxu0 0.0
    %4136 = vmatpush.msra.mxu0 0.0
    %4137 = vmatpush.msra.mxu0 0.0
    %4138 = vmatpush.msra.mxu0 0.0
    %4139 = vmatpush.msra.mxu0 0.0
    %4140 = vmatpush.msra.mxu0 0.0
    %4141 = vmatpush.msra.mxu0 %v4114
    %4142 = vmatpush.msra.mxu0 %v4113
    %4143 = vmatpush.msra.mxu0 %v4112
    %4144 = vmatpush.msra.mxu0 %v4111
    %4145 = vmatpush.msra.mxu0 %v4110
    %4146 = vmatmul.f32.gmra.mxu0 %v4116
    %v4147 = vpop.f32.mrf.mxu0
    %v4148 = vadd.f32 0.0, %v4147
    %4149 = vmatmul.f32.gmra.mxu0 %v4119
    %v4150 = vpop.f32.mrf.mxu0
    %v4151 = vadd.f32 0.0, %v4150
    %4152 = vmatmul.f32.gmra.mxu0 %v4122
    %v4153 = vpop.f32.mrf.mxu0
    %v4154 = vadd.f32 0.0, %v4153
    %4155 = vmatmul.f32.gmra.mxu0 %v4125
    %v4156 = vpop.f32.mrf.mxu0
    %v4157 = vadd.f32 0.0, %v4156
    %4158 = vmatmul.f32.gmra.mxu0 %v4128
    %v4159 = vpop.f32.mrf.mxu0
    %v4160 = vadd.f32 0.0, %v4159
    %4161 = vdwg.mxu0
    %s4162 = scalar_lea.vmem [#allocation2], 2520
    %4163 = vst.msk [vmem:[%s4162] sm:$0xff] %vm20, %v4148
    %4164 = vst.msk [vmem:[%s4162 + $0x8] sm:$0xff] %vm20, %v4151
    %4165 = vst.msk [vmem:[%s4162 + $0x10] sm:$0xff] %vm20, %v4154
    %4166 = vst.msk [vmem:[%s4162 + $0x18] sm:$0xff] %vm20, %v4157
    %4167 = vst.msk [vmem:[%s4162 + $0x20] sm:$0xff] %vm20, %v4160
    %v4168 = vld [vmem:[#allocation2] sm:$0xff]
    %v4169 = vld [vmem:[#allocation2 + $0x8] sm:$0xff]
    %v4170 = vld [vmem:[#allocation2 + $0x10] sm:$0xff]
    %v4171 = vld [vmem:[#allocation2 + $0x18] sm:$0xff]
    %v4172 = vld [vmem:[#allocation2 + $0x20] sm:$0xff]
    %v4173 = vld [vmem:[%s132] sm:$0xff]
    %v4174 = vld [vmem:[%s132 + $0x8] sm:$0xff]
    %v4175 = vld [vmem:[%s132 + $0x10] sm:$0xff]
    %v4176 = vld [vmem:[%s132 + $0x18] sm:$0xff]
    %v4177 = vld [vmem:[%s132 + $0x20] sm:$0xff]
    %v4179 = vsel %vm20, %v4168, 0
    %v4182 = vsel %vm20, %v4169, 0
    %v4185 = vsel %vm20, %v4170, 0
    %v4188 = vsel %vm20, %v4171, 0
    %v4191 = vsel %vm20, %v4172, 0
    %4193 = vmatpush.msra.mxu0 0.0
    %4194 = vmatpush.msra.mxu0 0.0
    %4195 = vmatpush.msra.mxu0 0.0
    %4196 = vmatpush.msra.mxu0 0.0
    %4197 = vmatpush.msra.mxu0 0.0
    %4198 = vmatpush.msra.mxu0 0.0
    %4199 = vmatpush.msra.mxu0 0.0
    %4200 = vmatpush.msra.mxu0 0.0
    %4201 = vmatpush.msra.mxu0 0.0
    %4202 = vmatpush.msra.mxu0 0.0
    %4203 = vmatpush.msra.mxu0 0.0
    %4204 = vmatpush.msra.mxu0 %v4177
    %4205 = vmatpush.msra.mxu0 %v4176
    %4206 = vmatpush.msra.mxu0 %v4175
    %4207 = vmatpush.msra.mxu0 %v4174
    %4208 = vmatpush.msra.mxu0 %v4173
    %4209 = vmatmul.f32.gmra.mxu0 %v4179
    %v4210 = vpop.f32.mrf.mxu0
    %v4211 = vadd.f32 0.0, %v4210
    %4212 = vmatmul.f32.gmra.mxu0 %v4182
    %v4213 = vpop.f32.mrf.mxu0
    %v4214 = vadd.f32 0.0, %v4213
    %4215 = vmatmul.f32.gmra.mxu0 %v4185
    %v4216 = vpop.f32.mrf.mxu0
    %v4217 = vadd.f32 0.0, %v4216
    %4218 = vmatmul.f32.gmra.mxu0 %v4188
    %v4219 = vpop.f32.mrf.mxu0
    %v4220 = vadd.f32 0.0, %v4219
    %4221 = vmatmul.f32.gmra.mxu0 %v4191
    %v4222 = vpop.f32.mrf.mxu0
    %v4223 = vadd.f32 0.0, %v4222
    %4224 = vdwg.mxu0
    %4225 = vst.msk [vmem:[#allocation2] sm:$0xff] %vm20, %v4211
    %4226 = vst.msk [vmem:[#allocation2 + $0x8] sm:$0xff] %vm20, %v4214
    %4227 = vst.msk [vmem:[#allocation2 + $0x10] sm:$0xff] %vm20, %v4217
    %4228 = vst.msk [vmem:[#allocation2 + $0x18] sm:$0xff] %vm20, %v4220
    %4229 = vst.msk [vmem:[#allocation2 + $0x20] sm:$0xff] %vm20, %v4223
    %v4230 = vld [vmem:[%s197] sm:$0xff]
    %v4231 = vld [vmem:[%s197 + $0x8] sm:$0xff]
    %v4232 = vld [vmem:[%s197 + $0x10] sm:$0xff]
    %v4233 = vld [vmem:[%s197 + $0x18] sm:$0xff]
    %v4234 = vld [vmem:[%s197 + $0x20] sm:$0xff]
    %v4235 = vld [vmem:[%s262] sm:$0xff]
    %v4236 = vld [vmem:[%s262 + $0x8] sm:$0xff]
    %v4237 = vld [vmem:[%s262 + $0x10] sm:$0xff]
    %v4238 = vld [vmem:[%s262 + $0x18] sm:$0xff]
    %v4239 = vld [vmem:[%s262 + $0x20] sm:$0xff]
    %v4241 = vsel %vm20, %v4230, 0
    %v4244 = vsel %vm20, %v4231, 0
    %v4247 = vsel %vm20, %v4232, 0
    %v4250 = vsel %vm20, %v4233, 0
    %v4253 = vsel %vm20, %v4234, 0
    %4255 = vmatpush.msra.mxu0 0.0
    %4256 = vmatpush.msra.mxu0 0.0
    %4257 = vmatpush.msra.mxu0 0.0
    %4258 = vmatpush.msra.mxu0 0.0
    %4259 = vmatpush.msra.mxu0 0.0
    %4260 = vmatpush.msra.mxu0 0.0
    %4261 = vmatpush.msra.mxu0 0.0
    %4262 = vmatpush.msra.mxu0 0.0
    %4263 = vmatpush.msra.mxu0 0.0
    %4264 = vmatpush.msra.mxu0 0.0
    %4265 = vmatpush.msra.mxu0 0.0
    %4266 = vmatpush.msra.mxu0 %v4239
    %4267 = vmatpush.msra.mxu0 %v4238
    %4268 = vmatpush.msra.mxu0 %v4237
    %4269 = vmatpush.msra.mxu0 %v4236
    %4270 = vmatpush.msra.mxu0 %v4235
    %4271 = vmatmul.f32.gmra.mxu0 %v4241
    %v4272 = vpop.f32.mrf.mxu0
    %v4273 = vadd.f32 0.0, %v4272
    %4274 = vmatmul.f32.gmra.mxu0 %v4244
    %v4275 = vpop.f32.mrf.mxu0
    %v4276 = vadd.f32 0.0, %v4275
    %4277 = vmatmul.f32.gmra.mxu0 %v4247
    %v4278 = vpop.f32.mrf.mxu0
    %v4279 = vadd.f32 0.0, %v4278
    %4280 = vmatmul.f32.gmra.mxu0 %v4250
    %v4281 = vpop.f32.mrf.mxu0
    %v4282 = vadd.f32 0.0, %v4281
    %4283 = vmatmul.f32.gmra.mxu0 %v4253
    %v4284 = vpop.f32.mrf.mxu0
    %v4285 = vadd.f32 0.0, %v4284
    %4286 = vdwg.mxu0
    %4287 = vst.msk [vmem:[%s132] sm:$0xff] %vm20, %v4273
    %4288 = vst.msk [vmem:[%s132 + $0x8] sm:$0xff] %vm20, %v4276
    %4289 = vst.msk [vmem:[%s132 + $0x10] sm:$0xff] %vm20, %v4279
    %4290 = vst.msk [vmem:[%s132 + $0x18] sm:$0xff] %vm20, %v4282
    %4291 = vst.msk [vmem:[%s132 + $0x20] sm:$0xff] %vm20, %v4285
    %v4292 = vld [vmem:[%s327] sm:$0xff]
    %v4293 = vld [vmem:[%s327 + $0x8] sm:$0xff]
    %v4294 = vld [vmem:[%s327 + $0x10] sm:$0xff]
    %v4295 = vld [vmem:[%s327 + $0x18] sm:$0xff]
    %v4296 = vld [vmem:[%s327 + $0x20] sm:$0xff]
    %v4297 = vld [vmem:[%s392] sm:$0xff]
    %v4298 = vld [vmem:[%s392 + $0x8] sm:$0xff]
    %v4299 = vld [vmem:[%s392 + $0x10] sm:$0xff]
    %v4300 = vld [vmem:[%s392 + $0x18] sm:$0xff]
    %v4301 = vld [vmem:[%s392 + $0x20] sm:$0xff]
    %v4303 = vsel %vm20, %v4292, 0
    %v4306 = vsel %vm20, %v4293, 0
    %v4309 = vsel %vm20, %v4294, 0
    %v4312 = vsel %vm20, %v4295, 0
    %v4315 = vsel %vm20, %v4296, 0
    %4317 = vmatpush.msra.mxu0 0.0
    %4318 = vmatpush.msra.mxu0 0.0
    %4319 = vmatpush.msra.mxu0 0.0
    %4320 = vmatpush.msra.mxu0 0.0
    %4321 = vmatpush.msra.mxu0 0.0
    %4322 = vmatpush.msra.mxu0 0.0
    %4323 = vmatpush.msra.mxu0 0.0
    %4324 = vmatpush.msra.mxu0 0.0
    %4325 = vmatpush.msra.mxu0 0.0
    %4326 = vmatpush.msra.mxu0 0.0
    %4327 = vmatpush.msra.mxu0 0.0
    %4328 = vmatpush.msra.mxu0 %v4301
    %4329 = vmatpush.msra.mxu0 %v4300
    %4330 = vmatpush.msra.mxu0 %v4299
    %4331 = vmatpush.msra.mxu0 %v4298
    %4332 = vmatpush.msra.mxu0 %v4297
    %4333 = vmatmul.f32.gmra.mxu0 %v4303
    %v4334 = vpop.f32.mrf.mxu0
    %v4335 = vadd.f32 0.0, %v4334
    %4336 = vmatmul.f32.gmra.mxu0 %v4306
    %v4337 = vpop.f32.mrf.mxu0
    %v4338 = vadd.f32 0.0, %v4337
    %4339 = vmatmul.f32.gmra.mxu0 %v4309
    %v4340 = vpop.f32.mrf.mxu0
    %v4341 = vadd.f32 0.0, %v4340
    %4342 = vmatmul.f32.gmra.mxu0 %v4312
    %v4343 = vpop.f32.mrf.mxu0
    %v4344 = vadd.f32 0.0, %v4343
    %4345 = vmatmul.f32.gmra.mxu0 %v4315
    %v4346 = vpop.f32.mrf.mxu0
    %v4347 = vadd.f32 0.0, %v4346
    %4348 = vdwg.mxu0
    %4349 = vst.msk [vmem:[%s197] sm:$0xff] %vm20, %v4335
    %4350 = vst.msk [vmem:[%s197 + $0x8] sm:$0xff] %vm20, %v4338
    %4351 = vst.msk [vmem:[%s197 + $0x10] sm:$0xff] %vm20, %v4341
    %4352 = vst.msk [vmem:[%s197 + $0x18] sm:$0xff] %vm20, %v4344
    %4353 = vst.msk [vmem:[%s197 + $0x20] sm:$0xff] %vm20, %v4347
    %v4354 = vld [vmem:[%s457] sm:$0xff]
    %v4355 = vld [vmem:[%s457 + $0x8] sm:$0xff]
    %v4356 = vld [vmem:[%s457 + $0x10] sm:$0xff]
    %v4357 = vld [vmem:[%s457 + $0x18] sm:$0xff]
    %v4358 = vld [vmem:[%s457 + $0x20] sm:$0xff]
    %v4359 = vld [vmem:[%s522] sm:$0xff]
    %v4360 = vld [vmem:[%s522 + $0x8] sm:$0xff]
    %v4361 = vld [vmem:[%s522 + $0x10] sm:$0xff]
    %v4362 = vld [vmem:[%s522 + $0x18] sm:$0xff]
    %v4363 = vld [vmem:[%s522 + $0x20] sm:$0xff]
    %v4365 = vsel %vm20, %v4354, 0
    %v4368 = vsel %vm20, %v4355, 0
    %v4371 = vsel %vm20, %v4356, 0
    %v4374 = vsel %vm20, %v4357, 0
    %v4377 = vsel %vm20, %v4358, 0
    %4379 = vmatpush.msra.mxu0 0.0
    %4380 = vmatpush.msra.mxu0 0.0
    %4381 = vmatpush.msra.mxu0 0.0
    %4382 = vmatpush.msra.mxu0 0.0
    %4383 = vmatpush.msra.mxu0 0.0
    %4384 = vmatpush.msra.mxu0 0.0
    %4385 = vmatpush.msra.mxu0 0.0
    %4386 = vmatpush.msra.mxu0 0.0
    %4387 = vmatpush.msra.mxu0 0.0
    %4388 = vmatpush.msra.mxu0 0.0
    %4389 = vmatpush.msra.mxu0 0.0
    %4390 = vmatpush.msra.mxu0 %v4363
    %4391 = vmatpush.msra.mxu0 %v4362
    %4392 = vmatpush.msra.mxu0 %v4361
    %4393 = vmatpush.msra.mxu0 %v4360
    %4394 = vmatpush.msra.mxu0 %v4359
    %4395 = vmatmul.f32.gmra.mxu0 %v4365
    %v4396 = vpop.f32.mrf.mxu0
    %v4397 = vadd.f32 0.0, %v4396
    %4398 = vmatmul.f32.gmra.mxu0 %v4368
    %v4399 = vpop.f32.mrf.mxu0
    %v4400 = vadd.f32 0.0, %v4399
    %4401 = vmatmul.f32.gmra.mxu0 %v4371
    %v4402 = vpop.f32.mrf.mxu0
    %v4403 = vadd.f32 0.0, %v4402
    %4404 = vmatmul.f32.gmra.mxu0 %v4374
    %v4405 = vpop.f32.mrf.mxu0
    %v4406 = vadd.f32 0.0, %v4405
    %4407 = vmatmul.f32.gmra.mxu0 %v4377
    %v4408 = vpop.f32.mrf.mxu0
    %v4409 = vadd.f32 0.0, %v4408
    %4410 = vdwg.mxu0
    %4411 = vst.msk [vmem:[%s262] sm:$0xff] %vm20, %v4397
    %4412 = vst.msk [vmem:[%s262 + $0x8] sm:$0xff] %vm20, %v4400
    %4413 = vst.msk [vmem:[%s262 + $0x10] sm:$0xff] %vm20, %v4403
    %4414 = vst.msk [vmem:[%s262 + $0x18] sm:$0xff] %vm20, %v4406
    %4415 = vst.msk [vmem:[%s262 + $0x20] sm:$0xff] %vm20, %v4409
    %v4416 = vld [vmem:[%s587] sm:$0xff]
    %v4417 = vld [vmem:[%s587 + $0x8] sm:$0xff]
    %v4418 = vld [vmem:[%s587 + $0x10] sm:$0xff]
    %v4419 = vld [vmem:[%s587 + $0x18] sm:$0xff]
    %v4420 = vld [vmem:[%s587 + $0x20] sm:$0xff]
    %v4421 = vld [vmem:[%s652] sm:$0xff]
    %v4422 = vld [vmem:[%s652 + $0x8] sm:$0xff]
    %v4423 = vld [vmem:[%s652 + $0x10] sm:$0xff]
    %v4424 = vld [vmem:[%s652 + $0x18] sm:$0xff]
    %v4425 = vld [vmem:[%s652 + $0x20] sm:$0xff]
    %v4427 = vsel %vm20, %v4416, 0
    %v4430 = vsel %vm20, %v4417, 0
    %v4433 = vsel %vm20, %v4418, 0
    %v4436 = vsel %vm20, %v4419, 0
    %v4439 = vsel %vm20, %v4420, 0
    %4441 = vmatpush.msra.mxu0 0.0
    %4442 = vmatpush.msra.mxu0 0.0
    %4443 = vmatpush.msra.mxu0 0.0
    %4444 = vmatpush.msra.mxu0 0.0
    %4445 = vmatpush.msra.mxu0 0.0
    %4446 = vmatpush.msra.mxu0 0.0
    %4447 = vmatpush.msra.mxu0 0.0
    %4448 = vmatpush.msra.mxu0 0.0
    %4449 = vmatpush.msra.mxu0 0.0
    %4450 = vmatpush.msra.mxu0 0.0
    %4451 = vmatpush.msra.mxu0 0.0
    %4452 = vmatpush.msra.mxu0 %v4425
    %4453 = vmatpush.msra.mxu0 %v4424
    %4454 = vmatpush.msra.mxu0 %v4423
    %4455 = vmatpush.msra.mxu0 %v4422
    %4456 = vmatpush.msra.mxu0 %v4421
    %4457 = vmatmul.f32.gmra.mxu0 %v4427
    %v4458 = vpop.f32.mrf.mxu0
    %v4459 = vadd.f32 0.0, %v4458
    %4460 = vmatmul.f32.gmra.mxu0 %v4430
    %v4461 = vpop.f32.mrf.mxu0
    %v4462 = vadd.f32 0.0, %v4461
    %4463 = vmatmul.f32.gmra.mxu0 %v4433
    %v4464 = vpop.f32.mrf.mxu0
    %v4465 = vadd.f32 0.0, %v4464
    %4466 = vmatmul.f32.gmra.mxu0 %v4436
    %v4467 = vpop.f32.mrf.mxu0
    %v4468 = vadd.f32 0.0, %v4467
    %4469 = vmatmul.f32.gmra.mxu0 %v4439
    %v4470 = vpop.f32.mrf.mxu0
    %v4471 = vadd.f32 0.0, %v4470
    %4472 = vdwg.mxu0
    %4473 = vst.msk [vmem:[%s327] sm:$0xff] %vm20, %v4459
    %4474 = vst.msk [vmem:[%s327 + $0x8] sm:$0xff] %vm20, %v4462
    %4475 = vst.msk [vmem:[%s327 + $0x10] sm:$0xff] %vm20, %v4465
    %4476 = vst.msk [vmem:[%s327 + $0x18] sm:$0xff] %vm20, %v4468
    %4477 = vst.msk [vmem:[%s327 + $0x20] sm:$0xff] %vm20, %v4471
    %v4478 = vld [vmem:[%s717] sm:$0xff]
    %v4479 = vld [vmem:[%s717 + $0x8] sm:$0xff]
    %v4480 = vld [vmem:[%s717 + $0x10] sm:$0xff]
    %v4481 = vld [vmem:[%s717 + $0x18] sm:$0xff]
    %v4482 = vld [vmem:[%s717 + $0x20] sm:$0xff]
    %v4483 = vld [vmem:[%s782] sm:$0xff]
    %v4484 = vld [vmem:[%s782 + $0x8] sm:$0xff]
    %v4485 = vld [vmem:[%s782 + $0x10] sm:$0xff]
    %v4486 = vld [vmem:[%s782 + $0x18] sm:$0xff]
    %v4487 = vld [vmem:[%s782 + $0x20] sm:$0xff]
    %v4489 = vsel %vm20, %v4478, 0
    %v4492 = vsel %vm20, %v4479, 0
    %v4495 = vsel %vm20, %v4480, 0
    %v4498 = vsel %vm20, %v4481, 0
    %v4501 = vsel %vm20, %v4482, 0
    %4503 = vmatpush.msra.mxu0 0.0
    %4504 = vmatpush.msra.mxu0 0.0
    %4505 = vmatpush.msra.mxu0 0.0
    %4506 = vmatpush.msra.mxu0 0.0
    %4507 = vmatpush.msra.mxu0 0.0
    %4508 = vmatpush.msra.mxu0 0.0
    %4509 = vmatpush.msra.mxu0 0.0
    %4510 = vmatpush.msra.mxu0 0.0
    %4511 = vmatpush.msra.mxu0 0.0
    %4512 = vmatpush.msra.mxu0 0.0
    %4513 = vmatpush.msra.mxu0 0.0
    %4514 = vmatpush.msra.mxu0 %v4487
    %4515 = vmatpush.msra.mxu0 %v4486
    %4516 = vmatpush.msra.mxu0 %v4485
    %4517 = vmatpush.msra.mxu0 %v4484
    %4518 = vmatpush.msra.mxu0 %v4483
    %4519 = vmatmul.f32.gmra.mxu0 %v4489
    %v4520 = vpop.f32.mrf.mxu0
    %v4521 = vadd.f32 0.0, %v4520
    %4522 = vmatmul.f32.gmra.mxu0 %v4492
    %v4523 = vpop.f32.mrf.mxu0
    %v4524 = vadd.f32 0.0, %v4523
    %4525 = vmatmul.f32.gmra.mxu0 %v4495
    %v4526 = vpop.f32.mrf.mxu0
    %v4527 = vadd.f32 0.0, %v4526
    %4528 = vmatmul.f32.gmra.mxu0 %v4498
    %v4529 = vpop.f32.mrf.mxu0
    %v4530 = vadd.f32 0.0, %v4529
    %4531 = vmatmul.f32.gmra.mxu0 %v4501
    %v4532 = vpop.f32.mrf.mxu0
    %v4533 = vadd.f32 0.0, %v4532
    %4534 = vdwg.mxu0
    %4535 = vst.msk [vmem:[%s392] sm:$0xff] %vm20, %v4521
    %4536 = vst.msk [vmem:[%s392 + $0x8] sm:$0xff] %vm20, %v4524
    %4537 = vst.msk [vmem:[%s392 + $0x10] sm:$0xff] %vm20, %v4527
    %4538 = vst.msk [vmem:[%s392 + $0x18] sm:$0xff] %vm20, %v4530
    %4539 = vst.msk [vmem:[%s392 + $0x20] sm:$0xff] %vm20, %v4533
    %v4540 = vld [vmem:[%s847] sm:$0xff]
    %v4541 = vld [vmem:[%s847 + $0x8] sm:$0xff]
    %v4542 = vld [vmem:[%s847 + $0x10] sm:$0xff]
    %v4543 = vld [vmem:[%s847 + $0x18] sm:$0xff]
    %v4544 = vld [vmem:[%s847 + $0x20] sm:$0xff]
    %v4545 = vld [vmem:[%s912] sm:$0xff]
    %v4546 = vld [vmem:[%s912 + $0x8] sm:$0xff]
    %v4547 = vld [vmem:[%s912 + $0x10] sm:$0xff]
    %v4548 = vld [vmem:[%s912 + $0x18] sm:$0xff]
    %v4549 = vld [vmem:[%s912 + $0x20] sm:$0xff]
    %v4551 = vsel %vm20, %v4540, 0
    %v4554 = vsel %vm20, %v4541, 0
    %v4557 = vsel %vm20, %v4542, 0
    %v4560 = vsel %vm20, %v4543, 0
    %v4563 = vsel %vm20, %v4544, 0
    %4565 = vmatpush.msra.mxu0 0.0
    %4566 = vmatpush.msra.mxu0 0.0
    %4567 = vmatpush.msra.mxu0 0.0
    %4568 = vmatpush.msra.mxu0 0.0
    %4569 = vmatpush.msra.mxu0 0.0
    %4570 = vmatpush.msra.mxu0 0.0
    %4571 = vmatpush.msra.mxu0 0.0
    %4572 = vmatpush.msra.mxu0 0.0
    %4573 = vmatpush.msra.mxu0 0.0
    %4574 = vmatpush.msra.mxu0 0.0
    %4575 = vmatpush.msra.mxu0 0.0
    %4576 = vmatpush.msra.mxu0 %v4549
    %4577 = vmatpush.msra.mxu0 %v4548
    %4578 = vmatpush.msra.mxu0 %v4547
    %4579 = vmatpush.msra.mxu0 %v4546
    %4580 = vmatpush.msra.mxu0 %v4545
    %4581 = vmatmul.f32.gmra.mxu0 %v4551
    %v4582 = vpop.f32.mrf.mxu0
    %v4583 = vadd.f32 0.0, %v4582
    %4584 = vmatmul.f32.gmra.mxu0 %v4554
    %v4585 = vpop.f32.mrf.mxu0
    %v4586 = vadd.f32 0.0, %v4585
    %4587 = vmatmul.f32.gmra.mxu0 %v4557
    %v4588 = vpop.f32.mrf.mxu0
    %v4589 = vadd.f32 0.0, %v4588
    %4590 = vmatmul.f32.gmra.mxu0 %v4560
    %v4591 = vpop.f32.mrf.mxu0
    %v4592 = vadd.f32 0.0, %v4591
    %4593 = vmatmul.f32.gmra.mxu0 %v4563
    %v4594 = vpop.f32.mrf.mxu0
    %v4595 = vadd.f32 0.0, %v4594
    %4596 = vdwg.mxu0
    %4597 = vst.msk [vmem:[%s457] sm:$0xff] %vm20, %v4583
    %4598 = vst.msk [vmem:[%s457 + $0x8] sm:$0xff] %vm20, %v4586
    %4599 = vst.msk [vmem:[%s457 + $0x10] sm:$0xff] %vm20, %v4589
    %4600 = vst.msk [vmem:[%s457 + $0x18] sm:$0xff] %vm20, %v4592
    %4601 = vst.msk [vmem:[%s457 + $0x20] sm:$0xff] %vm20, %v4595
    %v4602 = vld [vmem:[%s977] sm:$0xff]
    %v4603 = vld [vmem:[%s977 + $0x8] sm:$0xff]
    %v4604 = vld [vmem:[%s977 + $0x10] sm:$0xff]
    %v4605 = vld [vmem:[%s977 + $0x18] sm:$0xff]
    %v4606 = vld [vmem:[%s977 + $0x20] sm:$0xff]
    %v4607 = vld [vmem:[%s1042] sm:$0xff]
    %v4608 = vld [vmem:[%s1042 + $0x8] sm:$0xff]
    %v4609 = vld [vmem:[%s1042 + $0x10] sm:$0xff]
    %v4610 = vld [vmem:[%s1042 + $0x18] sm:$0xff]
    %v4611 = vld [vmem:[%s1042 + $0x20] sm:$0xff]
    %v4613 = vsel %vm20, %v4602, 0
    %v4616 = vsel %vm20, %v4603, 0
    %v4619 = vsel %vm20, %v4604, 0
    %v4622 = vsel %vm20, %v4605, 0
    %v4625 = vsel %vm20, %v4606, 0
    %4627 = vmatpush.msra.mxu0 0.0
    %4628 = vmatpush.msra.mxu0 0.0
    %4629 = vmatpush.msra.mxu0 0.0
    %4630 = vmatpush.msra.mxu0 0.0
    %4631 = vmatpush.msra.mxu0 0.0
    %4632 = vmatpush.msra.mxu0 0.0
    %4633 = vmatpush.msra.mxu0 0.0
    %4634 = vmatpush.msra.mxu0 0.0
    %4635 = vmatpush.msra.mxu0 0.0
    %4636 = vmatpush.msra.mxu0 0.0
    %4637 = vmatpush.msra.mxu0 0.0
    %4638 = vmatpush.msra.mxu0 %v4611
    %4639 = vmatpush.msra.mxu0 %v4610
    %4640 = vmatpush.msra.mxu0 %v4609
    %4641 = vmatpush.msra.mxu0 %v4608
    %4642 = vmatpush.msra.mxu0 %v4607
    %4643 = vmatmul.f32.gmra.mxu0 %v4613
    %v4644 = vpop.f32.mrf.mxu0
    %v4645 = vadd.f32 0.0, %v4644
    %4646 = vmatmul.f32.gmra.mxu0 %v4616
    %v4647 = vpop.f32.mrf.mxu0
    %v4648 = vadd.f32 0.0, %v4647
    %4649 = vmatmul.f32.gmra.mxu0 %v4619
    %v4650 = vpop.f32.mrf.mxu0
    %v4651 = vadd.f32 0.0, %v4650
    %4652 = vmatmul.f32.gmra.mxu0 %v4622
    %v4653 = vpop.f32.mrf.mxu0
    %v4654 = vadd.f32 0.0, %v4653
    %4655 = vmatmul.f32.gmra.mxu0 %v4625
    %v4656 = vpop.f32.mrf.mxu0
    %v4657 = vadd.f32 0.0, %v4656
    %4658 = vdwg.mxu0
    %4659 = vst.msk [vmem:[%s522] sm:$0xff] %vm20, %v4645
    %4660 = vst.msk [vmem:[%s522 + $0x8] sm:$0xff] %vm20, %v4648
    %4661 = vst.msk [vmem:[%s522 + $0x10] sm:$0xff] %vm20, %v4651
    %4662 = vst.msk [vmem:[%s522 + $0x18] sm:$0xff] %vm20, %v4654
    %4663 = vst.msk [vmem:[%s522 + $0x20] sm:$0xff] %vm20, %v4657
    %v4664 = vld [vmem:[%s1107] sm:$0xff]
    %v4665 = vld [vmem:[%s1107 + $0x8] sm:$0xff]
    %v4666 = vld [vmem:[%s1107 + $0x10] sm:$0xff]
    %v4667 = vld [vmem:[%s1107 + $0x18] sm:$0xff]
    %v4668 = vld [vmem:[%s1107 + $0x20] sm:$0xff]
    %v4669 = vld [vmem:[%s1172] sm:$0xff]
    %v4670 = vld [vmem:[%s1172 + $0x8] sm:$0xff]
    %v4671 = vld [vmem:[%s1172 + $0x10] sm:$0xff]
    %v4672 = vld [vmem:[%s1172 + $0x18] sm:$0xff]
    %v4673 = vld [vmem:[%s1172 + $0x20] sm:$0xff]
    %v4675 = vsel %vm20, %v4664, 0
    %v4678 = vsel %vm20, %v4665, 0
    %v4681 = vsel %vm20, %v4666, 0
    %v4684 = vsel %vm20, %v4667, 0
    %v4687 = vsel %vm20, %v4668, 0
    %4689 = vmatpush.msra.mxu0 0.0
    %4690 = vmatpush.msra.mxu0 0.0
    %4691 = vmatpush.msra.mxu0 0.0
    %4692 = vmatpush.msra.mxu0 0.0
    %4693 = vmatpush.msra.mxu0 0.0
    %4694 = vmatpush.msra.mxu0 0.0
    %4695 = vmatpush.msra.mxu0 0.0
    %4696 = vmatpush.msra.mxu0 0.0
    %4697 = vmatpush.msra.mxu0 0.0
    %4698 = vmatpush.msra.mxu0 0.0
    %4699 = vmatpush.msra.mxu0 0.0
    %4700 = vmatpush.msra.mxu0 %v4673
    %4701 = vmatpush.msra.mxu0 %v4672
    %4702 = vmatpush.msra.mxu0 %v4671
    %4703 = vmatpush.msra.mxu0 %v4670
    %4704 = vmatpush.msra.mxu0 %v4669
    %4705 = vmatmul.f32.gmra.mxu0 %v4675
    %v4706 = vpop.f32.mrf.mxu0
    %v4707 = vadd.f32 0.0, %v4706
    %4708 = vmatmul.f32.gmra.mxu0 %v4678
    %v4709 = vpop.f32.mrf.mxu0
    %v4710 = vadd.f32 0.0, %v4709
    %4711 = vmatmul.f32.gmra.mxu0 %v4681
    %v4712 = vpop.f32.mrf.mxu0
    %v4713 = vadd.f32 0.0, %v4712
    %4714 = vmatmul.f32.gmra.mxu0 %v4684
    %v4715 = vpop.f32.mrf.mxu0
    %v4716 = vadd.f32 0.0, %v4715
    %4717 = vmatmul.f32.gmra.mxu0 %v4687
    %v4718 = vpop.f32.mrf.mxu0
    %v4719 = vadd.f32 0.0, %v4718
    %4720 = vdwg.mxu0
    %4721 = vst.msk [vmem:[%s587] sm:$0xff] %vm20, %v4707
    %4722 = vst.msk [vmem:[%s587 + $0x8] sm:$0xff] %vm20, %v4710
    %4723 = vst.msk [vmem:[%s587 + $0x10] sm:$0xff] %vm20, %v4713
    %4724 = vst.msk [vmem:[%s587 + $0x18] sm:$0xff] %vm20, %v4716
    %4725 = vst.msk [vmem:[%s587 + $0x20] sm:$0xff] %vm20, %v4719
    %v4726 = vld [vmem:[%s1237] sm:$0xff]
    %v4727 = vld [vmem:[%s1237 + $0x8] sm:$0xff]
    %v4728 = vld [vmem:[%s1237 + $0x10] sm:$0xff]
    %v4729 = vld [vmem:[%s1237 + $0x18] sm:$0xff]
    %v4730 = vld [vmem:[%s1237 + $0x20] sm:$0xff]
    %v4731 = vld [vmem:[%s1302] sm:$0xff]
    %v4732 = vld [vmem:[%s1302 + $0x8] sm:$0xff]
    %v4733 = vld [vmem:[%s1302 + $0x10] sm:$0xff]
    %v4734 = vld [vmem:[%s1302 + $0x18] sm:$0xff]
    %v4735 = vld [vmem:[%s1302 + $0x20] sm:$0xff]
    %v4737 = vsel %vm20, %v4726, 0
    %v4740 = vsel %vm20, %v4727, 0
    %v4743 = vsel %vm20, %v4728, 0
    %v4746 = vsel %vm20, %v4729, 0
    %v4749 = vsel %vm20, %v4730, 0
    %4751 = vmatpush.msra.mxu0 0.0
    %4752 = vmatpush.msra.mxu0 0.0
    %4753 = vmatpush.msra.mxu0 0.0
    %4754 = vmatpush.msra.mxu0 0.0
    %4755 = vmatpush.msra.mxu0 0.0
    %4756 = vmatpush.msra.mxu0 0.0
    %4757 = vmatpush.msra.mxu0 0.0
    %4758 = vmatpush.msra.mxu0 0.0
    %4759 = vmatpush.msra.mxu0 0.0
    %4760 = vmatpush.msra.mxu0 0.0
    %4761 = vmatpush.msra.mxu0 0.0
    %4762 = vmatpush.msra.mxu0 %v4735
    %4763 = vmatpush.msra.mxu0 %v4734
    %4764 = vmatpush.msra.mxu0 %v4733
    %4765 = vmatpush.msra.mxu0 %v4732
    %4766 = vmatpush.msra.mxu0 %v4731
    %4767 = vmatmul.f32.gmra.mxu0 %v4737
    %v4768 = vpop.f32.mrf.mxu0
    %v4769 = vadd.f32 0.0, %v4768
    %4770 = vmatmul.f32.gmra.mxu0 %v4740
    %v4771 = vpop.f32.mrf.mxu0
    %v4772 = vadd.f32 0.0, %v4771
    %4773 = vmatmul.f32.gmra.mxu0 %v4743
    %v4774 = vpop.f32.mrf.mxu0
    %v4775 = vadd.f32 0.0, %v4774
    %4776 = vmatmul.f32.gmra.mxu0 %v4746
    %v4777 = vpop.f32.mrf.mxu0
    %v4778 = vadd.f32 0.0, %v4777
    %4779 = vmatmul.f32.gmra.mxu0 %v4749
    %v4780 = vpop.f32.mrf.mxu0
    %v4781 = vadd.f32 0.0, %v4780
    %4782 = vdwg.mxu0
    %4783 = vst.msk [vmem:[%s652] sm:$0xff] %vm20, %v4769
    %4784 = vst.msk [vmem:[%s652 + $0x8] sm:$0xff] %vm20, %v4772
    %4785 = vst.msk [vmem:[%s652 + $0x10] sm:$0xff] %vm20, %v4775
    %4786 = vst.msk [vmem:[%s652 + $0x18] sm:$0xff] %vm20, %v4778
    %4787 = vst.msk [vmem:[%s652 + $0x20] sm:$0xff] %vm20, %v4781
    %v4788 = vld [vmem:[%s1367] sm:$0xff]
    %v4789 = vld [vmem:[%s1367 + $0x8] sm:$0xff]
    %v4790 = vld [vmem:[%s1367 + $0x10] sm:$0xff]
    %v4791 = vld [vmem:[%s1367 + $0x18] sm:$0xff]
    %v4792 = vld [vmem:[%s1367 + $0x20] sm:$0xff]
    %v4793 = vld [vmem:[%s1432] sm:$0xff]
    %v4794 = vld [vmem:[%s1432 + $0x8] sm:$0xff]
    %v4795 = vld [vmem:[%s1432 + $0x10] sm:$0xff]
    %v4796 = vld [vmem:[%s1432 + $0x18] sm:$0xff]
    %v4797 = vld [vmem:[%s1432 + $0x20] sm:$0xff]
    %v4799 = vsel %vm20, %v4788, 0
    %v4802 = vsel %vm20, %v4789, 0
    %v4805 = vsel %vm20, %v4790, 0
    %v4808 = vsel %vm20, %v4791, 0
    %v4811 = vsel %vm20, %v4792, 0
    %4813 = vmatpush.msra.mxu0 0.0
    %4814 = vmatpush.msra.mxu0 0.0
    %4815 = vmatpush.msra.mxu0 0.0
    %4816 = vmatpush.msra.mxu0 0.0
    %4817 = vmatpush.msra.mxu0 0.0
    %4818 = vmatpush.msra.mxu0 0.0
    %4819 = vmatpush.msra.mxu0 0.0
    %4820 = vmatpush.msra.mxu0 0.0
    %4821 = vmatpush.msra.mxu0 0.0
    %4822 = vmatpush.msra.mxu0 0.0
    %4823 = vmatpush.msra.mxu0 0.0
    %4824 = vmatpush.msra.mxu0 %v4797
    %4825 = vmatpush.msra.mxu0 %v4796
    %4826 = vmatpush.msra.mxu0 %v4795
    %4827 = vmatpush.msra.mxu0 %v4794
    %4828 = vmatpush.msra.mxu0 %v4793
    %4829 = vmatmul.f32.gmra.mxu0 %v4799
    %v4830 = vpop.f32.mrf.mxu0
    %v4831 = vadd.f32 0.0, %v4830
    %4832 = vmatmul.f32.gmra.mxu0 %v4802
    %v4833 = vpop.f32.mrf.mxu0
    %v4834 = vadd.f32 0.0, %v4833
    %4835 = vmatmul.f32.gmra.mxu0 %v4805
    %v4836 = vpop.f32.mrf.mxu0
    %v4837 = vadd.f32 0.0, %v4836
    %4838 = vmatmul.f32.gmra.mxu0 %v4808
    %v4839 = vpop.f32.mrf.mxu0
    %v4840 = vadd.f32 0.0, %v4839
    %4841 = vmatmul.f32.gmra.mxu0 %v4811
    %v4842 = vpop.f32.mrf.mxu0
    %v4843 = vadd.f32 0.0, %v4842
    %4844 = vdwg.mxu0
    %4845 = vst.msk [vmem:[%s717] sm:$0xff] %vm20, %v4831
    %4846 = vst.msk [vmem:[%s717 + $0x8] sm:$0xff] %vm20, %v4834
    %4847 = vst.msk [vmem:[%s717 + $0x10] sm:$0xff] %vm20, %v4837
    %4848 = vst.msk [vmem:[%s717 + $0x18] sm:$0xff] %vm20, %v4840
    %4849 = vst.msk [vmem:[%s717 + $0x20] sm:$0xff] %vm20, %v4843
    %v4850 = vld [vmem:[%s1497] sm:$0xff]
    %v4851 = vld [vmem:[%s1497 + $0x8] sm:$0xff]
    %v4852 = vld [vmem:[%s1497 + $0x10] sm:$0xff]
    %v4853 = vld [vmem:[%s1497 + $0x18] sm:$0xff]
    %v4854 = vld [vmem:[%s1497 + $0x20] sm:$0xff]
    %v4855 = vld [vmem:[%s1562] sm:$0xff]
    %v4856 = vld [vmem:[%s1562 + $0x8] sm:$0xff]
    %v4857 = vld [vmem:[%s1562 + $0x10] sm:$0xff]
    %v4858 = vld [vmem:[%s1562 + $0x18] sm:$0xff]
    %v4859 = vld [vmem:[%s1562 + $0x20] sm:$0xff]
    %v4861 = vsel %vm20, %v4850, 0
    %v4864 = vsel %vm20, %v4851, 0
    %v4867 = vsel %vm20, %v4852, 0
    %v4870 = vsel %vm20, %v4853, 0
    %v4873 = vsel %vm20, %v4854, 0
    %4875 = vmatpush.msra.mxu0 0.0
    %4876 = vmatpush.msra.mxu0 0.0
    %4877 = vmatpush.msra.mxu0 0.0
    %4878 = vmatpush.msra.mxu0 0.0
    %4879 = vmatpush.msra.mxu0 0.0
    %4880 = vmatpush.msra.mxu0 0.0
    %4881 = vmatpush.msra.mxu0 0.0
    %4882 = vmatpush.msra.mxu0 0.0
    %4883 = vmatpush.msra.mxu0 0.0
    %4884 = vmatpush.msra.mxu0 0.0
    %4885 = vmatpush.msra.mxu0 0.0
    %4886 = vmatpush.msra.mxu0 %v4859
    %4887 = vmatpush.msra.mxu0 %v4858
    %4888 = vmatpush.msra.mxu0 %v4857
    %4889 = vmatpush.msra.mxu0 %v4856
    %4890 = vmatpush.msra.mxu0 %v4855
    %4891 = vmatmul.f32.gmra.mxu0 %v4861
    %v4892 = vpop.f32.mrf.mxu0
    %v4893 = vadd.f32 0.0, %v4892
    %4894 = vmatmul.f32.gmra.mxu0 %v4864
    %v4895 = vpop.f32.mrf.mxu0
    %v4896 = vadd.f32 0.0, %v4895
    %4897 = vmatmul.f32.gmra.mxu0 %v4867
    %v4898 = vpop.f32.mrf.mxu0
    %v4899 = vadd.f32 0.0, %v4898
    %4900 = vmatmul.f32.gmra.mxu0 %v4870
    %v4901 = vpop.f32.mrf.mxu0
    %v4902 = vadd.f32 0.0, %v4901
    %4903 = vmatmul.f32.gmra.mxu0 %v4873
    %v4904 = vpop.f32.mrf.mxu0
    %v4905 = vadd.f32 0.0, %v4904
    %4906 = vdwg.mxu0
    %4907 = vst.msk [vmem:[%s782] sm:$0xff] %vm20, %v4893
    %4908 = vst.msk [vmem:[%s782 + $0x8] sm:$0xff] %vm20, %v4896
    %4909 = vst.msk [vmem:[%s782 + $0x10] sm:$0xff] %vm20, %v4899
    %4910 = vst.msk [vmem:[%s782 + $0x18] sm:$0xff] %vm20, %v4902
    %4911 = vst.msk [vmem:[%s782 + $0x20] sm:$0xff] %vm20, %v4905
    %v4912 = vld [vmem:[%s1627] sm:$0xff]
    %v4913 = vld [vmem:[%s1627 + $0x8] sm:$0xff]
    %v4914 = vld [vmem:[%s1627 + $0x10] sm:$0xff]
    %v4915 = vld [vmem:[%s1627 + $0x18] sm:$0xff]
    %v4916 = vld [vmem:[%s1627 + $0x20] sm:$0xff]
    %v4917 = vld [vmem:[%s1692] sm:$0xff]
    %v4918 = vld [vmem:[%s1692 + $0x8] sm:$0xff]
    %v4919 = vld [vmem:[%s1692 + $0x10] sm:$0xff]
    %v4920 = vld [vmem:[%s1692 + $0x18] sm:$0xff]
    %v4921 = vld [vmem:[%s1692 + $0x20] sm:$0xff]
    %v4923 = vsel %vm20, %v4912, 0
    %v4926 = vsel %vm20, %v4913, 0
    %v4929 = vsel %vm20, %v4914, 0
    %v4932 = vsel %vm20, %v4915, 0
    %v4935 = vsel %vm20, %v4916, 0
    %4937 = vmatpush.msra.mxu0 0.0
    %4938 = vmatpush.msra.mxu0 0.0
    %4939 = vmatpush.msra.mxu0 0.0
    %4940 = vmatpush.msra.mxu0 0.0
    %4941 = vmatpush.msra.mxu0 0.0
    %4942 = vmatpush.msra.mxu0 0.0
    %4943 = vmatpush.msra.mxu0 0.0
    %4944 = vmatpush.msra.mxu0 0.0
    %4945 = vmatpush.msra.mxu0 0.0
    %4946 = vmatpush.msra.mxu0 0.0
    %4947 = vmatpush.msra.mxu0 0.0
    %4948 = vmatpush.msra.mxu0 %v4921
    %4949 = vmatpush.msra.mxu0 %v4920
    %4950 = vmatpush.msra.mxu0 %v4919
    %4951 = vmatpush.msra.mxu0 %v4918
    %4952 = vmatpush.msra.mxu0 %v4917
    %4953 = vmatmul.f32.gmra.mxu0 %v4923
    %v4954 = vpop.f32.mrf.mxu0
    %v4955 = vadd.f32 0.0, %v4954
    %4956 = vmatmul.f32.gmra.mxu0 %v4926
    %v4957 = vpop.f32.mrf.mxu0
    %v4958 = vadd.f32 0.0, %v4957
    %4959 = vmatmul.f32.gmra.mxu0 %v4929
    %v4960 = vpop.f32.mrf.mxu0
    %v4961 = vadd.f32 0.0, %v4960
    %4962 = vmatmul.f32.gmra.mxu0 %v4932
    %v4963 = vpop.f32.mrf.mxu0
    %v4964 = vadd.f32 0.0, %v4963
    %4965 = vmatmul.f32.gmra.mxu0 %v4935
    %v4966 = vpop.f32.mrf.mxu0
    %v4967 = vadd.f32 0.0, %v4966
    %4968 = vdwg.mxu0
    %4969 = vst.msk [vmem:[%s847] sm:$0xff] %vm20, %v4955
    %4970 = vst.msk [vmem:[%s847 + $0x8] sm:$0xff] %vm20, %v4958
    %4971 = vst.msk [vmem:[%s847 + $0x10] sm:$0xff] %vm20, %v4961
    %4972 = vst.msk [vmem:[%s847 + $0x18] sm:$0xff] %vm20, %v4964
    %4973 = vst.msk [vmem:[%s847 + $0x20] sm:$0xff] %vm20, %v4967
    %v4974 = vld [vmem:[%s1757] sm:$0xff]
    %v4975 = vld [vmem:[%s1757 + $0x8] sm:$0xff]
    %v4976 = vld [vmem:[%s1757 + $0x10] sm:$0xff]
    %v4977 = vld [vmem:[%s1757 + $0x18] sm:$0xff]
    %v4978 = vld [vmem:[%s1757 + $0x20] sm:$0xff]
    %v4979 = vld [vmem:[%s1822] sm:$0xff]
    %v4980 = vld [vmem:[%s1822 + $0x8] sm:$0xff]
    %v4981 = vld [vmem:[%s1822 + $0x10] sm:$0xff]
    %v4982 = vld [vmem:[%s1822 + $0x18] sm:$0xff]
    %v4983 = vld [vmem:[%s1822 + $0x20] sm:$0xff]
    %v4985 = vsel %vm20, %v4974, 0
    %v4988 = vsel %vm20, %v4975, 0
    %v4991 = vsel %vm20, %v4976, 0
    %v4994 = vsel %vm20, %v4977, 0
    %v4997 = vsel %vm20, %v4978, 0
    %4999 = vmatpush.msra.mxu0 0.0
    %5000 = vmatpush.msra.mxu0 0.0
    %5001 = vmatpush.msra.mxu0 0.0
    %5002 = vmatpush.msra.mxu0 0.0
    %5003 = vmatpush.msra.mxu0 0.0
    %5004 = vmatpush.msra.mxu0 0.0
    %5005 = vmatpush.msra.mxu0 0.0
    %5006 = vmatpush.msra.mxu0 0.0
    %5007 = vmatpush.msra.mxu0 0.0
    %5008 = vmatpush.msra.mxu0 0.0
    %5009 = vmatpush.msra.mxu0 0.0
    %5010 = vmatpush.msra.mxu0 %v4983
    %5011 = vmatpush.msra.mxu0 %v4982
    %5012 = vmatpush.msra.mxu0 %v4981
    %5013 = vmatpush.msra.mxu0 %v4980
    %5014 = vmatpush.msra.mxu0 %v4979
    %5015 = vmatmul.f32.gmra.mxu0 %v4985
    %v5016 = vpop.f32.mrf.mxu0
    %v5017 = vadd.f32 0.0, %v5016
    %5018 = vmatmul.f32.gmra.mxu0 %v4988
    %v5019 = vpop.f32.mrf.mxu0
    %v5020 = vadd.f32 0.0, %v5019
    %5021 = vmatmul.f32.gmra.mxu0 %v4991
    %v5022 = vpop.f32.mrf.mxu0
    %v5023 = vadd.f32 0.0, %v5022
    %5024 = vmatmul.f32.gmra.mxu0 %v4994
    %v5025 = vpop.f32.mrf.mxu0
    %v5026 = vadd.f32 0.0, %v5025
    %5027 = vmatmul.f32.gmra.mxu0 %v4997
    %v5028 = vpop.f32.mrf.mxu0
    %v5029 = vadd.f32 0.0, %v5028
    %5030 = vdwg.mxu0
    %5031 = vst.msk [vmem:[%s912] sm:$0xff] %vm20, %v5017
    %5032 = vst.msk [vmem:[%s912 + $0x8] sm:$0xff] %vm20, %v5020
    %5033 = vst.msk [vmem:[%s912 + $0x10] sm:$0xff] %vm20, %v5023
    %5034 = vst.msk [vmem:[%s912 + $0x18] sm:$0xff] %vm20, %v5026
    %5035 = vst.msk [vmem:[%s912 + $0x20] sm:$0xff] %vm20, %v5029
    %v5036 = vld [vmem:[%s1887] sm:$0xff]
    %v5037 = vld [vmem:[%s1887 + $0x8] sm:$0xff]
    %v5038 = vld [vmem:[%s1887 + $0x10] sm:$0xff]
    %v5039 = vld [vmem:[%s1887 + $0x18] sm:$0xff]
    %v5040 = vld [vmem:[%s1887 + $0x20] sm:$0xff]
    %v5041 = vld [vmem:[%s1952] sm:$0xff]
    %v5042 = vld [vmem:[%s1952 + $0x8] sm:$0xff]
    %v5043 = vld [vmem:[%s1952 + $0x10] sm:$0xff]
    %v5044 = vld [vmem:[%s1952 + $0x18] sm:$0xff]
    %v5045 = vld [vmem:[%s1952 + $0x20] sm:$0xff]
    %v5047 = vsel %vm20, %v5036, 0
    %v5050 = vsel %vm20, %v5037, 0
    %v5053 = vsel %vm20, %v5038, 0
    %v5056 = vsel %vm20, %v5039, 0
    %v5059 = vsel %vm20, %v5040, 0
    %5061 = vmatpush.msra.mxu0 0.0
    %5062 = vmatpush.msra.mxu0 0.0
    %5063 = vmatpush.msra.mxu0 0.0
    %5064 = vmatpush.msra.mxu0 0.0
    %5065 = vmatpush.msra.mxu0 0.0
    %5066 = vmatpush.msra.mxu0 0.0
    %5067 = vmatpush.msra.mxu0 0.0
    %5068 = vmatpush.msra.mxu0 0.0
    %5069 = vmatpush.msra.mxu0 0.0
    %5070 = vmatpush.msra.mxu0 0.0
    %5071 = vmatpush.msra.mxu0 0.0
    %5072 = vmatpush.msra.mxu0 %v5045
    %5073 = vmatpush.msra.mxu0 %v5044
    %5074 = vmatpush.msra.mxu0 %v5043
    %5075 = vmatpush.msra.mxu0 %v5042
    %5076 = vmatpush.msra.mxu0 %v5041
    %5077 = vmatmul.f32.gmra.mxu0 %v5047
    %v5078 = vpop.f32.mrf.mxu0
    %v5079 = vadd.f32 0.0, %v5078
    %5080 = vmatmul.f32.gmra.mxu0 %v5050
    %v5081 = vpop.f32.mrf.mxu0
    %v5082 = vadd.f32 0.0, %v5081
    %5083 = vmatmul.f32.gmra.mxu0 %v5053
    %v5084 = vpop.f32.mrf.mxu0
    %v5085 = vadd.f32 0.0, %v5084
    %5086 = vmatmul.f32.gmra.mxu0 %v5056
    %v5087 = vpop.f32.mrf.mxu0
    %v5088 = vadd.f32 0.0, %v5087
    %5089 = vmatmul.f32.gmra.mxu0 %v5059
    %v5090 = vpop.f32.mrf.mxu0
    %v5091 = vadd.f32 0.0, %v5090
    %5092 = vdwg.mxu0
    %5093 = vst.msk [vmem:[%s977] sm:$0xff] %vm20, %v5079
    %5094 = vst.msk [vmem:[%s977 + $0x8] sm:$0xff] %vm20, %v5082
    %5095 = vst.msk [vmem:[%s977 + $0x10] sm:$0xff] %vm20, %v5085
    %5096 = vst.msk [vmem:[%s977 + $0x18] sm:$0xff] %vm20, %v5088
    %5097 = vst.msk [vmem:[%s977 + $0x20] sm:$0xff] %vm20, %v5091
    %v5098 = vld [vmem:[%s2017] sm:$0xff]
    %v5099 = vld [vmem:[%s2017 + $0x8] sm:$0xff]
    %v5100 = vld [vmem:[%s2017 + $0x10] sm:$0xff]
    %v5101 = vld [vmem:[%s2017 + $0x18] sm:$0xff]
    %v5102 = vld [vmem:[%s2017 + $0x20] sm:$0xff]
    %v5103 = vld [vmem:[%s2082] sm:$0xff]
    %v5104 = vld [vmem:[%s2082 + $0x8] sm:$0xff]
    %v5105 = vld [vmem:[%s2082 + $0x10] sm:$0xff]
    %v5106 = vld [vmem:[%s2082 + $0x18] sm:$0xff]
    %v5107 = vld [vmem:[%s2082 + $0x20] sm:$0xff]
    %v5109 = vsel %vm20, %v5098, 0
    %v5112 = vsel %vm20, %v5099, 0
    %v5115 = vsel %vm20, %v5100, 0
    %v5118 = vsel %vm20, %v5101, 0
    %v5121 = vsel %vm20, %v5102, 0
    %5123 = vmatpush.msra.mxu0 0.0
    %5124 = vmatpush.msra.mxu0 0.0
    %5125 = vmatpush.msra.mxu0 0.0
    %5126 = vmatpush.msra.mxu0 0.0
    %5127 = vmatpush.msra.mxu0 0.0
    %5128 = vmatpush.msra.mxu0 0.0
    %5129 = vmatpush.msra.mxu0 0.0
    %5130 = vmatpush.msra.mxu0 0.0
    %5131 = vmatpush.msra.mxu0 0.0
    %5132 = vmatpush.msra.mxu0 0.0
    %5133 = vmatpush.msra.mxu0 0.0
    %5134 = vmatpush.msra.mxu0 %v5107
    %5135 = vmatpush.msra.mxu0 %v5106
    %5136 = vmatpush.msra.mxu0 %v5105
    %5137 = vmatpush.msra.mxu0 %v5104
    %5138 = vmatpush.msra.mxu0 %v5103
    %5139 = vmatmul.f32.gmra.mxu0 %v5109
    %v5140 = vpop.f32.mrf.mxu0
    %v5141 = vadd.f32 0.0, %v5140
    %5142 = vmatmul.f32.gmra.mxu0 %v5112
    %v5143 = vpop.f32.mrf.mxu0
    %v5144 = vadd.f32 0.0, %v5143
    %5145 = vmatmul.f32.gmra.mxu0 %v5115
    %v5146 = vpop.f32.mrf.mxu0
    %v5147 = vadd.f32 0.0, %v5146
    %5148 = vmatmul.f32.gmra.mxu0 %v5118
    %v5149 = vpop.f32.mrf.mxu0
    %v5150 = vadd.f32 0.0, %v5149
    %5151 = vmatmul.f32.gmra.mxu0 %v5121
    %v5152 = vpop.f32.mrf.mxu0
    %v5153 = vadd.f32 0.0, %v5152
    %5154 = vdwg.mxu0
    %5155 = vst.msk [vmem:[%s1042] sm:$0xff] %vm20, %v5141
    %5156 = vst.msk [vmem:[%s1042 + $0x8] sm:$0xff] %vm20, %v5144
    %5157 = vst.msk [vmem:[%s1042 + $0x10] sm:$0xff] %vm20, %v5147
    %5158 = vst.msk [vmem:[%s1042 + $0x18] sm:$0xff] %vm20, %v5150
    %5159 = vst.msk [vmem:[%s1042 + $0x20] sm:$0xff] %vm20, %v5153
    %v5160 = vld [vmem:[%s2147] sm:$0xff]
    %v5161 = vld [vmem:[%s2147 + $0x8] sm:$0xff]
    %v5162 = vld [vmem:[%s2147 + $0x10] sm:$0xff]
    %v5163 = vld [vmem:[%s2147 + $0x18] sm:$0xff]
    %v5164 = vld [vmem:[%s2147 + $0x20] sm:$0xff]
    %v5165 = vld [vmem:[%s2212] sm:$0xff]
    %v5166 = vld [vmem:[%s2212 + $0x8] sm:$0xff]
    %v5167 = vld [vmem:[%s2212 + $0x10] sm:$0xff]
    %v5168 = vld [vmem:[%s2212 + $0x18] sm:$0xff]
    %v5169 = vld [vmem:[%s2212 + $0x20] sm:$0xff]
    %v5171 = vsel %vm20, %v5160, 0
    %v5174 = vsel %vm20, %v5161, 0
    %v5177 = vsel %vm20, %v5162, 0
    %v5180 = vsel %vm20, %v5163, 0
    %v5183 = vsel %vm20, %v5164, 0
    %5185 = vmatpush.msra.mxu0 0.0
    %5186 = vmatpush.msra.mxu0 0.0
    %5187 = vmatpush.msra.mxu0 0.0
    %5188 = vmatpush.msra.mxu0 0.0
    %5189 = vmatpush.msra.mxu0 0.0
    %5190 = vmatpush.msra.mxu0 0.0
    %5191 = vmatpush.msra.mxu0 0.0
    %5192 = vmatpush.msra.mxu0 0.0
    %5193 = vmatpush.msra.mxu0 0.0
    %5194 = vmatpush.msra.mxu0 0.0
    %5195 = vmatpush.msra.mxu0 0.0
    %5196 = vmatpush.msra.mxu0 %v5169
    %5197 = vmatpush.msra.mxu0 %v5168
    %5198 = vmatpush.msra.mxu0 %v5167
    %5199 = vmatpush.msra.mxu0 %v5166
    %5200 = vmatpush.msra.mxu0 %v5165
    %5201 = vmatmul.f32.gmra.mxu0 %v5171
    %v5202 = vpop.f32.mrf.mxu0
    %v5203 = vadd.f32 0.0, %v5202
    %5204 = vmatmul.f32.gmra.mxu0 %v5174
    %v5205 = vpop.f32.mrf.mxu0
    %v5206 = vadd.f32 0.0, %v5205
    %5207 = vmatmul.f32.gmra.mxu0 %v5177
    %v5208 = vpop.f32.mrf.mxu0
    %v5209 = vadd.f32 0.0, %v5208
    %5210 = vmatmul.f32.gmra.mxu0 %v5180
    %v5211 = vpop.f32.mrf.mxu0
    %v5212 = vadd.f32 0.0, %v5211
    %5213 = vmatmul.f32.gmra.mxu0 %v5183
    %v5214 = vpop.f32.mrf.mxu0
    %v5215 = vadd.f32 0.0, %v5214
    %5216 = vdwg.mxu0
    %5217 = vst.msk [vmem:[%s1107] sm:$0xff] %vm20, %v5203
    %5218 = vst.msk [vmem:[%s1107 + $0x8] sm:$0xff] %vm20, %v5206
    %5219 = vst.msk [vmem:[%s1107 + $0x10] sm:$0xff] %vm20, %v5209
    %5220 = vst.msk [vmem:[%s1107 + $0x18] sm:$0xff] %vm20, %v5212
    %5221 = vst.msk [vmem:[%s1107 + $0x20] sm:$0xff] %vm20, %v5215
    %v5222 = vld [vmem:[%s2277] sm:$0xff]
    %v5223 = vld [vmem:[%s2277 + $0x8] sm:$0xff]
    %v5224 = vld [vmem:[%s2277 + $0x10] sm:$0xff]
    %v5225 = vld [vmem:[%s2277 + $0x18] sm:$0xff]
    %v5226 = vld [vmem:[%s2277 + $0x20] sm:$0xff]
    %v5227 = vld [vmem:[%s2342] sm:$0xff]
    %v5228 = vld [vmem:[%s2342 + $0x8] sm:$0xff]
    %v5229 = vld [vmem:[%s2342 + $0x10] sm:$0xff]
    %v5230 = vld [vmem:[%s2342 + $0x18] sm:$0xff]
    %v5231 = vld [vmem:[%s2342 + $0x20] sm:$0xff]
    %v5233 = vsel %vm20, %v5222, 0
    %v5236 = vsel %vm20, %v5223, 0
    %v5239 = vsel %vm20, %v5224, 0
    %v5242 = vsel %vm20, %v5225, 0
    %v5245 = vsel %vm20, %v5226, 0
    %5247 = vmatpush.msra.mxu0 0.0
    %5248 = vmatpush.msra.mxu0 0.0
    %5249 = vmatpush.msra.mxu0 0.0
    %5250 = vmatpush.msra.mxu0 0.0
    %5251 = vmatpush.msra.mxu0 0.0
    %5252 = vmatpush.msra.mxu0 0.0
    %5253 = vmatpush.msra.mxu0 0.0
    %5254 = vmatpush.msra.mxu0 0.0
    %5255 = vmatpush.msra.mxu0 0.0
    %5256 = vmatpush.msra.mxu0 0.0
    %5257 = vmatpush.msra.mxu0 0.0
    %5258 = vmatpush.msra.mxu0 %v5231
    %5259 = vmatpush.msra.mxu0 %v5230
    %5260 = vmatpush.msra.mxu0 %v5229
    %5261 = vmatpush.msra.mxu0 %v5228
    %5262 = vmatpush.msra.mxu0 %v5227
    %5263 = vmatmul.f32.gmra.mxu0 %v5233
    %v5264 = vpop.f32.mrf.mxu0
    %v5265 = vadd.f32 0.0, %v5264
    %5266 = vmatmul.f32.gmra.mxu0 %v5236
    %v5267 = vpop.f32.mrf.mxu0
    %v5268 = vadd.f32 0.0, %v5267
    %5269 = vmatmul.f32.gmra.mxu0 %v5239
    %v5270 = vpop.f32.mrf.mxu0
    %v5271 = vadd.f32 0.0, %v5270
    %5272 = vmatmul.f32.gmra.mxu0 %v5242
    %v5273 = vpop.f32.mrf.mxu0
    %v5274 = vadd.f32 0.0, %v5273
    %5275 = vmatmul.f32.gmra.mxu0 %v5245
    %v5276 = vpop.f32.mrf.mxu0
    %v5277 = vadd.f32 0.0, %v5276
    %5278 = vdwg.mxu0
    %5279 = vst.msk [vmem:[%s1172] sm:$0xff] %vm20, %v5265
    %5280 = vst.msk [vmem:[%s1172 + $0x8] sm:$0xff] %vm20, %v5268
    %5281 = vst.msk [vmem:[%s1172 + $0x10] sm:$0xff] %vm20, %v5271
    %5282 = vst.msk [vmem:[%s1172 + $0x18] sm:$0xff] %vm20, %v5274
    %5283 = vst.msk [vmem:[%s1172 + $0x20] sm:$0xff] %vm20, %v5277
    %v5284 = vld [vmem:[%s2407] sm:$0xff]
    %v5285 = vld [vmem:[%s2407 + $0x8] sm:$0xff]
    %v5286 = vld [vmem:[%s2407 + $0x10] sm:$0xff]
    %v5287 = vld [vmem:[%s2407 + $0x18] sm:$0xff]
    %v5288 = vld [vmem:[%s2407 + $0x20] sm:$0xff]
    %v5289 = vld [vmem:[%s2472] sm:$0xff]
    %v5290 = vld [vmem:[%s2472 + $0x8] sm:$0xff]
    %v5291 = vld [vmem:[%s2472 + $0x10] sm:$0xff]
    %v5292 = vld [vmem:[%s2472 + $0x18] sm:$0xff]
    %v5293 = vld [vmem:[%s2472 + $0x20] sm:$0xff]
    %v5295 = vsel %vm20, %v5284, 0
    %v5298 = vsel %vm20, %v5285, 0
    %v5301 = vsel %vm20, %v5286, 0
    %v5304 = vsel %vm20, %v5287, 0
    %v5307 = vsel %vm20, %v5288, 0
    %5309 = vmatpush.msra.mxu0 0.0
    %5310 = vmatpush.msra.mxu0 0.0
    %5311 = vmatpush.msra.mxu0 0.0
    %5312 = vmatpush.msra.mxu0 0.0
    %5313 = vmatpush.msra.mxu0 0.0
    %5314 = vmatpush.msra.mxu0 0.0
    %5315 = vmatpush.msra.mxu0 0.0
    %5316 = vmatpush.msra.mxu0 0.0
    %5317 = vmatpush.msra.mxu0 0.0
    %5318 = vmatpush.msra.mxu0 0.0
    %5319 = vmatpush.msra.mxu0 0.0
    %5320 = vmatpush.msra.mxu0 %v5293
    %5321 = vmatpush.msra.mxu0 %v5292
    %5322 = vmatpush.msra.mxu0 %v5291
    %5323 = vmatpush.msra.mxu0 %v5290
    %5324 = vmatpush.msra.mxu0 %v5289
    %5325 = vmatmul.f32.gmra.mxu0 %v5295
    %v5326 = vpop.f32.mrf.mxu0
    %v5327 = vadd.f32 0.0, %v5326
    %5328 = vmatmul.f32.gmra.mxu0 %v5298
    %v5329 = vpop.f32.mrf.mxu0
    %v5330 = vadd.f32 0.0, %v5329
    %5331 = vmatmul.f32.gmra.mxu0 %v5301
    %v5332 = vpop.f32.mrf.mxu0
    %v5333 = vadd.f32 0.0, %v5332
    %5334 = vmatmul.f32.gmra.mxu0 %v5304
    %v5335 = vpop.f32.mrf.mxu0
    %v5336 = vadd.f32 0.0, %v5335
    %5337 = vmatmul.f32.gmra.mxu0 %v5307
    %v5338 = vpop.f32.mrf.mxu0
    %v5339 = vadd.f32 0.0, %v5338
    %5340 = vdwg.mxu0
    %5341 = vst.msk [vmem:[%s1237] sm:$0xff] %vm20, %v5327
    %5342 = vst.msk [vmem:[%s1237 + $0x8] sm:$0xff] %vm20, %v5330
    %5343 = vst.msk [vmem:[%s1237 + $0x10] sm:$0xff] %vm20, %v5333
    %5344 = vst.msk [vmem:[%s1237 + $0x18] sm:$0xff] %vm20, %v5336
    %5345 = vst.msk [vmem:[%s1237 + $0x20] sm:$0xff] %vm20, %v5339
    %v5346 = vld [vmem:[%s2537] sm:$0xff]
    %v5347 = vld [vmem:[%s2537 + $0x8] sm:$0xff]
    %v5348 = vld [vmem:[%s2537 + $0x10] sm:$0xff]
    %v5349 = vld [vmem:[%s2537 + $0x18] sm:$0xff]
    %v5350 = vld [vmem:[%s2537 + $0x20] sm:$0xff]
    %v5351 = vld [vmem:[%s2602] sm:$0xff]
    %v5352 = vld [vmem:[%s2602 + $0x8] sm:$0xff]
    %v5353 = vld [vmem:[%s2602 + $0x10] sm:$0xff]
    %v5354 = vld [vmem:[%s2602 + $0x18] sm:$0xff]
    %v5355 = vld [vmem:[%s2602 + $0x20] sm:$0xff]
    %v5357 = vsel %vm20, %v5346, 0
    %v5360 = vsel %vm20, %v5347, 0
    %v5363 = vsel %vm20, %v5348, 0
    %v5366 = vsel %vm20, %v5349, 0
    %v5369 = vsel %vm20, %v5350, 0
    %5371 = vmatpush.msra.mxu0 0.0
    %5372 = vmatpush.msra.mxu0 0.0
    %5373 = vmatpush.msra.mxu0 0.0
    %5374 = vmatpush.msra.mxu0 0.0
    %5375 = vmatpush.msra.mxu0 0.0
    %5376 = vmatpush.msra.mxu0 0.0
    %5377 = vmatpush.msra.mxu0 0.0
    %5378 = vmatpush.msra.mxu0 0.0
    %5379 = vmatpush.msra.mxu0 0.0
    %5380 = vmatpush.msra.mxu0 0.0
    %5381 = vmatpush.msra.mxu0 0.0
    %5382 = vmatpush.msra.mxu0 %v5355
    %5383 = vmatpush.msra.mxu0 %v5354
    %5384 = vmatpush.msra.mxu0 %v5353
    %5385 = vmatpush.msra.mxu0 %v5352
    %5386 = vmatpush.msra.mxu0 %v5351
    %5387 = vmatmul.f32.gmra.mxu0 %v5357
    %v5388 = vpop.f32.mrf.mxu0
    %v5389 = vadd.f32 0.0, %v5388
    %5390 = vmatmul.f32.gmra.mxu0 %v5360
    %v5391 = vpop.f32.mrf.mxu0
    %v5392 = vadd.f32 0.0, %v5391
    %5393 = vmatmul.f32.gmra.mxu0 %v5363
    %v5394 = vpop.f32.mrf.mxu0
    %v5395 = vadd.f32 0.0, %v5394
    %5396 = vmatmul.f32.gmra.mxu0 %v5366
    %v5397 = vpop.f32.mrf.mxu0
    %v5398 = vadd.f32 0.0, %v5397
    %5399 = vmatmul.f32.gmra.mxu0 %v5369
    %v5400 = vpop.f32.mrf.mxu0
    %v5401 = vadd.f32 0.0, %v5400
    %5402 = vdwg.mxu0
    %5403 = vst.msk [vmem:[%s1302] sm:$0xff] %vm20, %v5389
    %5404 = vst.msk [vmem:[%s1302 + $0x8] sm:$0xff] %vm20, %v5392
    %5405 = vst.msk [vmem:[%s1302 + $0x10] sm:$0xff] %vm20, %v5395
    %5406 = vst.msk [vmem:[%s1302 + $0x18] sm:$0xff] %vm20, %v5398
    %5407 = vst.msk [vmem:[%s1302 + $0x20] sm:$0xff] %vm20, %v5401
    %v5408 = vld [vmem:[%s2667] sm:$0xff]
    %v5409 = vld [vmem:[%s2667 + $0x8] sm:$0xff]
    %v5410 = vld [vmem:[%s2667 + $0x10] sm:$0xff]
    %v5411 = vld [vmem:[%s2667 + $0x18] sm:$0xff]
    %v5412 = vld [vmem:[%s2667 + $0x20] sm:$0xff]
    %v5413 = vld [vmem:[%s2732] sm:$0xff]
    %v5414 = vld [vmem:[%s2732 + $0x8] sm:$0xff]
    %v5415 = vld [vmem:[%s2732 + $0x10] sm:$0xff]
    %v5416 = vld [vmem:[%s2732 + $0x18] sm:$0xff]
    %v5417 = vld [vmem:[%s2732 + $0x20] sm:$0xff]
    %v5419 = vsel %vm20, %v5408, 0
    %v5422 = vsel %vm20, %v5409, 0
    %v5425 = vsel %vm20, %v5410, 0
    %v5428 = vsel %vm20, %v5411, 0
    %v5431 = vsel %vm20, %v5412, 0
    %5433 = vmatpush.msra.mxu0 0.0
    %5434 = vmatpush.msra.mxu0 0.0
    %5435 = vmatpush.msra.mxu0 0.0
    %5436 = vmatpush.msra.mxu0 0.0
    %5437 = vmatpush.msra.mxu0 0.0
    %5438 = vmatpush.msra.mxu0 0.0
    %5439 = vmatpush.msra.mxu0 0.0
    %5440 = vmatpush.msra.mxu0 0.0
    %5441 = vmatpush.msra.mxu0 0.0
    %5442 = vmatpush.msra.mxu0 0.0
    %5443 = vmatpush.msra.mxu0 0.0
    %5444 = vmatpush.msra.mxu0 %v5417
    %5445 = vmatpush.msra.mxu0 %v5416
    %5446 = vmatpush.msra.mxu0 %v5415
    %5447 = vmatpush.msra.mxu0 %v5414
    %5448 = vmatpush.msra.mxu0 %v5413
    %5449 = vmatmul.f32.gmra.mxu0 %v5419
    %v5450 = vpop.f32.mrf.mxu0
    %v5451 = vadd.f32 0.0, %v5450
    %5452 = vmatmul.f32.gmra.mxu0 %v5422
    %v5453 = vpop.f32.mrf.mxu0
    %v5454 = vadd.f32 0.0, %v5453
    %5455 = vmatmul.f32.gmra.mxu0 %v5425
    %v5456 = vpop.f32.mrf.mxu0
    %v5457 = vadd.f32 0.0, %v5456
    %5458 = vmatmul.f32.gmra.mxu0 %v5428
    %v5459 = vpop.f32.mrf.mxu0
    %v5460 = vadd.f32 0.0, %v5459
    %5461 = vmatmul.f32.gmra.mxu0 %v5431
    %v5462 = vpop.f32.mrf.mxu0
    %v5463 = vadd.f32 0.0, %v5462
    %5464 = vdwg.mxu0
    %5465 = vst.msk [vmem:[%s1367] sm:$0xff] %vm20, %v5451
    %5466 = vst.msk [vmem:[%s1367 + $0x8] sm:$0xff] %vm20, %v5454
    %5467 = vst.msk [vmem:[%s1367 + $0x10] sm:$0xff] %vm20, %v5457
    %5468 = vst.msk [vmem:[%s1367 + $0x18] sm:$0xff] %vm20, %v5460
    %5469 = vst.msk [vmem:[%s1367 + $0x20] sm:$0xff] %vm20, %v5463
    %v5470 = vld [vmem:[%s2797] sm:$0xff]
    %v5471 = vld [vmem:[%s2797 + $0x8] sm:$0xff]
    %v5472 = vld [vmem:[%s2797 + $0x10] sm:$0xff]
    %v5473 = vld [vmem:[%s2797 + $0x18] sm:$0xff]
    %v5474 = vld [vmem:[%s2797 + $0x20] sm:$0xff]
    %v5475 = vld [vmem:[%s2862] sm:$0xff]
    %v5476 = vld [vmem:[%s2862 + $0x8] sm:$0xff]
    %v5477 = vld [vmem:[%s2862 + $0x10] sm:$0xff]
    %v5478 = vld [vmem:[%s2862 + $0x18] sm:$0xff]
    %v5479 = vld [vmem:[%s2862 + $0x20] sm:$0xff]
    %v5481 = vsel %vm20, %v5470, 0
    %v5484 = vsel %vm20, %v5471, 0
    %v5487 = vsel %vm20, %v5472, 0
    %v5490 = vsel %vm20, %v5473, 0
    %v5493 = vsel %vm20, %v5474, 0
    %5495 = vmatpush.msra.mxu0 0.0
    %5496 = vmatpush.msra.mxu0 0.0
    %5497 = vmatpush.msra.mxu0 0.0
    %5498 = vmatpush.msra.mxu0 0.0
    %5499 = vmatpush.msra.mxu0 0.0
    %5500 = vmatpush.msra.mxu0 0.0
    %5501 = vmatpush.msra.mxu0 0.0
    %5502 = vmatpush.msra.mxu0 0.0
    %5503 = vmatpush.msra.mxu0 0.0
    %5504 = vmatpush.msra.mxu0 0.0
    %5505 = vmatpush.msra.mxu0 0.0
    %5506 = vmatpush.msra.mxu0 %v5479
    %5507 = vmatpush.msra.mxu0 %v5478
    %5508 = vmatpush.msra.mxu0 %v5477
    %5509 = vmatpush.msra.mxu0 %v5476
    %5510 = vmatpush.msra.mxu0 %v5475
    %5511 = vmatmul.f32.gmra.mxu0 %v5481
    %v5512 = vpop.f32.mrf.mxu0
    %v5513 = vadd.f32 0.0, %v5512
    %5514 = vmatmul.f32.gmra.mxu0 %v5484
    %v5515 = vpop.f32.mrf.mxu0
    %v5516 = vadd.f32 0.0, %v5515
    %5517 = vmatmul.f32.gmra.mxu0 %v5487
    %v5518 = vpop.f32.mrf.mxu0
    %v5519 = vadd.f32 0.0, %v5518
    %5520 = vmatmul.f32.gmra.mxu0 %v5490
    %v5521 = vpop.f32.mrf.mxu0
    %v5522 = vadd.f32 0.0, %v5521
    %5523 = vmatmul.f32.gmra.mxu0 %v5493
    %v5524 = vpop.f32.mrf.mxu0
    %v5525 = vadd.f32 0.0, %v5524
    %5526 = vdwg.mxu0
    %5527 = vst.msk [vmem:[%s1432] sm:$0xff] %vm20, %v5513
    %5528 = vst.msk [vmem:[%s1432 + $0x8] sm:$0xff] %vm20, %v5516
    %5529 = vst.msk [vmem:[%s1432 + $0x10] sm:$0xff] %vm20, %v5519
    %5530 = vst.msk [vmem:[%s1432 + $0x18] sm:$0xff] %vm20, %v5522
    %5531 = vst.msk [vmem:[%s1432 + $0x20] sm:$0xff] %vm20, %v5525
    %v5532 = vld [vmem:[%s2927] sm:$0xff]
    %v5533 = vld [vmem:[%s2927 + $0x8] sm:$0xff]
    %v5534 = vld [vmem:[%s2927 + $0x10] sm:$0xff]
    %v5535 = vld [vmem:[%s2927 + $0x18] sm:$0xff]
    %v5536 = vld [vmem:[%s2927 + $0x20] sm:$0xff]
    %v5537 = vld [vmem:[%s2992] sm:$0xff]
    %v5538 = vld [vmem:[%s2992 + $0x8] sm:$0xff]
    %v5539 = vld [vmem:[%s2992 + $0x10] sm:$0xff]
    %v5540 = vld [vmem:[%s2992 + $0x18] sm:$0xff]
    %v5541 = vld [vmem:[%s2992 + $0x20] sm:$0xff]
    %v5543 = vsel %vm20, %v5532, 0
    %v5546 = vsel %vm20, %v5533, 0
    %v5549 = vsel %vm20, %v5534, 0
    %v5552 = vsel %vm20, %v5535, 0
    %v5555 = vsel %vm20, %v5536, 0
    %5557 = vmatpush.msra.mxu0 0.0
    %5558 = vmatpush.msra.mxu0 0.0
    %5559 = vmatpush.msra.mxu0 0.0
    %5560 = vmatpush.msra.mxu0 0.0
    %5561 = vmatpush.msra.mxu0 0.0
    %5562 = vmatpush.msra.mxu0 0.0
    %5563 = vmatpush.msra.mxu0 0.0
    %5564 = vmatpush.msra.mxu0 0.0
    %5565 = vmatpush.msra.mxu0 0.0
    %5566 = vmatpush.msra.mxu0 0.0
    %5567 = vmatpush.msra.mxu0 0.0
    %5568 = vmatpush.msra.mxu0 %v5541
    %5569 = vmatpush.msra.mxu0 %v5540
    %5570 = vmatpush.msra.mxu0 %v5539
    %5571 = vmatpush.msra.mxu0 %v5538
    %5572 = vmatpush.msra.mxu0 %v5537
    %5573 = vmatmul.f32.gmra.mxu0 %v5543
    %v5574 = vpop.f32.mrf.mxu0
    %v5575 = vadd.f32 0.0, %v5574
    %5576 = vmatmul.f32.gmra.mxu0 %v5546
    %v5577 = vpop.f32.mrf.mxu0
    %v5578 = vadd.f32 0.0, %v5577
    %5579 = vmatmul.f32.gmra.mxu0 %v5549
    %v5580 = vpop.f32.mrf.mxu0
    %v5581 = vadd.f32 0.0, %v5580
    %5582 = vmatmul.f32.gmra.mxu0 %v5552
    %v5583 = vpop.f32.mrf.mxu0
    %v5584 = vadd.f32 0.0, %v5583
    %5585 = vmatmul.f32.gmra.mxu0 %v5555
    %v5586 = vpop.f32.mrf.mxu0
    %v5587 = vadd.f32 0.0, %v5586
    %5588 = vdwg.mxu0
    %5589 = vst.msk [vmem:[%s1497] sm:$0xff] %vm20, %v5575
    %5590 = vst.msk [vmem:[%s1497 + $0x8] sm:$0xff] %vm20, %v5578
    %5591 = vst.msk [vmem:[%s1497 + $0x10] sm:$0xff] %vm20, %v5581
    %5592 = vst.msk [vmem:[%s1497 + $0x18] sm:$0xff] %vm20, %v5584
    %5593 = vst.msk [vmem:[%s1497 + $0x20] sm:$0xff] %vm20, %v5587
    %v5594 = vld [vmem:[%s3057] sm:$0xff]
    %v5595 = vld [vmem:[%s3057 + $0x8] sm:$0xff]
    %v5596 = vld [vmem:[%s3057 + $0x10] sm:$0xff]
    %v5597 = vld [vmem:[%s3057 + $0x18] sm:$0xff]
    %v5598 = vld [vmem:[%s3057 + $0x20] sm:$0xff]
    %v5599 = vld [vmem:[%s3122] sm:$0xff]
    %v5600 = vld [vmem:[%s3122 + $0x8] sm:$0xff]
    %v5601 = vld [vmem:[%s3122 + $0x10] sm:$0xff]
    %v5602 = vld [vmem:[%s3122 + $0x18] sm:$0xff]
    %v5603 = vld [vmem:[%s3122 + $0x20] sm:$0xff]
    %v5605 = vsel %vm20, %v5594, 0
    %v5608 = vsel %vm20, %v5595, 0
    %v5611 = vsel %vm20, %v5596, 0
    %v5614 = vsel %vm20, %v5597, 0
    %v5617 = vsel %vm20, %v5598, 0
    %5619 = vmatpush.msra.mxu0 0.0
    %5620 = vmatpush.msra.mxu0 0.0
    %5621 = vmatpush.msra.mxu0 0.0
    %5622 = vmatpush.msra.mxu0 0.0
    %5623 = vmatpush.msra.mxu0 0.0
    %5624 = vmatpush.msra.mxu0 0.0
    %5625 = vmatpush.msra.mxu0 0.0
    %5626 = vmatpush.msra.mxu0 0.0
    %5627 = vmatpush.msra.mxu0 0.0
    %5628 = vmatpush.msra.mxu0 0.0
    %5629 = vmatpush.msra.mxu0 0.0
    %5630 = vmatpush.msra.mxu0 %v5603
    %5631 = vmatpush.msra.mxu0 %v5602
    %5632 = vmatpush.msra.mxu0 %v5601
    %5633 = vmatpush.msra.mxu0 %v5600
    %5634 = vmatpush.msra.mxu0 %v5599
    %5635 = vmatmul.f32.gmra.mxu0 %v5605
    %v5636 = vpop.f32.mrf.mxu0
    %v5637 = vadd.f32 0.0, %v5636
    %5638 = vmatmul.f32.gmra.mxu0 %v5608
    %v5639 = vpop.f32.mrf.mxu0
    %v5640 = vadd.f32 0.0, %v5639
    %5641 = vmatmul.f32.gmra.mxu0 %v5611
    %v5642 = vpop.f32.mrf.mxu0
    %v5643 = vadd.f32 0.0, %v5642
    %5644 = vmatmul.f32.gmra.mxu0 %v5614
    %v5645 = vpop.f32.mrf.mxu0
    %v5646 = vadd.f32 0.0, %v5645
    %5647 = vmatmul.f32.gmra.mxu0 %v5617
    %v5648 = vpop.f32.mrf.mxu0
    %v5649 = vadd.f32 0.0, %v5648
    %5650 = vdwg.mxu0
    %5651 = vst.msk [vmem:[%s1562] sm:$0xff] %vm20, %v5637
    %5652 = vst.msk [vmem:[%s1562 + $0x8] sm:$0xff] %vm20, %v5640
    %5653 = vst.msk [vmem:[%s1562 + $0x10] sm:$0xff] %vm20, %v5643
    %5654 = vst.msk [vmem:[%s1562 + $0x18] sm:$0xff] %vm20, %v5646
    %5655 = vst.msk [vmem:[%s1562 + $0x20] sm:$0xff] %vm20, %v5649
    %v5656 = vld [vmem:[%s3187] sm:$0xff]
    %v5657 = vld [vmem:[%s3187 + $0x8] sm:$0xff]
    %v5658 = vld [vmem:[%s3187 + $0x10] sm:$0xff]
    %v5659 = vld [vmem:[%s3187 + $0x18] sm:$0xff]
    %v5660 = vld [vmem:[%s3187 + $0x20] sm:$0xff]
    %v5661 = vld [vmem:[%s3252] sm:$0xff]
    %v5662 = vld [vmem:[%s3252 + $0x8] sm:$0xff]
    %v5663 = vld [vmem:[%s3252 + $0x10] sm:$0xff]
    %v5664 = vld [vmem:[%s3252 + $0x18] sm:$0xff]
    %v5665 = vld [vmem:[%s3252 + $0x20] sm:$0xff]
    %v5667 = vsel %vm20, %v5656, 0
    %v5670 = vsel %vm20, %v5657, 0
    %v5673 = vsel %vm20, %v5658, 0
    %v5676 = vsel %vm20, %v5659, 0
    %v5679 = vsel %vm20, %v5660, 0
    %5681 = vmatpush.msra.mxu0 0.0
    %5682 = vmatpush.msra.mxu0 0.0
    %5683 = vmatpush.msra.mxu0 0.0
    %5684 = vmatpush.msra.mxu0 0.0
    %5685 = vmatpush.msra.mxu0 0.0
    %5686 = vmatpush.msra.mxu0 0.0
    %5687 = vmatpush.msra.mxu0 0.0
    %5688 = vmatpush.msra.mxu0 0.0
    %5689 = vmatpush.msra.mxu0 0.0
    %5690 = vmatpush.msra.mxu0 0.0
    %5691 = vmatpush.msra.mxu0 0.0
    %5692 = vmatpush.msra.mxu0 %v5665
    %5693 = vmatpush.msra.mxu0 %v5664
    %5694 = vmatpush.msra.mxu0 %v5663
    %5695 = vmatpush.msra.mxu0 %v5662
    %5696 = vmatpush.msra.mxu0 %v5661
    %5697 = vmatmul.f32.gmra.mxu0 %v5667
    %v5698 = vpop.f32.mrf.mxu0
    %v5699 = vadd.f32 0.0, %v5698
    %5700 = vmatmul.f32.gmra.mxu0 %v5670
    %v5701 = vpop.f32.mrf.mxu0
    %v5702 = vadd.f32 0.0, %v5701
    %5703 = vmatmul.f32.gmra.mxu0 %v5673
    %v5704 = vpop.f32.mrf.mxu0
    %v5705 = vadd.f32 0.0, %v5704
    %5706 = vmatmul.f32.gmra.mxu0 %v5676
    %v5707 = vpop.f32.mrf.mxu0
    %v5708 = vadd.f32 0.0, %v5707
    %5709 = vmatmul.f32.gmra.mxu0 %v5679
    %v5710 = vpop.f32.mrf.mxu0
    %v5711 = vadd.f32 0.0, %v5710
    %5712 = vdwg.mxu0
    %5713 = vst.msk [vmem:[%s1627] sm:$0xff] %vm20, %v5699
    %5714 = vst.msk [vmem:[%s1627 + $0x8] sm:$0xff] %vm20, %v5702
    %5715 = vst.msk [vmem:[%s1627 + $0x10] sm:$0xff] %vm20, %v5705
    %5716 = vst.msk [vmem:[%s1627 + $0x18] sm:$0xff] %vm20, %v5708
    %5717 = vst.msk [vmem:[%s1627 + $0x20] sm:$0xff] %vm20, %v5711
    %v5718 = vld [vmem:[%s3317] sm:$0xff]
    %v5719 = vld [vmem:[%s3317 + $0x8] sm:$0xff]
    %v5720 = vld [vmem:[%s3317 + $0x10] sm:$0xff]
    %v5721 = vld [vmem:[%s3317 + $0x18] sm:$0xff]
    %v5722 = vld [vmem:[%s3317 + $0x20] sm:$0xff]
    %v5723 = vld [vmem:[%s3382] sm:$0xff]
    %v5724 = vld [vmem:[%s3382 + $0x8] sm:$0xff]
    %v5725 = vld [vmem:[%s3382 + $0x10] sm:$0xff]
    %v5726 = vld [vmem:[%s3382 + $0x18] sm:$0xff]
    %v5727 = vld [vmem:[%s3382 + $0x20] sm:$0xff]
    %v5729 = vsel %vm20, %v5718, 0
    %v5732 = vsel %vm20, %v5719, 0
    %v5735 = vsel %vm20, %v5720, 0
    %v5738 = vsel %vm20, %v5721, 0
    %v5741 = vsel %vm20, %v5722, 0
    %5743 = vmatpush.msra.mxu0 0.0
    %5744 = vmatpush.msra.mxu0 0.0
    %5745 = vmatpush.msra.mxu0 0.0
    %5746 = vmatpush.msra.mxu0 0.0
    %5747 = vmatpush.msra.mxu0 0.0
    %5748 = vmatpush.msra.mxu0 0.0
    %5749 = vmatpush.msra.mxu0 0.0
    %5750 = vmatpush.msra.mxu0 0.0
    %5751 = vmatpush.msra.mxu0 0.0
    %5752 = vmatpush.msra.mxu0 0.0
    %5753 = vmatpush.msra.mxu0 0.0
    %5754 = vmatpush.msra.mxu0 %v5727
    %5755 = vmatpush.msra.mxu0 %v5726
    %5756 = vmatpush.msra.mxu0 %v5725
    %5757 = vmatpush.msra.mxu0 %v5724
    %5758 = vmatpush.msra.mxu0 %v5723
    %5759 = vmatmul.f32.gmra.mxu0 %v5729
    %v5760 = vpop.f32.mrf.mxu0
    %v5761 = vadd.f32 0.0, %v5760
    %5762 = vmatmul.f32.gmra.mxu0 %v5732
    %v5763 = vpop.f32.mrf.mxu0
    %v5764 = vadd.f32 0.0, %v5763
    %5765 = vmatmul.f32.gmra.mxu0 %v5735
    %v5766 = vpop.f32.mrf.mxu0
    %v5767 = vadd.f32 0.0, %v5766
    %5768 = vmatmul.f32.gmra.mxu0 %v5738
    %v5769 = vpop.f32.mrf.mxu0
    %v5770 = vadd.f32 0.0, %v5769
    %5771 = vmatmul.f32.gmra.mxu0 %v5741
    %v5772 = vpop.f32.mrf.mxu0
    %v5773 = vadd.f32 0.0, %v5772
    %5774 = vdwg.mxu0
    %5775 = vst.msk [vmem:[%s1692] sm:$0xff] %vm20, %v5761
    %5776 = vst.msk [vmem:[%s1692 + $0x8] sm:$0xff] %vm20, %v5764
    %5777 = vst.msk [vmem:[%s1692 + $0x10] sm:$0xff] %vm20, %v5767
    %5778 = vst.msk [vmem:[%s1692 + $0x18] sm:$0xff] %vm20, %v5770
    %5779 = vst.msk [vmem:[%s1692 + $0x20] sm:$0xff] %vm20, %v5773
    %v5780 = vld [vmem:[%s3447] sm:$0xff]
    %v5781 = vld [vmem:[%s3447 + $0x8] sm:$0xff]
    %v5782 = vld [vmem:[%s3447 + $0x10] sm:$0xff]
    %v5783 = vld [vmem:[%s3447 + $0x18] sm:$0xff]
    %v5784 = vld [vmem:[%s3447 + $0x20] sm:$0xff]
    %v5785 = vld [vmem:[%s3512] sm:$0xff]
    %v5786 = vld [vmem:[%s3512 + $0x8] sm:$0xff]
    %v5787 = vld [vmem:[%s3512 + $0x10] sm:$0xff]
    %v5788 = vld [vmem:[%s3512 + $0x18] sm:$0xff]
    %v5789 = vld [vmem:[%s3512 + $0x20] sm:$0xff]
    %v5791 = vsel %vm20, %v5780, 0
    %v5794 = vsel %vm20, %v5781, 0
    %v5797 = vsel %vm20, %v5782, 0
    %v5800 = vsel %vm20, %v5783, 0
    %v5803 = vsel %vm20, %v5784, 0
    %5805 = vmatpush.msra.mxu0 0.0
    %5806 = vmatpush.msra.mxu0 0.0
    %5807 = vmatpush.msra.mxu0 0.0
    %5808 = vmatpush.msra.mxu0 0.0
    %5809 = vmatpush.msra.mxu0 0.0
    %5810 = vmatpush.msra.mxu0 0.0
    %5811 = vmatpush.msra.mxu0 0.0
    %5812 = vmatpush.msra.mxu0 0.0
    %5813 = vmatpush.msra.mxu0 0.0
    %5814 = vmatpush.msra.mxu0 0.0
    %5815 = vmatpush.msra.mxu0 0.0
    %5816 = vmatpush.msra.mxu0 %v5789
    %5817 = vmatpush.msra.mxu0 %v5788
    %5818 = vmatpush.msra.mxu0 %v5787
    %5819 = vmatpush.msra.mxu0 %v5786
    %5820 = vmatpush.msra.mxu0 %v5785
    %5821 = vmatmul.f32.gmra.mxu0 %v5791
    %v5822 = vpop.f32.mrf.mxu0
    %v5823 = vadd.f32 0.0, %v5822
    %5824 = vmatmul.f32.gmra.mxu0 %v5794
    %v5825 = vpop.f32.mrf.mxu0
    %v5826 = vadd.f32 0.0, %v5825
    %5827 = vmatmul.f32.gmra.mxu0 %v5797
    %v5828 = vpop.f32.mrf.mxu0
    %v5829 = vadd.f32 0.0, %v5828
    %5830 = vmatmul.f32.gmra.mxu0 %v5800
    %v5831 = vpop.f32.mrf.mxu0
    %v5832 = vadd.f32 0.0, %v5831
    %5833 = vmatmul.f32.gmra.mxu0 %v5803
    %v5834 = vpop.f32.mrf.mxu0
    %v5835 = vadd.f32 0.0, %v5834
    %5836 = vdwg.mxu0
    %5837 = vst.msk [vmem:[%s1757] sm:$0xff] %vm20, %v5823
    %5838 = vst.msk [vmem:[%s1757 + $0x8] sm:$0xff] %vm20, %v5826
    %5839 = vst.msk [vmem:[%s1757 + $0x10] sm:$0xff] %vm20, %v5829
    %5840 = vst.msk [vmem:[%s1757 + $0x18] sm:$0xff] %vm20, %v5832
    %5841 = vst.msk [vmem:[%s1757 + $0x20] sm:$0xff] %vm20, %v5835
    %v5842 = vld [vmem:[%s3577] sm:$0xff]
    %v5843 = vld [vmem:[%s3577 + $0x8] sm:$0xff]
    %v5844 = vld [vmem:[%s3577 + $0x10] sm:$0xff]
    %v5845 = vld [vmem:[%s3577 + $0x18] sm:$0xff]
    %v5846 = vld [vmem:[%s3577 + $0x20] sm:$0xff]
    %v5847 = vld [vmem:[%s3642] sm:$0xff]
    %v5848 = vld [vmem:[%s3642 + $0x8] sm:$0xff]
    %v5849 = vld [vmem:[%s3642 + $0x10] sm:$0xff]
    %v5850 = vld [vmem:[%s3642 + $0x18] sm:$0xff]
    %v5851 = vld [vmem:[%s3642 + $0x20] sm:$0xff]
    %v5853 = vsel %vm20, %v5842, 0
    %v5856 = vsel %vm20, %v5843, 0
    %v5859 = vsel %vm20, %v5844, 0
    %v5862 = vsel %vm20, %v5845, 0
    %v5865 = vsel %vm20, %v5846, 0
    %5867 = vmatpush.msra.mxu0 0.0
    %5868 = vmatpush.msra.mxu0 0.0
    %5869 = vmatpush.msra.mxu0 0.0
    %5870 = vmatpush.msra.mxu0 0.0
    %5871 = vmatpush.msra.mxu0 0.0
    %5872 = vmatpush.msra.mxu0 0.0
    %5873 = vmatpush.msra.mxu0 0.0
    %5874 = vmatpush.msra.mxu0 0.0
    %5875 = vmatpush.msra.mxu0 0.0
    %5876 = vmatpush.msra.mxu0 0.0
    %5877 = vmatpush.msra.mxu0 0.0
    %5878 = vmatpush.msra.mxu0 %v5851
    %5879 = vmatpush.msra.mxu0 %v5850
    %5880 = vmatpush.msra.mxu0 %v5849
    %5881 = vmatpush.msra.mxu0 %v5848
    %5882 = vmatpush.msra.mxu0 %v5847
    %5883 = vmatmul.f32.gmra.mxu0 %v5853
    %v5884 = vpop.f32.mrf.mxu0
    %v5885 = vadd.f32 0.0, %v5884
    %5886 = vmatmul.f32.gmra.mxu0 %v5856
    %v5887 = vpop.f32.mrf.mxu0
    %v5888 = vadd.f32 0.0, %v5887
    %5889 = vmatmul.f32.gmra.mxu0 %v5859
    %v5890 = vpop.f32.mrf.mxu0
    %v5891 = vadd.f32 0.0, %v5890
    %5892 = vmatmul.f32.gmra.mxu0 %v5862
    %v5893 = vpop.f32.mrf.mxu0
    %v5894 = vadd.f32 0.0, %v5893
    %5895 = vmatmul.f32.gmra.mxu0 %v5865
    %v5896 = vpop.f32.mrf.mxu0
    %v5897 = vadd.f32 0.0, %v5896
    %5898 = vdwg.mxu0
    %5899 = vst.msk [vmem:[%s1822] sm:$0xff] %vm20, %v5885
    %5900 = vst.msk [vmem:[%s1822 + $0x8] sm:$0xff] %vm20, %v5888
    %5901 = vst.msk [vmem:[%s1822 + $0x10] sm:$0xff] %vm20, %v5891
    %5902 = vst.msk [vmem:[%s1822 + $0x18] sm:$0xff] %vm20, %v5894
    %5903 = vst.msk [vmem:[%s1822 + $0x20] sm:$0xff] %vm20, %v5897
    %v5904 = vld [vmem:[%s3707] sm:$0xff]
    %v5905 = vld [vmem:[%s3707 + $0x8] sm:$0xff]
    %v5906 = vld [vmem:[%s3707 + $0x10] sm:$0xff]
    %v5907 = vld [vmem:[%s3707 + $0x18] sm:$0xff]
    %v5908 = vld [vmem:[%s3707 + $0x20] sm:$0xff]
    %v5909 = vld [vmem:[%s3772] sm:$0xff]
    %v5910 = vld [vmem:[%s3772 + $0x8] sm:$0xff]
    %v5911 = vld [vmem:[%s3772 + $0x10] sm:$0xff]
    %v5912 = vld [vmem:[%s3772 + $0x18] sm:$0xff]
    %v5913 = vld [vmem:[%s3772 + $0x20] sm:$0xff]
    %v5915 = vsel %vm20, %v5904, 0
    %v5918 = vsel %vm20, %v5905, 0
    %v5921 = vsel %vm20, %v5906, 0
    %v5924 = vsel %vm20, %v5907, 0
    %v5927 = vsel %vm20, %v5908, 0
    %5929 = vmatpush.msra.mxu0 0.0
    %5930 = vmatpush.msra.mxu0 0.0
    %5931 = vmatpush.msra.mxu0 0.0
    %5932 = vmatpush.msra.mxu0 0.0
    %5933 = vmatpush.msra.mxu0 0.0
    %5934 = vmatpush.msra.mxu0 0.0
    %5935 = vmatpush.msra.mxu0 0.0
    %5936 = vmatpush.msra.mxu0 0.0
    %5937 = vmatpush.msra.mxu0 0.0
    %5938 = vmatpush.msra.mxu0 0.0
    %5939 = vmatpush.msra.mxu0 0.0
    %5940 = vmatpush.msra.mxu0 %v5913
    %5941 = vmatpush.msra.mxu0 %v5912
    %5942 = vmatpush.msra.mxu0 %v5911
    %5943 = vmatpush.msra.mxu0 %v5910
    %5944 = vmatpush.msra.mxu0 %v5909
    %5945 = vmatmul.f32.gmra.mxu0 %v5915
    %v5946 = vpop.f32.mrf.mxu0
    %v5947 = vadd.f32 0.0, %v5946
    %5948 = vmatmul.f32.gmra.mxu0 %v5918
    %v5949 = vpop.f32.mrf.mxu0
    %v5950 = vadd.f32 0.0, %v5949
    %5951 = vmatmul.f32.gmra.mxu0 %v5921
    %v5952 = vpop.f32.mrf.mxu0
    %v5953 = vadd.f32 0.0, %v5952
    %5954 = vmatmul.f32.gmra.mxu0 %v5924
    %v5955 = vpop.f32.mrf.mxu0
    %v5956 = vadd.f32 0.0, %v5955
    %5957 = vmatmul.f32.gmra.mxu0 %v5927
    %v5958 = vpop.f32.mrf.mxu0
    %v5959 = vadd.f32 0.0, %v5958
    %5960 = vdwg.mxu0
    %5961 = vst.msk [vmem:[%s1887] sm:$0xff] %vm20, %v5947
    %5962 = vst.msk [vmem:[%s1887 + $0x8] sm:$0xff] %vm20, %v5950
    %5963 = vst.msk [vmem:[%s1887 + $0x10] sm:$0xff] %vm20, %v5953
    %5964 = vst.msk [vmem:[%s1887 + $0x18] sm:$0xff] %vm20, %v5956
    %5965 = vst.msk [vmem:[%s1887 + $0x20] sm:$0xff] %vm20, %v5959
    %v5966 = vld [vmem:[%s3837] sm:$0xff]
    %v5967 = vld [vmem:[%s3837 + $0x8] sm:$0xff]
    %v5968 = vld [vmem:[%s3837 + $0x10] sm:$0xff]
    %v5969 = vld [vmem:[%s3837 + $0x18] sm:$0xff]
    %v5970 = vld [vmem:[%s3837 + $0x20] sm:$0xff]
    %v5971 = vld [vmem:[%s3902] sm:$0xff]
    %v5972 = vld [vmem:[%s3902 + $0x8] sm:$0xff]
    %v5973 = vld [vmem:[%s3902 + $0x10] sm:$0xff]
    %v5974 = vld [vmem:[%s3902 + $0x18] sm:$0xff]
    %v5975 = vld [vmem:[%s3902 + $0x20] sm:$0xff]
    %v5977 = vsel %vm20, %v5966, 0
    %v5980 = vsel %vm20, %v5967, 0
    %v5983 = vsel %vm20, %v5968, 0
    %v5986 = vsel %vm20, %v5969, 0
    %v5989 = vsel %vm20, %v5970, 0
    %5991 = vmatpush.msra.mxu0 0.0
    %5992 = vmatpush.msra.mxu0 0.0
    %5993 = vmatpush.msra.mxu0 0.0
    %5994 = vmatpush.msra.mxu0 0.0
    %5995 = vmatpush.msra.mxu0 0.0
    %5996 = vmatpush.msra.mxu0 0.0
    %5997 = vmatpush.msra.mxu0 0.0
    %5998 = vmatpush.msra.mxu0 0.0
    %5999 = vmatpush.msra.mxu0 0.0
    %6000 = vmatpush.msra.mxu0 0.0
    %6001 = vmatpush.msra.mxu0 0.0
    %6002 = vmatpush.msra.mxu0 %v5975
    %6003 = vmatpush.msra.mxu0 %v5974
    %6004 = vmatpush.msra.mxu0 %v5973
    %6005 = vmatpush.msra.mxu0 %v5972
    %6006 = vmatpush.msra.mxu0 %v5971
    %6007 = vmatmul.f32.gmra.mxu0 %v5977
    %v6008 = vpop.f32.mrf.mxu0
    %v6009 = vadd.f32 0.0, %v6008
    %6010 = vmatmul.f32.gmra.mxu0 %v5980
    %v6011 = vpop.f32.mrf.mxu0
    %v6012 = vadd.f32 0.0, %v6011
    %6013 = vmatmul.f32.gmra.mxu0 %v5983
    %v6014 = vpop.f32.mrf.mxu0
    %v6015 = vadd.f32 0.0, %v6014
    %6016 = vmatmul.f32.gmra.mxu0 %v5986
    %v6017 = vpop.f32.mrf.mxu0
    %v6018 = vadd.f32 0.0, %v6017
    %6019 = vmatmul.f32.gmra.mxu0 %v5989
    %v6020 = vpop.f32.mrf.mxu0
    %v6021 = vadd.f32 0.0, %v6020
    %6022 = vdwg.mxu0
    %6023 = vst.msk [vmem:[%s1952] sm:$0xff] %vm20, %v6009
    %6024 = vst.msk [vmem:[%s1952 + $0x8] sm:$0xff] %vm20, %v6012
    %6025 = vst.msk [vmem:[%s1952 + $0x10] sm:$0xff] %vm20, %v6015
    %6026 = vst.msk [vmem:[%s1952 + $0x18] sm:$0xff] %vm20, %v6018
    %6027 = vst.msk [vmem:[%s1952 + $0x20] sm:$0xff] %vm20, %v6021
    %v6028 = vld [vmem:[%s3967] sm:$0xff]
    %v6029 = vld [vmem:[%s3967 + $0x8] sm:$0xff]
    %v6030 = vld [vmem:[%s3967 + $0x10] sm:$0xff]
    %v6031 = vld [vmem:[%s3967 + $0x18] sm:$0xff]
    %v6032 = vld [vmem:[%s3967 + $0x20] sm:$0xff]
    %v6033 = vld [vmem:[%s4032] sm:$0xff]
    %v6034 = vld [vmem:[%s4032 + $0x8] sm:$0xff]
    %v6035 = vld [vmem:[%s4032 + $0x10] sm:$0xff]
    %v6036 = vld [vmem:[%s4032 + $0x18] sm:$0xff]
    %v6037 = vld [vmem:[%s4032 + $0x20] sm:$0xff]
    %v6039 = vsel %vm20, %v6028, 0
    %v6042 = vsel %vm20, %v6029, 0
    %v6045 = vsel %vm20, %v6030, 0
    %v6048 = vsel %vm20, %v6031, 0
    %v6051 = vsel %vm20, %v6032, 0
    %6053 = vmatpush.msra.mxu0 0.0
    %6054 = vmatpush.msra.mxu0 0.0
    %6055 = vmatpush.msra.mxu0 0.0
    %6056 = vmatpush.msra.mxu0 0.0
    %6057 = vmatpush.msra.mxu0 0.0
    %6058 = vmatpush.msra.mxu0 0.0
    %6059 = vmatpush.msra.mxu0 0.0
    %6060 = vmatpush.msra.mxu0 0.0
    %6061 = vmatpush.msra.mxu0 0.0
    %6062 = vmatpush.msra.mxu0 0.0
    %6063 = vmatpush.msra.mxu0 0.0
    %6064 = vmatpush.msra.mxu0 %v6037
    %6065 = vmatpush.msra.mxu0 %v6036
    %6066 = vmatpush.msra.mxu0 %v6035
    %6067 = vmatpush.msra.mxu0 %v6034
    %6068 = vmatpush.msra.mxu0 %v6033
    %6069 = vmatmul.f32.gmra.mxu0 %v6039
    %v6070 = vpop.f32.mrf.mxu0
    %v6071 = vadd.f32 0.0, %v6070
    %6072 = vmatmul.f32.gmra.mxu0 %v6042
    %v6073 = vpop.f32.mrf.mxu0
    %v6074 = vadd.f32 0.0, %v6073
    %6075 = vmatmul.f32.gmra.mxu0 %v6045
    %v6076 = vpop.f32.mrf.mxu0
    %v6077 = vadd.f32 0.0, %v6076
    %6078 = vmatmul.f32.gmra.mxu0 %v6048
    %v6079 = vpop.f32.mrf.mxu0
    %v6080 = vadd.f32 0.0, %v6079
    %6081 = vmatmul.f32.gmra.mxu0 %v6051
    %v6082 = vpop.f32.mrf.mxu0
    %v6083 = vadd.f32 0.0, %v6082
    %6084 = vdwg.mxu0
    %6085 = vst.msk [vmem:[%s2017] sm:$0xff] %vm20, %v6071
    %6086 = vst.msk [vmem:[%s2017 + $0x8] sm:$0xff] %vm20, %v6074
    %6087 = vst.msk [vmem:[%s2017 + $0x10] sm:$0xff] %vm20, %v6077
    %6088 = vst.msk [vmem:[%s2017 + $0x18] sm:$0xff] %vm20, %v6080
    %6089 = vst.msk [vmem:[%s2017 + $0x20] sm:$0xff] %vm20, %v6083
    %v6090 = vld [vmem:[%s4097] sm:$0xff]
    %v6091 = vld [vmem:[%s4097 + $0x8] sm:$0xff]
    %v6092 = vld [vmem:[%s4097 + $0x10] sm:$0xff]
    %v6093 = vld [vmem:[%s4097 + $0x18] sm:$0xff]
    %v6094 = vld [vmem:[%s4097 + $0x20] sm:$0xff]
    %v6095 = vld [vmem:[%s4162] sm:$0xff]
    %v6096 = vld [vmem:[%s4162 + $0x8] sm:$0xff]
    %v6097 = vld [vmem:[%s4162 + $0x10] sm:$0xff]
    %v6098 = vld [vmem:[%s4162 + $0x18] sm:$0xff]
    %v6099 = vld [vmem:[%s4162 + $0x20] sm:$0xff]
    %v6101 = vsel %vm20, %v6090, 0
    %v6104 = vsel %vm20, %v6091, 0
    %v6107 = vsel %vm20, %v6092, 0
    %v6110 = vsel %vm20, %v6093, 0
    %v6113 = vsel %vm20, %v6094, 0
    %6115 = vmatpush.msra.mxu0 0.0
    %6116 = vmatpush.msra.mxu0 0.0
    %6117 = vmatpush.msra.mxu0 0.0
    %6118 = vmatpush.msra.mxu0 0.0
    %6119 = vmatpush.msra.mxu0 0.0
    %6120 = vmatpush.msra.mxu0 0.0
    %6121 = vmatpush.msra.mxu0 0.0
    %6122 = vmatpush.msra.mxu0 0.0
    %6123 = vmatpush.msra.mxu0 0.0
    %6124 = vmatpush.msra.mxu0 0.0
    %6125 = vmatpush.msra.mxu0 0.0
    %6126 = vmatpush.msra.mxu0 %v6099
    %6127 = vmatpush.msra.mxu0 %v6098
    %6128 = vmatpush.msra.mxu0 %v6097
    %6129 = vmatpush.msra.mxu0 %v6096
    %6130 = vmatpush.msra.mxu0 %v6095
    %6131 = vmatmul.f32.gmra.mxu0 %v6101
    %v6132 = vpop.f32.mrf.mxu0
    %v6133 = vadd.f32 0.0, %v6132
    %6134 = vmatmul.f32.gmra.mxu0 %v6104
    %v6135 = vpop.f32.mrf.mxu0
    %v6136 = vadd.f32 0.0, %v6135
    %6137 = vmatmul.f32.gmra.mxu0 %v6107
    %v6138 = vpop.f32.mrf.mxu0
    %v6139 = vadd.f32 0.0, %v6138
    %6140 = vmatmul.f32.gmra.mxu0 %v6110
    %v6141 = vpop.f32.mrf.mxu0
    %v6142 = vadd.f32 0.0, %v6141
    %6143 = vmatmul.f32.gmra.mxu0 %v6113
    %v6144 = vpop.f32.mrf.mxu0
    %v6145 = vadd.f32 0.0, %v6144
    %6146 = vdwg.mxu0
    %6147 = vst.msk [vmem:[%s2082] sm:$0xff] %vm20, %v6133
    %6148 = vst.msk [vmem:[%s2082 + $0x8] sm:$0xff] %vm20, %v6136
    %6149 = vst.msk [vmem:[%s2082 + $0x10] sm:$0xff] %vm20, %v6139
    %6150 = vst.msk [vmem:[%s2082 + $0x18] sm:$0xff] %vm20, %v6142
    %6151 = vst.msk [vmem:[%s2082 + $0x20] sm:$0xff] %vm20, %v6145
    %v6152 = vld [vmem:[#allocation2] sm:$0xff]
    %v6153 = vld [vmem:[#allocation2 + $0x8] sm:$0xff]
    %v6154 = vld [vmem:[#allocation2 + $0x10] sm:$0xff]
    %v6155 = vld [vmem:[#allocation2 + $0x18] sm:$0xff]
    %v6156 = vld [vmem:[#allocation2 + $0x20] sm:$0xff]
    %v6157 = vld [vmem:[%s132] sm:$0xff]
    %v6158 = vld [vmem:[%s132 + $0x8] sm:$0xff]
    %v6159 = vld [vmem:[%s132 + $0x10] sm:$0xff]
    %v6160 = vld [vmem:[%s132 + $0x18] sm:$0xff]
    %v6161 = vld [vmem:[%s132 + $0x20] sm:$0xff]
    %v6163 = vsel %vm20, %v6152, 0
    %v6166 = vsel %vm20, %v6153, 0
    %v6169 = vsel %vm20, %v6154, 0
    %v6172 = vsel %vm20, %v6155, 0
    %v6175 = vsel %vm20, %v6156, 0
    %6177 = vmatpush.msra.mxu0 0.0
    %6178 = vmatpush.msra.mxu0 0.0
    %6179 = vmatpush.msra.mxu0 0.0
    %6180 = vmatpush.msra.mxu0 0.0
    %6181 = vmatpush.msra.mxu0 0.0
    %6182 = vmatpush.msra.mxu0 0.0
    %6183 = vmatpush.msra.mxu0 0.0
    %6184 = vmatpush.msra.mxu0 0.0
    %6185 = vmatpush.msra.mxu0 0.0
    %6186 = vmatpush.msra.mxu0 0.0
    %6187 = vmatpush.msra.mxu0 0.0
    %6188 = vmatpush.msra.mxu0 %v6161
    %6189 = vmatpush.msra.mxu0 %v6160
    %6190 = vmatpush.msra.mxu0 %v6159
    %6191 = vmatpush.msra.mxu0 %v6158
    %6192 = vmatpush.msra.mxu0 %v6157
    %6193 = vmatmul.f32.gmra.mxu0 %v6163
    %v6194 = vpop.f32.mrf.mxu0
    %v6195 = vadd.f32 0.0, %v6194
    %6196 = vmatmul.f32.gmra.mxu0 %v6166
    %v6197 = vpop.f32.mrf.mxu0
    %v6198 = vadd.f32 0.0, %v6197
    %6199 = vmatmul.f32.gmra.mxu0 %v6169
    %v6200 = vpop.f32.mrf.mxu0
    %v6201 = vadd.f32 0.0, %v6200
    %6202 = vmatmul.f32.gmra.mxu0 %v6172
    %v6203 = vpop.f32.mrf.mxu0
    %v6204 = vadd.f32 0.0, %v6203
    %6205 = vmatmul.f32.gmra.mxu0 %v6175
    %v6206 = vpop.f32.mrf.mxu0
    %v6207 = vadd.f32 0.0, %v6206
    %6208 = vdwg.mxu0
    %6209 = vst.msk [vmem:[#allocation2] sm:$0xff] %vm20, %v6195
    %6210 = vst.msk [vmem:[#allocation2 + $0x8] sm:$0xff] %vm20, %v6198
    %6211 = vst.msk [vmem:[#allocation2 + $0x10] sm:$0xff] %vm20, %v6201
    %6212 = vst.msk [vmem:[#allocation2 + $0x18] sm:$0xff] %vm20, %v6204
    %6213 = vst.msk [vmem:[#allocation2 + $0x20] sm:$0xff] %vm20, %v6207
    %v6214 = vld [vmem:[%s197] sm:$0xff]
    %v6215 = vld [vmem:[%s197 + $0x8] sm:$0xff]
    %v6216 = vld [vmem:[%s197 + $0x10] sm:$0xff]
    %v6217 = vld [vmem:[%s197 + $0x18] sm:$0xff]
    %v6218 = vld [vmem:[%s197 + $0x20] sm:$0xff]
    %v6219 = vld [vmem:[%s262] sm:$0xff]
    %v6220 = vld [vmem:[%s262 + $0x8] sm:$0xff]
    %v6221 = vld [vmem:[%s262 + $0x10] sm:$0xff]
    %v6222 = vld [vmem:[%s262 + $0x18] sm:$0xff]
    %v6223 = vld [vmem:[%s262 + $0x20] sm:$0xff]
    %v6225 = vsel %vm20, %v6214, 0
    %v6228 = vsel %vm20, %v6215, 0
    %v6231 = vsel %vm20, %v6216, 0
    %v6234 = vsel %vm20, %v6217, 0
    %v6237 = vsel %vm20, %v6218, 0
    %6239 = vmatpush.msra.mxu0 0.0
    %6240 = vmatpush.msra.mxu0 0.0
    %6241 = vmatpush.msra.mxu0 0.0
    %6242 = vmatpush.msra.mxu0 0.0
    %6243 = vmatpush.msra.mxu0 0.0
    %6244 = vmatpush.msra.mxu0 0.0
    %6245 = vmatpush.msra.mxu0 0.0
    %6246 = vmatpush.msra.mxu0 0.0
    %6247 = vmatpush.msra.mxu0 0.0
    %6248 = vmatpush.msra.mxu0 0.0
    %6249 = vmatpush.msra.mxu0 0.0
    %6250 = vmatpush.msra.mxu0 %v6223
    %6251 = vmatpush.msra.mxu0 %v6222
    %6252 = vmatpush.msra.mxu0 %v6221
    %6253 = vmatpush.msra.mxu0 %v6220
    %6254 = vmatpush.msra.mxu0 %v6219
    %6255 = vmatmul.f32.gmra.mxu0 %v6225
    %v6256 = vpop.f32.mrf.mxu0
    %v6257 = vadd.f32 0.0, %v6256
    %6258 = vmatmul.f32.gmra.mxu0 %v6228
    %v6259 = vpop.f32.mrf.mxu0
    %v6260 = vadd.f32 0.0, %v6259
    %6261 = vmatmul.f32.gmra.mxu0 %v6231
    %v6262 = vpop.f32.mrf.mxu0
    %v6263 = vadd.f32 0.0, %v6262
    %6264 = vmatmul.f32.gmra.mxu0 %v6234
    %v6265 = vpop.f32.mrf.mxu0
    %v6266 = vadd.f32 0.0, %v6265
    %6267 = vmatmul.f32.gmra.mxu0 %v6237
    %v6268 = vpop.f32.mrf.mxu0
    %v6269 = vadd.f32 0.0, %v6268
    %6270 = vdwg.mxu0
    %6271 = vst.msk [vmem:[%s132] sm:$0xff] %vm20, %v6257
    %6272 = vst.msk [vmem:[%s132 + $0x8] sm:$0xff] %vm20, %v6260
    %6273 = vst.msk [vmem:[%s132 + $0x10] sm:$0xff] %vm20, %v6263
    %6274 = vst.msk [vmem:[%s132 + $0x18] sm:$0xff] %vm20, %v6266
    %6275 = vst.msk [vmem:[%s132 + $0x20] sm:$0xff] %vm20, %v6269
    %v6276 = vld [vmem:[%s327] sm:$0xff]
    %v6277 = vld [vmem:[%s327 + $0x8] sm:$0xff]
    %v6278 = vld [vmem:[%s327 + $0x10] sm:$0xff]
    %v6279 = vld [vmem:[%s327 + $0x18] sm:$0xff]
    %v6280 = vld [vmem:[%s327 + $0x20] sm:$0xff]
    %v6281 = vld [vmem:[%s392] sm:$0xff]
    %v6282 = vld [vmem:[%s392 + $0x8] sm:$0xff]
    %v6283 = vld [vmem:[%s392 + $0x10] sm:$0xff]
    %v6284 = vld [vmem:[%s392 + $0x18] sm:$0xff]
    %v6285 = vld [vmem:[%s392 + $0x20] sm:$0xff]
    %v6287 = vsel %vm20, %v6276, 0
    %v6290 = vsel %vm20, %v6277, 0
    %v6293 = vsel %vm20, %v6278, 0
    %v6296 = vsel %vm20, %v6279, 0
    %v6299 = vsel %vm20, %v6280, 0
    %6301 = vmatpush.msra.mxu0 0.0
    %6302 = vmatpush.msra.mxu0 0.0
    %6303 = vmatpush.msra.mxu0 0.0
    %6304 = vmatpush.msra.mxu0 0.0
    %6305 = vmatpush.msra.mxu0 0.0
    %6306 = vmatpush.msra.mxu0 0.0
    %6307 = vmatpush.msra.mxu0 0.0
    %6308 = vmatpush.msra.mxu0 0.0
    %6309 = vmatpush.msra.mxu0 0.0
    %6310 = vmatpush.msra.mxu0 0.0
    %6311 = vmatpush.msra.mxu0 0.0
    %6312 = vmatpush.msra.mxu0 %v6285
    %6313 = vmatpush.msra.mxu0 %v6284
    %6314 = vmatpush.msra.mxu0 %v6283
    %6315 = vmatpush.msra.mxu0 %v6282
    %6316 = vmatpush.msra.mxu0 %v6281
    %6317 = vmatmul.f32.gmra.mxu0 %v6287
    %v6318 = vpop.f32.mrf.mxu0
    %v6319 = vadd.f32 0.0, %v6318
    %6320 = vmatmul.f32.gmra.mxu0 %v6290
    %v6321 = vpop.f32.mrf.mxu0
    %v6322 = vadd.f32 0.0, %v6321
    %6323 = vmatmul.f32.gmra.mxu0 %v6293
    %v6324 = vpop.f32.mrf.mxu0
    %v6325 = vadd.f32 0.0, %v6324
    %6326 = vmatmul.f32.gmra.mxu0 %v6296
    %v6327 = vpop.f32.mrf.mxu0
    %v6328 = vadd.f32 0.0, %v6327
    %6329 = vmatmul.f32.gmra.mxu0 %v6299
    %v6330 = vpop.f32.mrf.mxu0
    %v6331 = vadd.f32 0.0, %v6330
    %6332 = vdwg.mxu0
    %6333 = vst.msk [vmem:[%s197] sm:$0xff] %vm20, %v6319
    %6334 = vst.msk [vmem:[%s197 + $0x8] sm:$0xff] %vm20, %v6322
    %6335 = vst.msk [vmem:[%s197 + $0x10] sm:$0xff] %vm20, %v6325
    %6336 = vst.msk [vmem:[%s197 + $0x18] sm:$0xff] %vm20, %v6328
    %6337 = vst.msk [vmem:[%s197 + $0x20] sm:$0xff] %vm20, %v6331
    %v6338 = vld [vmem:[%s457] sm:$0xff]
    %v6339 = vld [vmem:[%s457 + $0x8] sm:$0xff]
    %v6340 = vld [vmem:[%s457 + $0x10] sm:$0xff]
    %v6341 = vld [vmem:[%s457 + $0x18] sm:$0xff]
    %v6342 = vld [vmem:[%s457 + $0x20] sm:$0xff]
    %v6343 = vld [vmem:[%s522] sm:$0xff]
    %v6344 = vld [vmem:[%s522 + $0x8] sm:$0xff]
    %v6345 = vld [vmem:[%s522 + $0x10] sm:$0xff]
    %v6346 = vld [vmem:[%s522 + $0x18] sm:$0xff]
    %v6347 = vld [vmem:[%s522 + $0x20] sm:$0xff]
    %v6349 = vsel %vm20, %v6338, 0
    %v6352 = vsel %vm20, %v6339, 0
    %v6355 = vsel %vm20, %v6340, 0
    %v6358 = vsel %vm20, %v6341, 0
    %v6361 = vsel %vm20, %v6342, 0
    %6363 = vmatpush.msra.mxu0 0.0
    %6364 = vmatpush.msra.mxu0 0.0
    %6365 = vmatpush.msra.mxu0 0.0
    %6366 = vmatpush.msra.mxu0 0.0
    %6367 = vmatpush.msra.mxu0 0.0
    %6368 = vmatpush.msra.mxu0 0.0
    %6369 = vmatpush.msra.mxu0 0.0
    %6370 = vmatpush.msra.mxu0 0.0
    %6371 = vmatpush.msra.mxu0 0.0
    %6372 = vmatpush.msra.mxu0 0.0
    %6373 = vmatpush.msra.mxu0 0.0
    %6374 = vmatpush.msra.mxu0 %v6347
    %6375 = vmatpush.msra.mxu0 %v6346
    %6376 = vmatpush.msra.mxu0 %v6345
    %6377 = vmatpush.msra.mxu0 %v6344
    %6378 = vmatpush.msra.mxu0 %v6343
    %6379 = vmatmul.f32.gmra.mxu0 %v6349
    %v6380 = vpop.f32.mrf.mxu0
    %v6381 = vadd.f32 0.0, %v6380
    %6382 = vmatmul.f32.gmra.mxu0 %v6352
    %v6383 = vpop.f32.mrf.mxu0
    %v6384 = vadd.f32 0.0, %v6383
    %6385 = vmatmul.f32.gmra.mxu0 %v6355
    %v6386 = vpop.f32.mrf.mxu0
    %v6387 = vadd.f32 0.0, %v6386
    %6388 = vmatmul.f32.gmra.mxu0 %v6358
    %v6389 = vpop.f32.mrf.mxu0
    %v6390 = vadd.f32 0.0, %v6389
    %6391 = vmatmul.f32.gmra.mxu0 %v6361
    %v6392 = vpop.f32.mrf.mxu0
    %v6393 = vadd.f32 0.0, %v6392
    %6394 = vdwg.mxu0
    %6395 = vst.msk [vmem:[%s262] sm:$0xff] %vm20, %v6381
    %6396 = vst.msk [vmem:[%s262 + $0x8] sm:$0xff] %vm20, %v6384
    %6397 = vst.msk [vmem:[%s262 + $0x10] sm:$0xff] %vm20, %v6387
    %6398 = vst.msk [vmem:[%s262 + $0x18] sm:$0xff] %vm20, %v6390
    %6399 = vst.msk [vmem:[%s262 + $0x20] sm:$0xff] %vm20, %v6393
    %v6400 = vld [vmem:[%s587] sm:$0xff]
    %v6401 = vld [vmem:[%s587 + $0x8] sm:$0xff]
    %v6402 = vld [vmem:[%s587 + $0x10] sm:$0xff]
    %v6403 = vld [vmem:[%s587 + $0x18] sm:$0xff]
    %v6404 = vld [vmem:[%s587 + $0x20] sm:$0xff]
    %v6405 = vld [vmem:[%s652] sm:$0xff]
    %v6406 = vld [vmem:[%s652 + $0x8] sm:$0xff]
    %v6407 = vld [vmem:[%s652 + $0x10] sm:$0xff]
    %v6408 = vld [vmem:[%s652 + $0x18] sm:$0xff]
    %v6409 = vld [vmem:[%s652 + $0x20] sm:$0xff]
    %v6411 = vsel %vm20, %v6400, 0
    %v6414 = vsel %vm20, %v6401, 0
    %v6417 = vsel %vm20, %v6402, 0
    %v6420 = vsel %vm20, %v6403, 0
    %v6423 = vsel %vm20, %v6404, 0
    %6425 = vmatpush.msra.mxu0 0.0
    %6426 = vmatpush.msra.mxu0 0.0
    %6427 = vmatpush.msra.mxu0 0.0
    %6428 = vmatpush.msra.mxu0 0.0
    %6429 = vmatpush.msra.mxu0 0.0
    %6430 = vmatpush.msra.mxu0 0.0
    %6431 = vmatpush.msra.mxu0 0.0
    %6432 = vmatpush.msra.mxu0 0.0
    %6433 = vmatpush.msra.mxu0 0.0
    %6434 = vmatpush.msra.mxu0 0.0
    %6435 = vmatpush.msra.mxu0 0.0
    %6436 = vmatpush.msra.mxu0 %v6409
    %6437 = vmatpush.msra.mxu0 %v6408
    %6438 = vmatpush.msra.mxu0 %v6407
    %6439 = vmatpush.msra.mxu0 %v6406
    %6440 = vmatpush.msra.mxu0 %v6405
    %6441 = vmatmul.f32.gmra.mxu0 %v6411
    %v6442 = vpop.f32.mrf.mxu0
    %v6443 = vadd.f32 0.0, %v6442
    %6444 = vmatmul.f32.gmra.mxu0 %v6414
    %v6445 = vpop.f32.mrf.mxu0
    %v6446 = vadd.f32 0.0, %v6445
    %6447 = vmatmul.f32.gmra.mxu0 %v6417
    %v6448 = vpop.f32.mrf.mxu0
    %v6449 = vadd.f32 0.0, %v6448
    %6450 = vmatmul.f32.gmra.mxu0 %v6420
    %v6451 = vpop.f32.mrf.mxu0
    %v6452 = vadd.f32 0.0, %v6451
    %6453 = vmatmul.f32.gmra.mxu0 %v6423
    %v6454 = vpop.f32.mrf.mxu0
    %v6455 = vadd.f32 0.0, %v6454
    %6456 = vdwg.mxu0
    %6457 = vst.msk [vmem:[%s327] sm:$0xff] %vm20, %v6443
    %6458 = vst.msk [vmem:[%s327 + $0x8] sm:$0xff] %vm20, %v6446
    %6459 = vst.msk [vmem:[%s327 + $0x10] sm:$0xff] %vm20, %v6449
    %6460 = vst.msk [vmem:[%s327 + $0x18] sm:$0xff] %vm20, %v6452
    %6461 = vst.msk [vmem:[%s327 + $0x20] sm:$0xff] %vm20, %v6455
    %v6462 = vld [vmem:[%s717] sm:$0xff]
    %v6463 = vld [vmem:[%s717 + $0x8] sm:$0xff]
    %v6464 = vld [vmem:[%s717 + $0x10] sm:$0xff]
    %v6465 = vld [vmem:[%s717 + $0x18] sm:$0xff]
    %v6466 = vld [vmem:[%s717 + $0x20] sm:$0xff]
    %v6467 = vld [vmem:[%s782] sm:$0xff]
    %v6468 = vld [vmem:[%s782 + $0x8] sm:$0xff]
    %v6469 = vld [vmem:[%s782 + $0x10] sm:$0xff]
    %v6470 = vld [vmem:[%s782 + $0x18] sm:$0xff]
    %v6471 = vld [vmem:[%s782 + $0x20] sm:$0xff]
    %v6473 = vsel %vm20, %v6462, 0
    %v6476 = vsel %vm20, %v6463, 0
    %v6479 = vsel %vm20, %v6464, 0
    %v6482 = vsel %vm20, %v6465, 0
    %v6485 = vsel %vm20, %v6466, 0
    %6487 = vmatpush.msra.mxu0 0.0
    %6488 = vmatpush.msra.mxu0 0.0
    %6489 = vmatpush.msra.mxu0 0.0
    %6490 = vmatpush.msra.mxu0 0.0
    %6491 = vmatpush.msra.mxu0 0.0
    %6492 = vmatpush.msra.mxu0 0.0
    %6493 = vmatpush.msra.mxu0 0.0
    %6494 = vmatpush.msra.mxu0 0.0
    %6495 = vmatpush.msra.mxu0 0.0
    %6496 = vmatpush.msra.mxu0 0.0
    %6497 = vmatpush.msra.mxu0 0.0
    %6498 = vmatpush.msra.mxu0 %v6471
    %6499 = vmatpush.msra.mxu0 %v6470
    %6500 = vmatpush.msra.mxu0 %v6469
    %6501 = vmatpush.msra.mxu0 %v6468
    %6502 = vmatpush.msra.mxu0 %v6467
    %6503 = vmatmul.f32.gmra.mxu0 %v6473
    %v6504 = vpop.f32.mrf.mxu0
    %v6505 = vadd.f32 0.0, %v6504
    %6506 = vmatmul.f32.gmra.mxu0 %v6476
    %v6507 = vpop.f32.mrf.mxu0
    %v6508 = vadd.f32 0.0, %v6507
    %6509 = vmatmul.f32.gmra.mxu0 %v6479
    %v6510 = vpop.f32.mrf.mxu0
    %v6511 = vadd.f32 0.0, %v6510
    %6512 = vmatmul.f32.gmra.mxu0 %v6482
    %v6513 = vpop.f32.mrf.mxu0
    %v6514 = vadd.f32 0.0, %v6513
    %6515 = vmatmul.f32.gmra.mxu0 %v6485
    %v6516 = vpop.f32.mrf.mxu0
    %v6517 = vadd.f32 0.0, %v6516
    %6518 = vdwg.mxu0
    %6519 = vst.msk [vmem:[%s392] sm:$0xff] %vm20, %v6505
    %6520 = vst.msk [vmem:[%s392 + $0x8] sm:$0xff] %vm20, %v6508
    %6521 = vst.msk [vmem:[%s392 + $0x10] sm:$0xff] %vm20, %v6511
    %6522 = vst.msk [vmem:[%s392 + $0x18] sm:$0xff] %vm20, %v6514
    %6523 = vst.msk [vmem:[%s392 + $0x20] sm:$0xff] %vm20, %v6517
    %v6524 = vld [vmem:[%s847] sm:$0xff]
    %v6525 = vld [vmem:[%s847 + $0x8] sm:$0xff]
    %v6526 = vld [vmem:[%s847 + $0x10] sm:$0xff]
    %v6527 = vld [vmem:[%s847 + $0x18] sm:$0xff]
    %v6528 = vld [vmem:[%s847 + $0x20] sm:$0xff]
    %v6529 = vld [vmem:[%s912] sm:$0xff]
    %v6530 = vld [vmem:[%s912 + $0x8] sm:$0xff]
    %v6531 = vld [vmem:[%s912 + $0x10] sm:$0xff]
    %v6532 = vld [vmem:[%s912 + $0x18] sm:$0xff]
    %v6533 = vld [vmem:[%s912 + $0x20] sm:$0xff]
    %v6535 = vsel %vm20, %v6524, 0
    %v6538 = vsel %vm20, %v6525, 0
    %v6541 = vsel %vm20, %v6526, 0
    %v6544 = vsel %vm20, %v6527, 0
    %v6547 = vsel %vm20, %v6528, 0
    %6549 = vmatpush.msra.mxu0 0.0
    %6550 = vmatpush.msra.mxu0 0.0
    %6551 = vmatpush.msra.mxu0 0.0
    %6552 = vmatpush.msra.mxu0 0.0
    %6553 = vmatpush.msra.mxu0 0.0
    %6554 = vmatpush.msra.mxu0 0.0
    %6555 = vmatpush.msra.mxu0 0.0
    %6556 = vmatpush.msra.mxu0 0.0
    %6557 = vmatpush.msra.mxu0 0.0
    %6558 = vmatpush.msra.mxu0 0.0
    %6559 = vmatpush.msra.mxu0 0.0
    %6560 = vmatpush.msra.mxu0 %v6533
    %6561 = vmatpush.msra.mxu0 %v6532
    %6562 = vmatpush.msra.mxu0 %v6531
    %6563 = vmatpush.msra.mxu0 %v6530
    %6564 = vmatpush.msra.mxu0 %v6529
    %6565 = vmatmul.f32.gmra.mxu0 %v6535
    %v6566 = vpop.f32.mrf.mxu0
    %v6567 = vadd.f32 0.0, %v6566
    %6568 = vmatmul.f32.gmra.mxu0 %v6538
    %v6569 = vpop.f32.mrf.mxu0
    %v6570 = vadd.f32 0.0, %v6569
    %6571 = vmatmul.f32.gmra.mxu0 %v6541
    %v6572 = vpop.f32.mrf.mxu0
    %v6573 = vadd.f32 0.0, %v6572
    %6574 = vmatmul.f32.gmra.mxu0 %v6544
    %v6575 = vpop.f32.mrf.mxu0
    %v6576 = vadd.f32 0.0, %v6575
    %6577 = vmatmul.f32.gmra.mxu0 %v6547
    %v6578 = vpop.f32.mrf.mxu0
    %v6579 = vadd.f32 0.0, %v6578
    %6580 = vdwg.mxu0
    %6581 = vst.msk [vmem:[%s457] sm:$0xff] %vm20, %v6567
    %6582 = vst.msk [vmem:[%s457 + $0x8] sm:$0xff] %vm20, %v6570
    %6583 = vst.msk [vmem:[%s457 + $0x10] sm:$0xff] %vm20, %v6573
    %6584 = vst.msk [vmem:[%s457 + $0x18] sm:$0xff] %vm20, %v6576
    %6585 = vst.msk [vmem:[%s457 + $0x20] sm:$0xff] %vm20, %v6579
    %v6586 = vld [vmem:[%s977] sm:$0xff]
    %v6587 = vld [vmem:[%s977 + $0x8] sm:$0xff]
    %v6588 = vld [vmem:[%s977 + $0x10] sm:$0xff]
    %v6589 = vld [vmem:[%s977 + $0x18] sm:$0xff]
    %v6590 = vld [vmem:[%s977 + $0x20] sm:$0xff]
    %v6591 = vld [vmem:[%s1042] sm:$0xff]
    %v6592 = vld [vmem:[%s1042 + $0x8] sm:$0xff]
    %v6593 = vld [vmem:[%s1042 + $0x10] sm:$0xff]
    %v6594 = vld [vmem:[%s1042 + $0x18] sm:$0xff]
    %v6595 = vld [vmem:[%s1042 + $0x20] sm:$0xff]
    %v6597 = vsel %vm20, %v6586, 0
    %v6600 = vsel %vm20, %v6587, 0
    %v6603 = vsel %vm20, %v6588, 0
    %v6606 = vsel %vm20, %v6589, 0
    %v6609 = vsel %vm20, %v6590, 0
    %6611 = vmatpush.msra.mxu0 0.0
    %6612 = vmatpush.msra.mxu0 0.0
    %6613 = vmatpush.msra.mxu0 0.0
    %6614 = vmatpush.msra.mxu0 0.0
    %6615 = vmatpush.msra.mxu0 0.0
    %6616 = vmatpush.msra.mxu0 0.0
    %6617 = vmatpush.msra.mxu0 0.0
    %6618 = vmatpush.msra.mxu0 0.0
    %6619 = vmatpush.msra.mxu0 0.0
    %6620 = vmatpush.msra.mxu0 0.0
    %6621 = vmatpush.msra.mxu0 0.0
    %6622 = vmatpush.msra.mxu0 %v6595
    %6623 = vmatpush.msra.mxu0 %v6594
    %6624 = vmatpush.msra.mxu0 %v6593
    %6625 = vmatpush.msra.mxu0 %v6592
    %6626 = vmatpush.msra.mxu0 %v6591
    %6627 = vmatmul.f32.gmra.mxu0 %v6597
    %v6628 = vpop.f32.mrf.mxu0
    %v6629 = vadd.f32 0.0, %v6628
    %6630 = vmatmul.f32.gmra.mxu0 %v6600
    %v6631 = vpop.f32.mrf.mxu0
    %v6632 = vadd.f32 0.0, %v6631
    %6633 = vmatmul.f32.gmra.mxu0 %v6603
    %v6634 = vpop.f32.mrf.mxu0
    %v6635 = vadd.f32 0.0, %v6634
    %6636 = vmatmul.f32.gmra.mxu0 %v6606
    %v6637 = vpop.f32.mrf.mxu0
    %v6638 = vadd.f32 0.0, %v6637
    %6639 = vmatmul.f32.gmra.mxu0 %v6609
    %v6640 = vpop.f32.mrf.mxu0
    %v6641 = vadd.f32 0.0, %v6640
    %6642 = vdwg.mxu0
    %6643 = vst.msk [vmem:[%s522] sm:$0xff] %vm20, %v6629
    %6644 = vst.msk [vmem:[%s522 + $0x8] sm:$0xff] %vm20, %v6632
    %6645 = vst.msk [vmem:[%s522 + $0x10] sm:$0xff] %vm20, %v6635
    %6646 = vst.msk [vmem:[%s522 + $0x18] sm:$0xff] %vm20, %v6638
    %6647 = vst.msk [vmem:[%s522 + $0x20] sm:$0xff] %vm20, %v6641
    %v6648 = vld [vmem:[%s1107] sm:$0xff]
    %v6649 = vld [vmem:[%s1107 + $0x8] sm:$0xff]
    %v6650 = vld [vmem:[%s1107 + $0x10] sm:$0xff]
    %v6651 = vld [vmem:[%s1107 + $0x18] sm:$0xff]
    %v6652 = vld [vmem:[%s1107 + $0x20] sm:$0xff]
    %v6653 = vld [vmem:[%s1172] sm:$0xff]
    %v6654 = vld [vmem:[%s1172 + $0x8] sm:$0xff]
    %v6655 = vld [vmem:[%s1172 + $0x10] sm:$0xff]
    %v6656 = vld [vmem:[%s1172 + $0x18] sm:$0xff]
    %v6657 = vld [vmem:[%s1172 + $0x20] sm:$0xff]
    %v6659 = vsel %vm20, %v6648, 0
    %v6662 = vsel %vm20, %v6649, 0
    %v6665 = vsel %vm20, %v6650, 0
    %v6668 = vsel %vm20, %v6651, 0
    %v6671 = vsel %vm20, %v6652, 0
    %6673 = vmatpush.msra.mxu0 0.0
    %6674 = vmatpush.msra.mxu0 0.0
    %6675 = vmatpush.msra.mxu0 0.0
    %6676 = vmatpush.msra.mxu0 0.0
    %6677 = vmatpush.msra.mxu0 0.0
    %6678 = vmatpush.msra.mxu0 0.0
    %6679 = vmatpush.msra.mxu0 0.0
    %6680 = vmatpush.msra.mxu0 0.0
    %6681 = vmatpush.msra.mxu0 0.0
    %6682 = vmatpush.msra.mxu0 0.0
    %6683 = vmatpush.msra.mxu0 0.0
    %6684 = vmatpush.msra.mxu0 %v6657
    %6685 = vmatpush.msra.mxu0 %v6656
    %6686 = vmatpush.msra.mxu0 %v6655
    %6687 = vmatpush.msra.mxu0 %v6654
    %6688 = vmatpush.msra.mxu0 %v6653
    %6689 = vmatmul.f32.gmra.mxu0 %v6659
    %v6690 = vpop.f32.mrf.mxu0
    %v6691 = vadd.f32 0.0, %v6690
    %6692 = vmatmul.f32.gmra.mxu0 %v6662
    %v6693 = vpop.f32.mrf.mxu0
    %v6694 = vadd.f32 0.0, %v6693
    %6695 = vmatmul.f32.gmra.mxu0 %v6665
    %v6696 = vpop.f32.mrf.mxu0
    %v6697 = vadd.f32 0.0, %v6696
    %6698 = vmatmul.f32.gmra.mxu0 %v6668
    %v6699 = vpop.f32.mrf.mxu0
    %v6700 = vadd.f32 0.0, %v6699
    %6701 = vmatmul.f32.gmra.mxu0 %v6671
    %v6702 = vpop.f32.mrf.mxu0
    %v6703 = vadd.f32 0.0, %v6702
    %6704 = vdwg.mxu0
    %6705 = vst.msk [vmem:[%s587] sm:$0xff] %vm20, %v6691
    %6706 = vst.msk [vmem:[%s587 + $0x8] sm:$0xff] %vm20, %v6694
    %6707 = vst.msk [vmem:[%s587 + $0x10] sm:$0xff] %vm20, %v6697
    %6708 = vst.msk [vmem:[%s587 + $0x18] sm:$0xff] %vm20, %v6700
    %6709 = vst.msk [vmem:[%s587 + $0x20] sm:$0xff] %vm20, %v6703
    %v6710 = vld [vmem:[%s1237] sm:$0xff]
    %v6711 = vld [vmem:[%s1237 + $0x8] sm:$0xff]
    %v6712 = vld [vmem:[%s1237 + $0x10] sm:$0xff]
    %v6713 = vld [vmem:[%s1237 + $0x18] sm:$0xff]
    %v6714 = vld [vmem:[%s1237 + $0x20] sm:$0xff]
    %v6715 = vld [vmem:[%s1302] sm:$0xff]
    %v6716 = vld [vmem:[%s1302 + $0x8] sm:$0xff]
    %v6717 = vld [vmem:[%s1302 + $0x10] sm:$0xff]
    %v6718 = vld [vmem:[%s1302 + $0x18] sm:$0xff]
    %v6719 = vld [vmem:[%s1302 + $0x20] sm:$0xff]
    %v6721 = vsel %vm20, %v6710, 0
    %v6724 = vsel %vm20, %v6711, 0
    %v6727 = vsel %vm20, %v6712, 0
    %v6730 = vsel %vm20, %v6713, 0
    %v6733 = vsel %vm20, %v6714, 0
    %6735 = vmatpush.msra.mxu0 0.0
    %6736 = vmatpush.msra.mxu0 0.0
    %6737 = vmatpush.msra.mxu0 0.0
    %6738 = vmatpush.msra.mxu0 0.0
    %6739 = vmatpush.msra.mxu0 0.0
    %6740 = vmatpush.msra.mxu0 0.0
    %6741 = vmatpush.msra.mxu0 0.0
    %6742 = vmatpush.msra.mxu0 0.0
    %6743 = vmatpush.msra.mxu0 0.0
    %6744 = vmatpush.msra.mxu0 0.0
    %6745 = vmatpush.msra.mxu0 0.0
    %6746 = vmatpush.msra.mxu0 %v6719
    %6747 = vmatpush.msra.mxu0 %v6718
    %6748 = vmatpush.msra.mxu0 %v6717
    %6749 = vmatpush.msra.mxu0 %v6716
    %6750 = vmatpush.msra.mxu0 %v6715
    %6751 = vmatmul.f32.gmra.mxu0 %v6721
    %v6752 = vpop.f32.mrf.mxu0
    %v6753 = vadd.f32 0.0, %v6752
    %6754 = vmatmul.f32.gmra.mxu0 %v6724
    %v6755 = vpop.f32.mrf.mxu0
    %v6756 = vadd.f32 0.0, %v6755
    %6757 = vmatmul.f32.gmra.mxu0 %v6727
    %v6758 = vpop.f32.mrf.mxu0
    %v6759 = vadd.f32 0.0, %v6758
    %6760 = vmatmul.f32.gmra.mxu0 %v6730
    %v6761 = vpop.f32.mrf.mxu0
    %v6762 = vadd.f32 0.0, %v6761
    %6763 = vmatmul.f32.gmra.mxu0 %v6733
    %v6764 = vpop.f32.mrf.mxu0
    %v6765 = vadd.f32 0.0, %v6764
    %6766 = vdwg.mxu0
    %6767 = vst.msk [vmem:[%s652] sm:$0xff] %vm20, %v6753
    %6768 = vst.msk [vmem:[%s652 + $0x8] sm:$0xff] %vm20, %v6756
    %6769 = vst.msk [vmem:[%s652 + $0x10] sm:$0xff] %vm20, %v6759
    %6770 = vst.msk [vmem:[%s652 + $0x18] sm:$0xff] %vm20, %v6762
    %6771 = vst.msk [vmem:[%s652 + $0x20] sm:$0xff] %vm20, %v6765
    %v6772 = vld [vmem:[%s1367] sm:$0xff]
    %v6773 = vld [vmem:[%s1367 + $0x8] sm:$0xff]
    %v6774 = vld [vmem:[%s1367 + $0x10] sm:$0xff]
    %v6775 = vld [vmem:[%s1367 + $0x18] sm:$0xff]
    %v6776 = vld [vmem:[%s1367 + $0x20] sm:$0xff]
    %v6777 = vld [vmem:[%s1432] sm:$0xff]
    %v6778 = vld [vmem:[%s1432 + $0x8] sm:$0xff]
    %v6779 = vld [vmem:[%s1432 + $0x10] sm:$0xff]
    %v6780 = vld [vmem:[%s1432 + $0x18] sm:$0xff]
    %v6781 = vld [vmem:[%s1432 + $0x20] sm:$0xff]
    %v6783 = vsel %vm20, %v6772, 0
    %v6786 = vsel %vm20, %v6773, 0
    %v6789 = vsel %vm20, %v6774, 0
    %v6792 = vsel %vm20, %v6775, 0
    %v6795 = vsel %vm20, %v6776, 0
    %6797 = vmatpush.msra.mxu0 0.0
    %6798 = vmatpush.msra.mxu0 0.0
    %6799 = vmatpush.msra.mxu0 0.0
    %6800 = vmatpush.msra.mxu0 0.0
    %6801 = vmatpush.msra.mxu0 0.0
    %6802 = vmatpush.msra.mxu0 0.0
    %6803 = vmatpush.msra.mxu0 0.0
    %6804 = vmatpush.msra.mxu0 0.0
    %6805 = vmatpush.msra.mxu0 0.0
    %6806 = vmatpush.msra.mxu0 0.0
    %6807 = vmatpush.msra.mxu0 0.0
    %6808 = vmatpush.msra.mxu0 %v6781
    %6809 = vmatpush.msra.mxu0 %v6780
    %6810 = vmatpush.msra.mxu0 %v6779
    %6811 = vmatpush.msra.mxu0 %v6778
    %6812 = vmatpush.msra.mxu0 %v6777
    %6813 = vmatmul.f32.gmra.mxu0 %v6783
    %v6814 = vpop.f32.mrf.mxu0
    %v6815 = vadd.f32 0.0, %v6814
    %6816 = vmatmul.f32.gmra.mxu0 %v6786
    %v6817 = vpop.f32.mrf.mxu0
    %v6818 = vadd.f32 0.0, %v6817
    %6819 = vmatmul.f32.gmra.mxu0 %v6789
    %v6820 = vpop.f32.mrf.mxu0
    %v6821 = vadd.f32 0.0, %v6820
    %6822 = vmatmul.f32.gmra.mxu0 %v6792
    %v6823 = vpop.f32.mrf.mxu0
    %v6824 = vadd.f32 0.0, %v6823
    %6825 = vmatmul.f32.gmra.mxu0 %v6795
    %v6826 = vpop.f32.mrf.mxu0
    %v6827 = vadd.f32 0.0, %v6826
    %6828 = vdwg.mxu0
    %6829 = vst.msk [vmem:[%s717] sm:$0xff] %vm20, %v6815
    %6830 = vst.msk [vmem:[%s717 + $0x8] sm:$0xff] %vm20, %v6818
    %6831 = vst.msk [vmem:[%s717 + $0x10] sm:$0xff] %vm20, %v6821
    %6832 = vst.msk [vmem:[%s717 + $0x18] sm:$0xff] %vm20, %v6824
    %6833 = vst.msk [vmem:[%s717 + $0x20] sm:$0xff] %vm20, %v6827
    %v6834 = vld [vmem:[%s1497] sm:$0xff]
    %v6835 = vld [vmem:[%s1497 + $0x8] sm:$0xff]
    %v6836 = vld [vmem:[%s1497 + $0x10] sm:$0xff]
    %v6837 = vld [vmem:[%s1497 + $0x18] sm:$0xff]
    %v6838 = vld [vmem:[%s1497 + $0x20] sm:$0xff]
    %v6839 = vld [vmem:[%s1562] sm:$0xff]
    %v6840 = vld [vmem:[%s1562 + $0x8] sm:$0xff]
    %v6841 = vld [vmem:[%s1562 + $0x10] sm:$0xff]
    %v6842 = vld [vmem:[%s1562 + $0x18] sm:$0xff]
    %v6843 = vld [vmem:[%s1562 + $0x20] sm:$0xff]
    %v6845 = vsel %vm20, %v6834, 0
    %v6848 = vsel %vm20, %v6835, 0
    %v6851 = vsel %vm20, %v6836, 0
    %v6854 = vsel %vm20, %v6837, 0
    %v6857 = vsel %vm20, %v6838, 0
    %6859 = vmatpush.msra.mxu0 0.0
    %6860 = vmatpush.msra.mxu0 0.0
    %6861 = vmatpush.msra.mxu0 0.0
    %6862 = vmatpush.msra.mxu0 0.0
    %6863 = vmatpush.msra.mxu0 0.0
    %6864 = vmatpush.msra.mxu0 0.0
    %6865 = vmatpush.msra.mxu0 0.0
    %6866 = vmatpush.msra.mxu0 0.0
    %6867 = vmatpush.msra.mxu0 0.0
    %6868 = vmatpush.msra.mxu0 0.0
    %6869 = vmatpush.msra.mxu0 0.0
    %6870 = vmatpush.msra.mxu0 %v6843
    %6871 = vmatpush.msra.mxu0 %v6842
    %6872 = vmatpush.msra.mxu0 %v6841
    %6873 = vmatpush.msra.mxu0 %v6840
    %6874 = vmatpush.msra.mxu0 %v6839
    %6875 = vmatmul.f32.gmra.mxu0 %v6845
    %v6876 = vpop.f32.mrf.mxu0
    %v6877 = vadd.f32 0.0, %v6876
    %6878 = vmatmul.f32.gmra.mxu0 %v6848
    %v6879 = vpop.f32.mrf.mxu0
    %v6880 = vadd.f32 0.0, %v6879
    %6881 = vmatmul.f32.gmra.mxu0 %v6851
    %v6882 = vpop.f32.mrf.mxu0
    %v6883 = vadd.f32 0.0, %v6882
    %6884 = vmatmul.f32.gmra.mxu0 %v6854
    %v6885 = vpop.f32.mrf.mxu0
    %v6886 = vadd.f32 0.0, %v6885
    %6887 = vmatmul.f32.gmra.mxu0 %v6857
    %v6888 = vpop.f32.mrf.mxu0
    %v6889 = vadd.f32 0.0, %v6888
    %6890 = vdwg.mxu0
    %6891 = vst.msk [vmem:[%s782] sm:$0xff] %vm20, %v6877
    %6892 = vst.msk [vmem:[%s782 + $0x8] sm:$0xff] %vm20, %v6880
    %6893 = vst.msk [vmem:[%s782 + $0x10] sm:$0xff] %vm20, %v6883
    %6894 = vst.msk [vmem:[%s782 + $0x18] sm:$0xff] %vm20, %v6886
    %6895 = vst.msk [vmem:[%s782 + $0x20] sm:$0xff] %vm20, %v6889
    %v6896 = vld [vmem:[%s1627] sm:$0xff]
    %v6897 = vld [vmem:[%s1627 + $0x8] sm:$0xff]
    %v6898 = vld [vmem:[%s1627 + $0x10] sm:$0xff]
    %v6899 = vld [vmem:[%s1627 + $0x18] sm:$0xff]
    %v6900 = vld [vmem:[%s1627 + $0x20] sm:$0xff]
    %v6901 = vld [vmem:[%s1692] sm:$0xff]
    %v6902 = vld [vmem:[%s1692 + $0x8] sm:$0xff]
    %v6903 = vld [vmem:[%s1692 + $0x10] sm:$0xff]
    %v6904 = vld [vmem:[%s1692 + $0x18] sm:$0xff]
    %v6905 = vld [vmem:[%s1692 + $0x20] sm:$0xff]
    %v6907 = vsel %vm20, %v6896, 0
    %v6910 = vsel %vm20, %v6897, 0
    %v6913 = vsel %vm20, %v6898, 0
    %v6916 = vsel %vm20, %v6899, 0
    %v6919 = vsel %vm20, %v6900, 0
    %6921 = vmatpush.msra.mxu0 0.0
    %6922 = vmatpush.msra.mxu0 0.0
    %6923 = vmatpush.msra.mxu0 0.0
    %6924 = vmatpush.msra.mxu0 0.0
    %6925 = vmatpush.msra.mxu0 0.0
    %6926 = vmatpush.msra.mxu0 0.0
    %6927 = vmatpush.msra.mxu0 0.0
    %6928 = vmatpush.msra.mxu0 0.0
    %6929 = vmatpush.msra.mxu0 0.0
    %6930 = vmatpush.msra.mxu0 0.0
    %6931 = vmatpush.msra.mxu0 0.0
    %6932 = vmatpush.msra.mxu0 %v6905
    %6933 = vmatpush.msra.mxu0 %v6904
    %6934 = vmatpush.msra.mxu0 %v6903
    %6935 = vmatpush.msra.mxu0 %v6902
    %6936 = vmatpush.msra.mxu0 %v6901
    %6937 = vmatmul.f32.gmra.mxu0 %v6907
    %v6938 = vpop.f32.mrf.mxu0
    %v6939 = vadd.f32 0.0, %v6938
    %6940 = vmatmul.f32.gmra.mxu0 %v6910
    %v6941 = vpop.f32.mrf.mxu0
    %v6942 = vadd.f32 0.0, %v6941
    %6943 = vmatmul.f32.gmra.mxu0 %v6913
    %v6944 = vpop.f32.mrf.mxu0
    %v6945 = vadd.f32 0.0, %v6944
    %6946 = vmatmul.f32.gmra.mxu0 %v6916
    %v6947 = vpop.f32.mrf.mxu0
    %v6948 = vadd.f32 0.0, %v6947
    %6949 = vmatmul.f32.gmra.mxu0 %v6919
    %v6950 = vpop.f32.mrf.mxu0
    %v6951 = vadd.f32 0.0, %v6950
    %6952 = vdwg.mxu0
    %6953 = vst.msk [vmem:[%s847] sm:$0xff] %vm20, %v6939
    %6954 = vst.msk [vmem:[%s847 + $0x8] sm:$0xff] %vm20, %v6942
    %6955 = vst.msk [vmem:[%s847 + $0x10] sm:$0xff] %vm20, %v6945
    %6956 = vst.msk [vmem:[%s847 + $0x18] sm:$0xff] %vm20, %v6948
    %6957 = vst.msk [vmem:[%s847 + $0x20] sm:$0xff] %vm20, %v6951
    %v6958 = vld [vmem:[%s1757] sm:$0xff]
    %v6959 = vld [vmem:[%s1757 + $0x8] sm:$0xff]
    %v6960 = vld [vmem:[%s1757 + $0x10] sm:$0xff]
    %v6961 = vld [vmem:[%s1757 + $0x18] sm:$0xff]
    %v6962 = vld [vmem:[%s1757 + $0x20] sm:$0xff]
    %v6963 = vld [vmem:[%s1822] sm:$0xff]
    %v6964 = vld [vmem:[%s1822 + $0x8] sm:$0xff]
    %v6965 = vld [vmem:[%s1822 + $0x10] sm:$0xff]
    %v6966 = vld [vmem:[%s1822 + $0x18] sm:$0xff]
    %v6967 = vld [vmem:[%s1822 + $0x20] sm:$0xff]
    %v6969 = vsel %vm20, %v6958, 0
    %v6972 = vsel %vm20, %v6959, 0
    %v6975 = vsel %vm20, %v6960, 0
    %v6978 = vsel %vm20, %v6961, 0
    %v6981 = vsel %vm20, %v6962, 0
    %6983 = vmatpush.msra.mxu0 0.0
    %6984 = vmatpush.msra.mxu0 0.0
    %6985 = vmatpush.msra.mxu0 0.0
    %6986 = vmatpush.msra.mxu0 0.0
    %6987 = vmatpush.msra.mxu0 0.0
    %6988 = vmatpush.msra.mxu0 0.0
    %6989 = vmatpush.msra.mxu0 0.0
    %6990 = vmatpush.msra.mxu0 0.0
    %6991 = vmatpush.msra.mxu0 0.0
    %6992 = vmatpush.msra.mxu0 0.0
    %6993 = vmatpush.msra.mxu0 0.0
    %6994 = vmatpush.msra.mxu0 %v6967
    %6995 = vmatpush.msra.mxu0 %v6966
    %6996 = vmatpush.msra.mxu0 %v6965
    %6997 = vmatpush.msra.mxu0 %v6964
    %6998 = vmatpush.msra.mxu0 %v6963
    %6999 = vmatmul.f32.gmra.mxu0 %v6969
    %v7000 = vpop.f32.mrf.mxu0
    %v7001 = vadd.f32 0.0, %v7000
    %7002 = vmatmul.f32.gmra.mxu0 %v6972
    %v7003 = vpop.f32.mrf.mxu0
    %v7004 = vadd.f32 0.0, %v7003
    %7005 = vmatmul.f32.gmra.mxu0 %v6975
    %v7006 = vpop.f32.mrf.mxu0
    %v7007 = vadd.f32 0.0, %v7006
    %7008 = vmatmul.f32.gmra.mxu0 %v6978
    %v7009 = vpop.f32.mrf.mxu0
    %v7010 = vadd.f32 0.0, %v7009
    %7011 = vmatmul.f32.gmra.mxu0 %v6981
    %v7012 = vpop.f32.mrf.mxu0
    %v7013 = vadd.f32 0.0, %v7012
    %7014 = vdwg.mxu0
    %7015 = vst.msk [vmem:[%s912] sm:$0xff] %vm20, %v7001
    %7016 = vst.msk [vmem:[%s912 + $0x8] sm:$0xff] %vm20, %v7004
    %7017 = vst.msk [vmem:[%s912 + $0x10] sm:$0xff] %vm20, %v7007
    %7018 = vst.msk [vmem:[%s912 + $0x18] sm:$0xff] %vm20, %v7010
    %7019 = vst.msk [vmem:[%s912 + $0x20] sm:$0xff] %vm20, %v7013
    %v7020 = vld [vmem:[%s1887] sm:$0xff]
    %v7021 = vld [vmem:[%s1887 + $0x8] sm:$0xff]
    %v7022 = vld [vmem:[%s1887 + $0x10] sm:$0xff]
    %v7023 = vld [vmem:[%s1887 + $0x18] sm:$0xff]
    %v7024 = vld [vmem:[%s1887 + $0x20] sm:$0xff]
    %v7025 = vld [vmem:[%s1952] sm:$0xff]
    %v7026 = vld [vmem:[%s1952 + $0x8] sm:$0xff]
    %v7027 = vld [vmem:[%s1952 + $0x10] sm:$0xff]
    %v7028 = vld [vmem:[%s1952 + $0x18] sm:$0xff]
    %v7029 = vld [vmem:[%s1952 + $0x20] sm:$0xff]
    %v7031 = vsel %vm20, %v7020, 0
    %v7034 = vsel %vm20, %v7021, 0
    %v7037 = vsel %vm20, %v7022, 0
    %v7040 = vsel %vm20, %v7023, 0
    %v7043 = vsel %vm20, %v7024, 0
    %7045 = vmatpush.msra.mxu0 0.0
    %7046 = vmatpush.msra.mxu0 0.0
    %7047 = vmatpush.msra.mxu0 0.0
    %7048 = vmatpush.msra.mxu0 0.0
    %7049 = vmatpush.msra.mxu0 0.0
    %7050 = vmatpush.msra.mxu0 0.0
    %7051 = vmatpush.msra.mxu0 0.0
    %7052 = vmatpush.msra.mxu0 0.0
    %7053 = vmatpush.msra.mxu0 0.0
    %7054 = vmatpush.msra.mxu0 0.0
    %7055 = vmatpush.msra.mxu0 0.0
    %7056 = vmatpush.msra.mxu0 %v7029
    %7057 = vmatpush.msra.mxu0 %v7028
    %7058 = vmatpush.msra.mxu0 %v7027
    %7059 = vmatpush.msra.mxu0 %v7026
    %7060 = vmatpush.msra.mxu0 %v7025
    %7061 = vmatmul.f32.gmra.mxu0 %v7031
    %v7062 = vpop.f32.mrf.mxu0
    %v7063 = vadd.f32 0.0, %v7062
    %7064 = vmatmul.f32.gmra.mxu0 %v7034
    %v7065 = vpop.f32.mrf.mxu0
    %v7066 = vadd.f32 0.0, %v7065
    %7067 = vmatmul.f32.gmra.mxu0 %v7037
    %v7068 = vpop.f32.mrf.mxu0
    %v7069 = vadd.f32 0.0, %v7068
    %7070 = vmatmul.f32.gmra.mxu0 %v7040
    %v7071 = vpop.f32.mrf.mxu0
    %v7072 = vadd.f32 0.0, %v7071
    %7073 = vmatmul.f32.gmra.mxu0 %v7043
    %v7074 = vpop.f32.mrf.mxu0
    %v7075 = vadd.f32 0.0, %v7074
    %7076 = vdwg.mxu0
    %7077 = vst.msk [vmem:[%s977] sm:$0xff] %vm20, %v7063
    %7078 = vst.msk [vmem:[%s977 + $0x8] sm:$0xff] %vm20, %v7066
    %7079 = vst.msk [vmem:[%s977 + $0x10] sm:$0xff] %vm20, %v7069
    %7080 = vst.msk [vmem:[%s977 + $0x18] sm:$0xff] %vm20, %v7072
    %7081 = vst.msk [vmem:[%s977 + $0x20] sm:$0xff] %vm20, %v7075
    %v7082 = vld [vmem:[%s2017] sm:$0xff]
    %v7083 = vld [vmem:[%s2017 + $0x8] sm:$0xff]
    %v7084 = vld [vmem:[%s2017 + $0x10] sm:$0xff]
    %v7085 = vld [vmem:[%s2017 + $0x18] sm:$0xff]
    %v7086 = vld [vmem:[%s2017 + $0x20] sm:$0xff]
    %v7087 = vld [vmem:[%s2082] sm:$0xff]
    %v7088 = vld [vmem:[%s2082 + $0x8] sm:$0xff]
    %v7089 = vld [vmem:[%s2082 + $0x10] sm:$0xff]
    %v7090 = vld [vmem:[%s2082 + $0x18] sm:$0xff]
    %v7091 = vld [vmem:[%s2082 + $0x20] sm:$0xff]
    %v7093 = vsel %vm20, %v7082, 0
    %v7096 = vsel %vm20, %v7083, 0
    %v7099 = vsel %vm20, %v7084, 0
    %v7102 = vsel %vm20, %v7085, 0
    %v7105 = vsel %vm20, %v7086, 0
    %7107 = vmatpush.msra.mxu0 0.0
    %7108 = vmatpush.msra.mxu0 0.0
    %7109 = vmatpush.msra.mxu0 0.0
    %7110 = vmatpush.msra.mxu0 0.0
    %7111 = vmatpush.msra.mxu0 0.0
    %7112 = vmatpush.msra.mxu0 0.0
    %7113 = vmatpush.msra.mxu0 0.0
    %7114 = vmatpush.msra.mxu0 0.0
    %7115 = vmatpush.msra.mxu0 0.0
    %7116 = vmatpush.msra.mxu0 0.0
    %7117 = vmatpush.msra.mxu0 0.0
    %7118 = vmatpush.msra.mxu0 %v7091
    %7119 = vmatpush.msra.mxu0 %v7090
    %7120 = vmatpush.msra.mxu0 %v7089
    %7121 = vmatpush.msra.mxu0 %v7088
    %7122 = vmatpush.msra.mxu0 %v7087
    %7123 = vmatmul.f32.gmra.mxu0 %v7093
    %v7124 = vpop.f32.mrf.mxu0
    %v7125 = vadd.f32 0.0, %v7124
    %7126 = vmatmul.f32.gmra.mxu0 %v7096
    %v7127 = vpop.f32.mrf.mxu0
    %v7128 = vadd.f32 0.0, %v7127
    %7129 = vmatmul.f32.gmra.mxu0 %v7099
    %v7130 = vpop.f32.mrf.mxu0
    %v7131 = vadd.f32 0.0, %v7130
    %7132 = vmatmul.f32.gmra.mxu0 %v7102
    %v7133 = vpop.f32.mrf.mxu0
    %v7134 = vadd.f32 0.0, %v7133
    %7135 = vmatmul.f32.gmra.mxu0 %v7105
    %v7136 = vpop.f32.mrf.mxu0
    %v7137 = vadd.f32 0.0, %v7136
    %7138 = vdwg.mxu0
    %7139 = vst.msk [vmem:[%s1042] sm:$0xff] %vm20, %v7125
    %7140 = vst.msk [vmem:[%s1042 + $0x8] sm:$0xff] %vm20, %v7128
    %7141 = vst.msk [vmem:[%s1042 + $0x10] sm:$0xff] %vm20, %v7131
    %7142 = vst.msk [vmem:[%s1042 + $0x18] sm:$0xff] %vm20, %v7134
    %7143 = vst.msk [vmem:[%s1042 + $0x20] sm:$0xff] %vm20, %v7137
    %v7144 = vld [vmem:[#allocation2] sm:$0xff]
    %v7145 = vld [vmem:[#allocation2 + $0x8] sm:$0xff]
    %v7146 = vld [vmem:[#allocation2 + $0x10] sm:$0xff]
    %v7147 = vld [vmem:[#allocation2 + $0x18] sm:$0xff]
    %v7148 = vld [vmem:[#allocation2 + $0x20] sm:$0xff]
    %v7149 = vld [vmem:[%s132] sm:$0xff]
    %v7150 = vld [vmem:[%s132 + $0x8] sm:$0xff]
    %v7151 = vld [vmem:[%s132 + $0x10] sm:$0xff]
    %v7152 = vld [vmem:[%s132 + $0x18] sm:$0xff]
    %v7153 = vld [vmem:[%s132 + $0x20] sm:$0xff]
    %v7155 = vsel %vm20, %v7144, 0
    %v7158 = vsel %vm20, %v7145, 0
    %v7161 = vsel %vm20, %v7146, 0
    %v7164 = vsel %vm20, %v7147, 0
    %v7167 = vsel %vm20, %v7148, 0
    %7169 = vmatpush.msra.mxu0 0.0
    %7170 = vmatpush.msra.mxu0 0.0
    %7171 = vmatpush.msra.mxu0 0.0
    %7172 = vmatpush.msra.mxu0 0.0
    %7173 = vmatpush.msra.mxu0 0.0
    %7174 = vmatpush.msra.mxu0 0.0
    %7175 = vmatpush.msra.mxu0 0.0
    %7176 = vmatpush.msra.mxu0 0.0
    %7177 = vmatpush.msra.mxu0 0.0
    %7178 = vmatpush.msra.mxu0 0.0
    %7179 = vmatpush.msra.mxu0 0.0
    %7180 = vmatpush.msra.mxu0 %v7153
    %7181 = vmatpush.msra.mxu0 %v7152
    %7182 = vmatpush.msra.mxu0 %v7151
    %7183 = vmatpush.msra.mxu0 %v7150
    %7184 = vmatpush.msra.mxu0 %v7149
    %7185 = vmatmul.f32.gmra.mxu0 %v7155
    %v7186 = vpop.f32.mrf.mxu0
    %v7187 = vadd.f32 0.0, %v7186
    %7188 = vmatmul.f32.gmra.mxu0 %v7158
    %v7189 = vpop.f32.mrf.mxu0
    %v7190 = vadd.f32 0.0, %v7189
    %7191 = vmatmul.f32.gmra.mxu0 %v7161
    %v7192 = vpop.f32.mrf.mxu0
    %v7193 = vadd.f32 0.0, %v7192
    %7194 = vmatmul.f32.gmra.mxu0 %v7164
    %v7195 = vpop.f32.mrf.mxu0
    %v7196 = vadd.f32 0.0, %v7195
    %7197 = vmatmul.f32.gmra.mxu0 %v7167
    %v7198 = vpop.f32.mrf.mxu0
    %v7199 = vadd.f32 0.0, %v7198
    %7200 = vdwg.mxu0
    %7201 = vst.msk [vmem:[#allocation2] sm:$0xff] %vm20, %v7187
    %7202 = vst.msk [vmem:[#allocation2 + $0x8] sm:$0xff] %vm20, %v7190
    %7203 = vst.msk [vmem:[#allocation2 + $0x10] sm:$0xff] %vm20, %v7193
    %7204 = vst.msk [vmem:[#allocation2 + $0x18] sm:$0xff] %vm20, %v7196
    %7205 = vst.msk [vmem:[#allocation2 + $0x20] sm:$0xff] %vm20, %v7199
    %v7206 = vld [vmem:[%s197] sm:$0xff]
    %v7207 = vld [vmem:[%s197 + $0x8] sm:$0xff]
    %v7208 = vld [vmem:[%s197 + $0x10] sm:$0xff]
    %v7209 = vld [vmem:[%s197 + $0x18] sm:$0xff]
    %v7210 = vld [vmem:[%s197 + $0x20] sm:$0xff]
    %v7211 = vld [vmem:[%s262] sm:$0xff]
    %v7212 = vld [vmem:[%s262 + $0x8] sm:$0xff]
    %v7213 = vld [vmem:[%s262 + $0x10] sm:$0xff]
    %v7214 = vld [vmem:[%s262 + $0x18] sm:$0xff]
    %v7215 = vld [vmem:[%s262 + $0x20] sm:$0xff]
    %v7217 = vsel %vm20, %v7206, 0
    %v7220 = vsel %vm20, %v7207, 0
    %v7223 = vsel %vm20, %v7208, 0
    %v7226 = vsel %vm20, %v7209, 0
    %v7229 = vsel %vm20, %v7210, 0
    %7231 = vmatpush.msra.mxu0 0.0
    %7232 = vmatpush.msra.mxu0 0.0
    %7233 = vmatpush.msra.mxu0 0.0
    %7234 = vmatpush.msra.mxu0 0.0
    %7235 = vmatpush.msra.mxu0 0.0
    %7236 = vmatpush.msra.mxu0 0.0
    %7237 = vmatpush.msra.mxu0 0.0
    %7238 = vmatpush.msra.mxu0 0.0
    %7239 = vmatpush.msra.mxu0 0.0
    %7240 = vmatpush.msra.mxu0 0.0
    %7241 = vmatpush.msra.mxu0 0.0
    %7242 = vmatpush.msra.mxu0 %v7215
    %7243 = vmatpush.msra.mxu0 %v7214
    %7244 = vmatpush.msra.mxu0 %v7213
    %7245 = vmatpush.msra.mxu0 %v7212
    %7246 = vmatpush.msra.mxu0 %v7211
    %7247 = vmatmul.f32.gmra.mxu0 %v7217
    %v7248 = vpop.f32.mrf.mxu0
    %v7249 = vadd.f32 0.0, %v7248
    %7250 = vmatmul.f32.gmra.mxu0 %v7220
    %v7251 = vpop.f32.mrf.mxu0
    %v7252 = vadd.f32 0.0, %v7251
    %7253 = vmatmul.f32.gmra.mxu0 %v7223
    %v7254 = vpop.f32.mrf.mxu0
    %v7255 = vadd.f32 0.0, %v7254
    %7256 = vmatmul.f32.gmra.mxu0 %v7226
    %v7257 = vpop.f32.mrf.mxu0
    %v7258 = vadd.f32 0.0, %v7257
    %7259 = vmatmul.f32.gmra.mxu0 %v7229
    %v7260 = vpop.f32.mrf.mxu0
    %v7261 = vadd.f32 0.0, %v7260
    %7262 = vdwg.mxu0
    %7263 = vst.msk [vmem:[%s132] sm:$0xff] %vm20, %v7249
    %7264 = vst.msk [vmem:[%s132 + $0x8] sm:$0xff] %vm20, %v7252
    %7265 = vst.msk [vmem:[%s132 + $0x10] sm:$0xff] %vm20, %v7255
    %7266 = vst.msk [vmem:[%s132 + $0x18] sm:$0xff] %vm20, %v7258
    %7267 = vst.msk [vmem:[%s132 + $0x20] sm:$0xff] %vm20, %v7261
    %v7268 = vld [vmem:[%s327] sm:$0xff]
    %v7269 = vld [vmem:[%s327 + $0x8] sm:$0xff]
    %v7270 = vld [vmem:[%s327 + $0x10] sm:$0xff]
    %v7271 = vld [vmem:[%s327 + $0x18] sm:$0xff]
    %v7272 = vld [vmem:[%s327 + $0x20] sm:$0xff]
    %v7273 = vld [vmem:[%s392] sm:$0xff]
    %v7274 = vld [vmem:[%s392 + $0x8] sm:$0xff]
    %v7275 = vld [vmem:[%s392 + $0x10] sm:$0xff]
    %v7276 = vld [vmem:[%s392 + $0x18] sm:$0xff]
    %v7277 = vld [vmem:[%s392 + $0x20] sm:$0xff]
    %v7279 = vsel %vm20, %v7268, 0
    %v7282 = vsel %vm20, %v7269, 0
    %v7285 = vsel %vm20, %v7270, 0
    %v7288 = vsel %vm20, %v7271, 0
    %v7291 = vsel %vm20, %v7272, 0
    %7293 = vmatpush.msra.mxu0 0.0
    %7294 = vmatpush.msra.mxu0 0.0
    %7295 = vmatpush.msra.mxu0 0.0
    %7296 = vmatpush.msra.mxu0 0.0
    %7297 = vmatpush.msra.mxu0 0.0
    %7298 = vmatpush.msra.mxu0 0.0
    %7299 = vmatpush.msra.mxu0 0.0
    %7300 = vmatpush.msra.mxu0 0.0
    %7301 = vmatpush.msra.mxu0 0.0
    %7302 = vmatpush.msra.mxu0 0.0
    %7303 = vmatpush.msra.mxu0 0.0
    %7304 = vmatpush.msra.mxu0 %v7277
    %7305 = vmatpush.msra.mxu0 %v7276
    %7306 = vmatpush.msra.mxu0 %v7275
    %7307 = vmatpush.msra.mxu0 %v7274
    %7308 = vmatpush.msra.mxu0 %v7273
    %7309 = vmatmul.f32.gmra.mxu0 %v7279
    %v7310 = vpop.f32.mrf.mxu0
    %v7311 = vadd.f32 0.0, %v7310
    %7312 = vmatmul.f32.gmra.mxu0 %v7282
    %v7313 = vpop.f32.mrf.mxu0
    %v7314 = vadd.f32 0.0, %v7313
    %7315 = vmatmul.f32.gmra.mxu0 %v7285
    %v7316 = vpop.f32.mrf.mxu0
    %v7317 = vadd.f32 0.0, %v7316
    %7318 = vmatmul.f32.gmra.mxu0 %v7288
    %v7319 = vpop.f32.mrf.mxu0
    %v7320 = vadd.f32 0.0, %v7319
    %7321 = vmatmul.f32.gmra.mxu0 %v7291
    %v7322 = vpop.f32.mrf.mxu0
    %v7323 = vadd.f32 0.0, %v7322
    %7324 = vdwg.mxu0
    %7325 = vst.msk [vmem:[%s197] sm:$0xff] %vm20, %v7311
    %7326 = vst.msk [vmem:[%s197 + $0x8] sm:$0xff] %vm20, %v7314
    %7327 = vst.msk [vmem:[%s197 + $0x10] sm:$0xff] %vm20, %v7317
    %7328 = vst.msk [vmem:[%s197 + $0x18] sm:$0xff] %vm20, %v7320
    %7329 = vst.msk [vmem:[%s197 + $0x20] sm:$0xff] %vm20, %v7323
    %v7330 = vld [vmem:[%s457] sm:$0xff]
    %v7331 = vld [vmem:[%s457 + $0x8] sm:$0xff]
    %v7332 = vld [vmem:[%s457 + $0x10] sm:$0xff]
    %v7333 = vld [vmem:[%s457 + $0x18] sm:$0xff]
    %v7334 = vld [vmem:[%s457 + $0x20] sm:$0xff]
    %v7335 = vld [vmem:[%s522] sm:$0xff]
    %v7336 = vld [vmem:[%s522 + $0x8] sm:$0xff]
    %v7337 = vld [vmem:[%s522 + $0x10] sm:$0xff]
    %v7338 = vld [vmem:[%s522 + $0x18] sm:$0xff]
    %v7339 = vld [vmem:[%s522 + $0x20] sm:$0xff]
    %v7341 = vsel %vm20, %v7330, 0
    %v7344 = vsel %vm20, %v7331, 0
    %v7347 = vsel %vm20, %v7332, 0
    %v7350 = vsel %vm20, %v7333, 0
    %v7353 = vsel %vm20, %v7334, 0
    %7355 = vmatpush.msra.mxu0 0.0
    %7356 = vmatpush.msra.mxu0 0.0
    %7357 = vmatpush.msra.mxu0 0.0
    %7358 = vmatpush.msra.mxu0 0.0
    %7359 = vmatpush.msra.mxu0 0.0
    %7360 = vmatpush.msra.mxu0 0.0
    %7361 = vmatpush.msra.mxu0 0.0
    %7362 = vmatpush.msra.mxu0 0.0
    %7363 = vmatpush.msra.mxu0 0.0
    %7364 = vmatpush.msra.mxu0 0.0
    %7365 = vmatpush.msra.mxu0 0.0
    %7366 = vmatpush.msra.mxu0 %v7339
    %7367 = vmatpush.msra.mxu0 %v7338
    %7368 = vmatpush.msra.mxu0 %v7337
    %7369 = vmatpush.msra.mxu0 %v7336
    %7370 = vmatpush.msra.mxu0 %v7335
    %7371 = vmatmul.f32.gmra.mxu0 %v7341
    %v7372 = vpop.f32.mrf.mxu0
    %v7373 = vadd.f32 0.0, %v7372
    %7374 = vmatmul.f32.gmra.mxu0 %v7344
    %v7375 = vpop.f32.mrf.mxu0
    %v7376 = vadd.f32 0.0, %v7375
    %7377 = vmatmul.f32.gmra.mxu0 %v7347
    %v7378 = vpop.f32.mrf.mxu0
    %v7379 = vadd.f32 0.0, %v7378
    %7380 = vmatmul.f32.gmra.mxu0 %v7350
    %v7381 = vpop.f32.mrf.mxu0
    %v7382 = vadd.f32 0.0, %v7381
    %7383 = vmatmul.f32.gmra.mxu0 %v7353
    %v7384 = vpop.f32.mrf.mxu0
    %v7385 = vadd.f32 0.0, %v7384
    %7386 = vdwg.mxu0
    %7387 = vst.msk [vmem:[%s262] sm:$0xff] %vm20, %v7373
    %7388 = vst.msk [vmem:[%s262 + $0x8] sm:$0xff] %vm20, %v7376
    %7389 = vst.msk [vmem:[%s262 + $0x10] sm:$0xff] %vm20, %v7379
    %7390 = vst.msk [vmem:[%s262 + $0x18] sm:$0xff] %vm20, %v7382
    %7391 = vst.msk [vmem:[%s262 + $0x20] sm:$0xff] %vm20, %v7385
    %v7392 = vld [vmem:[%s587] sm:$0xff]
    %v7393 = vld [vmem:[%s587 + $0x8] sm:$0xff]
    %v7394 = vld [vmem:[%s587 + $0x10] sm:$0xff]
    %v7395 = vld [vmem:[%s587 + $0x18] sm:$0xff]
    %v7396 = vld [vmem:[%s587 + $0x20] sm:$0xff]
    %v7397 = vld [vmem:[%s652] sm:$0xff]
    %v7398 = vld [vmem:[%s652 + $0x8] sm:$0xff]
    %v7399 = vld [vmem:[%s652 + $0x10] sm:$0xff]
    %v7400 = vld [vmem:[%s652 + $0x18] sm:$0xff]
    %v7401 = vld [vmem:[%s652 + $0x20] sm:$0xff]
    %v7403 = vsel %vm20, %v7392, 0
    %v7406 = vsel %vm20, %v7393, 0
    %v7409 = vsel %vm20, %v7394, 0
    %v7412 = vsel %vm20, %v7395, 0
    %v7415 = vsel %vm20, %v7396, 0
    %7417 = vmatpush.msra.mxu0 0.0
    %7418 = vmatpush.msra.mxu0 0.0
    %7419 = vmatpush.msra.mxu0 0.0
    %7420 = vmatpush.msra.mxu0 0.0
    %7421 = vmatpush.msra.mxu0 0.0
    %7422 = vmatpush.msra.mxu0 0.0
    %7423 = vmatpush.msra.mxu0 0.0
    %7424 = vmatpush.msra.mxu0 0.0
    %7425 = vmatpush.msra.mxu0 0.0
    %7426 = vmatpush.msra.mxu0 0.0
    %7427 = vmatpush.msra.mxu0 0.0
    %7428 = vmatpush.msra.mxu0 %v7401
    %7429 = vmatpush.msra.mxu0 %v7400
    %7430 = vmatpush.msra.mxu0 %v7399
    %7431 = vmatpush.msra.mxu0 %v7398
    %7432 = vmatpush.msra.mxu0 %v7397
    %7433 = vmatmul.f32.gmra.mxu0 %v7403
    %v7434 = vpop.f32.mrf.mxu0
    %v7435 = vadd.f32 0.0, %v7434
    %7436 = vmatmul.f32.gmra.mxu0 %v7406
    %v7437 = vpop.f32.mrf.mxu0
    %v7438 = vadd.f32 0.0, %v7437
    %7439 = vmatmul.f32.gmra.mxu0 %v7409
    %v7440 = vpop.f32.mrf.mxu0
    %v7441 = vadd.f32 0.0, %v7440
    %7442 = vmatmul.f32.gmra.mxu0 %v7412
    %v7443 = vpop.f32.mrf.mxu0
    %v7444 = vadd.f32 0.0, %v7443
    %7445 = vmatmul.f32.gmra.mxu0 %v7415
    %v7446 = vpop.f32.mrf.mxu0
    %v7447 = vadd.f32 0.0, %v7446
    %7448 = vdwg.mxu0
    %7449 = vst.msk [vmem:[%s327] sm:$0xff] %vm20, %v7435
    %7450 = vst.msk [vmem:[%s327 + $0x8] sm:$0xff] %vm20, %v7438
    %7451 = vst.msk [vmem:[%s327 + $0x10] sm:$0xff] %vm20, %v7441
    %7452 = vst.msk [vmem:[%s327 + $0x18] sm:$0xff] %vm20, %v7444
    %7453 = vst.msk [vmem:[%s327 + $0x20] sm:$0xff] %vm20, %v7447
    %v7454 = vld [vmem:[%s717] sm:$0xff]
    %v7455 = vld [vmem:[%s717 + $0x8] sm:$0xff]
    %v7456 = vld [vmem:[%s717 + $0x10] sm:$0xff]
    %v7457 = vld [vmem:[%s717 + $0x18] sm:$0xff]
    %v7458 = vld [vmem:[%s717 + $0x20] sm:$0xff]
    %v7459 = vld [vmem:[%s782] sm:$0xff]
    %v7460 = vld [vmem:[%s782 + $0x8] sm:$0xff]
    %v7461 = vld [vmem:[%s782 + $0x10] sm:$0xff]
    %v7462 = vld [vmem:[%s782 + $0x18] sm:$0xff]
    %v7463 = vld [vmem:[%s782 + $0x20] sm:$0xff]
    %v7465 = vsel %vm20, %v7454, 0
    %v7468 = vsel %vm20, %v7455, 0
    %v7471 = vsel %vm20, %v7456, 0
    %v7474 = vsel %vm20, %v7457, 0
    %v7477 = vsel %vm20, %v7458, 0
    %7479 = vmatpush.msra.mxu0 0.0
    %7480 = vmatpush.msra.mxu0 0.0
    %7481 = vmatpush.msra.mxu0 0.0
    %7482 = vmatpush.msra.mxu0 0.0
    %7483 = vmatpush.msra.mxu0 0.0
    %7484 = vmatpush.msra.mxu0 0.0
    %7485 = vmatpush.msra.mxu0 0.0
    %7486 = vmatpush.msra.mxu0 0.0
    %7487 = vmatpush.msra.mxu0 0.0
    %7488 = vmatpush.msra.mxu0 0.0
    %7489 = vmatpush.msra.mxu0 0.0
    %7490 = vmatpush.msra.mxu0 %v7463
    %7491 = vmatpush.msra.mxu0 %v7462
    %7492 = vmatpush.msra.mxu0 %v7461
    %7493 = vmatpush.msra.mxu0 %v7460
    %7494 = vmatpush.msra.mxu0 %v7459
    %7495 = vmatmul.f32.gmra.mxu0 %v7465
    %v7496 = vpop.f32.mrf.mxu0
    %v7497 = vadd.f32 0.0, %v7496
    %7498 = vmatmul.f32.gmra.mxu0 %v7468
    %v7499 = vpop.f32.mrf.mxu0
    %v7500 = vadd.f32 0.0, %v7499
    %7501 = vmatmul.f32.gmra.mxu0 %v7471
    %v7502 = vpop.f32.mrf.mxu0
    %v7503 = vadd.f32 0.0, %v7502
    %7504 = vmatmul.f32.gmra.mxu0 %v7474
    %v7505 = vpop.f32.mrf.mxu0
    %v7506 = vadd.f32 0.0, %v7505
    %7507 = vmatmul.f32.gmra.mxu0 %v7477
    %v7508 = vpop.f32.mrf.mxu0
    %v7509 = vadd.f32 0.0, %v7508
    %7510 = vdwg.mxu0
    %7511 = vst.msk [vmem:[%s392] sm:$0xff] %vm20, %v7497
    %7512 = vst.msk [vmem:[%s392 + $0x8] sm:$0xff] %vm20, %v7500
    %7513 = vst.msk [vmem:[%s392 + $0x10] sm:$0xff] %vm20, %v7503
    %7514 = vst.msk [vmem:[%s392 + $0x18] sm:$0xff] %vm20, %v7506
    %7515 = vst.msk [vmem:[%s392 + $0x20] sm:$0xff] %vm20, %v7509
    %v7516 = vld [vmem:[%s847] sm:$0xff]
    %v7517 = vld [vmem:[%s847 + $0x8] sm:$0xff]
    %v7518 = vld [vmem:[%s847 + $0x10] sm:$0xff]
    %v7519 = vld [vmem:[%s847 + $0x18] sm:$0xff]
    %v7520 = vld [vmem:[%s847 + $0x20] sm:$0xff]
    %v7521 = vld [vmem:[%s912] sm:$0xff]
    %v7522 = vld [vmem:[%s912 + $0x8] sm:$0xff]
    %v7523 = vld [vmem:[%s912 + $0x10] sm:$0xff]
    %v7524 = vld [vmem:[%s912 + $0x18] sm:$0xff]
    %v7525 = vld [vmem:[%s912 + $0x20] sm:$0xff]
    %v7527 = vsel %vm20, %v7516, 0
    %v7530 = vsel %vm20, %v7517, 0
    %v7533 = vsel %vm20, %v7518, 0
    %v7536 = vsel %vm20, %v7519, 0
    %v7539 = vsel %vm20, %v7520, 0
    %7541 = vmatpush.msra.mxu0 0.0
    %7542 = vmatpush.msra.mxu0 0.0
    %7543 = vmatpush.msra.mxu0 0.0
    %7544 = vmatpush.msra.mxu0 0.0
    %7545 = vmatpush.msra.mxu0 0.0
    %7546 = vmatpush.msra.mxu0 0.0
    %7547 = vmatpush.msra.mxu0 0.0
    %7548 = vmatpush.msra.mxu0 0.0
    %7549 = vmatpush.msra.mxu0 0.0
    %7550 = vmatpush.msra.mxu0 0.0
    %7551 = vmatpush.msra.mxu0 0.0
    %7552 = vmatpush.msra.mxu0 %v7525
    %7553 = vmatpush.msra.mxu0 %v7524
    %7554 = vmatpush.msra.mxu0 %v7523
    %7555 = vmatpush.msra.mxu0 %v7522
    %7556 = vmatpush.msra.mxu0 %v7521
    %7557 = vmatmul.f32.gmra.mxu0 %v7527
    %v7558 = vpop.f32.mrf.mxu0
    %v7559 = vadd.f32 0.0, %v7558
    %7560 = vmatmul.f32.gmra.mxu0 %v7530
    %v7561 = vpop.f32.mrf.mxu0
    %v7562 = vadd.f32 0.0, %v7561
    %7563 = vmatmul.f32.gmra.mxu0 %v7533
    %v7564 = vpop.f32.mrf.mxu0
    %v7565 = vadd.f32 0.0, %v7564
    %7566 = vmatmul.f32.gmra.mxu0 %v7536
    %v7567 = vpop.f32.mrf.mxu0
    %v7568 = vadd.f32 0.0, %v7567
    %7569 = vmatmul.f32.gmra.mxu0 %v7539
    %v7570 = vpop.f32.mrf.mxu0
    %v7571 = vadd.f32 0.0, %v7570
    %7572 = vdwg.mxu0
    %7573 = vst.msk [vmem:[%s457] sm:$0xff] %vm20, %v7559
    %7574 = vst.msk [vmem:[%s457 + $0x8] sm:$0xff] %vm20, %v7562
    %7575 = vst.msk [vmem:[%s457 + $0x10] sm:$0xff] %vm20, %v7565
    %7576 = vst.msk [vmem:[%s457 + $0x18] sm:$0xff] %vm20, %v7568
    %7577 = vst.msk [vmem:[%s457 + $0x20] sm:$0xff] %vm20, %v7571
    %v7578 = vld [vmem:[%s977] sm:$0xff]
    %v7579 = vld [vmem:[%s977 + $0x8] sm:$0xff]
    %v7580 = vld [vmem:[%s977 + $0x10] sm:$0xff]
    %v7581 = vld [vmem:[%s977 + $0x18] sm:$0xff]
    %v7582 = vld [vmem:[%s977 + $0x20] sm:$0xff]
    %v7583 = vld [vmem:[%s1042] sm:$0xff]
    %v7584 = vld [vmem:[%s1042 + $0x8] sm:$0xff]
    %v7585 = vld [vmem:[%s1042 + $0x10] sm:$0xff]
    %v7586 = vld [vmem:[%s1042 + $0x18] sm:$0xff]
    %v7587 = vld [vmem:[%s1042 + $0x20] sm:$0xff]
    %v7589 = vsel %vm20, %v7578, 0
    %v7592 = vsel %vm20, %v7579, 0
    %v7595 = vsel %vm20, %v7580, 0
    %v7598 = vsel %vm20, %v7581, 0
    %v7601 = vsel %vm20, %v7582, 0
    %7603 = vmatpush.msra.mxu0 0.0
    %7604 = vmatpush.msra.mxu0 0.0
    %7605 = vmatpush.msra.mxu0 0.0
    %7606 = vmatpush.msra.mxu0 0.0
    %7607 = vmatpush.msra.mxu0 0.0
    %7608 = vmatpush.msra.mxu0 0.0
    %7609 = vmatpush.msra.mxu0 0.0
    %7610 = vmatpush.msra.mxu0 0.0
    %7611 = vmatpush.msra.mxu0 0.0
    %7612 = vmatpush.msra.mxu0 0.0
    %7613 = vmatpush.msra.mxu0 0.0
    %7614 = vmatpush.msra.mxu0 %v7587
    %7615 = vmatpush.msra.mxu0 %v7586
    %7616 = vmatpush.msra.mxu0 %v7585
    %7617 = vmatpush.msra.mxu0 %v7584
    %7618 = vmatpush.msra.mxu0 %v7583
    %7619 = vmatmul.f32.gmra.mxu0 %v7589
    %v7620 = vpop.f32.mrf.mxu0
    %v7621 = vadd.f32 0.0, %v7620
    %7622 = vmatmul.f32.gmra.mxu0 %v7592
    %v7623 = vpop.f32.mrf.mxu0
    %v7624 = vadd.f32 0.0, %v7623
    %7625 = vmatmul.f32.gmra.mxu0 %v7595
    %v7626 = vpop.f32.mrf.mxu0
    %v7627 = vadd.f32 0.0, %v7626
    %7628 = vmatmul.f32.gmra.mxu0 %v7598
    %v7629 = vpop.f32.mrf.mxu0
    %v7630 = vadd.f32 0.0, %v7629
    %7631 = vmatmul.f32.gmra.mxu0 %v7601
    %v7632 = vpop.f32.mrf.mxu0
    %v7633 = vadd.f32 0.0, %v7632
    %7634 = vdwg.mxu0
    %7635 = vst.msk [vmem:[%s522] sm:$0xff] %vm20, %v7621
    %7636 = vst.msk [vmem:[%s522 + $0x8] sm:$0xff] %vm20, %v7624
    %7637 = vst.msk [vmem:[%s522 + $0x10] sm:$0xff] %vm20, %v7627
    %7638 = vst.msk [vmem:[%s522 + $0x18] sm:$0xff] %vm20, %v7630
    %7639 = vst.msk [vmem:[%s522 + $0x20] sm:$0xff] %vm20, %v7633
    %v7640 = vld [vmem:[#allocation2] sm:$0xff]
    %v7641 = vld [vmem:[#allocation2 + $0x8] sm:$0xff]
    %v7642 = vld [vmem:[#allocation2 + $0x10] sm:$0xff]
    %v7643 = vld [vmem:[#allocation2 + $0x18] sm:$0xff]
    %v7644 = vld [vmem:[#allocation2 + $0x20] sm:$0xff]
    %v7645 = vld [vmem:[%s132] sm:$0xff]
    %v7646 = vld [vmem:[%s132 + $0x8] sm:$0xff]
    %v7647 = vld [vmem:[%s132 + $0x10] sm:$0xff]
    %v7648 = vld [vmem:[%s132 + $0x18] sm:$0xff]
    %v7649 = vld [vmem:[%s132 + $0x20] sm:$0xff]
    %v7651 = vsel %vm20, %v7640, 0
    %v7654 = vsel %vm20, %v7641, 0
    %v7657 = vsel %vm20, %v7642, 0
    %v7660 = vsel %vm20, %v7643, 0
    %v7663 = vsel %vm20, %v7644, 0
    %7665 = vmatpush.msra.mxu0 0.0
    %7666 = vmatpush.msra.mxu0 0.0
    %7667 = vmatpush.msra.mxu0 0.0
    %7668 = vmatpush.msra.mxu0 0.0
    %7669 = vmatpush.msra.mxu0 0.0
    %7670 = vmatpush.msra.mxu0 0.0
    %7671 = vmatpush.msra.mxu0 0.0
    %7672 = vmatpush.msra.mxu0 0.0
    %7673 = vmatpush.msra.mxu0 0.0
    %7674 = vmatpush.msra.mxu0 0.0
    %7675 = vmatpush.msra.mxu0 0.0
    %7676 = vmatpush.msra.mxu0 %v7649
    %7677 = vmatpush.msra.mxu0 %v7648
    %7678 = vmatpush.msra.mxu0 %v7647
    %7679 = vmatpush.msra.mxu0 %v7646
    %7680 = vmatpush.msra.mxu0 %v7645
    %7681 = vmatmul.f32.gmra.mxu0 %v7651
    %v7682 = vpop.f32.mrf.mxu0
    %v7683 = vadd.f32 0.0, %v7682
    %7684 = vmatmul.f32.gmra.mxu0 %v7654
    %v7685 = vpop.f32.mrf.mxu0
    %v7686 = vadd.f32 0.0, %v7685
    %7687 = vmatmul.f32.gmra.mxu0 %v7657
    %v7688 = vpop.f32.mrf.mxu0
    %v7689 = vadd.f32 0.0, %v7688
    %7690 = vmatmul.f32.gmra.mxu0 %v7660
    %v7691 = vpop.f32.mrf.mxu0
    %v7692 = vadd.f32 0.0, %v7691
    %7693 = vmatmul.f32.gmra.mxu0 %v7663
    %v7694 = vpop.f32.mrf.mxu0
    %v7695 = vadd.f32 0.0, %v7694
    %7696 = vdwg.mxu0
    %7697 = vst.msk [vmem:[#allocation2] sm:$0xff] %vm20, %v7683
    %7698 = vst.msk [vmem:[#allocation2 + $0x8] sm:$0xff] %vm20, %v7686
    %7699 = vst.msk [vmem:[#allocation2 + $0x10] sm:$0xff] %vm20, %v7689
    %7700 = vst.msk [vmem:[#allocation2 + $0x18] sm:$0xff] %vm20, %v7692
    %7701 = vst.msk [vmem:[#allocation2 + $0x20] sm:$0xff] %vm20, %v7695
    %v7702 = vld [vmem:[%s197] sm:$0xff]
    %v7703 = vld [vmem:[%s197 + $0x8] sm:$0xff]
    %v7704 = vld [vmem:[%s197 + $0x10] sm:$0xff]
    %v7705 = vld [vmem:[%s197 + $0x18] sm:$0xff]
    %v7706 = vld [vmem:[%s197 + $0x20] sm:$0xff]
    %v7707 = vld [vmem:[%s262] sm:$0xff]
    %v7708 = vld [vmem:[%s262 + $0x8] sm:$0xff]
    %v7709 = vld [vmem:[%s262 + $0x10] sm:$0xff]
    %v7710 = vld [vmem:[%s262 + $0x18] sm:$0xff]
    %v7711 = vld [vmem:[%s262 + $0x20] sm:$0xff]
    %v7713 = vsel %vm20, %v7702, 0
    %v7716 = vsel %vm20, %v7703, 0
    %v7719 = vsel %vm20, %v7704, 0
    %v7722 = vsel %vm20, %v7705, 0
    %v7725 = vsel %vm20, %v7706, 0
    %7727 = vmatpush.msra.mxu0 0.0
    %7728 = vmatpush.msra.mxu0 0.0
    %7729 = vmatpush.msra.mxu0 0.0
    %7730 = vmatpush.msra.mxu0 0.0
    %7731 = vmatpush.msra.mxu0 0.0
    %7732 = vmatpush.msra.mxu0 0.0
    %7733 = vmatpush.msra.mxu0 0.0
    %7734 = vmatpush.msra.mxu0 0.0
    %7735 = vmatpush.msra.mxu0 0.0
    %7736 = vmatpush.msra.mxu0 0.0
    %7737 = vmatpush.msra.mxu0 0.0
    %7738 = vmatpush.msra.mxu0 %v7711
    %7739 = vmatpush.msra.mxu0 %v7710
    %7740 = vmatpush.msra.mxu0 %v7709
    %7741 = vmatpush.msra.mxu0 %v7708
    %7742 = vmatpush.msra.mxu0 %v7707
    %7743 = vmatmul.f32.gmra.mxu0 %v7713
    %v7744 = vpop.f32.mrf.mxu0
    %v7745 = vadd.f32 0.0, %v7744
    %7746 = vmatmul.f32.gmra.mxu0 %v7716
    %v7747 = vpop.f32.mrf.mxu0
    %v7748 = vadd.f32 0.0, %v7747
    %7749 = vmatmul.f32.gmra.mxu0 %v7719
    %v7750 = vpop.f32.mrf.mxu0
    %v7751 = vadd.f32 0.0, %v7750
    %7752 = vmatmul.f32.gmra.mxu0 %v7722
    %v7753 = vpop.f32.mrf.mxu0
    %v7754 = vadd.f32 0.0, %v7753
    %7755 = vmatmul.f32.gmra.mxu0 %v7725
    %v7756 = vpop.f32.mrf.mxu0
    %v7757 = vadd.f32 0.0, %v7756
    %7758 = vdwg.mxu0
    %7759 = vst.msk [vmem:[%s132] sm:$0xff] %vm20, %v7745
    %7760 = vst.msk [vmem:[%s132 + $0x8] sm:$0xff] %vm20, %v7748
    %7761 = vst.msk [vmem:[%s132 + $0x10] sm:$0xff] %vm20, %v7751
    %7762 = vst.msk [vmem:[%s132 + $0x18] sm:$0xff] %vm20, %v7754
    %7763 = vst.msk [vmem:[%s132 + $0x20] sm:$0xff] %vm20, %v7757
    %v7764 = vld [vmem:[%s327] sm:$0xff]
    %v7765 = vld [vmem:[%s327 + $0x8] sm:$0xff]
    %v7766 = vld [vmem:[%s327 + $0x10] sm:$0xff]
    %v7767 = vld [vmem:[%s327 + $0x18] sm:$0xff]
    %v7768 = vld [vmem:[%s327 + $0x20] sm:$0xff]
    %v7769 = vld [vmem:[%s392] sm:$0xff]
    %v7770 = vld [vmem:[%s392 + $0x8] sm:$0xff]
    %v7771 = vld [vmem:[%s392 + $0x10] sm:$0xff]
    %v7772 = vld [vmem:[%s392 + $0x18] sm:$0xff]
    %v7773 = vld [vmem:[%s392 + $0x20] sm:$0xff]
    %v7775 = vsel %vm20, %v7764, 0
    %v7778 = vsel %vm20, %v7765, 0
    %v7781 = vsel %vm20, %v7766, 0
    %v7784 = vsel %vm20, %v7767, 0
    %v7787 = vsel %vm20, %v7768, 0
    %7789 = vmatpush.msra.mxu0 0.0
    %7790 = vmatpush.msra.mxu0 0.0
    %7791 = vmatpush.msra.mxu0 0.0
    %7792 = vmatpush.msra.mxu0 0.0
    %7793 = vmatpush.msra.mxu0 0.0
    %7794 = vmatpush.msra.mxu0 0.0
    %7795 = vmatpush.msra.mxu0 0.0
    %7796 = vmatpush.msra.mxu0 0.0
    %7797 = vmatpush.msra.mxu0 0.0
    %7798 = vmatpush.msra.mxu0 0.0
    %7799 = vmatpush.msra.mxu0 0.0
    %7800 = vmatpush.msra.mxu0 %v7773
    %7801 = vmatpush.msra.mxu0 %v7772
    %7802 = vmatpush.msra.mxu0 %v7771
    %7803 = vmatpush.msra.mxu0 %v7770
    %7804 = vmatpush.msra.mxu0 %v7769
    %7805 = vmatmul.f32.gmra.mxu0 %v7775
    %v7806 = vpop.f32.mrf.mxu0
    %v7807 = vadd.f32 0.0, %v7806
    %7808 = vmatmul.f32.gmra.mxu0 %v7778
    %v7809 = vpop.f32.mrf.mxu0
    %v7810 = vadd.f32 0.0, %v7809
    %7811 = vmatmul.f32.gmra.mxu0 %v7781
    %v7812 = vpop.f32.mrf.mxu0
    %v7813 = vadd.f32 0.0, %v7812
    %7814 = vmatmul.f32.gmra.mxu0 %v7784
    %v7815 = vpop.f32.mrf.mxu0
    %v7816 = vadd.f32 0.0, %v7815
    %7817 = vmatmul.f32.gmra.mxu0 %v7787
    %v7818 = vpop.f32.mrf.mxu0
    %v7819 = vadd.f32 0.0, %v7818
    %7820 = vdwg.mxu0
    %7821 = vst.msk [vmem:[%s197] sm:$0xff] %vm20, %v7807
    %7822 = vst.msk [vmem:[%s197 + $0x8] sm:$0xff] %vm20, %v7810
    %7823 = vst.msk [vmem:[%s197 + $0x10] sm:$0xff] %vm20, %v7813
    %7824 = vst.msk [vmem:[%s197 + $0x18] sm:$0xff] %vm20, %v7816
    %7825 = vst.msk [vmem:[%s197 + $0x20] sm:$0xff] %vm20, %v7819
    %v7826 = vld [vmem:[%s457] sm:$0xff]
    %v7827 = vld [vmem:[%s457 + $0x8] sm:$0xff]
    %v7828 = vld [vmem:[%s457 + $0x10] sm:$0xff]
    %v7829 = vld [vmem:[%s457 + $0x18] sm:$0xff]
    %v7830 = vld [vmem:[%s457 + $0x20] sm:$0xff]
    %v7831 = vld [vmem:[%s522] sm:$0xff]
    %v7832 = vld [vmem:[%s522 + $0x8] sm:$0xff]
    %v7833 = vld [vmem:[%s522 + $0x10] sm:$0xff]
    %v7834 = vld [vmem:[%s522 + $0x18] sm:$0xff]
    %v7835 = vld [vmem:[%s522 + $0x20] sm:$0xff]
    %v7837 = vsel %vm20, %v7826, 0
    %v7840 = vsel %vm20, %v7827, 0
    %v7843 = vsel %vm20, %v7828, 0
    %v7846 = vsel %vm20, %v7829, 0
    %v7849 = vsel %vm20, %v7830, 0
    %7851 = vmatpush.msra.mxu0 0.0
    %7852 = vmatpush.msra.mxu0 0.0
    %7853 = vmatpush.msra.mxu0 0.0
    %7854 = vmatpush.msra.mxu0 0.0
    %7855 = vmatpush.msra.mxu0 0.0
    %7856 = vmatpush.msra.mxu0 0.0
    %7857 = vmatpush.msra.mxu0 0.0
    %7858 = vmatpush.msra.mxu0 0.0
    %7859 = vmatpush.msra.mxu0 0.0
    %7860 = vmatpush.msra.mxu0 0.0
    %7861 = vmatpush.msra.mxu0 0.0
    %7862 = vmatpush.msra.mxu0 %v7835
    %7863 = vmatpush.msra.mxu0 %v7834
    %7864 = vmatpush.msra.mxu0 %v7833
    %7865 = vmatpush.msra.mxu0 %v7832
    %7866 = vmatpush.msra.mxu0 %v7831
    %7867 = vmatmul.f32.gmra.mxu0 %v7837
    %v7868 = vpop.f32.mrf.mxu0
    %v7869 = vadd.f32 0.0, %v7868
    %7870 = vmatmul.f32.gmra.mxu0 %v7840
    %v7871 = vpop.f32.mrf.mxu0
    %v7872 = vadd.f32 0.0, %v7871
    %7873 = vmatmul.f32.gmra.mxu0 %v7843
    %v7874 = vpop.f32.mrf.mxu0
    %v7875 = vadd.f32 0.0, %v7874
    %7876 = vmatmul.f32.gmra.mxu0 %v7846
    %v7877 = vpop.f32.mrf.mxu0
    %v7878 = vadd.f32 0.0, %v7877
    %7879 = vmatmul.f32.gmra.mxu0 %v7849
    %v7880 = vpop.f32.mrf.mxu0
    %v7881 = vadd.f32 0.0, %v7880
    %7882 = vdwg.mxu0
    %7883 = vst.msk [vmem:[%s262] sm:$0xff] %vm20, %v7869
    %7884 = vst.msk [vmem:[%s262 + $0x8] sm:$0xff] %vm20, %v7872
    %7885 = vst.msk [vmem:[%s262 + $0x10] sm:$0xff] %vm20, %v7875
    %7886 = vst.msk [vmem:[%s262 + $0x18] sm:$0xff] %vm20, %v7878
    %7887 = vst.msk [vmem:[%s262 + $0x20] sm:$0xff] %vm20, %v7881
    %v7888 = vld [vmem:[#allocation2] sm:$0xff]
    %v7889 = vld [vmem:[#allocation2 + $0x8] sm:$0xff]
    %v7890 = vld [vmem:[#allocation2 + $0x10] sm:$0xff]
    %v7891 = vld [vmem:[#allocation2 + $0x18] sm:$0xff]
    %v7892 = vld [vmem:[#allocation2 + $0x20] sm:$0xff]
    %v7893 = vld [vmem:[%s132] sm:$0xff]
    %v7894 = vld [vmem:[%s132 + $0x8] sm:$0xff]
    %v7895 = vld [vmem:[%s132 + $0x10] sm:$0xff]
    %v7896 = vld [vmem:[%s132 + $0x18] sm:$0xff]
    %v7897 = vld [vmem:[%s132 + $0x20] sm:$0xff]
    %v7899 = vsel %vm20, %v7888, 0
    %v7902 = vsel %vm20, %v7889, 0
    %v7905 = vsel %vm20, %v7890, 0
    %v7908 = vsel %vm20, %v7891, 0
    %v7911 = vsel %vm20, %v7892, 0
    %7913 = vmatpush.msra.mxu0 0.0
    %7914 = vmatpush.msra.mxu0 0.0
    %7915 = vmatpush.msra.mxu0 0.0
    %7916 = vmatpush.msra.mxu0 0.0
    %7917 = vmatpush.msra.mxu0 0.0
    %7918 = vmatpush.msra.mxu0 0.0
    %7919 = vmatpush.msra.mxu0 0.0
    %7920 = vmatpush.msra.mxu0 0.0
    %7921 = vmatpush.msra.mxu0 0.0
    %7922 = vmatpush.msra.mxu0 0.0
    %7923 = vmatpush.msra.mxu0 0.0
    %7924 = vmatpush.msra.mxu0 %v7897
    %7925 = vmatpush.msra.mxu0 %v7896
    %7926 = vmatpush.msra.mxu0 %v7895
    %7927 = vmatpush.msra.mxu0 %v7894
    %7928 = vmatpush.msra.mxu0 %v7893
    %7929 = vmatmul.f32.gmra.mxu0 %v7899
    %v7930 = vpop.f32.mrf.mxu0
    %v7931 = vadd.f32 0.0, %v7930
    %7932 = vmatmul.f32.gmra.mxu0 %v7902
    %v7933 = vpop.f32.mrf.mxu0
    %v7934 = vadd.f32 0.0, %v7933
    %7935 = vmatmul.f32.gmra.mxu0 %v7905
    %v7936 = vpop.f32.mrf.mxu0
    %v7937 = vadd.f32 0.0, %v7936
    %7938 = vmatmul.f32.gmra.mxu0 %v7908
    %v7939 = vpop.f32.mrf.mxu0
    %v7940 = vadd.f32 0.0, %v7939
    %7941 = vmatmul.f32.gmra.mxu0 %v7911
    %v7942 = vpop.f32.mrf.mxu0
    %v7943 = vadd.f32 0.0, %v7942
    %7944 = vdwg.mxu0
    %7945 = vst.msk [vmem:[#allocation2] sm:$0xff] %vm20, %v7931
    %7946 = vst.msk [vmem:[#allocation2 + $0x8] sm:$0xff] %vm20, %v7934
    %7947 = vst.msk [vmem:[#allocation2 + $0x10] sm:$0xff] %vm20, %v7937
    %7948 = vst.msk [vmem:[#allocation2 + $0x18] sm:$0xff] %vm20, %v7940
    %7949 = vst.msk [vmem:[#allocation2 + $0x20] sm:$0xff] %vm20, %v7943
    %v7950 = vld [vmem:[%s197] sm:$0xff]
    %v7951 = vld [vmem:[%s197 + $0x8] sm:$0xff]
    %v7952 = vld [vmem:[%s197 + $0x10] sm:$0xff]
    %v7953 = vld [vmem:[%s197 + $0x18] sm:$0xff]
    %v7954 = vld [vmem:[%s197 + $0x20] sm:$0xff]
    %v7955 = vld [vmem:[%s262] sm:$0xff]
    %v7956 = vld [vmem:[%s262 + $0x8] sm:$0xff]
    %v7957 = vld [vmem:[%s262 + $0x10] sm:$0xff]
    %v7958 = vld [vmem:[%s262 + $0x18] sm:$0xff]
    %v7959 = vld [vmem:[%s262 + $0x20] sm:$0xff]
    %v7961 = vsel %vm20, %v7950, 0
    %v7964 = vsel %vm20, %v7951, 0
    %v7967 = vsel %vm20, %v7952, 0
    %v7970 = vsel %vm20, %v7953, 0
    %v7973 = vsel %vm20, %v7954, 0
    %7975 = vmatpush.msra.mxu0 0.0
    %7976 = vmatpush.msra.mxu0 0.0
    %7977 = vmatpush.msra.mxu0 0.0
    %7978 = vmatpush.msra.mxu0 0.0
    %7979 = vmatpush.msra.mxu0 0.0
    %7980 = vmatpush.msra.mxu0 0.0
    %7981 = vmatpush.msra.mxu0 0.0
    %7982 = vmatpush.msra.mxu0 0.0
    %7983 = vmatpush.msra.mxu0 0.0
    %7984 = vmatpush.msra.mxu0 0.0
    %7985 = vmatpush.msra.mxu0 0.0
    %7986 = vmatpush.msra.mxu0 %v7959
    %7987 = vmatpush.msra.mxu0 %v7958
    %7988 = vmatpush.msra.mxu0 %v7957
    %7989 = vmatpush.msra.mxu0 %v7956
    %7990 = vmatpush.msra.mxu0 %v7955
    %7991 = vmatmul.f32.gmra.mxu0 %v7961
    %v7992 = vpop.f32.mrf.mxu0
    %v7993 = vadd.f32 0.0, %v7992
    %7994 = vmatmul.f32.gmra.mxu0 %v7964
    %v7995 = vpop.f32.mrf.mxu0
    %v7996 = vadd.f32 0.0, %v7995
    %7997 = vmatmul.f32.gmra.mxu0 %v7967
    %v7998 = vpop.f32.mrf.mxu0
    %v7999 = vadd.f32 0.0, %v7998
    %8000 = vmatmul.f32.gmra.mxu0 %v7970
    %v8001 = vpop.f32.mrf.mxu0
    %v8002 = vadd.f32 0.0, %v8001
    %8003 = vmatmul.f32.gmra.mxu0 %v7973
    %v8004 = vpop.f32.mrf.mxu0
    %v8005 = vadd.f32 0.0, %v8004
    %8006 = vdwg.mxu0
    %8007 = vst.msk [vmem:[%s132] sm:$0xff] %vm20, %v7993
    %8008 = vst.msk [vmem:[%s132 + $0x8] sm:$0xff] %vm20, %v7996
    %8009 = vst.msk [vmem:[%s132 + $0x10] sm:$0xff] %vm20, %v7999
    %8010 = vst.msk [vmem:[%s132 + $0x18] sm:$0xff] %vm20, %v8002
    %8011 = vst.msk [vmem:[%s132 + $0x20] sm:$0xff] %vm20, %v8005
    %v8012 = vld [vmem:[#allocation2] sm:$0xff]
    %v8013 = vld [vmem:[#allocation2 + $0x8] sm:$0xff]
    %v8014 = vld [vmem:[#allocation2 + $0x10] sm:$0xff]
    %v8015 = vld [vmem:[#allocation2 + $0x18] sm:$0xff]
    %v8016 = vld [vmem:[#allocation2 + $0x20] sm:$0xff]
    %v8017 = vld [vmem:[%s132] sm:$0xff]
    %v8018 = vld [vmem:[%s132 + $0x8] sm:$0xff]
    %v8019 = vld [vmem:[%s132 + $0x10] sm:$0xff]
    %v8020 = vld [vmem:[%s132 + $0x18] sm:$0xff]
    %v8021 = vld [vmem:[%s132 + $0x20] sm:$0xff]
    %v8023 = vsel %vm20, %v8012, 0
    %v8026 = vsel %vm20, %v8013, 0
    %v8029 = vsel %vm20, %v8014, 0
    %v8032 = vsel %vm20, %v8015, 0
    %v8035 = vsel %vm20, %v8016, 0
    %8037 = vmatpush.msra.mxu0 0.0
    %8038 = vmatpush.msra.mxu0 0.0
    %8039 = vmatpush.msra.mxu0 0.0
    %8040 = vmatpush.msra.mxu0 0.0
    %8041 = vmatpush.msra.mxu0 0.0
    %8042 = vmatpush.msra.mxu0 0.0
    %8043 = vmatpush.msra.mxu0 0.0
    %8044 = vmatpush.msra.mxu0 0.0
    %8045 = vmatpush.msra.mxu0 0.0
    %8046 = vmatpush.msra.mxu0 0.0
    %8047 = vmatpush.msra.mxu0 0.0
    %8048 = vmatpush.msra.mxu0 %v8021
    %8049 = vmatpush.msra.mxu0 %v8020
    %8050 = vmatpush.msra.mxu0 %v8019
    %8051 = vmatpush.msra.mxu0 %v8018
    %8052 = vmatpush.msra.mxu0 %v8017
    %8053 = vmatmul.f32.gmra.mxu0 %v8023
    %v8054 = vpop.f32.mrf.mxu0
    %v8055 = vadd.f32 0.0, %v8054
    %8056 = vmatmul.f32.gmra.mxu0 %v8026
    %v8057 = vpop.f32.mrf.mxu0
    %v8058 = vadd.f32 0.0, %v8057
    %8059 = vmatmul.f32.gmra.mxu0 %v8029
    %v8060 = vpop.f32.mrf.mxu0
    %v8061 = vadd.f32 0.0, %v8060
    %8062 = vmatmul.f32.gmra.mxu0 %v8032
    %v8063 = vpop.f32.mrf.mxu0
    %v8064 = vadd.f32 0.0, %v8063
    %8065 = vmatmul.f32.gmra.mxu0 %v8035
    %v8066 = vpop.f32.mrf.mxu0
    %v8067 = vadd.f32 0.0, %v8066
    %8068 = vdwg.mxu0
    %8069 = vst.msk [vmem:[#allocation2] sm:$0xff] %vm20, %v8055
    %8070 = vst.msk [vmem:[#allocation2 + $0x8] sm:$0xff] %vm20, %v8058
    %8071 = vst.msk [vmem:[#allocation2 + $0x10] sm:$0xff] %vm20, %v8061
    %8072 = vst.msk [vmem:[#allocation2 + $0x18] sm:$0xff] %vm20, %v8064
    %8073 = vst.msk [vmem:[#allocation2 + $0x20] sm:$0xff] %vm20, %v8067
    %v8074 = vld [vmem:[#allocation2] sm:$0xff]
    %v8075 = vld [vmem:[#allocation2 + $0x8] sm:$0xff]
    %v8076 = vld [vmem:[#allocation2 + $0x10] sm:$0xff]
    %v8077 = vld [vmem:[#allocation2 + $0x18] sm:$0xff]
    %v8078 = vld [vmem:[#allocation2 + $0x20] sm:$0xff]
    %8079 = vst.msk [vmem:[#allocation3] sm:$0xff] %vm20, %v8074
    %8080 = vst.msk [vmem:[#allocation3 + $0x8] sm:$0xff] %vm20, %v8075
    %8081 = vst.msk [vmem:[#allocation3 + $0x10] sm:$0xff] %vm20, %v8076
    %8082 = vst.msk [vmem:[#allocation3 + $0x18] sm:$0xff] %vm20, %v8077
    %8083 = vst.msk [vmem:[#allocation3 + $0x20] sm:$0xff] %vm20, %v8078
    // Predicated region
    $region6: #{compose_affine_pallas.1} parent=1 // pred_check
      _
    $region7: #{compose_affine_pallas.1} parent=1 // pred_check_branch
      %8085 = sbr.rel (0) target = $region9
    $region8: #{compose_affine_pallas.1} parent=1 // pred_region
      %8087 = vsyncadd [#allocation4], 0
      %s8088 = sshll.u32 [#allocation3], 4
      %s8089 = int_to_ptr.vmem [resolvable:$true] %s8088
      %s8090 = sshll.u32 %s1, 4
      %s8091 = int_to_ptr.hbm [resolvable:$true] %s8090
      %8096 = dma.vmem_to_hbm [thread:$0]  %s8089, 640, %s8091, [#allocation4], 128, 128, 8
    $region9: #{compose_affine_pallas.1} parent=1 // pred_fallthru
      _
    // Predicated region
    $region10: #{compose_affine_pallas.1} parent=1 // pred_check
      _
    $region11: #{compose_affine_pallas.1} parent=1 // pred_check_branch
      %8098 = sbr.rel (0) target = $region13
    $region12: #{compose_affine_pallas.1} parent=1 // pred_region
      %8100 = dma.done [#allocation4], 640
    $region13: #{compose_affine_pallas.1} parent=1 // pred_fallthru
      _
    %8101 = vsyncpa [#allocation4], 1

</llo_original>
